<compile_context>
chip_gen: v7x
topology: tpu7x:2x2x1
jax: 0.10.0
libtpu: 0.0.40
codegen_flags: <defaults>
</compile_context>

<pallas_src>
import jax
import jax.numpy as jnp
from jax.experimental import pallas as pl
from jax.experimental.pallas import tpu as pltpu


# Geometry this model is defined for (fc expects 8*8*32 => 16x16 input).
H = W = 16            # input spatial size
WP = W + 2            # padded row length (pad=1 each side)
L = H * WP            # flattened stride-1 output length = 288 (lane dim)
XL = L + 2 * WP + 2   # padded+flattened activation length = 326 (covers shift 2*WP+2)
HO = WO = H // 2      # layer2 (stride 2) output spatial = 8
NFEAT = HO * WO       # 64 pixels after layer2


# ------------------------------- Pallas kernel -------------------------------

def _fused_kernel(xp_ref, mask_ref,
                  w1_ref, b1_ref, w2_ref, b2_ref, w3_ref, b3_ref,
                  sel_ref, wfc_ref, fcb_ref, o_ref):
    """Whole forward pass for one image, entirely in VMEM.

    xp_ref  : (1, 3, XL)   zero-padded, row-flattened input image
    mask_ref: (1, L)       1.0 on valid pixel lanes, 0.0 on wrap-around lanes
    w*_ref  : (9, Cout, Cin) conv weights (BN scale folded), per (kh,kw) tap
    b*_ref  : (Cout, 1)    folded conv+BN bias
    sel_ref : (L, 64)      0/1 matrix selecting the stride-2 8x8 output pixels
    wfc_ref : (10, 32, 64) fc weight reshaped to [class, channel, 8h+w]
    fcb_ref : (1, 10)      fc bias
    o_ref   : (1, 1, 10)   logits
    """
    f32 = jnp.float32

    def conv_bn_relu(xpad, w_ref, b_ref):
        # 3x3 conv as 9 accumulated matmuls over shifted lane-slices.
        acc = None
        for kh in range(3):
            for kw in range(3):
                off = kh * WP + kw
                t = jnp.dot(w_ref[3 * kh + kw], xpad[:, off:off + L],
                            preferred_element_type=f32)
                acc = t if acc is None else acc + t
        return jnp.maximum(acc + b_ref[...], 0.0)              # (Cout, L)

    def repad(y):
        # Zero the wrap-around lanes, then re-embed as the next layer's
        # zero-padded flattened input (shift by WP+1 = one padded row + 1 col).
        y = y * mask_ref[...]                                  # (C, L)
        z = jnp.zeros((y.shape[0], WP + 1), f32)
        return jnp.concatenate([z, y, z], axis=1)              # (C, XL)

    x0 = xp_ref[0]                                             # (3, XL)
    y1 = conv_bn_relu(x0, w1_ref, b1_ref)                      # conv1+bn1+relu (16, L)
    y2 = conv_bn_relu(repad(y1), w2_ref, b2_ref)               # layer1         (16, L)
    y3 = conv_bn_relu(repad(y2), w3_ref, b3_ref)               # layer2 @ stride1 (32, L)

    # Stride-2 subsample + adaptive_avg_pool2d((8,8)) (identity here) via a
    # 0/1 selection matmul: feat[c, 8h+w] = y3[c, 36h+2w].
    feat = jnp.dot(y3, sel_ref[...], preferred_element_type=f32)   # (32, 64)

    # fc over torch.flatten(NCHW) order: out[k] = sum_{c,p} Wfc[k,c,p]*feat[c,p].
    ncls = wfc_ref.shape[0]
    cols = []
    for k in range(ncls):
        cols.append(jnp.sum(wfc_ref[k] * feat, axis=1, keepdims=True))   # (32, 1)
    per_chan = jnp.concatenate(cols, axis=1)                             # (32, 10)
    out = jnp.sum(per_chan, axis=0, keepdims=True) + fcb_ref[...]        # (1, 10)
    o_ref[...] = out.reshape(o_ref.shape).astype(o_ref.dtype)


# ------------------------------ JAX wrapper ----------------------------------

def _fold_conv_bn(w_oihw, conv_b, bn, eps=1e-5):
    """Fold eval-mode BatchNorm into conv weights/bias; reshape to (9, O, I)."""
    gamma, beta, mean, var = bn
    scale = gamma / jnp.sqrt(var + eps)
    w = w_oihw * scale[:, None, None, None]
    b = (conv_b - mean) * scale + beta
    cout, cin = w.shape[0], w.shape[1]
    w9 = jnp.transpose(w, (2, 3, 0, 1)).reshape(9, cout, cin)  # [3*kh+kw, o, i]
    return w9.astype(jnp.float32), b.reshape(cout, 1).astype(jnp.float32)


@jax.jit
def simple_vision_model(x_nchw, params):
    N, cin, hx, wx = x_nchw.shape
    assert (cin, hx, wx) == (3, H, W), "kernel is specialized to 3x16x16 inputs"

    # --- cheap layout prep (a handful of tiny XLA ops, fused under jit) ---
    xp = jnp.pad(x_nchw.astype(jnp.float32), ((0, 0), (0, 0), (1, 1), (1, 1)))
    xp = xp.reshape(N, 3, WP * (H + 2))
    xp = jnp.pad(xp, ((0, 0), (0, 0), (0, XL - WP * (H + 2))))      # (N, 3, XL)

    lanes = jnp.arange(L, dtype=jnp.int32)
    mask = ((lanes % WP) < W).astype(jnp.float32).reshape(1, L)     # valid lanes

    jj = jnp.arange(NFEAT, dtype=jnp.int32)
    src = 2 * WP * (jj // WO) + 2 * (jj % WO)                       # lane of pixel (h,w)
    sel = (lanes[:, None] == src[None, :]).astype(jnp.float32)      # (L, 64)

    w1, b1 = _fold_conv_bn(params["conv1_w"], params["conv1_b"], params["bn1"])
    w2, b2 = _fold_conv_bn(params["l1_w"], params["l1_b"], params["l1_bn"])
    w3, b3 = _fold_conv_bn(params["l2_w"], params["l2_b"], params["l2_bn"])

    ncls = params["fc_w"].shape[0]
    wfc = params["fc_w"].reshape(ncls, 32, NFEAT).astype(jnp.float32)  # [k, c, 8h+w]
    fcb = params["fc_b"].reshape(1, ncls).astype(jnp.float32)

    def const_spec(a):
        if a.ndim == 2:
            return pl.BlockSpec(a.shape, lambda n: (0, 0))
        return pl.BlockSpec(a.shape, lambda n: (0, 0, 0))

    out = pl.pallas_call(
        _fused_kernel,
        out_shape=jax.ShapeDtypeStruct((N, 1, ncls), jnp.float32),
        grid=(N,),
        in_specs=[
            pl.BlockSpec((1, 3, XL), lambda n: (n, 0, 0)),
            const_spec(mask),
            const_spec(w1), const_spec(b1),
            const_spec(w2), const_spec(b2),
            const_spec(w3), const_spec(b3),
            const_spec(sel), const_spec(wfc), const_spec(fcb),
        ],
        out_specs=pl.BlockSpec((1, 1, ncls), lambda n: (n, 0, 0)),
        compiler_params=pltpu.CompilerParams(
            dimension_semantics=("parallel",)),   # split batch across TCs on v7x
    )(xp, mask, w1, b1, w2, b2, w3, b3, sel, wfc, fcb)

    return out[:, 0, :]


# ------------------------- pure-JAX reference (check) -------------------------

def _reference(x, params, eps=1e-5):
    def block(x, w, b, bn, stride):
        gamma, beta, mean, var = bn
        y = jax.lax.conv_general_dilated(
            x, w, (stride, stride), ((1, 1), (1, 1)),
            dimension_numbers=("NCHW", "OIHW", "NCHW"))
        y = y + b[None, :, None, None]
        y = (y - mean[None, :, None, None]) / jnp.sqrt(var[None, :, None, None] + eps)
        y = y * gamma[None, :, None, None] + beta[None, :, None, None]
        return jnp.maximum(y, 0.0)

    x = block(x, params["conv1_w"], params["conv1_b"], params["bn1"], 1)
    x = block(x, params["l1_w"], params["l1_b"], params["l1_bn"], 1)
    x = block(x, params["l2_w"], params["l2_b"], params["l2_bn"], 2)
    x = x.reshape(x.shape[0], -1)               # adaptive pool on 8x8 is identity
    return x @ params["fc_w"].T + params["fc_b"]


# ----------------------------------- main ------------------------------------

if __name__ == "__main__":
    key = jax.random.PRNGKey(0)
    ks = jax.random.split(key, 12)

    def init_bn(k, c):
        k1, k2, k3, k4 = jax.random.split(k, 4)
        return (1.0 + 0.1 * jax.random.normal(k1, (c,), jnp.float32),
                0.1 * jax.random.normal(k2, (c,), jnp.float32),
                0.1 * jax.random.normal(k3, (c,), jnp.float32),
                1.0 + 0.1 * jax.random.uniform(k4, (c,), jnp.float32))

    params = {
        # conv weights kept in PyTorch OIHW layout; folding/reshaping in wrapper
        "conv1_w": 0.1 * jax.random.normal(ks[0], (16, 3, 3, 3), jnp.float32),
        "conv1_b": 0.1 * jax.random.normal(ks[1], (16,), jnp.float32),
        "bn1": init_bn(ks[2], 16),
        "l1_w": 0.1 * jax.random.normal(ks[3], (16, 16, 3, 3), jnp.float32),
        "l1_b": 0.1 * jax.random.normal(ks[4], (16,), jnp.float32),
        "l1_bn": init_bn(ks[5], 16),
        "l2_w": 0.1 * jax.random.normal(ks[6], (32, 16, 3, 3), jnp.float32),
        "l2_b": 0.1 * jax.random.normal(ks[7], (32,), jnp.float32),
        "l2_bn": init_bn(ks[8], 32),
        # fc in PyTorch layout: (10, 8*8*32) over torch.flatten(NCHW) order
        "fc_w": 0.02 * jax.random.normal(ks[9], (10, 8 * 8 * 32), jnp.float32),
        "fc_b": 0.02 * jax.random.normal(ks[10], (10,), jnp.float32),
    }

    x = jax.random.normal(ks[11], (2, 3, 16, 16), jnp.float32)   # NCHW, like torch

    out = simple_vision_model(x, params)
    jax.block_until_ready(out)
    assert out.shape == (2, 10)

    ref = _reference(x, params)
    assert jnp.allclose(out, ref, rtol=1e-3, atol=1e-3), (
        f"mismatch vs reference, max abs diff = {jnp.max(jnp.abs(out - ref))}")

    print("KERNEL_OK")
</pallas_src>

<mosaic_0001>
module attributes {stable_mosaic.version = 11 : i64} {
  func.func @_fused_kernel(%arg0: i32, %arg1: memref<1x3x326xf32, #tpu.memory_space<vmem>>, %arg2: memref<1x288xf32, #tpu.memory_space<vmem>>, %arg3: memref<9x16x3xf32, #tpu.memory_space<vmem>>, %arg4: memref<16x1xf32, #tpu.memory_space<vmem>>, %arg5: memref<9x16x16xf32, #tpu.memory_space<vmem>>, %arg6: memref<16x1xf32, #tpu.memory_space<vmem>>, %arg7: memref<9x32x16xf32, #tpu.memory_space<vmem>>, %arg8: memref<32x1xf32, #tpu.memory_space<vmem>>, %arg9: memref<288x64xf32, #tpu.memory_space<vmem>>, %arg10: memref<10x32x64xf32, #tpu.memory_space<vmem>>, %arg11: memref<1x10xf32, #tpu.memory_space<vmem>>, %arg12: memref<1x1x10xf32, #tpu.memory_space<vmem>>) attributes {dimension_semantics = [#tpu.dimension_semantics<parallel>], iteration_bounds = array<i64: 2>, scalar_prefetch = 0 : i64, scratch_operands = 0 : i64, tpu.core_type = #tpu.core_type<tc>, window_params = [{transform_indices = @transform_0, window_bounds = array<i64: 1, 3, 326>}, {pipeline_mode = #tpu.pipeline_mode<synchronous>, transform_indices = @transform_1, window_bounds = array<i64: 1, 288>}, {pipeline_mode = #tpu.pipeline_mode<synchronous>, transform_indices = @transform_2, window_bounds = array<i64: 9, 16, 3>}, {pipeline_mode = #tpu.pipeline_mode<synchronous>, transform_indices = @transform_3, window_bounds = array<i64: 16, 1>}, {pipeline_mode = #tpu.pipeline_mode<synchronous>, transform_indices = @transform_4, window_bounds = array<i64: 9, 16, 16>}, {pipeline_mode = #tpu.pipeline_mode<synchronous>, transform_indices = @transform_5, window_bounds = array<i64: 16, 1>}, {pipeline_mode = #tpu.pipeline_mode<synchronous>, transform_indices = @transform_6, window_bounds = array<i64: 9, 32, 16>}, {pipeline_mode = #tpu.pipeline_mode<synchronous>, transform_indices = @transform_7, window_bounds = array<i64: 32, 1>}, {pipeline_mode = #tpu.pipeline_mode<synchronous>, transform_indices = @transform_8, window_bounds = array<i64: 288, 64>}, {pipeline_mode = #tpu.pipeline_mode<synchronous>, transform_indices = @transform_9, window_bounds = array<i64: 10, 32, 64>}, {pipeline_mode = #tpu.pipeline_mode<synchronous>, transform_indices = @transform_10, window_bounds = array<i64: 1, 10>}, {transform_indices = @transform_11, window_bounds = array<i64: 1, 1, 10>}]} {
    %c0 = arith.constant 0 : index
    %c0_0 = arith.constant 0 : index
    %c0_1 = arith.constant 0 : index
    %0 = vector.load %arg1[%c0, %c0_0, %c0_1] : memref<1x3x326xf32, #tpu.memory_space<vmem>>, vector<1x3x326xf32>
    %1 = vector.shape_cast %0 : vector<1x3x326xf32> to vector<3x326xf32>
    %c0_2 = arith.constant 0 : index
    %c0_3 = arith.constant 0 : index
    %c0_4 = arith.constant 0 : index
    %2 = vector.load %arg3[%c0_2, %c0_3, %c0_4] : memref<9x16x3xf32, #tpu.memory_space<vmem>>, vector<1x16x3xf32>
    %3 = vector.shape_cast %2 : vector<1x16x3xf32> to vector<16x3xf32>
    %4 = vector.extract_strided_slice %1 {offsets = [0, 0], sizes = [3, 288], strides = [1, 1]} : vector<3x326xf32> to vector<3x288xf32>
    %cst = arith.constant dense<0.000000e+00> : vector<16x288xf32>
    %5 = tpu.matmul %3, %4, %cst {dimension_numbers = #tpu.dot_dimension_numbers<[1], [0], [0], [1], [0, 0, 1, 1], [], []>} : vector<16x3xf32>, vector<3x288xf32>, vector<16x288xf32> -> vector<16x288xf32>
    %c1 = arith.constant 1 : index
    %c0_5 = arith.constant 0 : index
    %c0_6 = arith.constant 0 : index
    %6 = vector.load %arg3[%c1, %c0_5, %c0_6] : memref<9x16x3xf32, #tpu.memory_space<vmem>>, vector<1x16x3xf32>
    %7 = vector.shape_cast %6 : vector<1x16x3xf32> to vector<16x3xf32>
    %8 = vector.extract_strided_slice %1 {offsets = [0, 1], sizes = [3, 288], strides = [1, 1]} : vector<3x326xf32> to vector<3x288xf32>
    %cst_7 = arith.constant dense<0.000000e+00> : vector<16x288xf32>
    %9 = tpu.matmul %7, %8, %cst_7 {dimension_numbers = #tpu.dot_dimension_numbers<[1], [0], [0], [1], [0, 0, 1, 1], [], []>} : vector<16x3xf32>, vector<3x288xf32>, vector<16x288xf32> -> vector<16x288xf32>
    %10 = arith.addf %5, %9 : vector<16x288xf32>
    %c2 = arith.constant 2 : index
    %c0_8 = arith.constant 0 : index
    %c0_9 = arith.constant 0 : index
    %11 = vector.load %arg3[%c2, %c0_8, %c0_9] : memref<9x16x3xf32, #tpu.memory_space<vmem>>, vector<1x16x3xf32>
    %12 = vector.shape_cast %11 : vector<1x16x3xf32> to vector<16x3xf32>
    %13 = vector.extract_strided_slice %1 {offsets = [0, 2], sizes = [3, 288], strides = [1, 1]} : vector<3x326xf32> to vector<3x288xf32>
    %cst_10 = arith.constant dense<0.000000e+00> : vector<16x288xf32>
    %14 = tpu.matmul %12, %13, %cst_10 {dimension_numbers = #tpu.dot_dimension_numbers<[1], [0], [0], [1], [0, 0, 1, 1], [], []>} : vector<16x3xf32>, vector<3x288xf32>, vector<16x288xf32> -> vector<16x288xf32>
    %15 = arith.addf %10, %14 : vector<16x288xf32>
    %c3 = arith.constant 3 : index
    %c0_11 = arith.constant 0 : index
    %c0_12 = arith.constant 0 : index
    %16 = vector.load %arg3[%c3, %c0_11, %c0_12] : memref<9x16x3xf32, #tpu.memory_space<vmem>>, vector<1x16x3xf32>
    %17 = vector.shape_cast %16 : vector<1x16x3xf32> to vector<16x3xf32>
    %18 = vector.extract_strided_slice %1 {offsets = [0, 18], sizes = [3, 288], strides = [1, 1]} : vector<3x326xf32> to vector<3x288xf32>
    %cst_13 = arith.constant dense<0.000000e+00> : vector<16x288xf32>
    %19 = tpu.matmul %17, %18, %cst_13 {dimension_numbers = #tpu.dot_dimension_numbers<[1], [0], [0], [1], [0, 0, 1, 1], [], []>} : vector<16x3xf32>, vector<3x288xf32>, vector<16x288xf32> -> vector<16x288xf32>
    %20 = arith.addf %15, %19 : vector<16x288xf32>
    %c4 = arith.constant 4 : index
    %c0_14 = arith.constant 0 : index
    %c0_15 = arith.constant 0 : index
    %21 = vector.load %arg3[%c4, %c0_14, %c0_15] : memref<9x16x3xf32, #tpu.memory_space<vmem>>, vector<1x16x3xf32>
    %22 = vector.shape_cast %21 : vector<1x16x3xf32> to vector<16x3xf32>
    %23 = vector.extract_strided_slice %1 {offsets = [0, 19], sizes = [3, 288], strides = [1, 1]} : vector<3x326xf32> to vector<3x288xf32>
    %cst_16 = arith.constant dense<0.000000e+00> : vector<16x288xf32>
    %24 = tpu.matmul %22, %23, %cst_16 {dimension_numbers = #tpu.dot_dimension_numbers<[1], [0], [0], [1], [0, 0, 1, 1], [], []>} : vector<16x3xf32>, vector<3x288xf32>, vector<16x288xf32> -> vector<16x288xf32>
    %25 = arith.addf %20, %24 : vector<16x288xf32>
    %c5 = arith.constant 5 : index
    %c0_17 = arith.constant 0 : index
    %c0_18 = arith.constant 0 : index
    %26 = vector.load %arg3[%c5, %c0_17, %c0_18] : memref<9x16x3xf32, #tpu.memory_space<vmem>>, vector<1x16x3xf32>
    %27 = vector.shape_cast %26 : vector<1x16x3xf32> to vector<16x3xf32>
    %28 = vector.extract_strided_slice %1 {offsets = [0, 20], sizes = [3, 288], strides = [1, 1]} : vector<3x326xf32> to vector<3x288xf32>
    %cst_19 = arith.constant dense<0.000000e+00> : vector<16x288xf32>
    %29 = tpu.matmul %27, %28, %cst_19 {dimension_numbers = #tpu.dot_dimension_numbers<[1], [0], [0], [1], [0, 0, 1, 1], [], []>} : vector<16x3xf32>, vector<3x288xf32>, vector<16x288xf32> -> vector<16x288xf32>
    %30 = arith.addf %25, %29 : vector<16x288xf32>
    %c6 = arith.constant 6 : index
    %c0_20 = arith.constant 0 : index
    %c0_21 = arith.constant 0 : index
    %31 = vector.load %arg3[%c6, %c0_20, %c0_21] : memref<9x16x3xf32, #tpu.memory_space<vmem>>, vector<1x16x3xf32>
    %32 = vector.shape_cast %31 : vector<1x16x3xf32> to vector<16x3xf32>
    %33 = vector.extract_strided_slice %1 {offsets = [0, 36], sizes = [3, 288], strides = [1, 1]} : vector<3x326xf32> to vector<3x288xf32>
    %cst_22 = arith.constant dense<0.000000e+00> : vector<16x288xf32>
    %34 = tpu.matmul %32, %33, %cst_22 {dimension_numbers = #tpu.dot_dimension_numbers<[1], [0], [0], [1], [0, 0, 1, 1], [], []>} : vector<16x3xf32>, vector<3x288xf32>, vector<16x288xf32> -> vector<16x288xf32>
    %35 = arith.addf %30, %34 : vector<16x288xf32>
    %c7 = arith.constant 7 : index
    %c0_23 = arith.constant 0 : index
    %c0_24 = arith.constant 0 : index
    %36 = vector.load %arg3[%c7, %c0_23, %c0_24] : memref<9x16x3xf32, #tpu.memory_space<vmem>>, vector<1x16x3xf32>
    %37 = vector.shape_cast %36 : vector<1x16x3xf32> to vector<16x3xf32>
    %38 = vector.extract_strided_slice %1 {offsets = [0, 37], sizes = [3, 288], strides = [1, 1]} : vector<3x326xf32> to vector<3x288xf32>
    %cst_25 = arith.constant dense<0.000000e+00> : vector<16x288xf32>
    %39 = tpu.matmul %37, %38, %cst_25 {dimension_numbers = #tpu.dot_dimension_numbers<[1], [0], [0], [1], [0, 0, 1, 1], [], []>} : vector<16x3xf32>, vector<3x288xf32>, vector<16x288xf32> -> vector<16x288xf32>
    %40 = arith.addf %35, %39 : vector<16x288xf32>
    %c8 = arith.constant 8 : index
    %c0_26 = arith.constant 0 : index
    %c0_27 = arith.constant 0 : index
    %41 = vector.load %arg3[%c8, %c0_26, %c0_27] : memref<9x16x3xf32, #tpu.memory_space<vmem>>, vector<1x16x3xf32>
    %42 = vector.shape_cast %41 : vector<1x16x3xf32> to vector<16x3xf32>
    %43 = vector.extract_strided_slice %1 {offsets = [0, 38], sizes = [3, 288], strides = [1, 1]} : vector<3x326xf32> to vector<3x288xf32>
    %cst_28 = arith.constant dense<0.000000e+00> : vector<16x288xf32>
    %44 = tpu.matmul %42, %43, %cst_28 {dimension_numbers = #tpu.dot_dimension_numbers<[1], [0], [0], [1], [0, 0, 1, 1], [], []>} : vector<16x3xf32>, vector<3x288xf32>, vector<16x288xf32> -> vector<16x288xf32>
    %45 = arith.addf %40, %44 : vector<16x288xf32>
    %c0_29 = arith.constant 0 : index
    %c0_30 = arith.constant 0 : index
    %46 = vector.load %arg4[%c0_29, %c0_30] : memref<16x1xf32, #tpu.memory_space<vmem>>, vector<16x1xf32>
    %47 = vector.broadcast %46 : vector<16x1xf32> to vector<16x288xf32>
    %48 = arith.addf %45, %47 : vector<16x288xf32>
    %cst_31 = arith.constant 0.000000e+00 : f32
    %49 = vector.broadcast %cst_31 : f32 to vector<16x288xf32>
    %50 = arith.maximumf %48, %49 : vector<16x288xf32>
    %c0_32 = arith.constant 0 : index
    %c0_33 = arith.constant 0 : index
    %51 = vector.load %arg2[%c0_32, %c0_33] : memref<1x288xf32, #tpu.memory_space<vmem>>, vector<1x288xf32>
    %52 = vector.broadcast %51 : vector<1x288xf32> to vector<16x288xf32>
    %53 = arith.mulf %50, %52 : vector<16x288xf32>
    %cst_34 = arith.constant 0.000000e+00 : f32
    %54 = vector.broadcast %cst_34 : f32 to vector<16x19xf32>
    %55 = tpu.concatenate %54, %53, %54 in 1 : vector<16x19xf32>, vector<16x288xf32>, vector<16x19xf32> -> vector<16x326xf32>
    %c0_35 = arith.constant 0 : index
    %c0_36 = arith.constant 0 : index
    %c0_37 = arith.constant 0 : index
    %56 = vector.load %arg5[%c0_35, %c0_36, %c0_37] : memref<9x16x16xf32, #tpu.memory_space<vmem>>, vector<1x16x16xf32>
    %57 = vector.shape_cast %56 : vector<1x16x16xf32> to vector<16x16xf32>
    %58 = vector.extract_strided_slice %55 {offsets = [0, 0], sizes = [16, 288], strides = [1, 1]} : vector<16x326xf32> to vector<16x288xf32>
    %cst_38 = arith.constant dense<0.000000e+00> : vector<16x288xf32>
    %59 = tpu.matmul %57, %58, %cst_38 {dimension_numbers = #tpu.dot_dimension_numbers<[1], [0], [0], [1], [0, 0, 1, 1], [], []>} : vector<16x16xf32>, vector<16x288xf32>, vector<16x288xf32> -> vector<16x288xf32>
    %c1_39 = arith.constant 1 : index
    %c0_40 = arith.constant 0 : index
    %c0_41 = arith.constant 0 : index
    %60 = vector.load %arg5[%c1_39, %c0_40, %c0_41] : memref<9x16x16xf32, #tpu.memory_space<vmem>>, vector<1x16x16xf32>
    %61 = vector.shape_cast %60 : vector<1x16x16xf32> to vector<16x16xf32>
    %62 = vector.extract_strided_slice %55 {offsets = [0, 1], sizes = [16, 288], strides = [1, 1]} : vector<16x326xf32> to vector<16x288xf32>
    %cst_42 = arith.constant dense<0.000000e+00> : vector<16x288xf32>
    %63 = tpu.matmul %61, %62, %cst_42 {dimension_numbers = #tpu.dot_dimension_numbers<[1], [0], [0], [1], [0, 0, 1, 1], [], []>} : vector<16x16xf32>, vector<16x288xf32>, vector<16x288xf32> -> vector<16x288xf32>
    %64 = arith.addf %59, %63 : vector<16x288xf32>
    %c2_43 = arith.constant 2 : index
    %c0_44 = arith.constant 0 : index
    %c0_45 = arith.constant 0 : index
    %65 = vector.load %arg5[%c2_43, %c0_44, %c0_45] : memref<9x16x16xf32, #tpu.memory_space<vmem>>, vector<1x16x16xf32>
    %66 = vector.shape_cast %65 : vector<1x16x16xf32> to vector<16x16xf32>
    %67 = vector.extract_strided_slice %55 {offsets = [0, 2], sizes = [16, 288], strides = [1, 1]} : vector<16x326xf32> to vector<16x288xf32>
    %cst_46 = arith.constant dense<0.000000e+00> : vector<16x288xf32>
    %68 = tpu.matmul %66, %67, %cst_46 {dimension_numbers = #tpu.dot_dimension_numbers<[1], [0], [0], [1], [0, 0, 1, 1], [], []>} : vector<16x16xf32>, vector<16x288xf32>, vector<16x288xf32> -> vector<16x288xf32>
    %69 = arith.addf %64, %68 : vector<16x288xf32>
    %c3_47 = arith.constant 3 : index
    %c0_48 = arith.constant 0 : index
    %c0_49 = arith.constant 0 : index
    %70 = vector.load %arg5[%c3_47, %c0_48, %c0_49] : memref<9x16x16xf32, #tpu.memory_space<vmem>>, vector<1x16x16xf32>
    %71 = vector.shape_cast %70 : vector<1x16x16xf32> to vector<16x16xf32>
    %72 = vector.extract_strided_slice %55 {offsets = [0, 18], sizes = [16, 288], strides = [1, 1]} : vector<16x326xf32> to vector<16x288xf32>
    %cst_50 = arith.constant dense<0.000000e+00> : vector<16x288xf32>
    %73 = tpu.matmul %71, %72, %cst_50 {dimension_numbers = #tpu.dot_dimension_numbers<[1], [0], [0], [1], [0, 0, 1, 1], [], []>} : vector<16x16xf32>, vector<16x288xf32>, vector<16x288xf32> -> vector<16x288xf32>
    %74 = arith.addf %69, %73 : vector<16x288xf32>
    %c4_51 = arith.constant 4 : index
    %c0_52 = arith.constant 0 : index
    %c0_53 = arith.constant 0 : index
    %75 = vector.load %arg5[%c4_51, %c0_52, %c0_53] : memref<9x16x16xf32, #tpu.memory_space<vmem>>, vector<1x16x16xf32>
    %76 = vector.shape_cast %75 : vector<1x16x16xf32> to vector<16x16xf32>
    %77 = vector.extract_strided_slice %55 {offsets = [0, 19], sizes = [16, 288], strides = [1, 1]} : vector<16x326xf32> to vector<16x288xf32>
    %cst_54 = arith.constant dense<0.000000e+00> : vector<16x288xf32>
    %78 = tpu.matmul %76, %77, %cst_54 {dimension_numbers = #tpu.dot_dimension_numbers<[1], [0], [0], [1], [0, 0, 1, 1], [], []>} : vector<16x16xf32>, vector<16x288xf32>, vector<16x288xf32> -> vector<16x288xf32>
    %79 = arith.addf %74, %78 : vector<16x288xf32>
    %c5_55 = arith.constant 5 : index
    %c0_56 = arith.constant 0 : index
    %c0_57 = arith.constant 0 : index
    %80 = vector.load %arg5[%c5_55, %c0_56, %c0_57] : memref<9x16x16xf32, #tpu.memory_space<vmem>>, vector<1x16x16xf32>
    %81 = vector.shape_cast %80 : vector<1x16x16xf32> to vector<16x16xf32>
    %82 = vector.extract_strided_slice %55 {offsets = [0, 20], sizes = [16, 288], strides = [1, 1]} : vector<16x326xf32> to vector<16x288xf32>
    %cst_58 = arith.constant dense<0.000000e+00> : vector<16x288xf32>
    %83 = tpu.matmul %81, %82, %cst_58 {dimension_numbers = #tpu.dot_dimension_numbers<[1], [0], [0], [1], [0, 0, 1, 1], [], []>} : vector<16x16xf32>, vector<16x288xf32>, vector<16x288xf32> -> vector<16x288xf32>
    %84 = arith.addf %79, %83 : vector<16x288xf32>
    %c6_59 = arith.constant 6 : index
    %c0_60 = arith.constant 0 : index
    %c0_61 = arith.constant 0 : index
    %85 = vector.load %arg5[%c6_59, %c0_60, %c0_61] : memref<9x16x16xf32, #tpu.memory_space<vmem>>, vector<1x16x16xf32>
    %86 = vector.shape_cast %85 : vector<1x16x16xf32> to vector<16x16xf32>
    %87 = vector.extract_strided_slice %55 {offsets = [0, 36], sizes = [16, 288], strides = [1, 1]} : vector<16x326xf32> to vector<16x288xf32>
    %cst_62 = arith.constant dense<0.000000e+00> : vector<16x288xf32>
    %88 = tpu.matmul %86, %87, %cst_62 {dimension_numbers = #tpu.dot_dimension_numbers<[1], [0], [0], [1], [0, 0, 1, 1], [], []>} : vector<16x16xf32>, vector<16x288xf32>, vector<16x288xf32> -> vector<16x288xf32>
    %89 = arith.addf %84, %88 : vector<16x288xf32>
    %c7_63 = arith.constant 7 : index
    %c0_64 = arith.constant 0 : index
    %c0_65 = arith.constant 0 : index
    %90 = vector.load %arg5[%c7_63, %c0_64, %c0_65] : memref<9x16x16xf32, #tpu.memory_space<vmem>>, vector<1x16x16xf32>
    %91 = vector.shape_cast %90 : vector<1x16x16xf32> to vector<16x16xf32>
    %92 = vector.extract_strided_slice %55 {offsets = [0, 37], sizes = [16, 288], strides = [1, 1]} : vector<16x326xf32> to vector<16x288xf32>
    %cst_66 = arith.constant dense<0.000000e+00> : vector<16x288xf32>
    %93 = tpu.matmul %91, %92, %cst_66 {dimension_numbers = #tpu.dot_dimension_numbers<[1], [0], [0], [1], [0, 0, 1, 1], [], []>} : vector<16x16xf32>, vector<16x288xf32>, vector<16x288xf32> -> vector<16x288xf32>
    %94 = arith.addf %89, %93 : vector<16x288xf32>
    %c8_67 = arith.constant 8 : index
    %c0_68 = arith.constant 0 : index
    %c0_69 = arith.constant 0 : index
    %95 = vector.load %arg5[%c8_67, %c0_68, %c0_69] : memref<9x16x16xf32, #tpu.memory_space<vmem>>, vector<1x16x16xf32>
    %96 = vector.shape_cast %95 : vector<1x16x16xf32> to vector<16x16xf32>
    %97 = vector.extract_strided_slice %55 {offsets = [0, 38], sizes = [16, 288], strides = [1, 1]} : vector<16x326xf32> to vector<16x288xf32>
    %cst_70 = arith.constant dense<0.000000e+00> : vector<16x288xf32>
    %98 = tpu.matmul %96, %97, %cst_70 {dimension_numbers = #tpu.dot_dimension_numbers<[1], [0], [0], [1], [0, 0, 1, 1], [], []>} : vector<16x16xf32>, vector<16x288xf32>, vector<16x288xf32> -> vector<16x288xf32>
    %99 = arith.addf %94, %98 : vector<16x288xf32>
    %c0_71 = arith.constant 0 : index
    %c0_72 = arith.constant 0 : index
    %100 = vector.load %arg6[%c0_71, %c0_72] : memref<16x1xf32, #tpu.memory_space<vmem>>, vector<16x1xf32>
    %101 = vector.broadcast %100 : vector<16x1xf32> to vector<16x288xf32>
    %102 = arith.addf %99, %101 : vector<16x288xf32>
    %cst_73 = arith.constant 0.000000e+00 : f32
    %103 = vector.broadcast %cst_73 : f32 to vector<16x288xf32>
    %104 = arith.maximumf %102, %103 : vector<16x288xf32>
    %c0_74 = arith.constant 0 : index
    %c0_75 = arith.constant 0 : index
    %105 = vector.load %arg2[%c0_74, %c0_75] : memref<1x288xf32, #tpu.memory_space<vmem>>, vector<1x288xf32>
    %106 = vector.broadcast %105 : vector<1x288xf32> to vector<16x288xf32>
    %107 = arith.mulf %104, %106 : vector<16x288xf32>
    %cst_76 = arith.constant 0.000000e+00 : f32
    %108 = vector.broadcast %cst_76 : f32 to vector<16x19xf32>
    %109 = tpu.concatenate %108, %107, %108 in 1 : vector<16x19xf32>, vector<16x288xf32>, vector<16x19xf32> -> vector<16x326xf32>
    %c0_77 = arith.constant 0 : index
    %c0_78 = arith.constant 0 : index
    %c0_79 = arith.constant 0 : index
    %110 = vector.load %arg7[%c0_77, %c0_78, %c0_79] : memref<9x32x16xf32, #tpu.memory_space<vmem>>, vector<1x32x16xf32>
    %111 = vector.shape_cast %110 : vector<1x32x16xf32> to vector<32x16xf32>
    %112 = vector.extract_strided_slice %109 {offsets = [0, 0], sizes = [16, 288], strides = [1, 1]} : vector<16x326xf32> to vector<16x288xf32>
    %cst_80 = arith.constant dense<0.000000e+00> : vector<32x288xf32>
    %113 = tpu.matmul %111, %112, %cst_80 {dimension_numbers = #tpu.dot_dimension_numbers<[1], [0], [0], [1], [0, 0, 1, 1], [], []>} : vector<32x16xf32>, vector<16x288xf32>, vector<32x288xf32> -> vector<32x288xf32>
    %c1_81 = arith.constant 1 : index
    %c0_82 = arith.constant 0 : index
    %c0_83 = arith.constant 0 : index
    %114 = vector.load %arg7[%c1_81, %c0_82, %c0_83] : memref<9x32x16xf32, #tpu.memory_space<vmem>>, vector<1x32x16xf32>
    %115 = vector.shape_cast %114 : vector<1x32x16xf32> to vector<32x16xf32>
    %116 = vector.extract_strided_slice %109 {offsets = [0, 1], sizes = [16, 288], strides = [1, 1]} : vector<16x326xf32> to vector<16x288xf32>
    %cst_84 = arith.constant dense<0.000000e+00> : vector<32x288xf32>
    %117 = tpu.matmul %115, %116, %cst_84 {dimension_numbers = #tpu.dot_dimension_numbers<[1], [0], [0], [1], [0, 0, 1, 1], [], []>} : vector<32x16xf32>, vector<16x288xf32>, vector<32x288xf32> -> vector<32x288xf32>
    %118 = arith.addf %113, %117 : vector<32x288xf32>
    %c2_85 = arith.constant 2 : index
    %c0_86 = arith.constant 0 : index
    %c0_87 = arith.constant 0 : index
    %119 = vector.load %arg7[%c2_85, %c0_86, %c0_87] : memref<9x32x16xf32, #tpu.memory_space<vmem>>, vector<1x32x16xf32>
    %120 = vector.shape_cast %119 : vector<1x32x16xf32> to vector<32x16xf32>
    %121 = vector.extract_strided_slice %109 {offsets = [0, 2], sizes = [16, 288], strides = [1, 1]} : vector<16x326xf32> to vector<16x288xf32>
    %cst_88 = arith.constant dense<0.000000e+00> : vector<32x288xf32>
    %122 = tpu.matmul %120, %121, %cst_88 {dimension_numbers = #tpu.dot_dimension_numbers<[1], [0], [0], [1], [0, 0, 1, 1], [], []>} : vector<32x16xf32>, vector<16x288xf32>, vector<32x288xf32> -> vector<32x288xf32>
    %123 = arith.addf %118, %122 : vector<32x288xf32>
    %c3_89 = arith.constant 3 : index
    %c0_90 = arith.constant 0 : index
    %c0_91 = arith.constant 0 : index
    %124 = vector.load %arg7[%c3_89, %c0_90, %c0_91] : memref<9x32x16xf32, #tpu.memory_space<vmem>>, vector<1x32x16xf32>
    %125 = vector.shape_cast %124 : vector<1x32x16xf32> to vector<32x16xf32>
    %126 = vector.extract_strided_slice %109 {offsets = [0, 18], sizes = [16, 288], strides = [1, 1]} : vector<16x326xf32> to vector<16x288xf32>
    %cst_92 = arith.constant dense<0.000000e+00> : vector<32x288xf32>
    %127 = tpu.matmul %125, %126, %cst_92 {dimension_numbers = #tpu.dot_dimension_numbers<[1], [0], [0], [1], [0, 0, 1, 1], [], []>} : vector<32x16xf32>, vector<16x288xf32>, vector<32x288xf32> -> vector<32x288xf32>
    %128 = arith.addf %123, %127 : vector<32x288xf32>
    %c4_93 = arith.constant 4 : index
    %c0_94 = arith.constant 0 : index
    %c0_95 = arith.constant 0 : index
    %129 = vector.load %arg7[%c4_93, %c0_94, %c0_95] : memref<9x32x16xf32, #tpu.memory_space<vmem>>, vector<1x32x16xf32>
    %130 = vector.shape_cast %129 : vector<1x32x16xf32> to vector<32x16xf32>
    %131 = vector.extract_strided_slice %109 {offsets = [0, 19], sizes = [16, 288], strides = [1, 1]} : vector<16x326xf32> to vector<16x288xf32>
    %cst_96 = arith.constant dense<0.000000e+00> : vector<32x288xf32>
    %132 = tpu.matmul %130, %131, %cst_96 {dimension_numbers = #tpu.dot_dimension_numbers<[1], [0], [0], [1], [0, 0, 1, 1], [], []>} : vector<32x16xf32>, vector<16x288xf32>, vector<32x288xf32> -> vector<32x288xf32>
    %133 = arith.addf %128, %132 : vector<32x288xf32>
    %c5_97 = arith.constant 5 : index
    %c0_98 = arith.constant 0 : index
    %c0_99 = arith.constant 0 : index
    %134 = vector.load %arg7[%c5_97, %c0_98, %c0_99] : memref<9x32x16xf32, #tpu.memory_space<vmem>>, vector<1x32x16xf32>
    %135 = vector.shape_cast %134 : vector<1x32x16xf32> to vector<32x16xf32>
    %136 = vector.extract_strided_slice %109 {offsets = [0, 20], sizes = [16, 288], strides = [1, 1]} : vector<16x326xf32> to vector<16x288xf32>
    %cst_100 = arith.constant dense<0.000000e+00> : vector<32x288xf32>
    %137 = tpu.matmul %135, %136, %cst_100 {dimension_numbers = #tpu.dot_dimension_numbers<[1], [0], [0], [1], [0, 0, 1, 1], [], []>} : vector<32x16xf32>, vector<16x288xf32>, vector<32x288xf32> -> vector<32x288xf32>
    %138 = arith.addf %133, %137 : vector<32x288xf32>
    %c6_101 = arith.constant 6 : index
    %c0_102 = arith.constant 0 : index
    %c0_103 = arith.constant 0 : index
    %139 = vector.load %arg7[%c6_101, %c0_102, %c0_103] : memref<9x32x16xf32, #tpu.memory_space<vmem>>, vector<1x32x16xf32>
    %140 = vector.shape_cast %139 : vector<1x32x16xf32> to vector<32x16xf32>
    %141 = vector.extract_strided_slice %109 {offsets = [0, 36], sizes = [16, 288], strides = [1, 1]} : vector<16x326xf32> to vector<16x288xf32>
    %cst_104 = arith.constant dense<0.000000e+00> : vector<32x288xf32>
    %142 = tpu.matmul %140, %141, %cst_104 {dimension_numbers = #tpu.dot_dimension_numbers<[1], [0], [0], [1], [0, 0, 1, 1], [], []>} : vector<32x16xf32>, vector<16x288xf32>, vector<32x288xf32> -> vector<32x288xf32>
    %143 = arith.addf %138, %142 : vector<32x288xf32>
    %c7_105 = arith.constant 7 : index
    %c0_106 = arith.constant 0 : index
    %c0_107 = arith.constant 0 : index
    %144 = vector.load %arg7[%c7_105, %c0_106, %c0_107] : memref<9x32x16xf32, #tpu.memory_space<vmem>>, vector<1x32x16xf32>
    %145 = vector.shape_cast %144 : vector<1x32x16xf32> to vector<32x16xf32>
    %146 = vector.extract_strided_slice %109 {offsets = [0, 37], sizes = [16, 288], strides = [1, 1]} : vector<16x326xf32> to vector<16x288xf32>
    %cst_108 = arith.constant dense<0.000000e+00> : vector<32x288xf32>
    %147 = tpu.matmul %145, %146, %cst_108 {dimension_numbers = #tpu.dot_dimension_numbers<[1], [0], [0], [1], [0, 0, 1, 1], [], []>} : vector<32x16xf32>, vector<16x288xf32>, vector<32x288xf32> -> vector<32x288xf32>
    %148 = arith.addf %143, %147 : vector<32x288xf32>
    %c8_109 = arith.constant 8 : index
    %c0_110 = arith.constant 0 : index
    %c0_111 = arith.constant 0 : index
    %149 = vector.load %arg7[%c8_109, %c0_110, %c0_111] : memref<9x32x16xf32, #tpu.memory_space<vmem>>, vector<1x32x16xf32>
    %150 = vector.shape_cast %149 : vector<1x32x16xf32> to vector<32x16xf32>
    %151 = vector.extract_strided_slice %109 {offsets = [0, 38], sizes = [16, 288], strides = [1, 1]} : vector<16x326xf32> to vector<16x288xf32>
    %cst_112 = arith.constant dense<0.000000e+00> : vector<32x288xf32>
    %152 = tpu.matmul %150, %151, %cst_112 {dimension_numbers = #tpu.dot_dimension_numbers<[1], [0], [0], [1], [0, 0, 1, 1], [], []>} : vector<32x16xf32>, vector<16x288xf32>, vector<32x288xf32> -> vector<32x288xf32>
    %153 = arith.addf %148, %152 : vector<32x288xf32>
    %c0_113 = arith.constant 0 : index
    %c0_114 = arith.constant 0 : index
    %154 = vector.load %arg8[%c0_113, %c0_114] : memref<32x1xf32, #tpu.memory_space<vmem>>, vector<32x1xf32>
    %155 = vector.broadcast %154 : vector<32x1xf32> to vector<32x288xf32>
    %156 = arith.addf %153, %155 : vector<32x288xf32>
    %cst_115 = arith.constant 0.000000e+00 : f32
    %157 = vector.broadcast %cst_115 : f32 to vector<32x288xf32>
    %158 = arith.maximumf %156, %157 : vector<32x288xf32>
    %c0_116 = arith.constant 0 : index
    %c0_117 = arith.constant 0 : index
    %159 = vector.load %arg9[%c0_116, %c0_117] : memref<288x64xf32, #tpu.memory_space<vmem>>, vector<288x64xf32>
    %cst_118 = arith.constant dense<0.000000e+00> : vector<32x64xf32>
    %160 = tpu.matmul %158, %159, %cst_118 {dimension_numbers = #tpu.dot_dimension_numbers<[1], [0], [0], [1], [0, 0, 1, 1], [], []>} : vector<32x288xf32>, vector<288x64xf32>, vector<32x64xf32> -> vector<32x64xf32>
    %c0_119 = arith.constant 0 : index
    %c0_120 = arith.constant 0 : index
    %c0_121 = arith.constant 0 : index
    %161 = vector.load %arg10[%c0_119, %c0_120, %c0_121] : memref<10x32x64xf32, #tpu.memory_space<vmem>>, vector<1x32x64xf32>
    %162 = vector.shape_cast %161 : vector<1x32x64xf32> to vector<32x64xf32>
    %163 = arith.mulf %162, %160 : vector<32x64xf32>
    %cst_122 = arith.constant dense<0.000000e+00> : vector<32xf32>
    %164 = vector.multi_reduction <add>, %163, %cst_122 [1] : vector<32x64xf32> to vector<32xf32>
    %165 = vector.shape_cast %164 : vector<32xf32> to vector<32x1xf32>
    %c1_123 = arith.constant 1 : index
    %c0_124 = arith.constant 0 : index
    %c0_125 = arith.constant 0 : index
    %166 = vector.load %arg10[%c1_123, %c0_124, %c0_125] : memref<10x32x64xf32, #tpu.memory_space<vmem>>, vector<1x32x64xf32>
    %167 = vector.shape_cast %166 : vector<1x32x64xf32> to vector<32x64xf32>
    %168 = arith.mulf %167, %160 : vector<32x64xf32>
    %cst_126 = arith.constant dense<0.000000e+00> : vector<32xf32>
    %169 = vector.multi_reduction <add>, %168, %cst_126 [1] : vector<32x64xf32> to vector<32xf32>
    %170 = vector.shape_cast %169 : vector<32xf32> to vector<32x1xf32>
    %c2_127 = arith.constant 2 : index
    %c0_128 = arith.constant 0 : index
    %c0_129 = arith.constant 0 : index
    %171 = vector.load %arg10[%c2_127, %c0_128, %c0_129] : memref<10x32x64xf32, #tpu.memory_space<vmem>>, vector<1x32x64xf32>
    %172 = vector.shape_cast %171 : vector<1x32x64xf32> to vector<32x64xf32>
    %173 = arith.mulf %172, %160 : vector<32x64xf32>
    %cst_130 = arith.constant dense<0.000000e+00> : vector<32xf32>
    %174 = vector.multi_reduction <add>, %173, %cst_130 [1] : vector<32x64xf32> to vector<32xf32>
    %175 = vector.shape_cast %174 : vector<32xf32> to vector<32x1xf32>
    %c3_131 = arith.constant 3 : index
    %c0_132 = arith.constant 0 : index
    %c0_133 = arith.constant 0 : index
    %176 = vector.load %arg10[%c3_131, %c0_132, %c0_133] : memref<10x32x64xf32, #tpu.memory_space<vmem>>, vector<1x32x64xf32>
    %177 = vector.shape_cast %176 : vector<1x32x64xf32> to vector<32x64xf32>
    %178 = arith.mulf %177, %160 : vector<32x64xf32>
    %cst_134 = arith.constant dense<0.000000e+00> : vector<32xf32>
    %179 = vector.multi_reduction <add>, %178, %cst_134 [1] : vector<32x64xf32> to vector<32xf32>
    %180 = vector.shape_cast %179 : vector<32xf32> to vector<32x1xf32>
    %c4_135 = arith.constant 4 : index
    %c0_136 = arith.constant 0 : index
    %c0_137 = arith.constant 0 : index
    %181 = vector.load %arg10[%c4_135, %c0_136, %c0_137] : memref<10x32x64xf32, #tpu.memory_space<vmem>>, vector<1x32x64xf32>
    %182 = vector.shape_cast %181 : vector<1x32x64xf32> to vector<32x64xf32>
    %183 = arith.mulf %182, %160 : vector<32x64xf32>
    %cst_138 = arith.constant dense<0.000000e+00> : vector<32xf32>
    %184 = vector.multi_reduction <add>, %183, %cst_138 [1] : vector<32x64xf32> to vector<32xf32>
    %185 = vector.shape_cast %184 : vector<32xf32> to vector<32x1xf32>
    %c5_139 = arith.constant 5 : index
    %c0_140 = arith.constant 0 : index
    %c0_141 = arith.constant 0 : index
    %186 = vector.load %arg10[%c5_139, %c0_140, %c0_141] : memref<10x32x64xf32, #tpu.memory_space<vmem>>, vector<1x32x64xf32>
    %187 = vector.shape_cast %186 : vector<1x32x64xf32> to vector<32x64xf32>
    %188 = arith.mulf %187, %160 : vector<32x64xf32>
    %cst_142 = arith.constant dense<0.000000e+00> : vector<32xf32>
    %189 = vector.multi_reduction <add>, %188, %cst_142 [1] : vector<32x64xf32> to vector<32xf32>
    %190 = vector.shape_cast %189 : vector<32xf32> to vector<32x1xf32>
    %c6_143 = arith.constant 6 : index
    %c0_144 = arith.constant 0 : index
    %c0_145 = arith.constant 0 : index
    %191 = vector.load %arg10[%c6_143, %c0_144, %c0_145] : memref<10x32x64xf32, #tpu.memory_space<vmem>>, vector<1x32x64xf32>
    %192 = vector.shape_cast %191 : vector<1x32x64xf32> to vector<32x64xf32>
    %193 = arith.mulf %192, %160 : vector<32x64xf32>
    %cst_146 = arith.constant dense<0.000000e+00> : vector<32xf32>
    %194 = vector.multi_reduction <add>, %193, %cst_146 [1] : vector<32x64xf32> to vector<32xf32>
    %195 = vector.shape_cast %194 : vector<32xf32> to vector<32x1xf32>
    %c7_147 = arith.constant 7 : index
    %c0_148 = arith.constant 0 : index
    %c0_149 = arith.constant 0 : index
    %196 = vector.load %arg10[%c7_147, %c0_148, %c0_149] : memref<10x32x64xf32, #tpu.memory_space<vmem>>, vector<1x32x64xf32>
    %197 = vector.shape_cast %196 : vector<1x32x64xf32> to vector<32x64xf32>
    %198 = arith.mulf %197, %160 : vector<32x64xf32>
    %cst_150 = arith.constant dense<0.000000e+00> : vector<32xf32>
    %199 = vector.multi_reduction <add>, %198, %cst_150 [1] : vector<32x64xf32> to vector<32xf32>
    %200 = vector.shape_cast %199 : vector<32xf32> to vector<32x1xf32>
    %c8_151 = arith.constant 8 : index
    %c0_152 = arith.constant 0 : index
    %c0_153 = arith.constant 0 : index
    %201 = vector.load %arg10[%c8_151, %c0_152, %c0_153] : memref<10x32x64xf32, #tpu.memory_space<vmem>>, vector<1x32x64xf32>
    %202 = vector.shape_cast %201 : vector<1x32x64xf32> to vector<32x64xf32>
    %203 = arith.mulf %202, %160 : vector<32x64xf32>
    %cst_154 = arith.constant dense<0.000000e+00> : vector<32xf32>
    %204 = vector.multi_reduction <add>, %203, %cst_154 [1] : vector<32x64xf32> to vector<32xf32>
    %205 = vector.shape_cast %204 : vector<32xf32> to vector<32x1xf32>
    %c9 = arith.constant 9 : index
    %c0_155 = arith.constant 0 : index
    %c0_156 = arith.constant 0 : index
    %206 = vector.load %arg10[%c9, %c0_155, %c0_156] : memref<10x32x64xf32, #tpu.memory_space<vmem>>, vector<1x32x64xf32>
    %207 = vector.shape_cast %206 : vector<1x32x64xf32> to vector<32x64xf32>
    %208 = arith.mulf %207, %160 : vector<32x64xf32>
    %cst_157 = arith.constant dense<0.000000e+00> : vector<32xf32>
    %209 = vector.multi_reduction <add>, %208, %cst_157 [1] : vector<32x64xf32> to vector<32xf32>
    %210 = vector.shape_cast %209 : vector<32xf32> to vector<32x1xf32>
    %211 = tpu.concatenate %165, %170, %175, %180, %185, %190, %195, %200, %205, %210 in 1 : vector<32x1xf32>, vector<32x1xf32>, vector<32x1xf32>, vector<32x1xf32>, vector<32x1xf32>, vector<32x1xf32>, vector<32x1xf32>, vector<32x1xf32>, vector<32x1xf32>, vector<32x1xf32> -> vector<32x10xf32>
    %cst_158 = arith.constant dense<0.000000e+00> : vector<10xf32>
    %212 = vector.multi_reduction <add>, %211, %cst_158 [0] : vector<32x10xf32> to vector<10xf32>
    %213 = vector.shape_cast %212 : vector<10xf32> to vector<1x10xf32>
    %c0_159 = arith.constant 0 : index
    %c0_160 = arith.constant 0 : index
    %214 = vector.load %arg11[%c0_159, %c0_160] : memref<1x10xf32, #tpu.memory_space<vmem>>, vector<1x10xf32>
    %215 = arith.addf %213, %214 : vector<1x10xf32>
    %216 = vector.shape_cast %215 : vector<1x10xf32> to vector<1x1x10xf32>
    %c0_161 = arith.constant 0 : index
    %c0_162 = arith.constant 0 : index
    %c0_163 = arith.constant 0 : index
    %217 = vector.load %arg12[%c0_161, %c0_162, %c0_163] : memref<1x1x10xf32, #tpu.memory_space<vmem>>, vector<1x1x10xf32>
    tpu.vector_store %arg12[%c0_161, %c0_162, %c0_163], %216 {strides = array<i32>} : memref<1x1x10xf32, #tpu.memory_space<vmem>>, vector<1x1x10xf32>,
    return
  }
  func.func @transform_0(%arg0: i32) -> (i32, i32, i32) {
    %c0_i32 = arith.constant 0 : i32
    %c0_i32_0 = arith.constant 0 : i32
    %c0_i32_1 = arith.constant 0 : i32
    return %arg0, %c0_i32, %c0_i32_0 : i32, i32, i32
  }
  func.func @transform_1(%arg0: i32) -> (i32, i32) {
    %c0_i32 = arith.constant 0 : i32
    %c0_i32_0 = arith.constant 0 : i32
    %c0_i32_1 = arith.constant 0 : i32
    return %c0_i32, %c0_i32_0 : i32, i32
  }
  func.func @transform_2(%arg0: i32) -> (i32, i32, i32) {
    %c0_i32 = arith.constant 0 : i32
    %c0_i32_0 = arith.constant 0 : i32
    %c0_i32_1 = arith.constant 0 : i32
    %c0_i32_2 = arith.constant 0 : i32
    return %c0_i32, %c0_i32_0, %c0_i32_1 : i32, i32, i32
  }
  func.func @transform_3(%arg0: i32) -> (i32, i32) {
    %c0_i32 = arith.constant 0 : i32
    %c0_i32_0 = arith.constant 0 : i32
    %c0_i32_1 = arith.constant 0 : i32
    return %c0_i32, %c0_i32_0 : i32, i32
  }
  func.func @transform_4(%arg0: i32) -> (i32, i32, i32) {
    %c0_i32 = arith.constant 0 : i32
    %c0_i32_0 = arith.constant 0 : i32
    %c0_i32_1 = arith.constant 0 : i32
    %c0_i32_2 = arith.constant 0 : i32
    return %c0_i32, %c0_i32_0, %c0_i32_1 : i32, i32, i32
  }
  func.func @transform_5(%arg0: i32) -> (i32, i32) {
    %c0_i32 = arith.constant 0 : i32
    %c0_i32_0 = arith.constant 0 : i32
    %c0_i32_1 = arith.constant 0 : i32
    return %c0_i32, %c0_i32_0 : i32, i32
  }
  func.func @transform_6(%arg0: i32) -> (i32, i32, i32) {
    %c0_i32 = arith.constant 0 : i32
    %c0_i32_0 = arith.constant 0 : i32
    %c0_i32_1 = arith.constant 0 : i32
    %c0_i32_2 = arith.constant 0 : i32
    return %c0_i32, %c0_i32_0, %c0_i32_1 : i32, i32, i32
  }
  func.func @transform_7(%arg0: i32) -> (i32, i32) {
    %c0_i32 = arith.constant 0 : i32
    %c0_i32_0 = arith.constant 0 : i32
    %c0_i32_1 = arith.constant 0 : i32
    return %c0_i32, %c0_i32_0 : i32, i32
  }
  func.func @transform_8(%arg0: i32) -> (i32, i32) {
    %c0_i32 = arith.constant 0 : i32
    %c0_i32_0 = arith.constant 0 : i32
    %c0_i32_1 = arith.constant 0 : i32
    return %c0_i32, %c0_i32_0 : i32, i32
  }
  func.func @transform_9(%arg0: i32) -> (i32, i32, i32) {
    %c0_i32 = arith.constant 0 : i32
    %c0_i32_0 = arith.constant 0 : i32
    %c0_i32_1 = arith.constant 0 : i32
    %c0_i32_2 = arith.constant 0 : i32
    return %c0_i32, %c0_i32_0, %c0_i32_1 : i32, i32, i32
  }
  func.func @transform_10(%arg0: i32) -> (i32, i32) {
    %c0_i32 = arith.constant 0 : i32
    %c0_i32_0 = arith.constant 0 : i32
    %c0_i32_1 = arith.constant 0 : i32
    return %c0_i32, %c0_i32_0 : i32, i32
  }
  func.func @transform_11(%arg0: i32) -> (i32, i32, i32) {
    %c0_i32 = arith.constant 0 : i32
    %c0_i32_0 = arith.constant 0 : i32
    %c0_i32_1 = arith.constant 0 : i32
    return %arg0, %c0_i32, %c0_i32_0 : i32, i32, i32
  }
}

</mosaic_0001>

<llo_original>
// kernel: simple_vision_model.1
$region0: #{simple_vision_model.1}
  #allocation0 [shape = 'u32[]', space=smem, size = 0x4, offset = 0x4, fixed_abs, tag = 'smem constant byte address 0x4 - core index']
  #allocation1 [shape = 'u32[144,128]{1,0:T(1,128)}', space=vmem, size = 0x12000, scoped, tag = 'internal scratch']
  %s0 = inlined_call_operand.vmem [shape: f32[2,3,326], index: 0, kind: input, shape index: {}]
  %s1 = inlined_call_operand.vmem [shape: f32[1,288], index: 1, kind: input, shape index: {}]
  %s2 = inlined_call_operand.vmem [shape: f32[9,16,3], index: 2, kind: input, shape index: {}]
  %s3 = inlined_call_operand.vmem [shape: f32[16,1], index: 3, kind: input, shape index: {}]
  %s4 = inlined_call_operand.vmem [shape: f32[9,16,16], index: 4, kind: input, shape index: {}]
  %s5 = inlined_call_operand.vmem [shape: f32[16,1], index: 5, kind: input, shape index: {}]
  %s6 = inlined_call_operand.vmem [shape: f32[9,32,16], index: 6, kind: input, shape index: {}]
  %s7 = inlined_call_operand.vmem [shape: f32[32,1], index: 7, kind: input, shape index: {}]
  %s8 = inlined_call_operand.vmem [shape: f32[288,64], index: 8, kind: input, shape index: {}]
  %s9 = inlined_call_operand.vmem [shape: f32[10,32,64], index: 9, kind: input, shape index: {}]
  %s10 = inlined_call_operand.vmem [shape: f32[1,10], index: 10, kind: input, shape index: {}]
  %s11 = inlined_call_operand.hbm [shape: f32[2,1,10], index: 11, kind: output, shape index: {}]
  %s12 = sld [smem:[#allocation0]]
  $region77: #{simple_vision_model.1} parent=0
    _
  %s14 = ssub.s32 1, %s12
  %s15 = scalar_select 0, %s14, %s12
  $region1: #{simple_vision_model.1} parent=0
    #allocation2 [shape = 'u8[1024]{0}', space=vmem, size = 0x400, scoped, tag = 'output window, operand 0']
    #allocation3 [shape = 's32[2]{0}', space=sflag, size = 0x8, scoped, tag = 'scoped memory for simple_vision_model.1']
    %16 = vsyncpa [#allocation3], 0
    %s17 = scalar_lea.sflag [#allocation3], 1
    %18 = vsyncpa %s17, 0
    loop: start=0, step=1, limit=4
    $region2: #{simple_vision_model.1} parent=1 // loop_pre_header
      _
    $region3: #{simple_vision_model.1} parent=1 // loop_header
      %s20 = sphi 0, %s24
      %p21 = scmp.ge.s32.totalorder %s20, 4
      %s30 = sphi 0, %s32
      %s33 = sphi 0, %s30
      %s34 = sphi 0, %s33
      %s50 = sphi 0, %s34
      %s54 = sphi 0, %s54
      %s56 = sphi 0, %s54
      %s57 = sphi 0, %s56
      %s71 = sphi 0, %s57
      %s75 = sphi 0, %s75
      %s77 = sphi 0, %s75
      %s78 = sphi 0, %s77
      %s92 = sphi 0, %s78
      %s96 = sphi 0, %s96
      %s98 = sphi 0, %s96
      %s99 = sphi 0, %s98
      %s113 = sphi 0, %s99
      %s117 = sphi 0, %s117
      %s119 = sphi 0, %s117
      %s120 = sphi 0, %s119
      %s134 = sphi 0, %s120
      %s138 = sphi 0, %s138
      %s140 = sphi 0, %s138
      %s141 = sphi 0, %s140
      %s155 = sphi 0, %s141
      %s159 = sphi 0, %s159
      %s161 = sphi 0, %s159
      %s162 = sphi 0, %s161
      %s176 = sphi 0, %s162
      %s180 = sphi 0, %s180
      %s182 = sphi 0, %s180
      %s183 = sphi 0, %s182
      %s197 = sphi 0, %s183
      %s201 = sphi 0, %s201
      %s203 = sphi 0, %s201
      %s204 = sphi 0, %s203
      %s218 = sphi 0, %s204
      %s222 = sphi 0, %s222
      %s224 = sphi 0, %s222
      %s225 = sphi 0, %s224
      %s239 = sphi 0, %s225
      %s243 = sphi 0, %s243
      %s245 = sphi 0, %s243
      %s246 = sphi 0, %s245
      %s260 = sphi 0, %s246
      %s266 = sphi 0, %s268
      %s269 = sphi 0, %s266
      %s270 = sphi 0, %s269
      %s286 = sphi 0, %s270
    $region4: #{simple_vision_model.1} parent=1 // loop_header_branch
      %23 = sbr.rel (%p21) target = $region8
    $region5: #{simple_vision_model.1} parent=1 // loop_body
      %s25 = ssub.s32 %s20, 1
      %s26 = ssub.s32 %s20, 2
      %s27 = sadd.s32 %s20, 1
      %s28 = ssub.s32 %s20, %s27
      %p29 = scmp.eq.s32.totalorder %s28, 0
      %s31 = sadd.s32 %s30, 1
      %s32 = scalar_select %p29, %s30, %s31
      %p35 = pneg %p29
      %p36 = scmp.eq.s32.totalorder %s20, 1
      %p37 = por %p35, %p36
      %p38 = scmp.ne.s32.totalorder %s30, %s33
      %p39 = scmp.eq.s32.totalorder %s20, 0
      %p40 = por %p38, %p39
      %p41 = scmp.ne.s32.totalorder %s30, %s33
      %p42 = scmp.eq.s32.totalorder %s25, 1
      %p43 = por %p41, %p42
      %p44 = scmp.ne.s32.totalorder %s33, %s34
      %p45 = scmp.eq.s32.totalorder %s25, 0
      %p46 = por %p44, %p45
      %p47 = scmp.ne.s32.totalorder %s33, %s34
      %p48 = scmp.eq.s32.totalorder %s26, 1
      %p49 = por %p47, %p48
      %p51 = scmp.ne.s32.totalorder %s34, %s50
      %p52 = scmp.eq.s32.totalorder %s26, 0
      %p53 = por %p51, %p52
      %s55 = sadd.s32 %s54, 1
      %p58 = scmp.eq.s32.totalorder %s20, 1
      %p59 = scmp.ne.s32.totalorder %s54, %s56
      %p60 = scmp.eq.s32.totalorder %s20, 0
      %p61 = por %p59, %p60
      %p62 = scmp.ne.s32.totalorder %s54, %s56
      %p63 = scmp.eq.s32.totalorder %s25, 1
      %p64 = por %p62, %p63
      %p65 = scmp.ne.s32.totalorder %s56, %s57
      %p66 = scmp.eq.s32.totalorder %s25, 0
      %p67 = por %p65, %p66
      %p68 = scmp.ne.s32.totalorder %s56, %s57
      %p69 = scmp.eq.s32.totalorder %s26, 1
      %p70 = por %p68, %p69
      %p72 = scmp.ne.s32.totalorder %s57, %s71
      %p73 = scmp.eq.s32.totalorder %s26, 0
      %p74 = por %p72, %p73
      %s76 = sadd.s32 %s75, 1
      %p79 = scmp.eq.s32.totalorder %s20, 1
      %p80 = scmp.ne.s32.totalorder %s75, %s77
      %p81 = scmp.eq.s32.totalorder %s20, 0
      %p82 = por %p80, %p81
      %p83 = scmp.ne.s32.totalorder %s75, %s77
      %p84 = scmp.eq.s32.totalorder %s25, 1
      %p85 = por %p83, %p84
      %p86 = scmp.ne.s32.totalorder %s77, %s78
      %p87 = scmp.eq.s32.totalorder %s25, 0
      %p88 = por %p86, %p87
      %p89 = scmp.ne.s32.totalorder %s77, %s78
      %p90 = scmp.eq.s32.totalorder %s26, 1
      %p91 = por %p89, %p90
      %p93 = scmp.ne.s32.totalorder %s78, %s92
      %p94 = scmp.eq.s32.totalorder %s26, 0
      %p95 = por %p93, %p94
      %s97 = sadd.s32 %s96, 1
      %p100 = scmp.eq.s32.totalorder %s20, 1
      %p101 = scmp.ne.s32.totalorder %s96, %s98
      %p102 = scmp.eq.s32.totalorder %s20, 0
      %p103 = por %p101, %p102
      %p104 = scmp.ne.s32.totalorder %s96, %s98
      %p105 = scmp.eq.s32.totalorder %s25, 1
      %p106 = por %p104, %p105
      %p107 = scmp.ne.s32.totalorder %s98, %s99
      %p108 = scmp.eq.s32.totalorder %s25, 0
      %p109 = por %p107, %p108
      %p110 = scmp.ne.s32.totalorder %s98, %s99
      %p111 = scmp.eq.s32.totalorder %s26, 1
      %p112 = por %p110, %p111
      %p114 = scmp.ne.s32.totalorder %s99, %s113
      %p115 = scmp.eq.s32.totalorder %s26, 0
      %p116 = por %p114, %p115
      %s118 = sadd.s32 %s117, 1
      %p121 = scmp.eq.s32.totalorder %s20, 1
      %p122 = scmp.ne.s32.totalorder %s117, %s119
      %p123 = scmp.eq.s32.totalorder %s20, 0
      %p124 = por %p122, %p123
      %p125 = scmp.ne.s32.totalorder %s117, %s119
      %p126 = scmp.eq.s32.totalorder %s25, 1
      %p127 = por %p125, %p126
      %p128 = scmp.ne.s32.totalorder %s119, %s120
      %p129 = scmp.eq.s32.totalorder %s25, 0
      %p130 = por %p128, %p129
      %p131 = scmp.ne.s32.totalorder %s119, %s120
      %p132 = scmp.eq.s32.totalorder %s26, 1
      %p133 = por %p131, %p132
      %p135 = scmp.ne.s32.totalorder %s120, %s134
      %p136 = scmp.eq.s32.totalorder %s26, 0
      %p137 = por %p135, %p136
      %s139 = sadd.s32 %s138, 1
      %p142 = scmp.eq.s32.totalorder %s20, 1
      %p143 = scmp.ne.s32.totalorder %s138, %s140
      %p144 = scmp.eq.s32.totalorder %s20, 0
      %p145 = por %p143, %p144
      %p146 = scmp.ne.s32.totalorder %s138, %s140
      %p147 = scmp.eq.s32.totalorder %s25, 1
      %p148 = por %p146, %p147
      %p149 = scmp.ne.s32.totalorder %s140, %s141
      %p150 = scmp.eq.s32.totalorder %s25, 0
      %p151 = por %p149, %p150
      %p152 = scmp.ne.s32.totalorder %s140, %s141
      %p153 = scmp.eq.s32.totalorder %s26, 1
      %p154 = por %p152, %p153
      %p156 = scmp.ne.s32.totalorder %s141, %s155
      %p157 = scmp.eq.s32.totalorder %s26, 0
      %p158 = por %p156, %p157
      %s160 = sadd.s32 %s159, 1
      %p163 = scmp.eq.s32.totalorder %s20, 1
      %p164 = scmp.ne.s32.totalorder %s159, %s161
      %p165 = scmp.eq.s32.totalorder %s20, 0
      %p166 = por %p164, %p165
      %p167 = scmp.ne.s32.totalorder %s159, %s161
      %p168 = scmp.eq.s32.totalorder %s25, 1
      %p169 = por %p167, %p168
      %p170 = scmp.ne.s32.totalorder %s161, %s162
      %p171 = scmp.eq.s32.totalorder %s25, 0
      %p172 = por %p170, %p171
      %p173 = scmp.ne.s32.totalorder %s161, %s162
      %p174 = scmp.eq.s32.totalorder %s26, 1
      %p175 = por %p173, %p174
      %p177 = scmp.ne.s32.totalorder %s162, %s176
      %p178 = scmp.eq.s32.totalorder %s26, 0
      %p179 = por %p177, %p178
      %s181 = sadd.s32 %s180, 1
      %p184 = scmp.eq.s32.totalorder %s20, 1
      %p185 = scmp.ne.s32.totalorder %s180, %s182
      %p186 = scmp.eq.s32.totalorder %s20, 0
      %p187 = por %p185, %p186
      %p188 = scmp.ne.s32.totalorder %s180, %s182
      %p189 = scmp.eq.s32.totalorder %s25, 1
      %p190 = por %p188, %p189
      %p191 = scmp.ne.s32.totalorder %s182, %s183
      %p192 = scmp.eq.s32.totalorder %s25, 0
      %p193 = por %p191, %p192
      %p194 = scmp.ne.s32.totalorder %s182, %s183
      %p195 = scmp.eq.s32.totalorder %s26, 1
      %p196 = por %p194, %p195
      %p198 = scmp.ne.s32.totalorder %s183, %s197
      %p199 = scmp.eq.s32.totalorder %s26, 0
      %p200 = por %p198, %p199
      %s202 = sadd.s32 %s201, 1
      %p205 = scmp.eq.s32.totalorder %s20, 1
      %p206 = scmp.ne.s32.totalorder %s201, %s203
      %p207 = scmp.eq.s32.totalorder %s20, 0
      %p208 = por %p206, %p207
      %p209 = scmp.ne.s32.totalorder %s201, %s203
      %p210 = scmp.eq.s32.totalorder %s25, 1
      %p211 = por %p209, %p210
      %p212 = scmp.ne.s32.totalorder %s203, %s204
      %p213 = scmp.eq.s32.totalorder %s25, 0
      %p214 = por %p212, %p213
      %p215 = scmp.ne.s32.totalorder %s203, %s204
      %p216 = scmp.eq.s32.totalorder %s26, 1
      %p217 = por %p215, %p216
      %p219 = scmp.ne.s32.totalorder %s204, %s218
      %p220 = scmp.eq.s32.totalorder %s26, 0
      %p221 = por %p219, %p220
      %s223 = sadd.s32 %s222, 1
      %p226 = scmp.eq.s32.totalorder %s20, 1
      %p227 = scmp.ne.s32.totalorder %s222, %s224
      %p228 = scmp.eq.s32.totalorder %s20, 0
      %p229 = por %p227, %p228
      %p230 = scmp.ne.s32.totalorder %s222, %s224
      %p231 = scmp.eq.s32.totalorder %s25, 1
      %p232 = por %p230, %p231
      %p233 = scmp.ne.s32.totalorder %s224, %s225
      %p234 = scmp.eq.s32.totalorder %s25, 0
      %p235 = por %p233, %p234
      %p236 = scmp.ne.s32.totalorder %s224, %s225
      %p237 = scmp.eq.s32.totalorder %s26, 1
      %p238 = por %p236, %p237
      %p240 = scmp.ne.s32.totalorder %s225, %s239
      %p241 = scmp.eq.s32.totalorder %s26, 0
      %p242 = por %p240, %p241
      %s244 = sadd.s32 %s243, 1
      %p247 = scmp.eq.s32.totalorder %s20, 1
      %p248 = scmp.ne.s32.totalorder %s243, %s245
      %p249 = scmp.eq.s32.totalorder %s20, 0
      %p250 = por %p248, %p249
      %p251 = scmp.ne.s32.totalorder %s243, %s245
      %p252 = scmp.eq.s32.totalorder %s25, 1
      %p253 = por %p251, %p252
      %p254 = scmp.ne.s32.totalorder %s245, %s246
      %p255 = scmp.eq.s32.totalorder %s25, 0
      %p256 = por %p254, %p255
      %p257 = scmp.ne.s32.totalorder %s245, %s246
      %p258 = scmp.eq.s32.totalorder %s26, 1
      %p259 = por %p257, %p258
      %p261 = scmp.ne.s32.totalorder %s246, %s260
      %p262 = scmp.eq.s32.totalorder %s26, 0
      %p263 = por %p261, %p262
      %s264 = ssub.s32 %s20, %s27
      %p265 = scmp.eq.s32.totalorder %s264, 0
      %s267 = sadd.s32 %s266, 1
      %s268 = scalar_select %p265, %s266, %s267
      %p271 = pneg %p265
      %p272 = scmp.eq.s32.totalorder %s20, 1
      %p273 = por %p271, %p272
      %p274 = scmp.ne.s32.totalorder %s266, %s269
      %p275 = scmp.eq.s32.totalorder %s20, 0
      %p276 = por %p274, %p275
      %p277 = scmp.ne.s32.totalorder %s266, %s269
      %p278 = scmp.eq.s32.totalorder %s25, 1
      %p279 = por %p277, %p278
      %p280 = scmp.ne.s32.totalorder %s269, %s270
      %p281 = scmp.eq.s32.totalorder %s25, 0
      %p282 = por %p280, %p281
      %p283 = scmp.ne.s32.totalorder %s269, %s270
      %p284 = scmp.eq.s32.totalorder %s26, 1
      %p285 = por %p283, %p284
      %p287 = scmp.ne.s32.totalorder %s270, %s286
      %p288 = scmp.eq.s32.totalorder %s26, 0
      %p289 = por %p287, %p288
      %p290 = scmp.le.s32.totalorder 1, %s20
      %p291 = scmp.lt.s32.totalorder %s20, 3
      %p292 = pnand %p290, %p291
      %p293 = pneg %p292
      // Predicated region
      $region9: #{simple_vision_model.1} parent=5 // pred_check
        _
      $region10: #{simple_vision_model.1} parent=5 // pred_check_branch
        %295 = sbr.rel (%p292) target = $region12
      $region11: #{simple_vision_model.1} parent=5 // pred_region
        %s296 = ssub.s32 %s20, 1
        // Predicated region
        $region13: #{simple_vision_model.1} parent=11 // pred_check
          %p297 = pneg %p67
        $region14: #{simple_vision_model.1} parent=11 // pred_check_branch
          %299 = sbr.rel (%p297) target = $region16
        $region15: #{simple_vision_model.1} parent=11 // pred_region
          _
        $region16: #{simple_vision_model.1} parent=11 // pred_fallthru
          _
        // Predicated region
        $region17: #{simple_vision_model.1} parent=11 // pred_check
          %p300 = pneg %p88
        $region18: #{simple_vision_model.1} parent=11 // pred_check_branch
          %302 = sbr.rel (%p300) target = $region20
        $region19: #{simple_vision_model.1} parent=11 // pred_region
          _
        $region20: #{simple_vision_model.1} parent=11 // pred_fallthru
          _
        // Predicated region
        $region21: #{simple_vision_model.1} parent=11 // pred_check
          %p303 = pneg %p109
        $region22: #{simple_vision_model.1} parent=11 // pred_check_branch
          %305 = sbr.rel (%p303) target = $region24
        $region23: #{simple_vision_model.1} parent=11 // pred_region
          _
        $region24: #{simple_vision_model.1} parent=11 // pred_fallthru
          _
        // Predicated region
        $region25: #{simple_vision_model.1} parent=11 // pred_check
          %p306 = pneg %p130
        $region26: #{simple_vision_model.1} parent=11 // pred_check_branch
          %308 = sbr.rel (%p306) target = $region28
        $region27: #{simple_vision_model.1} parent=11 // pred_region
          _
        $region28: #{simple_vision_model.1} parent=11 // pred_fallthru
          _
        // Predicated region
        $region29: #{simple_vision_model.1} parent=11 // pred_check
          %p309 = pneg %p151
        $region30: #{simple_vision_model.1} parent=11 // pred_check_branch
          %311 = sbr.rel (%p309) target = $region32
        $region31: #{simple_vision_model.1} parent=11 // pred_region
          _
        $region32: #{simple_vision_model.1} parent=11 // pred_fallthru
          _
        // Predicated region
        $region33: #{simple_vision_model.1} parent=11 // pred_check
          %p312 = pneg %p172
        $region34: #{simple_vision_model.1} parent=11 // pred_check_branch
          %314 = sbr.rel (%p312) target = $region36
        $region35: #{simple_vision_model.1} parent=11 // pred_region
          _
        $region36: #{simple_vision_model.1} parent=11 // pred_fallthru
          _
        // Predicated region
        $region37: #{simple_vision_model.1} parent=11 // pred_check
          %p315 = pneg %p193
        $region38: #{simple_vision_model.1} parent=11 // pred_check_branch
          %317 = sbr.rel (%p315) target = $region40
        $region39: #{simple_vision_model.1} parent=11 // pred_region
          _
        $region40: #{simple_vision_model.1} parent=11 // pred_fallthru
          _
        // Predicated region
        $region41: #{simple_vision_model.1} parent=11 // pred_check
          %p318 = pneg %p214
        $region42: #{simple_vision_model.1} parent=11 // pred_check_branch
          %320 = sbr.rel (%p318) target = $region44
        $region43: #{simple_vision_model.1} parent=11 // pred_region
          _
        $region44: #{simple_vision_model.1} parent=11 // pred_fallthru
          _
        // Predicated region
        $region45: #{simple_vision_model.1} parent=11 // pred_check
          %p321 = pneg %p235
        $region46: #{simple_vision_model.1} parent=11 // pred_check_branch
          %323 = sbr.rel (%p321) target = $region48
        $region47: #{simple_vision_model.1} parent=11 // pred_region
          _
        $region48: #{simple_vision_model.1} parent=11 // pred_fallthru
          _
        // Predicated region
        $region49: #{simple_vision_model.1} parent=11 // pred_check
          %p324 = pneg %p256
        $region50: #{simple_vision_model.1} parent=11 // pred_check_branch
          %326 = sbr.rel (%p324) target = $region52
        $region51: #{simple_vision_model.1} parent=11 // pred_region
          _
        $region52: #{simple_vision_model.1} parent=11 // pred_fallthru
          _
      $region12: #{simple_vision_model.1} parent=5 // pred_fallthru
        _
      %p327 = scmp.lt.s32.totalorder %s20, 2
      // Predicated region
      $region53: #{simple_vision_model.1} parent=5 // pred_check
        %p328 = pneg %p327
      $region54: #{simple_vision_model.1} parent=5 // pred_check_branch
        %330 = sbr.rel (%p328) target = $region56
      $region55: #{simple_vision_model.1} parent=5 // pred_region
        // Predicated region
        $region57: #{simple_vision_model.1} parent=55 // pred_check
          %p331 = pneg %p40
        $region58: #{simple_vision_model.1} parent=55 // pred_check_branch
          %333 = sbr.rel (%p331) target = $region60
        $region59: #{simple_vision_model.1} parent=55 // pred_region
          %p334 = scmp.lt.s32.totalorder %s20, 1
          %s335 = scalar_select %p334, %s20, 1
          %s336 = smul.addr %s335, 3
          %s337 = smul.addr %s336, 4
          %s338 = scalar_lea.vmem %s0, %s337
        $region60: #{simple_vision_model.1} parent=55 // pred_fallthru
          _
      $region56: #{simple_vision_model.1} parent=5 // pred_fallthru
        _
      %p339 = scmp.le.s32.totalorder 1, %s20
      %p340 = scmp.lt.s32.totalorder %s20, 3
      %p341 = pnand %p339, %p340
      %p342 = pneg %p341
      // Predicated region
      $region61: #{simple_vision_model.1} parent=5 // pred_check
        _
      $region62: #{simple_vision_model.1} parent=5 // pred_check_branch
        %344 = sbr.rel (%p341) target = $region64
      $region63: #{simple_vision_model.1} parent=5 // pred_region
        %s345 = ssub.s32 %s20, 1
        %p346 = scmp.lt.s32.totalorder %s25, 1
        %s347 = scalar_select %p346, %s25, 1
        %s348 = smul.addr %s347, 3
        %s349 = smul.addr %s348, 4
        %s350 = scalar_lea.vmem %s0, %s349
        %p351 = pneg %p46
        %p352 = pneg %p43
        %p353 = pneg %p67
        %p354 = pneg %p64
        %p355 = pneg %p88
        %p356 = pneg %p85
        %p357 = pneg %p109
        %p358 = pneg %p106
        %p359 = pneg %p130
        %p360 = pneg %p127
        %p361 = pneg %p151
        %p362 = pneg %p148
        %p363 = pneg %p172
        %p364 = pneg %p169
        %p365 = pneg %p193
        %p366 = pneg %p190
        %p367 = pneg %p214
        %p368 = pneg %p211
        %p369 = pneg %p235
        %p370 = pneg %p232
        %p371 = pneg %p256
        %p372 = pneg %p253
        %p373 = pneg %p282
        %p374 = pneg %p279
        %s375 = sand.u32 %s269, 1
        %s376 = scalar_lea.sflag [#allocation3], %s375
        %s377 = sand.u32 %s269, 1
        %s378 = scalar_lea.vmem [#allocation2], %s377
        %p379 = scmp.lt.s32.totalorder %s25, 1
        %s380 = scalar_select %p379, %s25, 1
        %s381 = smul.addr %s380, 3
        %s382 = smul.addr %s381, 4
        %s383 = scalar_lea.vmem %s0, %s382
        %v384 = vld [vmem:[%s383] sm:$0x77]
        %v385 = vld [vmem:[%s383 + $0x8] sm:$0x7]
        %v386 = vld [vmem:[%s2] sm:$0xff]
        %v387 = vld [vmem:[%s2 + $0x8] sm:$0xff]
        %s388 = scalar_lea.vmem %s2, 16
        %v389 = vld [vmem:[%s388] sm:$0xff]
        %v390 = vld [vmem:[%s388 + $0x8] sm:$0xff]
        %v393 = vcombine.high %v384, %v384
        %394 = vrot.lane.b32.xlu0 %v384, 127
        %v395 = vpop.permute.xlu0 %394
        %396 = vrot.lane.b32.xlu0 %v393, 127
        %v397 = vpop.permute.xlu0 %396
        %398 = vrot.lane.b32.xlu0 %v385, 127
        %v399 = vpop.permute.xlu0 %398
        %vm400 = vcmask 1039360
        %v401 = vsel %vm400, %v395, %v397
        %v402 = vsel %vm400, %v397, %v399
        %vm403 = vcmask 23552
        %v405 = vsel %vm403, %v389, 0
        %v408 = vsel %vm403, %v390, 0
        %vm410 = vcmask 1042432
        %v411 = vsel %vm410, %v401, 0
        %v413 = vsel %vm410, %v402, 0
        %v415 = vsel %vm410, %v399, 0
        %417 = vmatprep.subr.mxu0 %v413
        %418 = vmatpush1.msra.mxu0 %v411
        %419 = vmatprep.subr.mxu0 0.0
        %420 = vmatpush1.msra.mxu0 0.0
        %421 = vmatprep.subr.mxu0 0.0
        %422 = vmatpush1.msra.mxu0 0.0
        %423 = vmatprep.subr.mxu0 0.0
        %424 = vmatpush1.msra.mxu0 0.0
        %425 = vmatprep.subr.mxu0 0.0
        %426 = vmatpush1.msra.mxu0 0.0
        %427 = vmatprep.subr.mxu0 0.0
        %428 = vmatpush1.msra.mxu0 0.0
        %429 = vmatprep.subr.mxu0 0.0
        %430 = vmatpush1.msra.mxu0 0.0
        %431 = vmatprep.subr.mxu0 0.0
        %432 = vmatpush1.msra.mxu0 0.0
        %433 = vmatprep.subr.mxu0 0.0
        %434 = vmatpush1.msra.mxu0 0.0
        %435 = vmatprep.subr.mxu0 0.0
        %436 = vmatpush1.msra.mxu0 0.0
        %437 = vmatprep.subr.mxu0 0.0
        %438 = vmatpush1.msra.mxu0 0.0
        %439 = vmatprep.subr.mxu0 0.0
        %440 = vmatpush1.msra.mxu0 0.0
        %441 = vmatprep.subr.mxu0 0.0
        %442 = vmatpush1.msra.mxu0 0.0
        %443 = vmatprep.subr.mxu0 0.0
        %444 = vmatpush1.msra.mxu0 0.0
        %445 = vmatprep.subr.mxu0 0.0
        %446 = vmatpush1.msra.mxu0 0.0
        %447 = vmatprep.subr.mxu0 0.0
        %448 = vmatpush1.msra.mxu0 0.0
        %449 = vmatprep.subr.mxu0 0.0
        %450 = vmatpush1.msra.mxu0 0.0
        %451 = vmatprep.subr.mxu0 0.0
        %452 = vmatpush1.msra.mxu0 0.0
        %453 = vmatprep.subr.mxu0 0.0
        %454 = vmatpush1.msra.mxu0 0.0
        %455 = vmatprep.subr.mxu0 0.0
        %456 = vmatpush1.msra.mxu0 0.0
        %457 = vmatprep.subr.mxu0 0.0
        %458 = vmatpush1.msra.mxu0 0.0
        %459 = vmatprep.subr.mxu0 0.0
        %460 = vmatpush1.msra.mxu0 0.0
        %461 = vmatprep.subr.mxu0 0.0
        %462 = vmatpush1.msra.mxu0 0.0
        %463 = vmatprep.subr.mxu0 0.0
        %464 = vmatpush1.msra.mxu0 0.0
        %465 = vmatprep.subr.mxu0 0.0
        %466 = vmatpush1.msra.mxu0 0.0
        %467 = vmatprep.subr.mxu0 0.0
        %468 = vmatpush1.msra.mxu0 0.0
        %469 = vmatprep.subr.mxu0 0.0
        %470 = vmatpush1.msra.mxu0 0.0
        %471 = vmatprep.subr.mxu0 0.0
        %472 = vmatpush1.msra.mxu0 0.0
        %473 = vmatprep.subr.mxu0 0.0
        %474 = vmatpush1.msra.mxu0 0.0
        %475 = vmatprep.subr.mxu0 0.0
        %476 = vmatpush1.msra.mxu0 0.0
        %477 = vmatprep.subr.mxu0 0.0
        %478 = vmatpush1.msra.mxu0 0.0
        %479 = vmatprep.subr.mxu0 0.0
        %480 = vmatpush1.msra.mxu0 0.0
        %481 = vmatprep.mubr.f32.mxu0 0.0
        %482 = vmatmul.mubr.f32.gmra.mrb[0].mxu0 %v405
        %v483 = vpop.f32.mrb[0].mxu0
        %v484 = vadd.f32 0.0, %v483
        %v485 = vpop.f32.mrb[0].mxu0
        %v486 = vadd.f32 0.0, %v485
        %487 = vmatprep.mubr.f32.mxu0 0.0
        %488 = vmatmul.mubr.f32.gmra.mrb[0].mxu0 %v408
        %v489 = vpop.f32.mrb[0].mxu0
        %v490 = vadd.f32 0.0, %v489
        %v491 = vpop.f32.mrb[0].mxu0
        %v492 = vadd.f32 0.0, %v491
        %493 = vdwg.mxu0
        %494 = vmatprep.subr.mxu0 0.0
        %495 = vmatpush1.msra.mxu0 %v415
        %496 = vmatprep.subr.mxu0 0.0
        %497 = vmatpush1.msra.mxu0 0.0
        %498 = vmatprep.subr.mxu0 0.0
        %499 = vmatpush1.msra.mxu0 0.0
        %500 = vmatprep.subr.mxu0 0.0
        %501 = vmatpush1.msra.mxu0 0.0
        %502 = vmatprep.subr.mxu0 0.0
        %503 = vmatpush1.msra.mxu0 0.0
        %504 = vmatprep.subr.mxu0 0.0
        %505 = vmatpush1.msra.mxu0 0.0
        %506 = vmatprep.subr.mxu0 0.0
        %507 = vmatpush1.msra.mxu0 0.0
        %508 = vmatprep.subr.mxu0 0.0
        %509 = vmatpush1.msra.mxu0 0.0
        %510 = vmatprep.subr.mxu0 0.0
        %511 = vmatpush1.msra.mxu0 0.0
        %512 = vmatprep.subr.mxu0 0.0
        %513 = vmatpush1.msra.mxu0 0.0
        %514 = vmatprep.subr.mxu0 0.0
        %515 = vmatpush1.msra.mxu0 0.0
        %516 = vmatprep.subr.mxu0 0.0
        %517 = vmatpush1.msra.mxu0 0.0
        %518 = vmatprep.subr.mxu0 0.0
        %519 = vmatpush1.msra.mxu0 0.0
        %520 = vmatprep.subr.mxu0 0.0
        %521 = vmatpush1.msra.mxu0 0.0
        %522 = vmatprep.subr.mxu0 0.0
        %523 = vmatpush1.msra.mxu0 0.0
        %524 = vmatprep.subr.mxu0 0.0
        %525 = vmatpush1.msra.mxu0 0.0
        %526 = vmatprep.subr.mxu0 0.0
        %527 = vmatpush1.msra.mxu0 0.0
        %528 = vmatprep.subr.mxu0 0.0
        %529 = vmatpush1.msra.mxu0 0.0
        %530 = vmatprep.subr.mxu0 0.0
        %531 = vmatpush1.msra.mxu0 0.0
        %532 = vmatprep.subr.mxu0 0.0
        %533 = vmatpush1.msra.mxu0 0.0
        %534 = vmatprep.subr.mxu0 0.0
        %535 = vmatpush1.msra.mxu0 0.0
        %536 = vmatprep.subr.mxu0 0.0
        %537 = vmatpush1.msra.mxu0 0.0
        %538 = vmatprep.subr.mxu0 0.0
        %539 = vmatpush1.msra.mxu0 0.0
        %540 = vmatprep.subr.mxu0 0.0
        %541 = vmatpush1.msra.mxu0 0.0
        %542 = vmatprep.subr.mxu0 0.0
        %543 = vmatpush1.msra.mxu0 0.0
        %544 = vmatprep.subr.mxu0 0.0
        %545 = vmatpush1.msra.mxu0 0.0
        %546 = vmatprep.subr.mxu0 0.0
        %547 = vmatpush1.msra.mxu0 0.0
        %548 = vmatprep.subr.mxu0 0.0
        %549 = vmatpush1.msra.mxu0 0.0
        %550 = vmatprep.subr.mxu0 0.0
        %551 = vmatpush1.msra.mxu0 0.0
        %552 = vmatprep.subr.mxu0 0.0
        %553 = vmatpush1.msra.mxu0 0.0
        %554 = vmatprep.subr.mxu0 0.0
        %555 = vmatpush1.msra.mxu0 0.0
        %556 = vmatprep.subr.mxu0 0.0
        %557 = vmatpush1.msra.mxu0 0.0
        %558 = vmatprep.mubr.f32.mxu0 0.0
        %559 = vmatmul.mubr.f32.gmra.mrb[0].mxu0 %v405
        %v560 = vpop.f32.mrb[0].mxu0
        %v561 = vadd.f32 0.0, %v560
        %v562 = vpop.f32.mrb[0].mxu0
        %563 = vmatprep.mubr.f32.mxu0 0.0
        %564 = vmatmul.mubr.f32.gmra.mrb[0].mxu0 %v408
        %v565 = vpop.f32.mrb[0].mxu0
        %v566 = vadd.f32 0.0, %v565
        %v567 = vpop.f32.mrb[0].mxu0
        %568 = vdwg.mxu0
        %v570 = vsel %vm403, %v386, 0
        %v573 = vsel %vm403, %v387, 0
        %v575 = vsel %vm410, %v384, 0
        %v577 = vsel %vm410, %v393, 0
        %v579 = vsel %vm410, %v385, 0
        %581 = vmatprep.subr.mxu0 %v577
        %582 = vmatpush1.msra.mxu0 %v575
        %583 = vmatprep.subr.mxu0 0.0
        %584 = vmatpush1.msra.mxu0 0.0
        %585 = vmatprep.subr.mxu0 0.0
        %586 = vmatpush1.msra.mxu0 0.0
        %587 = vmatprep.subr.mxu0 0.0
        %588 = vmatpush1.msra.mxu0 0.0
        %589 = vmatprep.subr.mxu0 0.0
        %590 = vmatpush1.msra.mxu0 0.0
        %591 = vmatprep.subr.mxu0 0.0
        %592 = vmatpush1.msra.mxu0 0.0
        %593 = vmatprep.subr.mxu0 0.0
        %594 = vmatpush1.msra.mxu0 0.0
        %595 = vmatprep.subr.mxu0 0.0
        %596 = vmatpush1.msra.mxu0 0.0
        %597 = vmatprep.subr.mxu0 0.0
        %598 = vmatpush1.msra.mxu0 0.0
        %599 = vmatprep.subr.mxu0 0.0
        %600 = vmatpush1.msra.mxu0 0.0
        %601 = vmatprep.subr.mxu0 0.0
        %602 = vmatpush1.msra.mxu0 0.0
        %603 = vmatprep.subr.mxu0 0.0
        %604 = vmatpush1.msra.mxu0 0.0
        %605 = vmatprep.subr.mxu0 0.0
        %606 = vmatpush1.msra.mxu0 0.0
        %607 = vmatprep.subr.mxu0 0.0
        %608 = vmatpush1.msra.mxu0 0.0
        %609 = vmatprep.subr.mxu0 0.0
        %610 = vmatpush1.msra.mxu0 0.0
        %611 = vmatprep.subr.mxu0 0.0
        %612 = vmatpush1.msra.mxu0 0.0
        %613 = vmatprep.subr.mxu0 0.0
        %614 = vmatpush1.msra.mxu0 0.0
        %615 = vmatprep.subr.mxu0 0.0
        %616 = vmatpush1.msra.mxu0 0.0
        %617 = vmatprep.subr.mxu0 0.0
        %618 = vmatpush1.msra.mxu0 0.0
        %619 = vmatprep.subr.mxu0 0.0
        %620 = vmatpush1.msra.mxu0 0.0
        %621 = vmatprep.subr.mxu0 0.0
        %622 = vmatpush1.msra.mxu0 0.0
        %623 = vmatprep.subr.mxu0 0.0
        %624 = vmatpush1.msra.mxu0 0.0
        %625 = vmatprep.subr.mxu0 0.0
        %626 = vmatpush1.msra.mxu0 0.0
        %627 = vmatprep.subr.mxu0 0.0
        %628 = vmatpush1.msra.mxu0 0.0
        %629 = vmatprep.subr.mxu0 0.0
        %630 = vmatpush1.msra.mxu0 0.0
        %631 = vmatprep.subr.mxu0 0.0
        %632 = vmatpush1.msra.mxu0 0.0
        %633 = vmatprep.subr.mxu0 0.0
        %634 = vmatpush1.msra.mxu0 0.0
        %635 = vmatprep.subr.mxu0 0.0
        %636 = vmatpush1.msra.mxu0 0.0
        %637 = vmatprep.subr.mxu0 0.0
        %638 = vmatpush1.msra.mxu0 0.0
        %639 = vmatprep.subr.mxu0 0.0
        %640 = vmatpush1.msra.mxu0 0.0
        %641 = vmatprep.subr.mxu0 0.0
        %642 = vmatpush1.msra.mxu0 0.0
        %643 = vmatprep.subr.mxu0 0.0
        %644 = vmatpush1.msra.mxu0 0.0
        %645 = vmatprep.mubr.f32.mxu0 0.0
        %646 = vmatmul.mubr.f32.gmra.mrb[0].mxu0 %v570
        %v647 = vpop.f32.mrb[0].mxu0
        %v648 = vadd.f32 %v484, %v647
        %v649 = vpop.f32.mrb[0].mxu0
        %v650 = vadd.f32 %v486, %v649
        %651 = vmatprep.mubr.f32.mxu0 0.0
        %652 = vmatmul.mubr.f32.gmra.mrb[0].mxu0 %v573
        %v653 = vpop.f32.mrb[0].mxu0
        %v654 = vadd.f32 %v490, %v653
        %v655 = vpop.f32.mrb[0].mxu0
        %v656 = vadd.f32 %v492, %v655
        %657 = vdwg.mxu0
        %658 = vmatprep.subr.mxu0 0.0
        %659 = vmatpush1.msra.mxu0 %v579
        %660 = vmatprep.subr.mxu0 0.0
        %661 = vmatpush1.msra.mxu0 0.0
        %662 = vmatprep.subr.mxu0 0.0
        %663 = vmatpush1.msra.mxu0 0.0
        %664 = vmatprep.subr.mxu0 0.0
        %665 = vmatpush1.msra.mxu0 0.0
        %666 = vmatprep.subr.mxu0 0.0
        %667 = vmatpush1.msra.mxu0 0.0
        %668 = vmatprep.subr.mxu0 0.0
        %669 = vmatpush1.msra.mxu0 0.0
        %670 = vmatprep.subr.mxu0 0.0
        %671 = vmatpush1.msra.mxu0 0.0
        %672 = vmatprep.subr.mxu0 0.0
        %673 = vmatpush1.msra.mxu0 0.0
        %674 = vmatprep.subr.mxu0 0.0
        %675 = vmatpush1.msra.mxu0 0.0
        %676 = vmatprep.subr.mxu0 0.0
        %677 = vmatpush1.msra.mxu0 0.0
        %678 = vmatprep.subr.mxu0 0.0
        %679 = vmatpush1.msra.mxu0 0.0
        %680 = vmatprep.subr.mxu0 0.0
        %681 = vmatpush1.msra.mxu0 0.0
        %682 = vmatprep.subr.mxu0 0.0
        %683 = vmatpush1.msra.mxu0 0.0
        %684 = vmatprep.subr.mxu0 0.0
        %685 = vmatpush1.msra.mxu0 0.0
        %686 = vmatprep.subr.mxu0 0.0
        %687 = vmatpush1.msra.mxu0 0.0
        %688 = vmatprep.subr.mxu0 0.0
        %689 = vmatpush1.msra.mxu0 0.0
        %690 = vmatprep.subr.mxu0 0.0
        %691 = vmatpush1.msra.mxu0 0.0
        %692 = vmatprep.subr.mxu0 0.0
        %693 = vmatpush1.msra.mxu0 0.0
        %694 = vmatprep.subr.mxu0 0.0
        %695 = vmatpush1.msra.mxu0 0.0
        %696 = vmatprep.subr.mxu0 0.0
        %697 = vmatpush1.msra.mxu0 0.0
        %698 = vmatprep.subr.mxu0 0.0
        %699 = vmatpush1.msra.mxu0 0.0
        %700 = vmatprep.subr.mxu0 0.0
        %701 = vmatpush1.msra.mxu0 0.0
        %702 = vmatprep.subr.mxu0 0.0
        %703 = vmatpush1.msra.mxu0 0.0
        %704 = vmatprep.subr.mxu0 0.0
        %705 = vmatpush1.msra.mxu0 0.0
        %706 = vmatprep.subr.mxu0 0.0
        %707 = vmatpush1.msra.mxu0 0.0
        %708 = vmatprep.subr.mxu0 0.0
        %709 = vmatpush1.msra.mxu0 0.0
        %710 = vmatprep.subr.mxu0 0.0
        %711 = vmatpush1.msra.mxu0 0.0
        %712 = vmatprep.subr.mxu0 0.0
        %713 = vmatpush1.msra.mxu0 0.0
        %714 = vmatprep.subr.mxu0 0.0
        %715 = vmatpush1.msra.mxu0 0.0
        %716 = vmatprep.subr.mxu0 0.0
        %717 = vmatpush1.msra.mxu0 0.0
        %718 = vmatprep.subr.mxu0 0.0
        %719 = vmatpush1.msra.mxu0 0.0
        %720 = vmatprep.subr.mxu0 0.0
        %721 = vmatpush1.msra.mxu0 0.0
        %722 = vmatprep.mubr.f32.mxu0 0.0
        %723 = vmatmul.mubr.f32.gmra.mrb[0].mxu0 %v570
        %v724 = vpop.f32.mrb[0].mxu0
        %v725 = vadd.f32 %v561, %v724
        %v726 = vpop.f32.mrb[0].mxu0
        %727 = vmatprep.mubr.f32.mxu0 0.0
        %728 = vmatmul.mubr.f32.gmra.mrb[0].mxu0 %v573
        %v729 = vpop.f32.mrb[0].mxu0
        %v730 = vadd.f32 %v566, %v729
        %v731 = vpop.f32.mrb[0].mxu0
        %732 = vdwg.mxu0
        %s733 = scalar_lea.vmem %s2, 32
        %v734 = vld [vmem:[%s733] sm:$0xff]
        %v735 = vld [vmem:[%s733 + $0x8] sm:$0xff]
        %736 = vrot.lane.b32.xlu0 %v384, 126
        %v737 = vpop.permute.xlu0 %736
        %738 = vrot.lane.b32.xlu0 %v393, 126
        %v739 = vpop.permute.xlu0 %738
        %740 = vrot.lane.b32.xlu0 %v385, 126
        %v741 = vpop.permute.xlu0 %740
        %vm742 = vcmask 1031168
        %v743 = vsel %vm742, %v737, %v739
        %v744 = vsel %vm742, %v739, %v741
        %v746 = vsel %vm403, %v734, 0
        %v749 = vsel %vm403, %v735, 0
        %v751 = vsel %vm410, %v743, 0
        %v753 = vsel %vm410, %v744, 0
        %v755 = vsel %vm410, %v741, 0
        %757 = vmatprep.subr.mxu0 %v753
        %758 = vmatpush1.msra.mxu0 %v751
        %759 = vmatprep.subr.mxu0 0.0
        %760 = vmatpush1.msra.mxu0 0.0
        %761 = vmatprep.subr.mxu0 0.0
        %762 = vmatpush1.msra.mxu0 0.0
        %763 = vmatprep.subr.mxu0 0.0
        %764 = vmatpush1.msra.mxu0 0.0
        %765 = vmatprep.subr.mxu0 0.0
        %766 = vmatpush1.msra.mxu0 0.0
        %767 = vmatprep.subr.mxu0 0.0
        %768 = vmatpush1.msra.mxu0 0.0
        %769 = vmatprep.subr.mxu0 0.0
        %770 = vmatpush1.msra.mxu0 0.0
        %771 = vmatprep.subr.mxu0 0.0
        %772 = vmatpush1.msra.mxu0 0.0
        %773 = vmatprep.subr.mxu0 0.0
        %774 = vmatpush1.msra.mxu0 0.0
        %775 = vmatprep.subr.mxu0 0.0
        %776 = vmatpush1.msra.mxu0 0.0
        %777 = vmatprep.subr.mxu0 0.0
        %778 = vmatpush1.msra.mxu0 0.0
        %779 = vmatprep.subr.mxu0 0.0
        %780 = vmatpush1.msra.mxu0 0.0
        %781 = vmatprep.subr.mxu0 0.0
        %782 = vmatpush1.msra.mxu0 0.0
        %783 = vmatprep.subr.mxu0 0.0
        %784 = vmatpush1.msra.mxu0 0.0
        %785 = vmatprep.subr.mxu0 0.0
        %786 = vmatpush1.msra.mxu0 0.0
        %787 = vmatprep.subr.mxu0 0.0
        %788 = vmatpush1.msra.mxu0 0.0
        %789 = vmatprep.subr.mxu0 0.0
        %790 = vmatpush1.msra.mxu0 0.0
        %791 = vmatprep.subr.mxu0 0.0
        %792 = vmatpush1.msra.mxu0 0.0
        %793 = vmatprep.subr.mxu0 0.0
        %794 = vmatpush1.msra.mxu0 0.0
        %795 = vmatprep.subr.mxu0 0.0
        %796 = vmatpush1.msra.mxu0 0.0
        %797 = vmatprep.subr.mxu0 0.0
        %798 = vmatpush1.msra.mxu0 0.0
        %799 = vmatprep.subr.mxu0 0.0
        %800 = vmatpush1.msra.mxu0 0.0
        %801 = vmatprep.subr.mxu0 0.0
        %802 = vmatpush1.msra.mxu0 0.0
        %803 = vmatprep.subr.mxu0 0.0
        %804 = vmatpush1.msra.mxu0 0.0
        %805 = vmatprep.subr.mxu0 0.0
        %806 = vmatpush1.msra.mxu0 0.0
        %807 = vmatprep.subr.mxu0 0.0
        %808 = vmatpush1.msra.mxu0 0.0
        %809 = vmatprep.subr.mxu0 0.0
        %810 = vmatpush1.msra.mxu0 0.0
        %811 = vmatprep.subr.mxu0 0.0
        %812 = vmatpush1.msra.mxu0 0.0
        %813 = vmatprep.subr.mxu0 0.0
        %814 = vmatpush1.msra.mxu0 0.0
        %815 = vmatprep.subr.mxu0 0.0
        %816 = vmatpush1.msra.mxu0 0.0
        %817 = vmatprep.subr.mxu0 0.0
        %818 = vmatpush1.msra.mxu0 0.0
        %819 = vmatprep.subr.mxu0 0.0
        %820 = vmatpush1.msra.mxu0 0.0
        %821 = vmatprep.mubr.f32.mxu0 0.0
        %822 = vmatmul.mubr.f32.gmra.mrb[0].mxu0 %v746
        %v823 = vpop.f32.mrb[0].mxu0
        %v824 = vadd.f32 0.0, %v823
        %v825 = vpop.f32.mrb[0].mxu0
        %v826 = vadd.f32 0.0, %v825
        %827 = vmatprep.mubr.f32.mxu0 0.0
        %828 = vmatmul.mubr.f32.gmra.mrb[0].mxu0 %v749
        %v829 = vpop.f32.mrb[0].mxu0
        %v830 = vadd.f32 0.0, %v829
        %v831 = vpop.f32.mrb[0].mxu0
        %v832 = vadd.f32 0.0, %v831
        %833 = vdwg.mxu0
        %834 = vmatprep.subr.mxu0 0.0
        %835 = vmatpush1.msra.mxu0 %v755
        %836 = vmatprep.subr.mxu0 0.0
        %837 = vmatpush1.msra.mxu0 0.0
        %838 = vmatprep.subr.mxu0 0.0
        %839 = vmatpush1.msra.mxu0 0.0
        %840 = vmatprep.subr.mxu0 0.0
        %841 = vmatpush1.msra.mxu0 0.0
        %842 = vmatprep.subr.mxu0 0.0
        %843 = vmatpush1.msra.mxu0 0.0
        %844 = vmatprep.subr.mxu0 0.0
        %845 = vmatpush1.msra.mxu0 0.0
        %846 = vmatprep.subr.mxu0 0.0
        %847 = vmatpush1.msra.mxu0 0.0
        %848 = vmatprep.subr.mxu0 0.0
        %849 = vmatpush1.msra.mxu0 0.0
        %850 = vmatprep.subr.mxu0 0.0
        %851 = vmatpush1.msra.mxu0 0.0
        %852 = vmatprep.subr.mxu0 0.0
        %853 = vmatpush1.msra.mxu0 0.0
        %854 = vmatprep.subr.mxu0 0.0
        %855 = vmatpush1.msra.mxu0 0.0
        %856 = vmatprep.subr.mxu0 0.0
        %857 = vmatpush1.msra.mxu0 0.0
        %858 = vmatprep.subr.mxu0 0.0
        %859 = vmatpush1.msra.mxu0 0.0
        %860 = vmatprep.subr.mxu0 0.0
        %861 = vmatpush1.msra.mxu0 0.0
        %862 = vmatprep.subr.mxu0 0.0
        %863 = vmatpush1.msra.mxu0 0.0
        %864 = vmatprep.subr.mxu0 0.0
        %865 = vmatpush1.msra.mxu0 0.0
        %866 = vmatprep.subr.mxu0 0.0
        %867 = vmatpush1.msra.mxu0 0.0
        %868 = vmatprep.subr.mxu0 0.0
        %869 = vmatpush1.msra.mxu0 0.0
        %870 = vmatprep.subr.mxu0 0.0
        %871 = vmatpush1.msra.mxu0 0.0
        %872 = vmatprep.subr.mxu0 0.0
        %873 = vmatpush1.msra.mxu0 0.0
        %874 = vmatprep.subr.mxu0 0.0
        %875 = vmatpush1.msra.mxu0 0.0
        %876 = vmatprep.subr.mxu0 0.0
        %877 = vmatpush1.msra.mxu0 0.0
        %878 = vmatprep.subr.mxu0 0.0
        %879 = vmatpush1.msra.mxu0 0.0
        %880 = vmatprep.subr.mxu0 0.0
        %881 = vmatpush1.msra.mxu0 0.0
        %882 = vmatprep.subr.mxu0 0.0
        %883 = vmatpush1.msra.mxu0 0.0
        %884 = vmatprep.subr.mxu0 0.0
        %885 = vmatpush1.msra.mxu0 0.0
        %886 = vmatprep.subr.mxu0 0.0
        %887 = vmatpush1.msra.mxu0 0.0
        %888 = vmatprep.subr.mxu0 0.0
        %889 = vmatpush1.msra.mxu0 0.0
        %890 = vmatprep.subr.mxu0 0.0
        %891 = vmatpush1.msra.mxu0 0.0
        %892 = vmatprep.subr.mxu0 0.0
        %893 = vmatpush1.msra.mxu0 0.0
        %894 = vmatprep.subr.mxu0 0.0
        %895 = vmatpush1.msra.mxu0 0.0
        %896 = vmatprep.subr.mxu0 0.0
        %897 = vmatpush1.msra.mxu0 0.0
        %898 = vmatprep.mubr.f32.mxu0 0.0
        %899 = vmatmul.mubr.f32.gmra.mrb[0].mxu0 %v746
        %v900 = vpop.f32.mrb[0].mxu0
        %v901 = vadd.f32 0.0, %v900
        %v902 = vpop.f32.mrb[0].mxu0
        %903 = vmatprep.mubr.f32.mxu0 0.0
        %904 = vmatmul.mubr.f32.gmra.mrb[0].mxu0 %v749
        %v905 = vpop.f32.mrb[0].mxu0
        %v906 = vadd.f32 0.0, %v905
        %v907 = vpop.f32.mrb[0].mxu0
        %908 = vdwg.mxu0
        %v909 = vadd.f32 %v648, %v824
        %v910 = vadd.f32 %v650, %v826
        %v911 = vadd.f32 %v725, %v901
        %v912 = vadd.f32 %v654, %v830
        %v913 = vadd.f32 %v656, %v832
        %v914 = vadd.f32 %v730, %v906
        %s915 = scalar_lea.vmem %s2, 48
        %v916 = vld [vmem:[%s915] sm:$0xff]
        %v917 = vld [vmem:[%s915 + $0x8] sm:$0xff]
        %918 = vrot.lane.b32.xlu0 %v384, 110
        %v919 = vpop.permute.xlu0 %918
        %920 = vrot.lane.b32.xlu0 %v393, 110
        %v921 = vpop.permute.xlu0 %920
        %922 = vrot.lane.b32.xlu0 %v385, 110
        %v923 = vpop.permute.xlu0 %922
        %vm924 = vcmask 900096
        %v925 = vsel %vm924, %v919, %v921
        %v926 = vsel %vm924, %v921, %v923
        %v928 = vsel %vm403, %v916, 0
        %v931 = vsel %vm403, %v917, 0
        %v933 = vsel %vm410, %v925, 0
        %v935 = vsel %vm410, %v926, 0
        %v937 = vsel %vm410, %v923, 0
        %939 = vmatprep.subr.mxu0 %v935
        %940 = vmatpush1.msra.mxu0 %v933
        %941 = vmatprep.subr.mxu0 0.0
        %942 = vmatpush1.msra.mxu0 0.0
        %943 = vmatprep.subr.mxu0 0.0
        %944 = vmatpush1.msra.mxu0 0.0
        %945 = vmatprep.subr.mxu0 0.0
        %946 = vmatpush1.msra.mxu0 0.0
        %947 = vmatprep.subr.mxu0 0.0
        %948 = vmatpush1.msra.mxu0 0.0
        %949 = vmatprep.subr.mxu0 0.0
        %950 = vmatpush1.msra.mxu0 0.0
        %951 = vmatprep.subr.mxu0 0.0
        %952 = vmatpush1.msra.mxu0 0.0
        %953 = vmatprep.subr.mxu0 0.0
        %954 = vmatpush1.msra.mxu0 0.0
        %955 = vmatprep.subr.mxu0 0.0
        %956 = vmatpush1.msra.mxu0 0.0
        %957 = vmatprep.subr.mxu0 0.0
        %958 = vmatpush1.msra.mxu0 0.0
        %959 = vmatprep.subr.mxu0 0.0
        %960 = vmatpush1.msra.mxu0 0.0
        %961 = vmatprep.subr.mxu0 0.0
        %962 = vmatpush1.msra.mxu0 0.0
        %963 = vmatprep.subr.mxu0 0.0
        %964 = vmatpush1.msra.mxu0 0.0
        %965 = vmatprep.subr.mxu0 0.0
        %966 = vmatpush1.msra.mxu0 0.0
        %967 = vmatprep.subr.mxu0 0.0
        %968 = vmatpush1.msra.mxu0 0.0
        %969 = vmatprep.subr.mxu0 0.0
        %970 = vmatpush1.msra.mxu0 0.0
        %971 = vmatprep.subr.mxu0 0.0
        %972 = vmatpush1.msra.mxu0 0.0
        %973 = vmatprep.subr.mxu0 0.0
        %974 = vmatpush1.msra.mxu0 0.0
        %975 = vmatprep.subr.mxu0 0.0
        %976 = vmatpush1.msra.mxu0 0.0
        %977 = vmatprep.subr.mxu0 0.0
        %978 = vmatpush1.msra.mxu0 0.0
        %979 = vmatprep.subr.mxu0 0.0
        %980 = vmatpush1.msra.mxu0 0.0
        %981 = vmatprep.subr.mxu0 0.0
        %982 = vmatpush1.msra.mxu0 0.0
        %983 = vmatprep.subr.mxu0 0.0
        %984 = vmatpush1.msra.mxu0 0.0
        %985 = vmatprep.subr.mxu0 0.0
        %986 = vmatpush1.msra.mxu0 0.0
        %987 = vmatprep.subr.mxu0 0.0
        %988 = vmatpush1.msra.mxu0 0.0
        %989 = vmatprep.subr.mxu0 0.0
        %990 = vmatpush1.msra.mxu0 0.0
        %991 = vmatprep.subr.mxu0 0.0
        %992 = vmatpush1.msra.mxu0 0.0
        %993 = vmatprep.subr.mxu0 0.0
        %994 = vmatpush1.msra.mxu0 0.0
        %995 = vmatprep.subr.mxu0 0.0
        %996 = vmatpush1.msra.mxu0 0.0
        %997 = vmatprep.subr.mxu0 0.0
        %998 = vmatpush1.msra.mxu0 0.0
        %999 = vmatprep.subr.mxu0 0.0
        %1000 = vmatpush1.msra.mxu0 0.0
        %1001 = vmatprep.subr.mxu0 0.0
        %1002 = vmatpush1.msra.mxu0 0.0
        %1003 = vmatprep.mubr.f32.mxu0 0.0
        %1004 = vmatmul.mubr.f32.gmra.mrb[0].mxu0 %v928
        %v1005 = vpop.f32.mrb[0].mxu0
        %v1006 = vadd.f32 0.0, %v1005
        %v1007 = vpop.f32.mrb[0].mxu0
        %v1008 = vadd.f32 0.0, %v1007
        %1009 = vmatprep.mubr.f32.mxu0 0.0
        %1010 = vmatmul.mubr.f32.gmra.mrb[0].mxu0 %v931
        %v1011 = vpop.f32.mrb[0].mxu0
        %v1012 = vadd.f32 0.0, %v1011
        %v1013 = vpop.f32.mrb[0].mxu0
        %v1014 = vadd.f32 0.0, %v1013
        %1015 = vdwg.mxu0
        %1016 = vmatprep.subr.mxu0 0.0
        %1017 = vmatpush1.msra.mxu0 %v937
        %1018 = vmatprep.subr.mxu0 0.0
        %1019 = vmatpush1.msra.mxu0 0.0
        %1020 = vmatprep.subr.mxu0 0.0
        %1021 = vmatpush1.msra.mxu0 0.0
        %1022 = vmatprep.subr.mxu0 0.0
        %1023 = vmatpush1.msra.mxu0 0.0
        %1024 = vmatprep.subr.mxu0 0.0
        %1025 = vmatpush1.msra.mxu0 0.0
        %1026 = vmatprep.subr.mxu0 0.0
        %1027 = vmatpush1.msra.mxu0 0.0
        %1028 = vmatprep.subr.mxu0 0.0
        %1029 = vmatpush1.msra.mxu0 0.0
        %1030 = vmatprep.subr.mxu0 0.0
        %1031 = vmatpush1.msra.mxu0 0.0
        %1032 = vmatprep.subr.mxu0 0.0
        %1033 = vmatpush1.msra.mxu0 0.0
        %1034 = vmatprep.subr.mxu0 0.0
        %1035 = vmatpush1.msra.mxu0 0.0
        %1036 = vmatprep.subr.mxu0 0.0
        %1037 = vmatpush1.msra.mxu0 0.0
        %1038 = vmatprep.subr.mxu0 0.0
        %1039 = vmatpush1.msra.mxu0 0.0
        %1040 = vmatprep.subr.mxu0 0.0
        %1041 = vmatpush1.msra.mxu0 0.0
        %1042 = vmatprep.subr.mxu0 0.0
        %1043 = vmatpush1.msra.mxu0 0.0
        %1044 = vmatprep.subr.mxu0 0.0
        %1045 = vmatpush1.msra.mxu0 0.0
        %1046 = vmatprep.subr.mxu0 0.0
        %1047 = vmatpush1.msra.mxu0 0.0
        %1048 = vmatprep.subr.mxu0 0.0
        %1049 = vmatpush1.msra.mxu0 0.0
        %1050 = vmatprep.subr.mxu0 0.0
        %1051 = vmatpush1.msra.mxu0 0.0
        %1052 = vmatprep.subr.mxu0 0.0
        %1053 = vmatpush1.msra.mxu0 0.0
        %1054 = vmatprep.subr.mxu0 0.0
        %1055 = vmatpush1.msra.mxu0 0.0
        %1056 = vmatprep.subr.mxu0 0.0
        %1057 = vmatpush1.msra.mxu0 0.0
        %1058 = vmatprep.subr.mxu0 0.0
        %1059 = vmatpush1.msra.mxu0 0.0
        %1060 = vmatprep.subr.mxu0 0.0
        %1061 = vmatpush1.msra.mxu0 0.0
        %1062 = vmatprep.subr.mxu0 0.0
        %1063 = vmatpush1.msra.mxu0 0.0
        %1064 = vmatprep.subr.mxu0 0.0
        %1065 = vmatpush1.msra.mxu0 0.0
        %1066 = vmatprep.subr.mxu0 0.0
        %1067 = vmatpush1.msra.mxu0 0.0
        %1068 = vmatprep.subr.mxu0 0.0
        %1069 = vmatpush1.msra.mxu0 0.0
        %1070 = vmatprep.subr.mxu0 0.0
        %1071 = vmatpush1.msra.mxu0 0.0
        %1072 = vmatprep.subr.mxu0 0.0
        %1073 = vmatpush1.msra.mxu0 0.0
        %1074 = vmatprep.subr.mxu0 0.0
        %1075 = vmatpush1.msra.mxu0 0.0
        %1076 = vmatprep.subr.mxu0 0.0
        %1077 = vmatpush1.msra.mxu0 0.0
        %1078 = vmatprep.subr.mxu0 0.0
        %1079 = vmatpush1.msra.mxu0 0.0
        %1080 = vmatprep.mubr.f32.mxu0 0.0
        %1081 = vmatmul.mubr.f32.gmra.mrb[0].mxu0 %v928
        %v1082 = vpop.f32.mrb[0].mxu0
        %v1083 = vadd.f32 0.0, %v1082
        %v1084 = vpop.f32.mrb[0].mxu0
        %1085 = vmatprep.mubr.f32.mxu0 0.0
        %1086 = vmatmul.mubr.f32.gmra.mrb[0].mxu0 %v931
        %v1087 = vpop.f32.mrb[0].mxu0
        %v1088 = vadd.f32 0.0, %v1087
        %v1089 = vpop.f32.mrb[0].mxu0
        %1090 = vdwg.mxu0
        %v1091 = vadd.f32 %v909, %v1006
        %v1092 = vadd.f32 %v910, %v1008
        %v1093 = vadd.f32 %v911, %v1083
        %v1094 = vadd.f32 %v912, %v1012
        %v1095 = vadd.f32 %v913, %v1014
        %v1096 = vadd.f32 %v914, %v1088
        %s1097 = scalar_lea.vmem %s2, 64
        %v1098 = vld [vmem:[%s1097] sm:$0xff]
        %v1099 = vld [vmem:[%s1097 + $0x8] sm:$0xff]
        %1100 = vrot.lane.b32.xlu0 %v384, 109
        %v1101 = vpop.permute.xlu0 %1100
        %1102 = vrot.lane.b32.xlu0 %v393, 109
        %v1103 = vpop.permute.xlu0 %1102
        %1104 = vrot.lane.b32.xlu0 %v385, 109
        %v1105 = vpop.permute.xlu0 %1104
        %vm1106 = vcmask 891904
        %v1107 = vsel %vm1106, %v1101, %v1103
        %v1108 = vsel %vm1106, %v1103, %v1105
        %v1110 = vsel %vm403, %v1098, 0
        %v1113 = vsel %vm403, %v1099, 0
        %v1115 = vsel %vm410, %v1107, 0
        %v1117 = vsel %vm410, %v1108, 0
        %v1119 = vsel %vm410, %v1105, 0
        %1121 = vmatprep.subr.mxu0 %v1117
        %1122 = vmatpush1.msra.mxu0 %v1115
        %1123 = vmatprep.subr.mxu0 0.0
        %1124 = vmatpush1.msra.mxu0 0.0
        %1125 = vmatprep.subr.mxu0 0.0
        %1126 = vmatpush1.msra.mxu0 0.0
        %1127 = vmatprep.subr.mxu0 0.0
        %1128 = vmatpush1.msra.mxu0 0.0
        %1129 = vmatprep.subr.mxu0 0.0
        %1130 = vmatpush1.msra.mxu0 0.0
        %1131 = vmatprep.subr.mxu0 0.0
        %1132 = vmatpush1.msra.mxu0 0.0
        %1133 = vmatprep.subr.mxu0 0.0
        %1134 = vmatpush1.msra.mxu0 0.0
        %1135 = vmatprep.subr.mxu0 0.0
        %1136 = vmatpush1.msra.mxu0 0.0
        %1137 = vmatprep.subr.mxu0 0.0
        %1138 = vmatpush1.msra.mxu0 0.0
        %1139 = vmatprep.subr.mxu0 0.0
        %1140 = vmatpush1.msra.mxu0 0.0
        %1141 = vmatprep.subr.mxu0 0.0
        %1142 = vmatpush1.msra.mxu0 0.0
        %1143 = vmatprep.subr.mxu0 0.0
        %1144 = vmatpush1.msra.mxu0 0.0
        %1145 = vmatprep.subr.mxu0 0.0
        %1146 = vmatpush1.msra.mxu0 0.0
        %1147 = vmatprep.subr.mxu0 0.0
        %1148 = vmatpush1.msra.mxu0 0.0
        %1149 = vmatprep.subr.mxu0 0.0
        %1150 = vmatpush1.msra.mxu0 0.0
        %1151 = vmatprep.subr.mxu0 0.0
        %1152 = vmatpush1.msra.mxu0 0.0
        %1153 = vmatprep.subr.mxu0 0.0
        %1154 = vmatpush1.msra.mxu0 0.0
        %1155 = vmatprep.subr.mxu0 0.0
        %1156 = vmatpush1.msra.mxu0 0.0
        %1157 = vmatprep.subr.mxu0 0.0
        %1158 = vmatpush1.msra.mxu0 0.0
        %1159 = vmatprep.subr.mxu0 0.0
        %1160 = vmatpush1.msra.mxu0 0.0
        %1161 = vmatprep.subr.mxu0 0.0
        %1162 = vmatpush1.msra.mxu0 0.0
        %1163 = vmatprep.subr.mxu0 0.0
        %1164 = vmatpush1.msra.mxu0 0.0
        %1165 = vmatprep.subr.mxu0 0.0
        %1166 = vmatpush1.msra.mxu0 0.0
        %1167 = vmatprep.subr.mxu0 0.0
        %1168 = vmatpush1.msra.mxu0 0.0
        %1169 = vmatprep.subr.mxu0 0.0
        %1170 = vmatpush1.msra.mxu0 0.0
        %1171 = vmatprep.subr.mxu0 0.0
        %1172 = vmatpush1.msra.mxu0 0.0
        %1173 = vmatprep.subr.mxu0 0.0
        %1174 = vmatpush1.msra.mxu0 0.0
        %1175 = vmatprep.subr.mxu0 0.0
        %1176 = vmatpush1.msra.mxu0 0.0
        %1177 = vmatprep.subr.mxu0 0.0
        %1178 = vmatpush1.msra.mxu0 0.0
        %1179 = vmatprep.subr.mxu0 0.0
        %1180 = vmatpush1.msra.mxu0 0.0
        %1181 = vmatprep.subr.mxu0 0.0
        %1182 = vmatpush1.msra.mxu0 0.0
        %1183 = vmatprep.subr.mxu0 0.0
        %1184 = vmatpush1.msra.mxu0 0.0
        %1185 = vmatprep.mubr.f32.mxu0 0.0
        %1186 = vmatmul.mubr.f32.gmra.mrb[0].mxu0 %v1110
        %v1187 = vpop.f32.mrb[0].mxu0
        %v1188 = vadd.f32 0.0, %v1187
        %v1189 = vpop.f32.mrb[0].mxu0
        %v1190 = vadd.f32 0.0, %v1189
        %1191 = vmatprep.mubr.f32.mxu0 0.0
        %1192 = vmatmul.mubr.f32.gmra.mrb[0].mxu0 %v1113
        %v1193 = vpop.f32.mrb[0].mxu0
        %v1194 = vadd.f32 0.0, %v1193
        %v1195 = vpop.f32.mrb[0].mxu0
        %v1196 = vadd.f32 0.0, %v1195
        %1197 = vdwg.mxu0
        %1198 = vmatprep.subr.mxu0 0.0
        %1199 = vmatpush1.msra.mxu0 %v1119
        %1200 = vmatprep.subr.mxu0 0.0
        %1201 = vmatpush1.msra.mxu0 0.0
        %1202 = vmatprep.subr.mxu0 0.0
        %1203 = vmatpush1.msra.mxu0 0.0
        %1204 = vmatprep.subr.mxu0 0.0
        %1205 = vmatpush1.msra.mxu0 0.0
        %1206 = vmatprep.subr.mxu0 0.0
        %1207 = vmatpush1.msra.mxu0 0.0
        %1208 = vmatprep.subr.mxu0 0.0
        %1209 = vmatpush1.msra.mxu0 0.0
        %1210 = vmatprep.subr.mxu0 0.0
        %1211 = vmatpush1.msra.mxu0 0.0
        %1212 = vmatprep.subr.mxu0 0.0
        %1213 = vmatpush1.msra.mxu0 0.0
        %1214 = vmatprep.subr.mxu0 0.0
        %1215 = vmatpush1.msra.mxu0 0.0
        %1216 = vmatprep.subr.mxu0 0.0
        %1217 = vmatpush1.msra.mxu0 0.0
        %1218 = vmatprep.subr.mxu0 0.0
        %1219 = vmatpush1.msra.mxu0 0.0
        %1220 = vmatprep.subr.mxu0 0.0
        %1221 = vmatpush1.msra.mxu0 0.0
        %1222 = vmatprep.subr.mxu0 0.0
        %1223 = vmatpush1.msra.mxu0 0.0
        %1224 = vmatprep.subr.mxu0 0.0
        %1225 = vmatpush1.msra.mxu0 0.0
        %1226 = vmatprep.subr.mxu0 0.0
        %1227 = vmatpush1.msra.mxu0 0.0
        %1228 = vmatprep.subr.mxu0 0.0
        %1229 = vmatpush1.msra.mxu0 0.0
        %1230 = vmatprep.subr.mxu0 0.0
        %1231 = vmatpush1.msra.mxu0 0.0
        %1232 = vmatprep.subr.mxu0 0.0
        %1233 = vmatpush1.msra.mxu0 0.0
        %1234 = vmatprep.subr.mxu0 0.0
        %1235 = vmatpush1.msra.mxu0 0.0
        %1236 = vmatprep.subr.mxu0 0.0
        %1237 = vmatpush1.msra.mxu0 0.0
        %1238 = vmatprep.subr.mxu0 0.0
        %1239 = vmatpush1.msra.mxu0 0.0
        %1240 = vmatprep.subr.mxu0 0.0
        %1241 = vmatpush1.msra.mxu0 0.0
        %1242 = vmatprep.subr.mxu0 0.0
        %1243 = vmatpush1.msra.mxu0 0.0
        %1244 = vmatprep.subr.mxu0 0.0
        %1245 = vmatpush1.msra.mxu0 0.0
        %1246 = vmatprep.subr.mxu0 0.0
        %1247 = vmatpush1.msra.mxu0 0.0
        %1248 = vmatprep.subr.mxu0 0.0
        %1249 = vmatpush1.msra.mxu0 0.0
        %1250 = vmatprep.subr.mxu0 0.0
        %1251 = vmatpush1.msra.mxu0 0.0
        %1252 = vmatprep.subr.mxu0 0.0
        %1253 = vmatpush1.msra.mxu0 0.0
        %1254 = vmatprep.subr.mxu0 0.0
        %1255 = vmatpush1.msra.mxu0 0.0
        %1256 = vmatprep.subr.mxu0 0.0
        %1257 = vmatpush1.msra.mxu0 0.0
        %1258 = vmatprep.subr.mxu0 0.0
        %1259 = vmatpush1.msra.mxu0 0.0
        %1260 = vmatprep.subr.mxu0 0.0
        %1261 = vmatpush1.msra.mxu0 0.0
        %1262 = vmatprep.mubr.f32.mxu0 0.0
        %1263 = vmatmul.mubr.f32.gmra.mrb[0].mxu0 %v1110
        %v1264 = vpop.f32.mrb[0].mxu0
        %v1265 = vadd.f32 0.0, %v1264
        %v1266 = vpop.f32.mrb[0].mxu0
        %1267 = vmatprep.mubr.f32.mxu0 0.0
        %1268 = vmatmul.mubr.f32.gmra.mrb[0].mxu0 %v1113
        %v1269 = vpop.f32.mrb[0].mxu0
        %v1270 = vadd.f32 0.0, %v1269
        %v1271 = vpop.f32.mrb[0].mxu0
        %1272 = vdwg.mxu0
        %v1273 = vadd.f32 %v1091, %v1188
        %v1274 = vadd.f32 %v1092, %v1190
        %v1275 = vadd.f32 %v1093, %v1265
        %v1276 = vadd.f32 %v1094, %v1194
        %v1277 = vadd.f32 %v1095, %v1196
        %v1278 = vadd.f32 %v1096, %v1270
        %s1279 = scalar_lea.vmem %s2, 80
        %v1280 = vld [vmem:[%s1279] sm:$0xff]
        %v1281 = vld [vmem:[%s1279 + $0x8] sm:$0xff]
        %1282 = vrot.lane.b32.xlu0 %v384, 108
        %v1283 = vpop.permute.xlu0 %1282
        %1284 = vrot.lane.b32.xlu0 %v393, 108
        %v1285 = vpop.permute.xlu0 %1284
        %1286 = vrot.lane.b32.xlu0 %v385, 108
        %v1287 = vpop.permute.xlu0 %1286
        %vm1288 = vcmask 883712
        %v1289 = vsel %vm1288, %v1283, %v1285
        %v1290 = vsel %vm1288, %v1285, %v1287
        %v1292 = vsel %vm403, %v1280, 0
        %v1295 = vsel %vm403, %v1281, 0
        %v1297 = vsel %vm410, %v1289, 0
        %v1299 = vsel %vm410, %v1290, 0
        %v1301 = vsel %vm410, %v1287, 0
        %1303 = vmatprep.subr.mxu0 %v1299
        %1304 = vmatpush1.msra.mxu0 %v1297
        %1305 = vmatprep.subr.mxu0 0.0
        %1306 = vmatpush1.msra.mxu0 0.0
        %1307 = vmatprep.subr.mxu0 0.0
        %1308 = vmatpush1.msra.mxu0 0.0
        %1309 = vmatprep.subr.mxu0 0.0
        %1310 = vmatpush1.msra.mxu0 0.0
        %1311 = vmatprep.subr.mxu0 0.0
        %1312 = vmatpush1.msra.mxu0 0.0
        %1313 = vmatprep.subr.mxu0 0.0
        %1314 = vmatpush1.msra.mxu0 0.0
        %1315 = vmatprep.subr.mxu0 0.0
        %1316 = vmatpush1.msra.mxu0 0.0
        %1317 = vmatprep.subr.mxu0 0.0
        %1318 = vmatpush1.msra.mxu0 0.0
        %1319 = vmatprep.subr.mxu0 0.0
        %1320 = vmatpush1.msra.mxu0 0.0
        %1321 = vmatprep.subr.mxu0 0.0
        %1322 = vmatpush1.msra.mxu0 0.0
        %1323 = vmatprep.subr.mxu0 0.0
        %1324 = vmatpush1.msra.mxu0 0.0
        %1325 = vmatprep.subr.mxu0 0.0
        %1326 = vmatpush1.msra.mxu0 0.0
        %1327 = vmatprep.subr.mxu0 0.0
        %1328 = vmatpush1.msra.mxu0 0.0
        %1329 = vmatprep.subr.mxu0 0.0
        %1330 = vmatpush1.msra.mxu0 0.0
        %1331 = vmatprep.subr.mxu0 0.0
        %1332 = vmatpush1.msra.mxu0 0.0
        %1333 = vmatprep.subr.mxu0 0.0
        %1334 = vmatpush1.msra.mxu0 0.0
        %1335 = vmatprep.subr.mxu0 0.0
        %1336 = vmatpush1.msra.mxu0 0.0
        %1337 = vmatprep.subr.mxu0 0.0
        %1338 = vmatpush1.msra.mxu0 0.0
        %1339 = vmatprep.subr.mxu0 0.0
        %1340 = vmatpush1.msra.mxu0 0.0
        %1341 = vmatprep.subr.mxu0 0.0
        %1342 = vmatpush1.msra.mxu0 0.0
        %1343 = vmatprep.subr.mxu0 0.0
        %1344 = vmatpush1.msra.mxu0 0.0
        %1345 = vmatprep.subr.mxu0 0.0
        %1346 = vmatpush1.msra.mxu0 0.0
        %1347 = vmatprep.subr.mxu0 0.0
        %1348 = vmatpush1.msra.mxu0 0.0
        %1349 = vmatprep.subr.mxu0 0.0
        %1350 = vmatpush1.msra.mxu0 0.0
        %1351 = vmatprep.subr.mxu0 0.0
        %1352 = vmatpush1.msra.mxu0 0.0
        %1353 = vmatprep.subr.mxu0 0.0
        %1354 = vmatpush1.msra.mxu0 0.0
        %1355 = vmatprep.subr.mxu0 0.0
        %1356 = vmatpush1.msra.mxu0 0.0
        %1357 = vmatprep.subr.mxu0 0.0
        %1358 = vmatpush1.msra.mxu0 0.0
        %1359 = vmatprep.subr.mxu0 0.0
        %1360 = vmatpush1.msra.mxu0 0.0
        %1361 = vmatprep.subr.mxu0 0.0
        %1362 = vmatpush1.msra.mxu0 0.0
        %1363 = vmatprep.subr.mxu0 0.0
        %1364 = vmatpush1.msra.mxu0 0.0
        %1365 = vmatprep.subr.mxu0 0.0
        %1366 = vmatpush1.msra.mxu0 0.0
        %1367 = vmatprep.mubr.f32.mxu0 0.0
        %1368 = vmatmul.mubr.f32.gmra.mrb[0].mxu0 %v1292
        %v1369 = vpop.f32.mrb[0].mxu0
        %v1370 = vadd.f32 0.0, %v1369
        %v1371 = vpop.f32.mrb[0].mxu0
        %v1372 = vadd.f32 0.0, %v1371
        %1373 = vmatprep.mubr.f32.mxu0 0.0
        %1374 = vmatmul.mubr.f32.gmra.mrb[0].mxu0 %v1295
        %v1375 = vpop.f32.mrb[0].mxu0
        %v1376 = vadd.f32 0.0, %v1375
        %v1377 = vpop.f32.mrb[0].mxu0
        %v1378 = vadd.f32 0.0, %v1377
        %1379 = vdwg.mxu0
        %1380 = vmatprep.subr.mxu0 0.0
        %1381 = vmatpush1.msra.mxu0 %v1301
        %1382 = vmatprep.subr.mxu0 0.0
        %1383 = vmatpush1.msra.mxu0 0.0
        %1384 = vmatprep.subr.mxu0 0.0
        %1385 = vmatpush1.msra.mxu0 0.0
        %1386 = vmatprep.subr.mxu0 0.0
        %1387 = vmatpush1.msra.mxu0 0.0
        %1388 = vmatprep.subr.mxu0 0.0
        %1389 = vmatpush1.msra.mxu0 0.0
        %1390 = vmatprep.subr.mxu0 0.0
        %1391 = vmatpush1.msra.mxu0 0.0
        %1392 = vmatprep.subr.mxu0 0.0
        %1393 = vmatpush1.msra.mxu0 0.0
        %1394 = vmatprep.subr.mxu0 0.0
        %1395 = vmatpush1.msra.mxu0 0.0
        %1396 = vmatprep.subr.mxu0 0.0
        %1397 = vmatpush1.msra.mxu0 0.0
        %1398 = vmatprep.subr.mxu0 0.0
        %1399 = vmatpush1.msra.mxu0 0.0
        %1400 = vmatprep.subr.mxu0 0.0
        %1401 = vmatpush1.msra.mxu0 0.0
        %1402 = vmatprep.subr.mxu0 0.0
        %1403 = vmatpush1.msra.mxu0 0.0
        %1404 = vmatprep.subr.mxu0 0.0
        %1405 = vmatpush1.msra.mxu0 0.0
        %1406 = vmatprep.subr.mxu0 0.0
        %1407 = vmatpush1.msra.mxu0 0.0
        %1408 = vmatprep.subr.mxu0 0.0
        %1409 = vmatpush1.msra.mxu0 0.0
        %1410 = vmatprep.subr.mxu0 0.0
        %1411 = vmatpush1.msra.mxu0 0.0
        %1412 = vmatprep.subr.mxu0 0.0
        %1413 = vmatpush1.msra.mxu0 0.0
        %1414 = vmatprep.subr.mxu0 0.0
        %1415 = vmatpush1.msra.mxu0 0.0
        %1416 = vmatprep.subr.mxu0 0.0
        %1417 = vmatpush1.msra.mxu0 0.0
        %1418 = vmatprep.subr.mxu0 0.0
        %1419 = vmatpush1.msra.mxu0 0.0
        %1420 = vmatprep.subr.mxu0 0.0
        %1421 = vmatpush1.msra.mxu0 0.0
        %1422 = vmatprep.subr.mxu0 0.0
        %1423 = vmatpush1.msra.mxu0 0.0
        %1424 = vmatprep.subr.mxu0 0.0
        %1425 = vmatpush1.msra.mxu0 0.0
        %1426 = vmatprep.subr.mxu0 0.0
        %1427 = vmatpush1.msra.mxu0 0.0
        %1428 = vmatprep.subr.mxu0 0.0
        %1429 = vmatpush1.msra.mxu0 0.0
        %1430 = vmatprep.subr.mxu0 0.0
        %1431 = vmatpush1.msra.mxu0 0.0
        %1432 = vmatprep.subr.mxu0 0.0
        %1433 = vmatpush1.msra.mxu0 0.0
        %1434 = vmatprep.subr.mxu0 0.0
        %1435 = vmatpush1.msra.mxu0 0.0
        %1436 = vmatprep.subr.mxu0 0.0
        %1437 = vmatpush1.msra.mxu0 0.0
        %1438 = vmatprep.subr.mxu0 0.0
        %1439 = vmatpush1.msra.mxu0 0.0
        %1440 = vmatprep.subr.mxu0 0.0
        %1441 = vmatpush1.msra.mxu0 0.0
        %1442 = vmatprep.subr.mxu0 0.0
        %1443 = vmatpush1.msra.mxu0 0.0
        %1444 = vmatprep.mubr.f32.mxu0 0.0
        %1445 = vmatmul.mubr.f32.gmra.mrb[0].mxu0 %v1292
        %v1446 = vpop.f32.mrb[0].mxu0
        %v1447 = vadd.f32 0.0, %v1446
        %v1448 = vpop.f32.mrb[0].mxu0
        %1449 = vmatprep.mubr.f32.mxu0 0.0
        %1450 = vmatmul.mubr.f32.gmra.mrb[0].mxu0 %v1295
        %v1451 = vpop.f32.mrb[0].mxu0
        %v1452 = vadd.f32 0.0, %v1451
        %v1453 = vpop.f32.mrb[0].mxu0
        %1454 = vdwg.mxu0
        %v1455 = vadd.f32 %v1273, %v1370
        %v1456 = vadd.f32 %v1274, %v1372
        %v1457 = vadd.f32 %v1275, %v1447
        %v1458 = vadd.f32 %v1276, %v1376
        %v1459 = vadd.f32 %v1277, %v1378
        %v1460 = vadd.f32 %v1278, %v1452
        %s1461 = scalar_lea.vmem %s2, 96
        %v1462 = vld [vmem:[%s1461] sm:$0xff]
        %v1463 = vld [vmem:[%s1461 + $0x8] sm:$0xff]
        %1464 = vrot.lane.b32.xlu0 %v384, 92
        %v1465 = vpop.permute.xlu0 %1464
        %1466 = vrot.lane.b32.xlu0 %v393, 92
        %v1467 = vpop.permute.xlu0 %1466
        %1468 = vrot.lane.b32.xlu0 %v385, 92
        %v1469 = vpop.permute.xlu0 %1468
        %vm1470 = vcmask 752640
        %v1471 = vsel %vm1470, %v1465, %v1467
        %v1472 = vsel %vm1470, %v1467, %v1469
        %v1474 = vsel %vm403, %v1462, 0
        %v1477 = vsel %vm403, %v1463, 0
        %v1479 = vsel %vm410, %v1471, 0
        %v1481 = vsel %vm410, %v1472, 0
        %v1483 = vsel %vm410, %v1469, 0
        %1485 = vmatprep.subr.mxu0 %v1481
        %1486 = vmatpush1.msra.mxu0 %v1479
        %1487 = vmatprep.subr.mxu0 0.0
        %1488 = vmatpush1.msra.mxu0 0.0
        %1489 = vmatprep.subr.mxu0 0.0
        %1490 = vmatpush1.msra.mxu0 0.0
        %1491 = vmatprep.subr.mxu0 0.0
        %1492 = vmatpush1.msra.mxu0 0.0
        %1493 = vmatprep.subr.mxu0 0.0
        %1494 = vmatpush1.msra.mxu0 0.0
        %1495 = vmatprep.subr.mxu0 0.0
        %1496 = vmatpush1.msra.mxu0 0.0
        %1497 = vmatprep.subr.mxu0 0.0
        %1498 = vmatpush1.msra.mxu0 0.0
        %1499 = vmatprep.subr.mxu0 0.0
        %1500 = vmatpush1.msra.mxu0 0.0
        %1501 = vmatprep.subr.mxu0 0.0
        %1502 = vmatpush1.msra.mxu0 0.0
        %1503 = vmatprep.subr.mxu0 0.0
        %1504 = vmatpush1.msra.mxu0 0.0
        %1505 = vmatprep.subr.mxu0 0.0
        %1506 = vmatpush1.msra.mxu0 0.0
        %1507 = vmatprep.subr.mxu0 0.0
        %1508 = vmatpush1.msra.mxu0 0.0
        %1509 = vmatprep.subr.mxu0 0.0
        %1510 = vmatpush1.msra.mxu0 0.0
        %1511 = vmatprep.subr.mxu0 0.0
        %1512 = vmatpush1.msra.mxu0 0.0
        %1513 = vmatprep.subr.mxu0 0.0
        %1514 = vmatpush1.msra.mxu0 0.0
        %1515 = vmatprep.subr.mxu0 0.0
        %1516 = vmatpush1.msra.mxu0 0.0
        %1517 = vmatprep.subr.mxu0 0.0
        %1518 = vmatpush1.msra.mxu0 0.0
        %1519 = vmatprep.subr.mxu0 0.0
        %1520 = vmatpush1.msra.mxu0 0.0
        %1521 = vmatprep.subr.mxu0 0.0
        %1522 = vmatpush1.msra.mxu0 0.0
        %1523 = vmatprep.subr.mxu0 0.0
        %1524 = vmatpush1.msra.mxu0 0.0
        %1525 = vmatprep.subr.mxu0 0.0
        %1526 = vmatpush1.msra.mxu0 0.0
        %1527 = vmatprep.subr.mxu0 0.0
        %1528 = vmatpush1.msra.mxu0 0.0
        %1529 = vmatprep.subr.mxu0 0.0
        %1530 = vmatpush1.msra.mxu0 0.0
        %1531 = vmatprep.subr.mxu0 0.0
        %1532 = vmatpush1.msra.mxu0 0.0
        %1533 = vmatprep.subr.mxu0 0.0
        %1534 = vmatpush1.msra.mxu0 0.0
        %1535 = vmatprep.subr.mxu0 0.0
        %1536 = vmatpush1.msra.mxu0 0.0
        %1537 = vmatprep.subr.mxu0 0.0
        %1538 = vmatpush1.msra.mxu0 0.0
        %1539 = vmatprep.subr.mxu0 0.0
        %1540 = vmatpush1.msra.mxu0 0.0
        %1541 = vmatprep.subr.mxu0 0.0
        %1542 = vmatpush1.msra.mxu0 0.0
        %1543 = vmatprep.subr.mxu0 0.0
        %1544 = vmatpush1.msra.mxu0 0.0
        %1545 = vmatprep.subr.mxu0 0.0
        %1546 = vmatpush1.msra.mxu0 0.0
        %1547 = vmatprep.subr.mxu0 0.0
        %1548 = vmatpush1.msra.mxu0 0.0
        %1549 = vmatprep.mubr.f32.mxu0 0.0
        %1550 = vmatmul.mubr.f32.gmra.mrb[0].mxu0 %v1474
        %v1551 = vpop.f32.mrb[0].mxu0
        %v1552 = vadd.f32 0.0, %v1551
        %v1553 = vpop.f32.mrb[0].mxu0
        %v1554 = vadd.f32 0.0, %v1553
        %1555 = vmatprep.mubr.f32.mxu0 0.0
        %1556 = vmatmul.mubr.f32.gmra.mrb[0].mxu0 %v1477
        %v1557 = vpop.f32.mrb[0].mxu0
        %v1558 = vadd.f32 0.0, %v1557
        %v1559 = vpop.f32.mrb[0].mxu0
        %v1560 = vadd.f32 0.0, %v1559
        %1561 = vdwg.mxu0
        %1562 = vmatprep.subr.mxu0 0.0
        %1563 = vmatpush1.msra.mxu0 %v1483
        %1564 = vmatprep.subr.mxu0 0.0
        %1565 = vmatpush1.msra.mxu0 0.0
        %1566 = vmatprep.subr.mxu0 0.0
        %1567 = vmatpush1.msra.mxu0 0.0
        %1568 = vmatprep.subr.mxu0 0.0
        %1569 = vmatpush1.msra.mxu0 0.0
        %1570 = vmatprep.subr.mxu0 0.0
        %1571 = vmatpush1.msra.mxu0 0.0
        %1572 = vmatprep.subr.mxu0 0.0
        %1573 = vmatpush1.msra.mxu0 0.0
        %1574 = vmatprep.subr.mxu0 0.0
        %1575 = vmatpush1.msra.mxu0 0.0
        %1576 = vmatprep.subr.mxu0 0.0
        %1577 = vmatpush1.msra.mxu0 0.0
        %1578 = vmatprep.subr.mxu0 0.0
        %1579 = vmatpush1.msra.mxu0 0.0
        %1580 = vmatprep.subr.mxu0 0.0
        %1581 = vmatpush1.msra.mxu0 0.0
        %1582 = vmatprep.subr.mxu0 0.0
        %1583 = vmatpush1.msra.mxu0 0.0
        %1584 = vmatprep.subr.mxu0 0.0
        %1585 = vmatpush1.msra.mxu0 0.0
        %1586 = vmatprep.subr.mxu0 0.0
        %1587 = vmatpush1.msra.mxu0 0.0
        %1588 = vmatprep.subr.mxu0 0.0
        %1589 = vmatpush1.msra.mxu0 0.0
        %1590 = vmatprep.subr.mxu0 0.0
        %1591 = vmatpush1.msra.mxu0 0.0
        %1592 = vmatprep.subr.mxu0 0.0
        %1593 = vmatpush1.msra.mxu0 0.0
        %1594 = vmatprep.subr.mxu0 0.0
        %1595 = vmatpush1.msra.mxu0 0.0
        %1596 = vmatprep.subr.mxu0 0.0
        %1597 = vmatpush1.msra.mxu0 0.0
        %1598 = vmatprep.subr.mxu0 0.0
        %1599 = vmatpush1.msra.mxu0 0.0
        %1600 = vmatprep.subr.mxu0 0.0
        %1601 = vmatpush1.msra.mxu0 0.0
        %1602 = vmatprep.subr.mxu0 0.0
        %1603 = vmatpush1.msra.mxu0 0.0
        %1604 = vmatprep.subr.mxu0 0.0
        %1605 = vmatpush1.msra.mxu0 0.0
        %1606 = vmatprep.subr.mxu0 0.0
        %1607 = vmatpush1.msra.mxu0 0.0
        %1608 = vmatprep.subr.mxu0 0.0
        %1609 = vmatpush1.msra.mxu0 0.0
        %1610 = vmatprep.subr.mxu0 0.0
        %1611 = vmatpush1.msra.mxu0 0.0
        %1612 = vmatprep.subr.mxu0 0.0
        %1613 = vmatpush1.msra.mxu0 0.0
        %1614 = vmatprep.subr.mxu0 0.0
        %1615 = vmatpush1.msra.mxu0 0.0
        %1616 = vmatprep.subr.mxu0 0.0
        %1617 = vmatpush1.msra.mxu0 0.0
        %1618 = vmatprep.subr.mxu0 0.0
        %1619 = vmatpush1.msra.mxu0 0.0
        %1620 = vmatprep.subr.mxu0 0.0
        %1621 = vmatpush1.msra.mxu0 0.0
        %1622 = vmatprep.subr.mxu0 0.0
        %1623 = vmatpush1.msra.mxu0 0.0
        %1624 = vmatprep.subr.mxu0 0.0
        %1625 = vmatpush1.msra.mxu0 0.0
        %1626 = vmatprep.mubr.f32.mxu0 0.0
        %1627 = vmatmul.mubr.f32.gmra.mrb[0].mxu0 %v1474
        %v1628 = vpop.f32.mrb[0].mxu0
        %v1629 = vadd.f32 0.0, %v1628
        %v1630 = vpop.f32.mrb[0].mxu0
        %1631 = vmatprep.mubr.f32.mxu0 0.0
        %1632 = vmatmul.mubr.f32.gmra.mrb[0].mxu0 %v1477
        %v1633 = vpop.f32.mrb[0].mxu0
        %v1634 = vadd.f32 0.0, %v1633
        %v1635 = vpop.f32.mrb[0].mxu0
        %1636 = vdwg.mxu0
        %v1637 = vadd.f32 %v1455, %v1552
        %v1638 = vadd.f32 %v1456, %v1554
        %v1639 = vadd.f32 %v1457, %v1629
        %v1640 = vadd.f32 %v1458, %v1558
        %v1641 = vadd.f32 %v1459, %v1560
        %v1642 = vadd.f32 %v1460, %v1634
        %s1643 = scalar_lea.vmem %s2, 112
        %v1644 = vld [vmem:[%s1643] sm:$0xff]
        %v1645 = vld [vmem:[%s1643 + $0x8] sm:$0xff]
        %1646 = vrot.lane.b32.xlu0 %v384, 91
        %v1647 = vpop.permute.xlu0 %1646
        %1648 = vrot.lane.b32.xlu0 %v393, 91
        %v1649 = vpop.permute.xlu0 %1648
        %1650 = vrot.lane.b32.xlu0 %v385, 91
        %v1651 = vpop.permute.xlu0 %1650
        %vm1652 = vcmask 744448
        %v1653 = vsel %vm1652, %v1647, %v1649
        %v1654 = vsel %vm1652, %v1649, %v1651
        %v1656 = vsel %vm403, %v1644, 0
        %v1659 = vsel %vm403, %v1645, 0
        %v1661 = vsel %vm410, %v1653, 0
        %v1663 = vsel %vm410, %v1654, 0
        %v1665 = vsel %vm410, %v1651, 0
        %1667 = vmatprep.subr.mxu0 %v1663
        %1668 = vmatpush1.msra.mxu0 %v1661
        %1669 = vmatprep.subr.mxu0 0.0
        %1670 = vmatpush1.msra.mxu0 0.0
        %1671 = vmatprep.subr.mxu0 0.0
        %1672 = vmatpush1.msra.mxu0 0.0
        %1673 = vmatprep.subr.mxu0 0.0
        %1674 = vmatpush1.msra.mxu0 0.0
        %1675 = vmatprep.subr.mxu0 0.0
        %1676 = vmatpush1.msra.mxu0 0.0
        %1677 = vmatprep.subr.mxu0 0.0
        %1678 = vmatpush1.msra.mxu0 0.0
        %1679 = vmatprep.subr.mxu0 0.0
        %1680 = vmatpush1.msra.mxu0 0.0
        %1681 = vmatprep.subr.mxu0 0.0
        %1682 = vmatpush1.msra.mxu0 0.0
        %1683 = vmatprep.subr.mxu0 0.0
        %1684 = vmatpush1.msra.mxu0 0.0
        %1685 = vmatprep.subr.mxu0 0.0
        %1686 = vmatpush1.msra.mxu0 0.0
        %1687 = vmatprep.subr.mxu0 0.0
        %1688 = vmatpush1.msra.mxu0 0.0
        %1689 = vmatprep.subr.mxu0 0.0
        %1690 = vmatpush1.msra.mxu0 0.0
        %1691 = vmatprep.subr.mxu0 0.0
        %1692 = vmatpush1.msra.mxu0 0.0
        %1693 = vmatprep.subr.mxu0 0.0
        %1694 = vmatpush1.msra.mxu0 0.0
        %1695 = vmatprep.subr.mxu0 0.0
        %1696 = vmatpush1.msra.mxu0 0.0
        %1697 = vmatprep.subr.mxu0 0.0
        %1698 = vmatpush1.msra.mxu0 0.0
        %1699 = vmatprep.subr.mxu0 0.0
        %1700 = vmatpush1.msra.mxu0 0.0
        %1701 = vmatprep.subr.mxu0 0.0
        %1702 = vmatpush1.msra.mxu0 0.0
        %1703 = vmatprep.subr.mxu0 0.0
        %1704 = vmatpush1.msra.mxu0 0.0
        %1705 = vmatprep.subr.mxu0 0.0
        %1706 = vmatpush1.msra.mxu0 0.0
        %1707 = vmatprep.subr.mxu0 0.0
        %1708 = vmatpush1.msra.mxu0 0.0
        %1709 = vmatprep.subr.mxu0 0.0
        %1710 = vmatpush1.msra.mxu0 0.0
        %1711 = vmatprep.subr.mxu0 0.0
        %1712 = vmatpush1.msra.mxu0 0.0
        %1713 = vmatprep.subr.mxu0 0.0
        %1714 = vmatpush1.msra.mxu0 0.0
        %1715 = vmatprep.subr.mxu0 0.0
        %1716 = vmatpush1.msra.mxu0 0.0
        %1717 = vmatprep.subr.mxu0 0.0
        %1718 = vmatpush1.msra.mxu0 0.0
        %1719 = vmatprep.subr.mxu0 0.0
        %1720 = vmatpush1.msra.mxu0 0.0
        %1721 = vmatprep.subr.mxu0 0.0
        %1722 = vmatpush1.msra.mxu0 0.0
        %1723 = vmatprep.subr.mxu0 0.0
        %1724 = vmatpush1.msra.mxu0 0.0
        %1725 = vmatprep.subr.mxu0 0.0
        %1726 = vmatpush1.msra.mxu0 0.0
        %1727 = vmatprep.subr.mxu0 0.0
        %1728 = vmatpush1.msra.mxu0 0.0
        %1729 = vmatprep.subr.mxu0 0.0
        %1730 = vmatpush1.msra.mxu0 0.0
        %1731 = vmatprep.mubr.f32.mxu0 0.0
        %1732 = vmatmul.mubr.f32.gmra.mrb[0].mxu0 %v1656
        %v1733 = vpop.f32.mrb[0].mxu0
        %v1734 = vadd.f32 0.0, %v1733
        %v1735 = vpop.f32.mrb[0].mxu0
        %v1736 = vadd.f32 0.0, %v1735
        %1737 = vmatprep.mubr.f32.mxu0 0.0
        %1738 = vmatmul.mubr.f32.gmra.mrb[0].mxu0 %v1659
        %v1739 = vpop.f32.mrb[0].mxu0
        %v1740 = vadd.f32 0.0, %v1739
        %v1741 = vpop.f32.mrb[0].mxu0
        %v1742 = vadd.f32 0.0, %v1741
        %1743 = vdwg.mxu0
        %1744 = vmatprep.subr.mxu0 0.0
        %1745 = vmatpush1.msra.mxu0 %v1665
        %1746 = vmatprep.subr.mxu0 0.0
        %1747 = vmatpush1.msra.mxu0 0.0
        %1748 = vmatprep.subr.mxu0 0.0
        %1749 = vmatpush1.msra.mxu0 0.0
        %1750 = vmatprep.subr.mxu0 0.0
        %1751 = vmatpush1.msra.mxu0 0.0
        %1752 = vmatprep.subr.mxu0 0.0
        %1753 = vmatpush1.msra.mxu0 0.0
        %1754 = vmatprep.subr.mxu0 0.0
        %1755 = vmatpush1.msra.mxu0 0.0
        %1756 = vmatprep.subr.mxu0 0.0
        %1757 = vmatpush1.msra.mxu0 0.0
        %1758 = vmatprep.subr.mxu0 0.0
        %1759 = vmatpush1.msra.mxu0 0.0
        %1760 = vmatprep.subr.mxu0 0.0
        %1761 = vmatpush1.msra.mxu0 0.0
        %1762 = vmatprep.subr.mxu0 0.0
        %1763 = vmatpush1.msra.mxu0 0.0
        %1764 = vmatprep.subr.mxu0 0.0
        %1765 = vmatpush1.msra.mxu0 0.0
        %1766 = vmatprep.subr.mxu0 0.0
        %1767 = vmatpush1.msra.mxu0 0.0
        %1768 = vmatprep.subr.mxu0 0.0
        %1769 = vmatpush1.msra.mxu0 0.0
        %1770 = vmatprep.subr.mxu0 0.0
        %1771 = vmatpush1.msra.mxu0 0.0
        %1772 = vmatprep.subr.mxu0 0.0
        %1773 = vmatpush1.msra.mxu0 0.0
        %1774 = vmatprep.subr.mxu0 0.0
        %1775 = vmatpush1.msra.mxu0 0.0
        %1776 = vmatprep.subr.mxu0 0.0
        %1777 = vmatpush1.msra.mxu0 0.0
        %1778 = vmatprep.subr.mxu0 0.0
        %1779 = vmatpush1.msra.mxu0 0.0
        %1780 = vmatprep.subr.mxu0 0.0
        %1781 = vmatpush1.msra.mxu0 0.0
        %1782 = vmatprep.subr.mxu0 0.0
        %1783 = vmatpush1.msra.mxu0 0.0
        %1784 = vmatprep.subr.mxu0 0.0
        %1785 = vmatpush1.msra.mxu0 0.0
        %1786 = vmatprep.subr.mxu0 0.0
        %1787 = vmatpush1.msra.mxu0 0.0
        %1788 = vmatprep.subr.mxu0 0.0
        %1789 = vmatpush1.msra.mxu0 0.0
        %1790 = vmatprep.subr.mxu0 0.0
        %1791 = vmatpush1.msra.mxu0 0.0
        %1792 = vmatprep.subr.mxu0 0.0
        %1793 = vmatpush1.msra.mxu0 0.0
        %1794 = vmatprep.subr.mxu0 0.0
        %1795 = vmatpush1.msra.mxu0 0.0
        %1796 = vmatprep.subr.mxu0 0.0
        %1797 = vmatpush1.msra.mxu0 0.0
        %1798 = vmatprep.subr.mxu0 0.0
        %1799 = vmatpush1.msra.mxu0 0.0
        %1800 = vmatprep.subr.mxu0 0.0
        %1801 = vmatpush1.msra.mxu0 0.0
        %1802 = vmatprep.subr.mxu0 0.0
        %1803 = vmatpush1.msra.mxu0 0.0
        %1804 = vmatprep.subr.mxu0 0.0
        %1805 = vmatpush1.msra.mxu0 0.0
        %1806 = vmatprep.subr.mxu0 0.0
        %1807 = vmatpush1.msra.mxu0 0.0
        %1808 = vmatprep.mubr.f32.mxu0 0.0
        %1809 = vmatmul.mubr.f32.gmra.mrb[0].mxu0 %v1656
        %v1810 = vpop.f32.mrb[0].mxu0
        %v1811 = vadd.f32 0.0, %v1810
        %v1812 = vpop.f32.mrb[0].mxu0
        %1813 = vmatprep.mubr.f32.mxu0 0.0
        %1814 = vmatmul.mubr.f32.gmra.mrb[0].mxu0 %v1659
        %v1815 = vpop.f32.mrb[0].mxu0
        %v1816 = vadd.f32 0.0, %v1815
        %v1817 = vpop.f32.mrb[0].mxu0
        %1818 = vdwg.mxu0
        %v1819 = vadd.f32 %v1637, %v1734
        %v1820 = vadd.f32 %v1638, %v1736
        %v1821 = vadd.f32 %v1639, %v1811
        %v1822 = vadd.f32 %v1640, %v1740
        %v1823 = vadd.f32 %v1641, %v1742
        %v1824 = vadd.f32 %v1642, %v1816
        %s1825 = scalar_lea.vmem %s2, 128
        %v1826 = vld [vmem:[%s1825] sm:$0xff]
        %v1827 = vld [vmem:[%s1825 + $0x8] sm:$0xff]
        %1828 = vrot.lane.b32.xlu0 %v384, 90
        %v1829 = vpop.permute.xlu0 %1828
        %1830 = vrot.lane.b32.xlu0 %v393, 90
        %v1831 = vpop.permute.xlu0 %1830
        %1832 = vrot.lane.b32.xlu0 %v385, 90
        %v1833 = vpop.permute.xlu0 %1832
        %vm1834 = vcmask 736256
        %v1835 = vsel %vm1834, %v1829, %v1831
        %v1836 = vsel %vm1834, %v1831, %v1833
        %v1838 = vsel %vm403, %v1826, 0
        %v1841 = vsel %vm403, %v1827, 0
        %v1843 = vsel %vm410, %v1835, 0
        %v1845 = vsel %vm410, %v1836, 0
        %v1847 = vsel %vm410, %v1833, 0
        %1849 = vmatprep.subr.mxu0 %v1845
        %1850 = vmatpush1.msra.mxu0 %v1843
        %1851 = vmatprep.subr.mxu0 0.0
        %1852 = vmatpush1.msra.mxu0 0.0
        %1853 = vmatprep.subr.mxu0 0.0
        %1854 = vmatpush1.msra.mxu0 0.0
        %1855 = vmatprep.subr.mxu0 0.0
        %1856 = vmatpush1.msra.mxu0 0.0
        %1857 = vmatprep.subr.mxu0 0.0
        %1858 = vmatpush1.msra.mxu0 0.0
        %1859 = vmatprep.subr.mxu0 0.0
        %1860 = vmatpush1.msra.mxu0 0.0
        %1861 = vmatprep.subr.mxu0 0.0
        %1862 = vmatpush1.msra.mxu0 0.0
        %1863 = vmatprep.subr.mxu0 0.0
        %1864 = vmatpush1.msra.mxu0 0.0
        %1865 = vmatprep.subr.mxu0 0.0
        %1866 = vmatpush1.msra.mxu0 0.0
        %1867 = vmatprep.subr.mxu0 0.0
        %1868 = vmatpush1.msra.mxu0 0.0
        %1869 = vmatprep.subr.mxu0 0.0
        %1870 = vmatpush1.msra.mxu0 0.0
        %1871 = vmatprep.subr.mxu0 0.0
        %1872 = vmatpush1.msra.mxu0 0.0
        %1873 = vmatprep.subr.mxu0 0.0
        %1874 = vmatpush1.msra.mxu0 0.0
        %1875 = vmatprep.subr.mxu0 0.0
        %1876 = vmatpush1.msra.mxu0 0.0
        %1877 = vmatprep.subr.mxu0 0.0
        %1878 = vmatpush1.msra.mxu0 0.0
        %1879 = vmatprep.subr.mxu0 0.0
        %1880 = vmatpush1.msra.mxu0 0.0
        %1881 = vmatprep.subr.mxu0 0.0
        %1882 = vmatpush1.msra.mxu0 0.0
        %1883 = vmatprep.subr.mxu0 0.0
        %1884 = vmatpush1.msra.mxu0 0.0
        %1885 = vmatprep.subr.mxu0 0.0
        %1886 = vmatpush1.msra.mxu0 0.0
        %1887 = vmatprep.subr.mxu0 0.0
        %1888 = vmatpush1.msra.mxu0 0.0
        %1889 = vmatprep.subr.mxu0 0.0
        %1890 = vmatpush1.msra.mxu0 0.0
        %1891 = vmatprep.subr.mxu0 0.0
        %1892 = vmatpush1.msra.mxu0 0.0
        %1893 = vmatprep.subr.mxu0 0.0
        %1894 = vmatpush1.msra.mxu0 0.0
        %1895 = vmatprep.subr.mxu0 0.0
        %1896 = vmatpush1.msra.mxu0 0.0
        %1897 = vmatprep.subr.mxu0 0.0
        %1898 = vmatpush1.msra.mxu0 0.0
        %1899 = vmatprep.subr.mxu0 0.0
        %1900 = vmatpush1.msra.mxu0 0.0
        %1901 = vmatprep.subr.mxu0 0.0
        %1902 = vmatpush1.msra.mxu0 0.0
        %1903 = vmatprep.subr.mxu0 0.0
        %1904 = vmatpush1.msra.mxu0 0.0
        %1905 = vmatprep.subr.mxu0 0.0
        %1906 = vmatpush1.msra.mxu0 0.0
        %1907 = vmatprep.subr.mxu0 0.0
        %1908 = vmatpush1.msra.mxu0 0.0
        %1909 = vmatprep.subr.mxu0 0.0
        %1910 = vmatpush1.msra.mxu0 0.0
        %1911 = vmatprep.subr.mxu0 0.0
        %1912 = vmatpush1.msra.mxu0 0.0
        %1913 = vmatprep.mubr.f32.mxu0 0.0
        %1914 = vmatmul.mubr.f32.gmra.mrb[0].mxu0 %v1838
        %v1915 = vpop.f32.mrb[0].mxu0
        %v1916 = vadd.f32 0.0, %v1915
        %v1917 = vpop.f32.mrb[0].mxu0
        %v1918 = vadd.f32 0.0, %v1917
        %1919 = vmatprep.mubr.f32.mxu0 0.0
        %1920 = vmatmul.mubr.f32.gmra.mrb[0].mxu0 %v1841
        %v1921 = vpop.f32.mrb[0].mxu0
        %v1922 = vadd.f32 0.0, %v1921
        %v1923 = vpop.f32.mrb[0].mxu0
        %v1924 = vadd.f32 0.0, %v1923
        %1925 = vdwg.mxu0
        %1926 = vmatprep.subr.mxu0 0.0
        %1927 = vmatpush1.msra.mxu0 %v1847
        %1928 = vmatprep.subr.mxu0 0.0
        %1929 = vmatpush1.msra.mxu0 0.0
        %1930 = vmatprep.subr.mxu0 0.0
        %1931 = vmatpush1.msra.mxu0 0.0
        %1932 = vmatprep.subr.mxu0 0.0
        %1933 = vmatpush1.msra.mxu0 0.0
        %1934 = vmatprep.subr.mxu0 0.0
        %1935 = vmatpush1.msra.mxu0 0.0
        %1936 = vmatprep.subr.mxu0 0.0
        %1937 = vmatpush1.msra.mxu0 0.0
        %1938 = vmatprep.subr.mxu0 0.0
        %1939 = vmatpush1.msra.mxu0 0.0
        %1940 = vmatprep.subr.mxu0 0.0
        %1941 = vmatpush1.msra.mxu0 0.0
        %1942 = vmatprep.subr.mxu0 0.0
        %1943 = vmatpush1.msra.mxu0 0.0
        %1944 = vmatprep.subr.mxu0 0.0
        %1945 = vmatpush1.msra.mxu0 0.0
        %1946 = vmatprep.subr.mxu0 0.0
        %1947 = vmatpush1.msra.mxu0 0.0
        %1948 = vmatprep.subr.mxu0 0.0
        %1949 = vmatpush1.msra.mxu0 0.0
        %1950 = vmatprep.subr.mxu0 0.0
        %1951 = vmatpush1.msra.mxu0 0.0
        %1952 = vmatprep.subr.mxu0 0.0
        %1953 = vmatpush1.msra.mxu0 0.0
        %1954 = vmatprep.subr.mxu0 0.0
        %1955 = vmatpush1.msra.mxu0 0.0
        %1956 = vmatprep.subr.mxu0 0.0
        %1957 = vmatpush1.msra.mxu0 0.0
        %1958 = vmatprep.subr.mxu0 0.0
        %1959 = vmatpush1.msra.mxu0 0.0
        %1960 = vmatprep.subr.mxu0 0.0
        %1961 = vmatpush1.msra.mxu0 0.0
        %1962 = vmatprep.subr.mxu0 0.0
        %1963 = vmatpush1.msra.mxu0 0.0
        %1964 = vmatprep.subr.mxu0 0.0
        %1965 = vmatpush1.msra.mxu0 0.0
        %1966 = vmatprep.subr.mxu0 0.0
        %1967 = vmatpush1.msra.mxu0 0.0
        %1968 = vmatprep.subr.mxu0 0.0
        %1969 = vmatpush1.msra.mxu0 0.0
        %1970 = vmatprep.subr.mxu0 0.0
        %1971 = vmatpush1.msra.mxu0 0.0
        %1972 = vmatprep.subr.mxu0 0.0
        %1973 = vmatpush1.msra.mxu0 0.0
        %1974 = vmatprep.subr.mxu0 0.0
        %1975 = vmatpush1.msra.mxu0 0.0
        %1976 = vmatprep.subr.mxu0 0.0
        %1977 = vmatpush1.msra.mxu0 0.0
        %1978 = vmatprep.subr.mxu0 0.0
        %1979 = vmatpush1.msra.mxu0 0.0
        %1980 = vmatprep.subr.mxu0 0.0
        %1981 = vmatpush1.msra.mxu0 0.0
        %1982 = vmatprep.subr.mxu0 0.0
        %1983 = vmatpush1.msra.mxu0 0.0
        %1984 = vmatprep.subr.mxu0 0.0
        %1985 = vmatpush1.msra.mxu0 0.0
        %1986 = vmatprep.subr.mxu0 0.0
        %1987 = vmatpush1.msra.mxu0 0.0
        %1988 = vmatprep.subr.mxu0 0.0
        %1989 = vmatpush1.msra.mxu0 0.0
        %1990 = vmatprep.mubr.f32.mxu0 0.0
        %1991 = vmatmul.mubr.f32.gmra.mrb[0].mxu0 %v1838
        %v1992 = vpop.f32.mrb[0].mxu0
        %v1993 = vadd.f32 0.0, %v1992
        %v1994 = vpop.f32.mrb[0].mxu0
        %1995 = vmatprep.mubr.f32.mxu0 0.0
        %1996 = vmatmul.mubr.f32.gmra.mrb[0].mxu0 %v1841
        %v1997 = vpop.f32.mrb[0].mxu0
        %v1998 = vadd.f32 0.0, %v1997
        %v1999 = vpop.f32.mrb[0].mxu0
        %2000 = vdwg.mxu0
        %v2001 = vadd.f32 %v1819, %v1916
        %v2002 = vadd.f32 %v1820, %v1918
        %v2003 = vadd.f32 %v1821, %v1993
        %v2004 = vadd.f32 %v1822, %v1922
        %v2005 = vadd.f32 %v1823, %v1924
        %v2006 = vadd.f32 %v1824, %v1998
        %v2007 = vld [vmem:[%s3] sm:$0xff]
        %v2008 = vld [vmem:[%s3 + $0x8] sm:$0xff]
        %2010 = vset.pattern.permute.xlu0 0
        %2011 = vperm.xlu0 %2010, %v2007
        %v2012 = vpop.permute.xlu0 %2011
        %2015 = vset.pattern.permute.xlu0 0
        %2016 = vperm.xlu0 %2015, %v2008
        %v2017 = vpop.permute.xlu0 %2016
        %v2019 = vadd.f32 %v2001, %v2012
        %v2020 = vadd.f32 %v2002, %v2012
        %v2021 = vadd.f32 %v2003, %v2012
        %v2022 = vadd.f32 %v2004, %v2017
        %v2023 = vadd.f32 %v2005, %v2017
        %v2024 = vadd.f32 %v2006, %v2017
        %v2025 = vmax.f32 %v2019, 0.0
        %v2026 = vmax.f32 %v2020, 0.0
        %v2027 = vmax.f32 %v2021, 0.0
        %v2028 = vmax.f32 %v2022, 0.0
        %v2029 = vmax.f32 %v2023, 0.0
        %v2030 = vmax.f32 %v2024, 0.0
        %v2031 = vld [vmem:[%s1] sm:$0x7]
        %v2033 = vlaneseq
        %v2034 = vshrl.u32 %v2033, 7
        %v2035 = vsub.s32 0, %v2034
        %v2036 = vrot.slane %v2031, %v2035
        %v2037 = vlaneseq
        %v2038 = vshrl.u32 %v2037, 7
        %v2039 = vsub.s32 1, %v2038
        %v2040 = vrot.slane %v2031, %v2039
        %v2041 = vlaneseq
        %v2042 = vshrl.u32 %v2041, 7
        %v2043 = vsub.s32 2, %v2042
        %v2044 = vrot.slane %v2031, %v2043
        %v2048 = vmul.f32 %v2025, %v2036
        %v2049 = vmul.f32 %v2026, %v2040
        %v2050 = vmul.f32 %v2027, %v2044
        %v2051 = vmul.f32 %v2028, %v2036
        %v2052 = vmul.f32 %v2029, %v2040
        %v2053 = vmul.f32 %v2030, %v2044
        %2060 = vrot.lane.b32.xlu0 %v2048, 19
        %v2061 = vpop.permute.xlu0 %2060
        %2062 = vrot.lane.b32.xlu0 %v2049, 19
        %v2063 = vpop.permute.xlu0 %2062
        %2064 = vrot.lane.b32.xlu0 %v2050, 19
        %v2065 = vpop.permute.xlu0 %2064
        %2066 = vrot.lane.b32.xlu0 %v2051, 19
        %v2067 = vpop.permute.xlu0 %2066
        %2068 = vrot.lane.b32.xlu0 %v2052, 19
        %v2069 = vpop.permute.xlu0 %2068
        %2070 = vrot.lane.b32.xlu0 %v2053, 19
        %v2071 = vpop.permute.xlu0 %2070
        %vm2072 = vcmask 154624
        %v2073 = vsel %vm2072, %v2061, %v2063
        %v2074 = vsel %vm2072, %v2063, %v2065
        %v2075 = vsel %vm2072, %v2067, %v2069
        %v2076 = vsel %vm2072, %v2069, %v2071
        %v2083 = vsel %vm2072, 0.0, %v2061
        %v2084 = vsel %vm2072, 0.0, %v2067
        %vm2085 = vcmask 416768
        %v2086 = vsel %vm2085, %v2074, 0.0
        %v2087 = vsel %vm2085, %v2076, 0.0
        %v2088 = vld [vmem:[%s4] sm:$0xff]
        %v2089 = vld [vmem:[%s4 + $0x8] sm:$0xff]
        %s2090 = scalar_lea.vmem %s4, 16
        %v2091 = vld [vmem:[%s2090] sm:$0xff]
        %v2092 = vld [vmem:[%s2090 + $0x8] sm:$0xff]
        %2097 = vrot.lane.b32.xlu0 %v2083, 127
        %v2098 = vpop.permute.xlu0 %2097
        %2099 = vrot.lane.b32.xlu0 %v2073, 127
        %v2100 = vpop.permute.xlu0 %2099
        %2101 = vrot.lane.b32.xlu0 %v2086, 127
        %v2102 = vpop.permute.xlu0 %2101
        %2103 = vrot.lane.b32.xlu0 %v2084, 127
        %v2104 = vpop.permute.xlu0 %2103
        %2105 = vrot.lane.b32.xlu0 %v2075, 127
        %v2106 = vpop.permute.xlu0 %2105
        %2107 = vrot.lane.b32.xlu0 %v2087, 127
        %v2108 = vpop.permute.xlu0 %2107
        %v2109 = vsel %vm400, %v2098, %v2100
        %v2110 = vsel %vm400, %v2100, %v2102
        %v2111 = vsel %vm400, %v2104, %v2106
        %v2112 = vsel %vm400, %v2106, %v2108
        %vm2119 = vcmask 130048
        %v2121 = vsel %vm2119, %v2091, 0
        %v2124 = vsel %vm2119, %v2092, 0
        %2126 = vmatprep.subr.mxu0 %v2110
        %2127 = vmatpush1.msra.mxu0 %v2109
        %2128 = vmatprep.subr.mxu0 %v2112
        %2129 = vmatpush1.msra.mxu0 %v2111
        %2130 = vmatprep.subr.mxu0 0.0
        %2131 = vmatpush1.msra.mxu0 0.0
        %2132 = vmatprep.subr.mxu0 0.0
        %2133 = vmatpush1.msra.mxu0 0.0
        %2134 = vmatprep.subr.mxu0 0.0
        %2135 = vmatpush1.msra.mxu0 0.0
        %2136 = vmatprep.subr.mxu0 0.0
        %2137 = vmatpush1.msra.mxu0 0.0
        %2138 = vmatprep.subr.mxu0 0.0
        %2139 = vmatpush1.msra.mxu0 0.0
        %2140 = vmatprep.subr.mxu0 0.0
        %2141 = vmatpush1.msra.mxu0 0.0
        %2142 = vmatprep.subr.mxu0 0.0
        %2143 = vmatpush1.msra.mxu0 0.0
        %2144 = vmatprep.subr.mxu0 0.0
        %2145 = vmatpush1.msra.mxu0 0.0
        %2146 = vmatprep.subr.mxu0 0.0
        %2147 = vmatpush1.msra.mxu0 0.0
        %2148 = vmatprep.subr.mxu0 0.0
        %2149 = vmatpush1.msra.mxu0 0.0
        %2150 = vmatprep.subr.mxu0 0.0
        %2151 = vmatpush1.msra.mxu0 0.0
        %2152 = vmatprep.subr.mxu0 0.0
        %2153 = vmatpush1.msra.mxu0 0.0
        %2154 = vmatprep.subr.mxu0 0.0
        %2155 = vmatpush1.msra.mxu0 0.0
        %2156 = vmatprep.subr.mxu0 0.0
        %2157 = vmatpush1.msra.mxu0 0.0
        %2158 = vmatprep.subr.mxu0 0.0
        %2159 = vmatpush1.msra.mxu0 0.0
        %2160 = vmatprep.subr.mxu0 0.0
        %2161 = vmatpush1.msra.mxu0 0.0
        %2162 = vmatprep.subr.mxu0 0.0
        %2163 = vmatpush1.msra.mxu0 0.0
        %2164 = vmatprep.subr.mxu0 0.0
        %2165 = vmatpush1.msra.mxu0 0.0
        %2166 = vmatprep.subr.mxu0 0.0
        %2167 = vmatpush1.msra.mxu0 0.0
        %2168 = vmatprep.subr.mxu0 0.0
        %2169 = vmatpush1.msra.mxu0 0.0
        %2170 = vmatprep.subr.mxu0 0.0
        %2171 = vmatpush1.msra.mxu0 0.0
        %2172 = vmatprep.subr.mxu0 0.0
        %2173 = vmatpush1.msra.mxu0 0.0
        %2174 = vmatprep.subr.mxu0 0.0
        %2175 = vmatpush1.msra.mxu0 0.0
        %2176 = vmatprep.subr.mxu0 0.0
        %2177 = vmatpush1.msra.mxu0 0.0
        %2178 = vmatprep.subr.mxu0 0.0
        %2179 = vmatpush1.msra.mxu0 0.0
        %2180 = vmatprep.subr.mxu0 0.0
        %2181 = vmatpush1.msra.mxu0 0.0
        %2182 = vmatprep.subr.mxu0 0.0
        %2183 = vmatpush1.msra.mxu0 0.0
        %2184 = vmatprep.subr.mxu0 0.0
        %2185 = vmatpush1.msra.mxu0 0.0
        %2186 = vmatprep.subr.mxu0 0.0
        %2187 = vmatpush1.msra.mxu0 0.0
        %2188 = vmatprep.subr.mxu0 0.0
        %2189 = vmatpush1.msra.mxu0 0.0
        %2190 = vmatprep.mubr.f32.mxu0 0.0
        %2191 = vmatmul.mubr.f32.gmra.mrb[0].mxu0 %v2121
        %v2192 = vpop.f32.mrb[0].mxu0
        %v2193 = vadd.f32 0.0, %v2192
        %v2194 = vpop.f32.mrb[0].mxu0
        %v2195 = vadd.f32 0.0, %v2194
        %2196 = vmatprep.mubr.f32.mxu0 0.0
        %2197 = vmatmul.mubr.f32.gmra.mrb[0].mxu0 %v2124
        %v2198 = vpop.f32.mrb[0].mxu0
        %v2199 = vadd.f32 0.0, %v2198
        %v2200 = vpop.f32.mrb[0].mxu0
        %v2201 = vadd.f32 0.0, %v2200
        %2202 = vdwg.mxu0
        %2203 = vmatprep.subr.mxu0 0.0
        %2204 = vmatpush1.msra.mxu0 %v2102
        %2205 = vmatprep.subr.mxu0 0.0
        %2206 = vmatpush1.msra.mxu0 %v2108
        %2207 = vmatprep.subr.mxu0 0.0
        %2208 = vmatpush1.msra.mxu0 0.0
        %2209 = vmatprep.subr.mxu0 0.0
        %2210 = vmatpush1.msra.mxu0 0.0
        %2211 = vmatprep.subr.mxu0 0.0
        %2212 = vmatpush1.msra.mxu0 0.0
        %2213 = vmatprep.subr.mxu0 0.0
        %2214 = vmatpush1.msra.mxu0 0.0
        %2215 = vmatprep.subr.mxu0 0.0
        %2216 = vmatpush1.msra.mxu0 0.0
        %2217 = vmatprep.subr.mxu0 0.0
        %2218 = vmatpush1.msra.mxu0 0.0
        %2219 = vmatprep.subr.mxu0 0.0
        %2220 = vmatpush1.msra.mxu0 0.0
        %2221 = vmatprep.subr.mxu0 0.0
        %2222 = vmatpush1.msra.mxu0 0.0
        %2223 = vmatprep.subr.mxu0 0.0
        %2224 = vmatpush1.msra.mxu0 0.0
        %2225 = vmatprep.subr.mxu0 0.0
        %2226 = vmatpush1.msra.mxu0 0.0
        %2227 = vmatprep.subr.mxu0 0.0
        %2228 = vmatpush1.msra.mxu0 0.0
        %2229 = vmatprep.subr.mxu0 0.0
        %2230 = vmatpush1.msra.mxu0 0.0
        %2231 = vmatprep.subr.mxu0 0.0
        %2232 = vmatpush1.msra.mxu0 0.0
        %2233 = vmatprep.subr.mxu0 0.0
        %2234 = vmatpush1.msra.mxu0 0.0
        %2235 = vmatprep.subr.mxu0 0.0
        %2236 = vmatpush1.msra.mxu0 0.0
        %2237 = vmatprep.subr.mxu0 0.0
        %2238 = vmatpush1.msra.mxu0 0.0
        %2239 = vmatprep.subr.mxu0 0.0
        %2240 = vmatpush1.msra.mxu0 0.0
        %2241 = vmatprep.subr.mxu0 0.0
        %2242 = vmatpush1.msra.mxu0 0.0
        %2243 = vmatprep.subr.mxu0 0.0
        %2244 = vmatpush1.msra.mxu0 0.0
        %2245 = vmatprep.subr.mxu0 0.0
        %2246 = vmatpush1.msra.mxu0 0.0
        %2247 = vmatprep.subr.mxu0 0.0
        %2248 = vmatpush1.msra.mxu0 0.0
        %2249 = vmatprep.subr.mxu0 0.0
        %2250 = vmatpush1.msra.mxu0 0.0
        %2251 = vmatprep.subr.mxu0 0.0
        %2252 = vmatpush1.msra.mxu0 0.0
        %2253 = vmatprep.subr.mxu0 0.0
        %2254 = vmatpush1.msra.mxu0 0.0
        %2255 = vmatprep.subr.mxu0 0.0
        %2256 = vmatpush1.msra.mxu0 0.0
        %2257 = vmatprep.subr.mxu0 0.0
        %2258 = vmatpush1.msra.mxu0 0.0
        %2259 = vmatprep.subr.mxu0 0.0
        %2260 = vmatpush1.msra.mxu0 0.0
        %2261 = vmatprep.subr.mxu0 0.0
        %2262 = vmatpush1.msra.mxu0 0.0
        %2263 = vmatprep.subr.mxu0 0.0
        %2264 = vmatpush1.msra.mxu0 0.0
        %2265 = vmatprep.subr.mxu0 0.0
        %2266 = vmatpush1.msra.mxu0 0.0
        %2267 = vmatprep.mubr.f32.mxu0 0.0
        %2268 = vmatmul.mubr.f32.gmra.mrb[0].mxu0 %v2121
        %v2269 = vpop.f32.mrb[0].mxu0
        %v2270 = vadd.f32 0.0, %v2269
        %v2271 = vpop.f32.mrb[0].mxu0
        %2272 = vmatprep.mubr.f32.mxu0 0.0
        %2273 = vmatmul.mubr.f32.gmra.mrb[0].mxu0 %v2124
        %v2274 = vpop.f32.mrb[0].mxu0
        %v2275 = vadd.f32 0.0, %v2274
        %v2276 = vpop.f32.mrb[0].mxu0
        %2277 = vdwg.mxu0
        %v2279 = vsel %vm2119, %v2088, 0
        %v2282 = vsel %vm2119, %v2089, 0
        %2284 = vmatprep.subr.mxu0 %v2073
        %2285 = vmatpush1.msra.mxu0 %v2083
        %2286 = vmatprep.subr.mxu0 %v2075
        %2287 = vmatpush1.msra.mxu0 %v2084
        %2288 = vmatprep.subr.mxu0 0.0
        %2289 = vmatpush1.msra.mxu0 0.0
        %2290 = vmatprep.subr.mxu0 0.0
        %2291 = vmatpush1.msra.mxu0 0.0
        %2292 = vmatprep.subr.mxu0 0.0
        %2293 = vmatpush1.msra.mxu0 0.0
        %2294 = vmatprep.subr.mxu0 0.0
        %2295 = vmatpush1.msra.mxu0 0.0
        %2296 = vmatprep.subr.mxu0 0.0
        %2297 = vmatpush1.msra.mxu0 0.0
        %2298 = vmatprep.subr.mxu0 0.0
        %2299 = vmatpush1.msra.mxu0 0.0
        %2300 = vmatprep.subr.mxu0 0.0
        %2301 = vmatpush1.msra.mxu0 0.0
        %2302 = vmatprep.subr.mxu0 0.0
        %2303 = vmatpush1.msra.mxu0 0.0
        %2304 = vmatprep.subr.mxu0 0.0
        %2305 = vmatpush1.msra.mxu0 0.0
        %2306 = vmatprep.subr.mxu0 0.0
        %2307 = vmatpush1.msra.mxu0 0.0
        %2308 = vmatprep.subr.mxu0 0.0
        %2309 = vmatpush1.msra.mxu0 0.0
        %2310 = vmatprep.subr.mxu0 0.0
        %2311 = vmatpush1.msra.mxu0 0.0
        %2312 = vmatprep.subr.mxu0 0.0
        %2313 = vmatpush1.msra.mxu0 0.0
        %2314 = vmatprep.subr.mxu0 0.0
        %2315 = vmatpush1.msra.mxu0 0.0
        %2316 = vmatprep.subr.mxu0 0.0
        %2317 = vmatpush1.msra.mxu0 0.0
        %2318 = vmatprep.subr.mxu0 0.0
        %2319 = vmatpush1.msra.mxu0 0.0
        %2320 = vmatprep.subr.mxu0 0.0
        %2321 = vmatpush1.msra.mxu0 0.0
        %2322 = vmatprep.subr.mxu0 0.0
        %2323 = vmatpush1.msra.mxu0 0.0
        %2324 = vmatprep.subr.mxu0 0.0
        %2325 = vmatpush1.msra.mxu0 0.0
        %2326 = vmatprep.subr.mxu0 0.0
        %2327 = vmatpush1.msra.mxu0 0.0
        %2328 = vmatprep.subr.mxu0 0.0
        %2329 = vmatpush1.msra.mxu0 0.0
        %2330 = vmatprep.subr.mxu0 0.0
        %2331 = vmatpush1.msra.mxu0 0.0
        %2332 = vmatprep.subr.mxu0 0.0
        %2333 = vmatpush1.msra.mxu0 0.0
        %2334 = vmatprep.subr.mxu0 0.0
        %2335 = vmatpush1.msra.mxu0 0.0
        %2336 = vmatprep.subr.mxu0 0.0
        %2337 = vmatpush1.msra.mxu0 0.0
        %2338 = vmatprep.subr.mxu0 0.0
        %2339 = vmatpush1.msra.mxu0 0.0
        %2340 = vmatprep.subr.mxu0 0.0
        %2341 = vmatpush1.msra.mxu0 0.0
        %2342 = vmatprep.subr.mxu0 0.0
        %2343 = vmatpush1.msra.mxu0 0.0
        %2344 = vmatprep.subr.mxu0 0.0
        %2345 = vmatpush1.msra.mxu0 0.0
        %2346 = vmatprep.subr.mxu0 0.0
        %2347 = vmatpush1.msra.mxu0 0.0
        %2348 = vmatprep.mubr.f32.mxu0 0.0
        %2349 = vmatmul.mubr.f32.gmra.mrb[0].mxu0 %v2279
        %v2350 = vpop.f32.mrb[0].mxu0
        %v2351 = vadd.f32 %v2193, %v2350
        %v2352 = vpop.f32.mrb[0].mxu0
        %v2353 = vadd.f32 %v2195, %v2352
        %2354 = vmatprep.mubr.f32.mxu0 0.0
        %2355 = vmatmul.mubr.f32.gmra.mrb[0].mxu0 %v2282
        %v2356 = vpop.f32.mrb[0].mxu0
        %v2357 = vadd.f32 %v2199, %v2356
        %v2358 = vpop.f32.mrb[0].mxu0
        %v2359 = vadd.f32 %v2201, %v2358
        %2360 = vdwg.mxu0
        %2361 = vmatprep.subr.mxu0 0.0
        %2362 = vmatpush1.msra.mxu0 %v2086
        %2363 = vmatprep.subr.mxu0 0.0
        %2364 = vmatpush1.msra.mxu0 %v2087
        %2365 = vmatprep.subr.mxu0 0.0
        %2366 = vmatpush1.msra.mxu0 0.0
        %2367 = vmatprep.subr.mxu0 0.0
        %2368 = vmatpush1.msra.mxu0 0.0
        %2369 = vmatprep.subr.mxu0 0.0
        %2370 = vmatpush1.msra.mxu0 0.0
        %2371 = vmatprep.subr.mxu0 0.0
        %2372 = vmatpush1.msra.mxu0 0.0
        %2373 = vmatprep.subr.mxu0 0.0
        %2374 = vmatpush1.msra.mxu0 0.0
        %2375 = vmatprep.subr.mxu0 0.0
        %2376 = vmatpush1.msra.mxu0 0.0
        %2377 = vmatprep.subr.mxu0 0.0
        %2378 = vmatpush1.msra.mxu0 0.0
        %2379 = vmatprep.subr.mxu0 0.0
        %2380 = vmatpush1.msra.mxu0 0.0
        %2381 = vmatprep.subr.mxu0 0.0
        %2382 = vmatpush1.msra.mxu0 0.0
        %2383 = vmatprep.subr.mxu0 0.0
        %2384 = vmatpush1.msra.mxu0 0.0
        %2385 = vmatprep.subr.mxu0 0.0
        %2386 = vmatpush1.msra.mxu0 0.0
        %2387 = vmatprep.subr.mxu0 0.0
        %2388 = vmatpush1.msra.mxu0 0.0
        %2389 = vmatprep.subr.mxu0 0.0
        %2390 = vmatpush1.msra.mxu0 0.0
        %2391 = vmatprep.subr.mxu0 0.0
        %2392 = vmatpush1.msra.mxu0 0.0
        %2393 = vmatprep.subr.mxu0 0.0
        %2394 = vmatpush1.msra.mxu0 0.0
        %2395 = vmatprep.subr.mxu0 0.0
        %2396 = vmatpush1.msra.mxu0 0.0
        %2397 = vmatprep.subr.mxu0 0.0
        %2398 = vmatpush1.msra.mxu0 0.0
        %2399 = vmatprep.subr.mxu0 0.0
        %2400 = vmatpush1.msra.mxu0 0.0
        %2401 = vmatprep.subr.mxu0 0.0
        %2402 = vmatpush1.msra.mxu0 0.0
        %2403 = vmatprep.subr.mxu0 0.0
        %2404 = vmatpush1.msra.mxu0 0.0
        %2405 = vmatprep.subr.mxu0 0.0
        %2406 = vmatpush1.msra.mxu0 0.0
        %2407 = vmatprep.subr.mxu0 0.0
        %2408 = vmatpush1.msra.mxu0 0.0
        %2409 = vmatprep.subr.mxu0 0.0
        %2410 = vmatpush1.msra.mxu0 0.0
        %2411 = vmatprep.subr.mxu0 0.0
        %2412 = vmatpush1.msra.mxu0 0.0
        %2413 = vmatprep.subr.mxu0 0.0
        %2414 = vmatpush1.msra.mxu0 0.0
        %2415 = vmatprep.subr.mxu0 0.0
        %2416 = vmatpush1.msra.mxu0 0.0
        %2417 = vmatprep.subr.mxu0 0.0
        %2418 = vmatpush1.msra.mxu0 0.0
        %2419 = vmatprep.subr.mxu0 0.0
        %2420 = vmatpush1.msra.mxu0 0.0
        %2421 = vmatprep.subr.mxu0 0.0
        %2422 = vmatpush1.msra.mxu0 0.0
        %2423 = vmatprep.subr.mxu0 0.0
        %2424 = vmatpush1.msra.mxu0 0.0
        %2425 = vmatprep.mubr.f32.mxu0 0.0
        %2426 = vmatmul.mubr.f32.gmra.mrb[0].mxu0 %v2279
        %v2427 = vpop.f32.mrb[0].mxu0
        %v2428 = vadd.f32 %v2270, %v2427
        %v2429 = vpop.f32.mrb[0].mxu0
        %2430 = vmatprep.mubr.f32.mxu0 0.0
        %2431 = vmatmul.mubr.f32.gmra.mrb[0].mxu0 %v2282
        %v2432 = vpop.f32.mrb[0].mxu0
        %v2433 = vadd.f32 %v2275, %v2432
        %v2434 = vpop.f32.mrb[0].mxu0
        %2435 = vdwg.mxu0
        %s2436 = scalar_lea.vmem %s4, 32
        %v2437 = vld [vmem:[%s2436] sm:$0xff]
        %v2438 = vld [vmem:[%s2436 + $0x8] sm:$0xff]
        %2439 = vrot.lane.b32.xlu0 %v2083, 126
        %v2440 = vpop.permute.xlu0 %2439
        %2441 = vrot.lane.b32.xlu0 %v2073, 126
        %v2442 = vpop.permute.xlu0 %2441
        %2443 = vrot.lane.b32.xlu0 %v2086, 126
        %v2444 = vpop.permute.xlu0 %2443
        %2445 = vrot.lane.b32.xlu0 %v2084, 126
        %v2446 = vpop.permute.xlu0 %2445
        %2447 = vrot.lane.b32.xlu0 %v2075, 126
        %v2448 = vpop.permute.xlu0 %2447
        %2449 = vrot.lane.b32.xlu0 %v2087, 126
        %v2450 = vpop.permute.xlu0 %2449
        %v2451 = vsel %vm742, %v2440, %v2442
        %v2452 = vsel %vm742, %v2442, %v2444
        %v2453 = vsel %vm742, %v2446, %v2448
        %v2454 = vsel %vm742, %v2448, %v2450
        %v2462 = vsel %vm2119, %v2437, 0
        %v2465 = vsel %vm2119, %v2438, 0
        %2467 = vmatprep.subr.mxu0 %v2452
        %2468 = vmatpush1.msra.mxu0 %v2451
        %2469 = vmatprep.subr.mxu0 %v2454
        %2470 = vmatpush1.msra.mxu0 %v2453
        %2471 = vmatprep.subr.mxu0 0.0
        %2472 = vmatpush1.msra.mxu0 0.0
        %2473 = vmatprep.subr.mxu0 0.0
        %2474 = vmatpush1.msra.mxu0 0.0
        %2475 = vmatprep.subr.mxu0 0.0
        %2476 = vmatpush1.msra.mxu0 0.0
        %2477 = vmatprep.subr.mxu0 0.0
        %2478 = vmatpush1.msra.mxu0 0.0
        %2479 = vmatprep.subr.mxu0 0.0
        %2480 = vmatpush1.msra.mxu0 0.0
        %2481 = vmatprep.subr.mxu0 0.0
        %2482 = vmatpush1.msra.mxu0 0.0
        %2483 = vmatprep.subr.mxu0 0.0
        %2484 = vmatpush1.msra.mxu0 0.0
        %2485 = vmatprep.subr.mxu0 0.0
        %2486 = vmatpush1.msra.mxu0 0.0
        %2487 = vmatprep.subr.mxu0 0.0
        %2488 = vmatpush1.msra.mxu0 0.0
        %2489 = vmatprep.subr.mxu0 0.0
        %2490 = vmatpush1.msra.mxu0 0.0
        %2491 = vmatprep.subr.mxu0 0.0
        %2492 = vmatpush1.msra.mxu0 0.0
        %2493 = vmatprep.subr.mxu0 0.0
        %2494 = vmatpush1.msra.mxu0 0.0
        %2495 = vmatprep.subr.mxu0 0.0
        %2496 = vmatpush1.msra.mxu0 0.0
        %2497 = vmatprep.subr.mxu0 0.0
        %2498 = vmatpush1.msra.mxu0 0.0
        %2499 = vmatprep.subr.mxu0 0.0
        %2500 = vmatpush1.msra.mxu0 0.0
        %2501 = vmatprep.subr.mxu0 0.0
        %2502 = vmatpush1.msra.mxu0 0.0
        %2503 = vmatprep.subr.mxu0 0.0
        %2504 = vmatpush1.msra.mxu0 0.0
        %2505 = vmatprep.subr.mxu0 0.0
        %2506 = vmatpush1.msra.mxu0 0.0
        %2507 = vmatprep.subr.mxu0 0.0
        %2508 = vmatpush1.msra.mxu0 0.0
        %2509 = vmatprep.subr.mxu0 0.0
        %2510 = vmatpush1.msra.mxu0 0.0
        %2511 = vmatprep.subr.mxu0 0.0
        %2512 = vmatpush1.msra.mxu0 0.0
        %2513 = vmatprep.subr.mxu0 0.0
        %2514 = vmatpush1.msra.mxu0 0.0
        %2515 = vmatprep.subr.mxu0 0.0
        %2516 = vmatpush1.msra.mxu0 0.0
        %2517 = vmatprep.subr.mxu0 0.0
        %2518 = vmatpush1.msra.mxu0 0.0
        %2519 = vmatprep.subr.mxu0 0.0
        %2520 = vmatpush1.msra.mxu0 0.0
        %2521 = vmatprep.subr.mxu0 0.0
        %2522 = vmatpush1.msra.mxu0 0.0
        %2523 = vmatprep.subr.mxu0 0.0
        %2524 = vmatpush1.msra.mxu0 0.0
        %2525 = vmatprep.subr.mxu0 0.0
        %2526 = vmatpush1.msra.mxu0 0.0
        %2527 = vmatprep.subr.mxu0 0.0
        %2528 = vmatpush1.msra.mxu0 0.0
        %2529 = vmatprep.subr.mxu0 0.0
        %2530 = vmatpush1.msra.mxu0 0.0
        %2531 = vmatprep.mubr.f32.mxu0 0.0
        %2532 = vmatmul.mubr.f32.gmra.mrb[0].mxu0 %v2462
        %v2533 = vpop.f32.mrb[0].mxu0
        %v2534 = vadd.f32 0.0, %v2533
        %v2535 = vpop.f32.mrb[0].mxu0
        %v2536 = vadd.f32 0.0, %v2535
        %2537 = vmatprep.mubr.f32.mxu0 0.0
        %2538 = vmatmul.mubr.f32.gmra.mrb[0].mxu0 %v2465
        %v2539 = vpop.f32.mrb[0].mxu0
        %v2540 = vadd.f32 0.0, %v2539
        %v2541 = vpop.f32.mrb[0].mxu0
        %v2542 = vadd.f32 0.0, %v2541
        %2543 = vdwg.mxu0
        %2544 = vmatprep.subr.mxu0 0.0
        %2545 = vmatpush1.msra.mxu0 %v2444
        %2546 = vmatprep.subr.mxu0 0.0
        %2547 = vmatpush1.msra.mxu0 %v2450
        %2548 = vmatprep.subr.mxu0 0.0
        %2549 = vmatpush1.msra.mxu0 0.0
        %2550 = vmatprep.subr.mxu0 0.0
        %2551 = vmatpush1.msra.mxu0 0.0
        %2552 = vmatprep.subr.mxu0 0.0
        %2553 = vmatpush1.msra.mxu0 0.0
        %2554 = vmatprep.subr.mxu0 0.0
        %2555 = vmatpush1.msra.mxu0 0.0
        %2556 = vmatprep.subr.mxu0 0.0
        %2557 = vmatpush1.msra.mxu0 0.0
        %2558 = vmatprep.subr.mxu0 0.0
        %2559 = vmatpush1.msra.mxu0 0.0
        %2560 = vmatprep.subr.mxu0 0.0
        %2561 = vmatpush1.msra.mxu0 0.0
        %2562 = vmatprep.subr.mxu0 0.0
        %2563 = vmatpush1.msra.mxu0 0.0
        %2564 = vmatprep.subr.mxu0 0.0
        %2565 = vmatpush1.msra.mxu0 0.0
        %2566 = vmatprep.subr.mxu0 0.0
        %2567 = vmatpush1.msra.mxu0 0.0
        %2568 = vmatprep.subr.mxu0 0.0
        %2569 = vmatpush1.msra.mxu0 0.0
        %2570 = vmatprep.subr.mxu0 0.0
        %2571 = vmatpush1.msra.mxu0 0.0
        %2572 = vmatprep.subr.mxu0 0.0
        %2573 = vmatpush1.msra.mxu0 0.0
        %2574 = vmatprep.subr.mxu0 0.0
        %2575 = vmatpush1.msra.mxu0 0.0
        %2576 = vmatprep.subr.mxu0 0.0
        %2577 = vmatpush1.msra.mxu0 0.0
        %2578 = vmatprep.subr.mxu0 0.0
        %2579 = vmatpush1.msra.mxu0 0.0
        %2580 = vmatprep.subr.mxu0 0.0
        %2581 = vmatpush1.msra.mxu0 0.0
        %2582 = vmatprep.subr.mxu0 0.0
        %2583 = vmatpush1.msra.mxu0 0.0
        %2584 = vmatprep.subr.mxu0 0.0
        %2585 = vmatpush1.msra.mxu0 0.0
        %2586 = vmatprep.subr.mxu0 0.0
        %2587 = vmatpush1.msra.mxu0 0.0
        %2588 = vmatprep.subr.mxu0 0.0
        %2589 = vmatpush1.msra.mxu0 0.0
        %2590 = vmatprep.subr.mxu0 0.0
        %2591 = vmatpush1.msra.mxu0 0.0
        %2592 = vmatprep.subr.mxu0 0.0
        %2593 = vmatpush1.msra.mxu0 0.0
        %2594 = vmatprep.subr.mxu0 0.0
        %2595 = vmatpush1.msra.mxu0 0.0
        %2596 = vmatprep.subr.mxu0 0.0
        %2597 = vmatpush1.msra.mxu0 0.0
        %2598 = vmatprep.subr.mxu0 0.0
        %2599 = vmatpush1.msra.mxu0 0.0
        %2600 = vmatprep.subr.mxu0 0.0
        %2601 = vmatpush1.msra.mxu0 0.0
        %2602 = vmatprep.subr.mxu0 0.0
        %2603 = vmatpush1.msra.mxu0 0.0
        %2604 = vmatprep.subr.mxu0 0.0
        %2605 = vmatpush1.msra.mxu0 0.0
        %2606 = vmatprep.subr.mxu0 0.0
        %2607 = vmatpush1.msra.mxu0 0.0
        %2608 = vmatprep.mubr.f32.mxu0 0.0
        %2609 = vmatmul.mubr.f32.gmra.mrb[0].mxu0 %v2462
        %v2610 = vpop.f32.mrb[0].mxu0
        %v2611 = vadd.f32 0.0, %v2610
        %v2612 = vpop.f32.mrb[0].mxu0
        %2613 = vmatprep.mubr.f32.mxu0 0.0
        %2614 = vmatmul.mubr.f32.gmra.mrb[0].mxu0 %v2465
        %v2615 = vpop.f32.mrb[0].mxu0
        %v2616 = vadd.f32 0.0, %v2615
        %v2617 = vpop.f32.mrb[0].mxu0
        %2618 = vdwg.mxu0
        %v2619 = vadd.f32 %v2351, %v2534
        %v2620 = vadd.f32 %v2353, %v2536
        %v2621 = vadd.f32 %v2428, %v2611
        %v2622 = vadd.f32 %v2357, %v2540
        %v2623 = vadd.f32 %v2359, %v2542
        %v2624 = vadd.f32 %v2433, %v2616
        %s2625 = scalar_lea.vmem %s4, 48
        %v2626 = vld [vmem:[%s2625] sm:$0xff]
        %v2627 = vld [vmem:[%s2625 + $0x8] sm:$0xff]
        %2628 = vrot.lane.b32.xlu0 %v2083, 110
        %v2629 = vpop.permute.xlu0 %2628
        %2630 = vrot.lane.b32.xlu0 %v2073, 110
        %v2631 = vpop.permute.xlu0 %2630
        %2632 = vrot.lane.b32.xlu0 %v2086, 110
        %v2633 = vpop.permute.xlu0 %2632
        %2634 = vrot.lane.b32.xlu0 %v2084, 110
        %v2635 = vpop.permute.xlu0 %2634
        %2636 = vrot.lane.b32.xlu0 %v2075, 110
        %v2637 = vpop.permute.xlu0 %2636
        %2638 = vrot.lane.b32.xlu0 %v2087, 110
        %v2639 = vpop.permute.xlu0 %2638
        %v2640 = vsel %vm924, %v2629, %v2631
        %v2641 = vsel %vm924, %v2631, %v2633
        %v2642 = vsel %vm924, %v2635, %v2637
        %v2643 = vsel %vm924, %v2637, %v2639
        %v2651 = vsel %vm2119, %v2626, 0
        %v2654 = vsel %vm2119, %v2627, 0
        %2656 = vmatprep.subr.mxu0 %v2641
        %2657 = vmatpush1.msra.mxu0 %v2640
        %2658 = vmatprep.subr.mxu0 %v2643
        %2659 = vmatpush1.msra.mxu0 %v2642
        %2660 = vmatprep.subr.mxu0 0.0
        %2661 = vmatpush1.msra.mxu0 0.0
        %2662 = vmatprep.subr.mxu0 0.0
        %2663 = vmatpush1.msra.mxu0 0.0
        %2664 = vmatprep.subr.mxu0 0.0
        %2665 = vmatpush1.msra.mxu0 0.0
        %2666 = vmatprep.subr.mxu0 0.0
        %2667 = vmatpush1.msra.mxu0 0.0
        %2668 = vmatprep.subr.mxu0 0.0
        %2669 = vmatpush1.msra.mxu0 0.0
        %2670 = vmatprep.subr.mxu0 0.0
        %2671 = vmatpush1.msra.mxu0 0.0
        %2672 = vmatprep.subr.mxu0 0.0
        %2673 = vmatpush1.msra.mxu0 0.0
        %2674 = vmatprep.subr.mxu0 0.0
        %2675 = vmatpush1.msra.mxu0 0.0
        %2676 = vmatprep.subr.mxu0 0.0
        %2677 = vmatpush1.msra.mxu0 0.0
        %2678 = vmatprep.subr.mxu0 0.0
        %2679 = vmatpush1.msra.mxu0 0.0
        %2680 = vmatprep.subr.mxu0 0.0
        %2681 = vmatpush1.msra.mxu0 0.0
        %2682 = vmatprep.subr.mxu0 0.0
        %2683 = vmatpush1.msra.mxu0 0.0
        %2684 = vmatprep.subr.mxu0 0.0
        %2685 = vmatpush1.msra.mxu0 0.0
        %2686 = vmatprep.subr.mxu0 0.0
        %2687 = vmatpush1.msra.mxu0 0.0
        %2688 = vmatprep.subr.mxu0 0.0
        %2689 = vmatpush1.msra.mxu0 0.0
        %2690 = vmatprep.subr.mxu0 0.0
        %2691 = vmatpush1.msra.mxu0 0.0
        %2692 = vmatprep.subr.mxu0 0.0
        %2693 = vmatpush1.msra.mxu0 0.0
        %2694 = vmatprep.subr.mxu0 0.0
        %2695 = vmatpush1.msra.mxu0 0.0
        %2696 = vmatprep.subr.mxu0 0.0
        %2697 = vmatpush1.msra.mxu0 0.0
        %2698 = vmatprep.subr.mxu0 0.0
        %2699 = vmatpush1.msra.mxu0 0.0
        %2700 = vmatprep.subr.mxu0 0.0
        %2701 = vmatpush1.msra.mxu0 0.0
        %2702 = vmatprep.subr.mxu0 0.0
        %2703 = vmatpush1.msra.mxu0 0.0
        %2704 = vmatprep.subr.mxu0 0.0
        %2705 = vmatpush1.msra.mxu0 0.0
        %2706 = vmatprep.subr.mxu0 0.0
        %2707 = vmatpush1.msra.mxu0 0.0
        %2708 = vmatprep.subr.mxu0 0.0
        %2709 = vmatpush1.msra.mxu0 0.0
        %2710 = vmatprep.subr.mxu0 0.0
        %2711 = vmatpush1.msra.mxu0 0.0
        %2712 = vmatprep.subr.mxu0 0.0
        %2713 = vmatpush1.msra.mxu0 0.0
        %2714 = vmatprep.subr.mxu0 0.0
        %2715 = vmatpush1.msra.mxu0 0.0
        %2716 = vmatprep.subr.mxu0 0.0
        %2717 = vmatpush1.msra.mxu0 0.0
        %2718 = vmatprep.subr.mxu0 0.0
        %2719 = vmatpush1.msra.mxu0 0.0
        %2720 = vmatprep.mubr.f32.mxu0 0.0
        %2721 = vmatmul.mubr.f32.gmra.mrb[0].mxu0 %v2651
        %v2722 = vpop.f32.mrb[0].mxu0
        %v2723 = vadd.f32 0.0, %v2722
        %v2724 = vpop.f32.mrb[0].mxu0
        %v2725 = vadd.f32 0.0, %v2724
        %2726 = vmatprep.mubr.f32.mxu0 0.0
        %2727 = vmatmul.mubr.f32.gmra.mrb[0].mxu0 %v2654
        %v2728 = vpop.f32.mrb[0].mxu0
        %v2729 = vadd.f32 0.0, %v2728
        %v2730 = vpop.f32.mrb[0].mxu0
        %v2731 = vadd.f32 0.0, %v2730
        %2732 = vdwg.mxu0
        %2733 = vmatprep.subr.mxu0 0.0
        %2734 = vmatpush1.msra.mxu0 %v2633
        %2735 = vmatprep.subr.mxu0 0.0
        %2736 = vmatpush1.msra.mxu0 %v2639
        %2737 = vmatprep.subr.mxu0 0.0
        %2738 = vmatpush1.msra.mxu0 0.0
        %2739 = vmatprep.subr.mxu0 0.0
        %2740 = vmatpush1.msra.mxu0 0.0
        %2741 = vmatprep.subr.mxu0 0.0
        %2742 = vmatpush1.msra.mxu0 0.0
        %2743 = vmatprep.subr.mxu0 0.0
        %2744 = vmatpush1.msra.mxu0 0.0
        %2745 = vmatprep.subr.mxu0 0.0
        %2746 = vmatpush1.msra.mxu0 0.0
        %2747 = vmatprep.subr.mxu0 0.0
        %2748 = vmatpush1.msra.mxu0 0.0
        %2749 = vmatprep.subr.mxu0 0.0
        %2750 = vmatpush1.msra.mxu0 0.0
        %2751 = vmatprep.subr.mxu0 0.0
        %2752 = vmatpush1.msra.mxu0 0.0
        %2753 = vmatprep.subr.mxu0 0.0
        %2754 = vmatpush1.msra.mxu0 0.0
        %2755 = vmatprep.subr.mxu0 0.0
        %2756 = vmatpush1.msra.mxu0 0.0
        %2757 = vmatprep.subr.mxu0 0.0
        %2758 = vmatpush1.msra.mxu0 0.0
        %2759 = vmatprep.subr.mxu0 0.0
        %2760 = vmatpush1.msra.mxu0 0.0
        %2761 = vmatprep.subr.mxu0 0.0
        %2762 = vmatpush1.msra.mxu0 0.0
        %2763 = vmatprep.subr.mxu0 0.0
        %2764 = vmatpush1.msra.mxu0 0.0
        %2765 = vmatprep.subr.mxu0 0.0
        %2766 = vmatpush1.msra.mxu0 0.0
        %2767 = vmatprep.subr.mxu0 0.0
        %2768 = vmatpush1.msra.mxu0 0.0
        %2769 = vmatprep.subr.mxu0 0.0
        %2770 = vmatpush1.msra.mxu0 0.0
        %2771 = vmatprep.subr.mxu0 0.0
        %2772 = vmatpush1.msra.mxu0 0.0
        %2773 = vmatprep.subr.mxu0 0.0
        %2774 = vmatpush1.msra.mxu0 0.0
        %2775 = vmatprep.subr.mxu0 0.0
        %2776 = vmatpush1.msra.mxu0 0.0
        %2777 = vmatprep.subr.mxu0 0.0
        %2778 = vmatpush1.msra.mxu0 0.0
        %2779 = vmatprep.subr.mxu0 0.0
        %2780 = vmatpush1.msra.mxu0 0.0
        %2781 = vmatprep.subr.mxu0 0.0
        %2782 = vmatpush1.msra.mxu0 0.0
        %2783 = vmatprep.subr.mxu0 0.0
        %2784 = vmatpush1.msra.mxu0 0.0
        %2785 = vmatprep.subr.mxu0 0.0
        %2786 = vmatpush1.msra.mxu0 0.0
        %2787 = vmatprep.subr.mxu0 0.0
        %2788 = vmatpush1.msra.mxu0 0.0
        %2789 = vmatprep.subr.mxu0 0.0
        %2790 = vmatpush1.msra.mxu0 0.0
        %2791 = vmatprep.subr.mxu0 0.0
        %2792 = vmatpush1.msra.mxu0 0.0
        %2793 = vmatprep.subr.mxu0 0.0
        %2794 = vmatpush1.msra.mxu0 0.0
        %2795 = vmatprep.subr.mxu0 0.0
        %2796 = vmatpush1.msra.mxu0 0.0
        %2797 = vmatprep.mubr.f32.mxu0 0.0
        %2798 = vmatmul.mubr.f32.gmra.mrb[0].mxu0 %v2651
        %v2799 = vpop.f32.mrb[0].mxu0
        %v2800 = vadd.f32 0.0, %v2799
        %v2801 = vpop.f32.mrb[0].mxu0
        %2802 = vmatprep.mubr.f32.mxu0 0.0
        %2803 = vmatmul.mubr.f32.gmra.mrb[0].mxu0 %v2654
        %v2804 = vpop.f32.mrb[0].mxu0
        %v2805 = vadd.f32 0.0, %v2804
        %v2806 = vpop.f32.mrb[0].mxu0
        %2807 = vdwg.mxu0
        %v2808 = vadd.f32 %v2619, %v2723
        %v2809 = vadd.f32 %v2620, %v2725
        %v2810 = vadd.f32 %v2621, %v2800
        %v2811 = vadd.f32 %v2622, %v2729
        %v2812 = vadd.f32 %v2623, %v2731
        %v2813 = vadd.f32 %v2624, %v2805
        %s2814 = scalar_lea.vmem %s4, 64
        %v2815 = vld [vmem:[%s2814] sm:$0xff]
        %v2816 = vld [vmem:[%s2814 + $0x8] sm:$0xff]
        %2817 = vrot.lane.b32.xlu0 %v2083, 109
        %v2818 = vpop.permute.xlu0 %2817
        %2819 = vrot.lane.b32.xlu0 %v2073, 109
        %v2820 = vpop.permute.xlu0 %2819
        %2821 = vrot.lane.b32.xlu0 %v2086, 109
        %v2822 = vpop.permute.xlu0 %2821
        %2823 = vrot.lane.b32.xlu0 %v2084, 109
        %v2824 = vpop.permute.xlu0 %2823
        %2825 = vrot.lane.b32.xlu0 %v2075, 109
        %v2826 = vpop.permute.xlu0 %2825
        %2827 = vrot.lane.b32.xlu0 %v2087, 109
        %v2828 = vpop.permute.xlu0 %2827
        %v2829 = vsel %vm1106, %v2818, %v2820
        %v2830 = vsel %vm1106, %v2820, %v2822
        %v2831 = vsel %vm1106, %v2824, %v2826
        %v2832 = vsel %vm1106, %v2826, %v2828
        %v2840 = vsel %vm2119, %v2815, 0
        %v2843 = vsel %vm2119, %v2816, 0
        %2845 = vmatprep.subr.mxu0 %v2830
        %2846 = vmatpush1.msra.mxu0 %v2829
        %2847 = vmatprep.subr.mxu0 %v2832
        %2848 = vmatpush1.msra.mxu0 %v2831
        %2849 = vmatprep.subr.mxu0 0.0
        %2850 = vmatpush1.msra.mxu0 0.0
        %2851 = vmatprep.subr.mxu0 0.0
        %2852 = vmatpush1.msra.mxu0 0.0
        %2853 = vmatprep.subr.mxu0 0.0
        %2854 = vmatpush1.msra.mxu0 0.0
        %2855 = vmatprep.subr.mxu0 0.0
        %2856 = vmatpush1.msra.mxu0 0.0
        %2857 = vmatprep.subr.mxu0 0.0
        %2858 = vmatpush1.msra.mxu0 0.0
        %2859 = vmatprep.subr.mxu0 0.0
        %2860 = vmatpush1.msra.mxu0 0.0
        %2861 = vmatprep.subr.mxu0 0.0
        %2862 = vmatpush1.msra.mxu0 0.0
        %2863 = vmatprep.subr.mxu0 0.0
        %2864 = vmatpush1.msra.mxu0 0.0
        %2865 = vmatprep.subr.mxu0 0.0
        %2866 = vmatpush1.msra.mxu0 0.0
        %2867 = vmatprep.subr.mxu0 0.0
        %2868 = vmatpush1.msra.mxu0 0.0
        %2869 = vmatprep.subr.mxu0 0.0
        %2870 = vmatpush1.msra.mxu0 0.0
        %2871 = vmatprep.subr.mxu0 0.0
        %2872 = vmatpush1.msra.mxu0 0.0
        %2873 = vmatprep.subr.mxu0 0.0
        %2874 = vmatpush1.msra.mxu0 0.0
        %2875 = vmatprep.subr.mxu0 0.0
        %2876 = vmatpush1.msra.mxu0 0.0
        %2877 = vmatprep.subr.mxu0 0.0
        %2878 = vmatpush1.msra.mxu0 0.0
        %2879 = vmatprep.subr.mxu0 0.0
        %2880 = vmatpush1.msra.mxu0 0.0
        %2881 = vmatprep.subr.mxu0 0.0
        %2882 = vmatpush1.msra.mxu0 0.0
        %2883 = vmatprep.subr.mxu0 0.0
        %2884 = vmatpush1.msra.mxu0 0.0
        %2885 = vmatprep.subr.mxu0 0.0
        %2886 = vmatpush1.msra.mxu0 0.0
        %2887 = vmatprep.subr.mxu0 0.0
        %2888 = vmatpush1.msra.mxu0 0.0
        %2889 = vmatprep.subr.mxu0 0.0
        %2890 = vmatpush1.msra.mxu0 0.0
        %2891 = vmatprep.subr.mxu0 0.0
        %2892 = vmatpush1.msra.mxu0 0.0
        %2893 = vmatprep.subr.mxu0 0.0
        %2894 = vmatpush1.msra.mxu0 0.0
        %2895 = vmatprep.subr.mxu0 0.0
        %2896 = vmatpush1.msra.mxu0 0.0
        %2897 = vmatprep.subr.mxu0 0.0
        %2898 = vmatpush1.msra.mxu0 0.0
        %2899 = vmatprep.subr.mxu0 0.0
        %2900 = vmatpush1.msra.mxu0 0.0
        %2901 = vmatprep.subr.mxu0 0.0
        %2902 = vmatpush1.msra.mxu0 0.0
        %2903 = vmatprep.subr.mxu0 0.0
        %2904 = vmatpush1.msra.mxu0 0.0
        %2905 = vmatprep.subr.mxu0 0.0
        %2906 = vmatpush1.msra.mxu0 0.0
        %2907 = vmatprep.subr.mxu0 0.0
        %2908 = vmatpush1.msra.mxu0 0.0
        %2909 = vmatprep.mubr.f32.mxu0 0.0
        %2910 = vmatmul.mubr.f32.gmra.mrb[0].mxu0 %v2840
        %v2911 = vpop.f32.mrb[0].mxu0
        %v2912 = vadd.f32 0.0, %v2911
        %v2913 = vpop.f32.mrb[0].mxu0
        %v2914 = vadd.f32 0.0, %v2913
        %2915 = vmatprep.mubr.f32.mxu0 0.0
        %2916 = vmatmul.mubr.f32.gmra.mrb[0].mxu0 %v2843
        %v2917 = vpop.f32.mrb[0].mxu0
        %v2918 = vadd.f32 0.0, %v2917
        %v2919 = vpop.f32.mrb[0].mxu0
        %v2920 = vadd.f32 0.0, %v2919
        %2921 = vdwg.mxu0
        %2922 = vmatprep.subr.mxu0 0.0
        %2923 = vmatpush1.msra.mxu0 %v2822
        %2924 = vmatprep.subr.mxu0 0.0
        %2925 = vmatpush1.msra.mxu0 %v2828
        %2926 = vmatprep.subr.mxu0 0.0
        %2927 = vmatpush1.msra.mxu0 0.0
        %2928 = vmatprep.subr.mxu0 0.0
        %2929 = vmatpush1.msra.mxu0 0.0
        %2930 = vmatprep.subr.mxu0 0.0
        %2931 = vmatpush1.msra.mxu0 0.0
        %2932 = vmatprep.subr.mxu0 0.0
        %2933 = vmatpush1.msra.mxu0 0.0
        %2934 = vmatprep.subr.mxu0 0.0
        %2935 = vmatpush1.msra.mxu0 0.0
        %2936 = vmatprep.subr.mxu0 0.0
        %2937 = vmatpush1.msra.mxu0 0.0
        %2938 = vmatprep.subr.mxu0 0.0
        %2939 = vmatpush1.msra.mxu0 0.0
        %2940 = vmatprep.subr.mxu0 0.0
        %2941 = vmatpush1.msra.mxu0 0.0
        %2942 = vmatprep.subr.mxu0 0.0
        %2943 = vmatpush1.msra.mxu0 0.0
        %2944 = vmatprep.subr.mxu0 0.0
        %2945 = vmatpush1.msra.mxu0 0.0
        %2946 = vmatprep.subr.mxu0 0.0
        %2947 = vmatpush1.msra.mxu0 0.0
        %2948 = vmatprep.subr.mxu0 0.0
        %2949 = vmatpush1.msra.mxu0 0.0
        %2950 = vmatprep.subr.mxu0 0.0
        %2951 = vmatpush1.msra.mxu0 0.0
        %2952 = vmatprep.subr.mxu0 0.0
        %2953 = vmatpush1.msra.mxu0 0.0
        %2954 = vmatprep.subr.mxu0 0.0
        %2955 = vmatpush1.msra.mxu0 0.0
        %2956 = vmatprep.subr.mxu0 0.0
        %2957 = vmatpush1.msra.mxu0 0.0
        %2958 = vmatprep.subr.mxu0 0.0
        %2959 = vmatpush1.msra.mxu0 0.0
        %2960 = vmatprep.subr.mxu0 0.0
        %2961 = vmatpush1.msra.mxu0 0.0
        %2962 = vmatprep.subr.mxu0 0.0
        %2963 = vmatpush1.msra.mxu0 0.0
        %2964 = vmatprep.subr.mxu0 0.0
        %2965 = vmatpush1.msra.mxu0 0.0
        %2966 = vmatprep.subr.mxu0 0.0
        %2967 = vmatpush1.msra.mxu0 0.0
        %2968 = vmatprep.subr.mxu0 0.0
        %2969 = vmatpush1.msra.mxu0 0.0
        %2970 = vmatprep.subr.mxu0 0.0
        %2971 = vmatpush1.msra.mxu0 0.0
        %2972 = vmatprep.subr.mxu0 0.0
        %2973 = vmatpush1.msra.mxu0 0.0
        %2974 = vmatprep.subr.mxu0 0.0
        %2975 = vmatpush1.msra.mxu0 0.0
        %2976 = vmatprep.subr.mxu0 0.0
        %2977 = vmatpush1.msra.mxu0 0.0
        %2978 = vmatprep.subr.mxu0 0.0
        %2979 = vmatpush1.msra.mxu0 0.0
        %2980 = vmatprep.subr.mxu0 0.0
        %2981 = vmatpush1.msra.mxu0 0.0
        %2982 = vmatprep.subr.mxu0 0.0
        %2983 = vmatpush1.msra.mxu0 0.0
        %2984 = vmatprep.subr.mxu0 0.0
        %2985 = vmatpush1.msra.mxu0 0.0
        %2986 = vmatprep.mubr.f32.mxu0 0.0
        %2987 = vmatmul.mubr.f32.gmra.mrb[0].mxu0 %v2840
        %v2988 = vpop.f32.mrb[0].mxu0
        %v2989 = vadd.f32 0.0, %v2988
        %v2990 = vpop.f32.mrb[0].mxu0
        %2991 = vmatprep.mubr.f32.mxu0 0.0
        %2992 = vmatmul.mubr.f32.gmra.mrb[0].mxu0 %v2843
        %v2993 = vpop.f32.mrb[0].mxu0
        %v2994 = vadd.f32 0.0, %v2993
        %v2995 = vpop.f32.mrb[0].mxu0
        %2996 = vdwg.mxu0
        %v2997 = vadd.f32 %v2808, %v2912
        %v2998 = vadd.f32 %v2809, %v2914
        %v2999 = vadd.f32 %v2810, %v2989
        %v3000 = vadd.f32 %v2811, %v2918
        %v3001 = vadd.f32 %v2812, %v2920
        %v3002 = vadd.f32 %v2813, %v2994
        %s3003 = scalar_lea.vmem %s4, 80
        %v3004 = vld [vmem:[%s3003] sm:$0xff]
        %v3005 = vld [vmem:[%s3003 + $0x8] sm:$0xff]
        %3006 = vrot.lane.b32.xlu0 %v2083, 108
        %v3007 = vpop.permute.xlu0 %3006
        %3008 = vrot.lane.b32.xlu0 %v2073, 108
        %v3009 = vpop.permute.xlu0 %3008
        %3010 = vrot.lane.b32.xlu0 %v2086, 108
        %v3011 = vpop.permute.xlu0 %3010
        %3012 = vrot.lane.b32.xlu0 %v2084, 108
        %v3013 = vpop.permute.xlu0 %3012
        %3014 = vrot.lane.b32.xlu0 %v2075, 108
        %v3015 = vpop.permute.xlu0 %3014
        %3016 = vrot.lane.b32.xlu0 %v2087, 108
        %v3017 = vpop.permute.xlu0 %3016
        %v3018 = vsel %vm1288, %v3007, %v3009
        %v3019 = vsel %vm1288, %v3009, %v3011
        %v3020 = vsel %vm1288, %v3013, %v3015
        %v3021 = vsel %vm1288, %v3015, %v3017
        %v3029 = vsel %vm2119, %v3004, 0
        %v3032 = vsel %vm2119, %v3005, 0
        %3034 = vmatprep.subr.mxu0 %v3019
        %3035 = vmatpush1.msra.mxu0 %v3018
        %3036 = vmatprep.subr.mxu0 %v3021
        %3037 = vmatpush1.msra.mxu0 %v3020
        %3038 = vmatprep.subr.mxu0 0.0
        %3039 = vmatpush1.msra.mxu0 0.0
        %3040 = vmatprep.subr.mxu0 0.0
        %3041 = vmatpush1.msra.mxu0 0.0
        %3042 = vmatprep.subr.mxu0 0.0
        %3043 = vmatpush1.msra.mxu0 0.0
        %3044 = vmatprep.subr.mxu0 0.0
        %3045 = vmatpush1.msra.mxu0 0.0
        %3046 = vmatprep.subr.mxu0 0.0
        %3047 = vmatpush1.msra.mxu0 0.0
        %3048 = vmatprep.subr.mxu0 0.0
        %3049 = vmatpush1.msra.mxu0 0.0
        %3050 = vmatprep.subr.mxu0 0.0
        %3051 = vmatpush1.msra.mxu0 0.0
        %3052 = vmatprep.subr.mxu0 0.0
        %3053 = vmatpush1.msra.mxu0 0.0
        %3054 = vmatprep.subr.mxu0 0.0
        %3055 = vmatpush1.msra.mxu0 0.0
        %3056 = vmatprep.subr.mxu0 0.0
        %3057 = vmatpush1.msra.mxu0 0.0
        %3058 = vmatprep.subr.mxu0 0.0
        %3059 = vmatpush1.msra.mxu0 0.0
        %3060 = vmatprep.subr.mxu0 0.0
        %3061 = vmatpush1.msra.mxu0 0.0
        %3062 = vmatprep.subr.mxu0 0.0
        %3063 = vmatpush1.msra.mxu0 0.0
        %3064 = vmatprep.subr.mxu0 0.0
        %3065 = vmatpush1.msra.mxu0 0.0
        %3066 = vmatprep.subr.mxu0 0.0
        %3067 = vmatpush1.msra.mxu0 0.0
        %3068 = vmatprep.subr.mxu0 0.0
        %3069 = vmatpush1.msra.mxu0 0.0
        %3070 = vmatprep.subr.mxu0 0.0
        %3071 = vmatpush1.msra.mxu0 0.0
        %3072 = vmatprep.subr.mxu0 0.0
        %3073 = vmatpush1.msra.mxu0 0.0
        %3074 = vmatprep.subr.mxu0 0.0
        %3075 = vmatpush1.msra.mxu0 0.0
        %3076 = vmatprep.subr.mxu0 0.0
        %3077 = vmatpush1.msra.mxu0 0.0
        %3078 = vmatprep.subr.mxu0 0.0
        %3079 = vmatpush1.msra.mxu0 0.0
        %3080 = vmatprep.subr.mxu0 0.0
        %3081 = vmatpush1.msra.mxu0 0.0
        %3082 = vmatprep.subr.mxu0 0.0
        %3083 = vmatpush1.msra.mxu0 0.0
        %3084 = vmatprep.subr.mxu0 0.0
        %3085 = vmatpush1.msra.mxu0 0.0
        %3086 = vmatprep.subr.mxu0 0.0
        %3087 = vmatpush1.msra.mxu0 0.0
        %3088 = vmatprep.subr.mxu0 0.0
        %3089 = vmatpush1.msra.mxu0 0.0
        %3090 = vmatprep.subr.mxu0 0.0
        %3091 = vmatpush1.msra.mxu0 0.0
        %3092 = vmatprep.subr.mxu0 0.0
        %3093 = vmatpush1.msra.mxu0 0.0
        %3094 = vmatprep.subr.mxu0 0.0
        %3095 = vmatpush1.msra.mxu0 0.0
        %3096 = vmatprep.subr.mxu0 0.0
        %3097 = vmatpush1.msra.mxu0 0.0
        %3098 = vmatprep.mubr.f32.mxu0 0.0
        %3099 = vmatmul.mubr.f32.gmra.mrb[0].mxu0 %v3029
        %v3100 = vpop.f32.mrb[0].mxu0
        %v3101 = vadd.f32 0.0, %v3100
        %v3102 = vpop.f32.mrb[0].mxu0
        %v3103 = vadd.f32 0.0, %v3102
        %3104 = vmatprep.mubr.f32.mxu0 0.0
        %3105 = vmatmul.mubr.f32.gmra.mrb[0].mxu0 %v3032
        %v3106 = vpop.f32.mrb[0].mxu0
        %v3107 = vadd.f32 0.0, %v3106
        %v3108 = vpop.f32.mrb[0].mxu0
        %v3109 = vadd.f32 0.0, %v3108
        %3110 = vdwg.mxu0
        %3111 = vmatprep.subr.mxu0 0.0
        %3112 = vmatpush1.msra.mxu0 %v3011
        %3113 = vmatprep.subr.mxu0 0.0
        %3114 = vmatpush1.msra.mxu0 %v3017
        %3115 = vmatprep.subr.mxu0 0.0
        %3116 = vmatpush1.msra.mxu0 0.0
        %3117 = vmatprep.subr.mxu0 0.0
        %3118 = vmatpush1.msra.mxu0 0.0
        %3119 = vmatprep.subr.mxu0 0.0
        %3120 = vmatpush1.msra.mxu0 0.0
        %3121 = vmatprep.subr.mxu0 0.0
        %3122 = vmatpush1.msra.mxu0 0.0
        %3123 = vmatprep.subr.mxu0 0.0
        %3124 = vmatpush1.msra.mxu0 0.0
        %3125 = vmatprep.subr.mxu0 0.0
        %3126 = vmatpush1.msra.mxu0 0.0
        %3127 = vmatprep.subr.mxu0 0.0
        %3128 = vmatpush1.msra.mxu0 0.0
        %3129 = vmatprep.subr.mxu0 0.0
        %3130 = vmatpush1.msra.mxu0 0.0
        %3131 = vmatprep.subr.mxu0 0.0
        %3132 = vmatpush1.msra.mxu0 0.0
        %3133 = vmatprep.subr.mxu0 0.0
        %3134 = vmatpush1.msra.mxu0 0.0
        %3135 = vmatprep.subr.mxu0 0.0
        %3136 = vmatpush1.msra.mxu0 0.0
        %3137 = vmatprep.subr.mxu0 0.0
        %3138 = vmatpush1.msra.mxu0 0.0
        %3139 = vmatprep.subr.mxu0 0.0
        %3140 = vmatpush1.msra.mxu0 0.0
        %3141 = vmatprep.subr.mxu0 0.0
        %3142 = vmatpush1.msra.mxu0 0.0
        %3143 = vmatprep.subr.mxu0 0.0
        %3144 = vmatpush1.msra.mxu0 0.0
        %3145 = vmatprep.subr.mxu0 0.0
        %3146 = vmatpush1.msra.mxu0 0.0
        %3147 = vmatprep.subr.mxu0 0.0
        %3148 = vmatpush1.msra.mxu0 0.0
        %3149 = vmatprep.subr.mxu0 0.0
        %3150 = vmatpush1.msra.mxu0 0.0
        %3151 = vmatprep.subr.mxu0 0.0
        %3152 = vmatpush1.msra.mxu0 0.0
        %3153 = vmatprep.subr.mxu0 0.0
        %3154 = vmatpush1.msra.mxu0 0.0
        %3155 = vmatprep.subr.mxu0 0.0
        %3156 = vmatpush1.msra.mxu0 0.0
        %3157 = vmatprep.subr.mxu0 0.0
        %3158 = vmatpush1.msra.mxu0 0.0
        %3159 = vmatprep.subr.mxu0 0.0
        %3160 = vmatpush1.msra.mxu0 0.0
        %3161 = vmatprep.subr.mxu0 0.0
        %3162 = vmatpush1.msra.mxu0 0.0
        %3163 = vmatprep.subr.mxu0 0.0
        %3164 = vmatpush1.msra.mxu0 0.0
        %3165 = vmatprep.subr.mxu0 0.0
        %3166 = vmatpush1.msra.mxu0 0.0
        %3167 = vmatprep.subr.mxu0 0.0
        %3168 = vmatpush1.msra.mxu0 0.0
        %3169 = vmatprep.subr.mxu0 0.0
        %3170 = vmatpush1.msra.mxu0 0.0
        %3171 = vmatprep.subr.mxu0 0.0
        %3172 = vmatpush1.msra.mxu0 0.0
        %3173 = vmatprep.subr.mxu0 0.0
        %3174 = vmatpush1.msra.mxu0 0.0
        %3175 = vmatprep.mubr.f32.mxu0 0.0
        %3176 = vmatmul.mubr.f32.gmra.mrb[0].mxu0 %v3029
        %v3177 = vpop.f32.mrb[0].mxu0
        %v3178 = vadd.f32 0.0, %v3177
        %v3179 = vpop.f32.mrb[0].mxu0
        %3180 = vmatprep.mubr.f32.mxu0 0.0
        %3181 = vmatmul.mubr.f32.gmra.mrb[0].mxu0 %v3032
        %v3182 = vpop.f32.mrb[0].mxu0
        %v3183 = vadd.f32 0.0, %v3182
        %v3184 = vpop.f32.mrb[0].mxu0
        %3185 = vdwg.mxu0
        %v3186 = vadd.f32 %v2997, %v3101
        %v3187 = vadd.f32 %v2998, %v3103
        %v3188 = vadd.f32 %v2999, %v3178
        %v3189 = vadd.f32 %v3000, %v3107
        %v3190 = vadd.f32 %v3001, %v3109
        %v3191 = vadd.f32 %v3002, %v3183
        %s3192 = scalar_lea.vmem %s4, 96
        %v3193 = vld [vmem:[%s3192] sm:$0xff]
        %v3194 = vld [vmem:[%s3192 + $0x8] sm:$0xff]
        %3195 = vrot.lane.b32.xlu0 %v2083, 92
        %v3196 = vpop.permute.xlu0 %3195
        %3197 = vrot.lane.b32.xlu0 %v2073, 92
        %v3198 = vpop.permute.xlu0 %3197
        %3199 = vrot.lane.b32.xlu0 %v2086, 92
        %v3200 = vpop.permute.xlu0 %3199
        %3201 = vrot.lane.b32.xlu0 %v2084, 92
        %v3202 = vpop.permute.xlu0 %3201
        %3203 = vrot.lane.b32.xlu0 %v2075, 92
        %v3204 = vpop.permute.xlu0 %3203
        %3205 = vrot.lane.b32.xlu0 %v2087, 92
        %v3206 = vpop.permute.xlu0 %3205
        %v3207 = vsel %vm1470, %v3196, %v3198
        %v3208 = vsel %vm1470, %v3198, %v3200
        %v3209 = vsel %vm1470, %v3202, %v3204
        %v3210 = vsel %vm1470, %v3204, %v3206
        %v3218 = vsel %vm2119, %v3193, 0
        %v3221 = vsel %vm2119, %v3194, 0
        %3223 = vmatprep.subr.mxu0 %v3208
        %3224 = vmatpush1.msra.mxu0 %v3207
        %3225 = vmatprep.subr.mxu0 %v3210
        %3226 = vmatpush1.msra.mxu0 %v3209
        %3227 = vmatprep.subr.mxu0 0.0
        %3228 = vmatpush1.msra.mxu0 0.0
        %3229 = vmatprep.subr.mxu0 0.0
        %3230 = vmatpush1.msra.mxu0 0.0
        %3231 = vmatprep.subr.mxu0 0.0
        %3232 = vmatpush1.msra.mxu0 0.0
        %3233 = vmatprep.subr.mxu0 0.0
        %3234 = vmatpush1.msra.mxu0 0.0
        %3235 = vmatprep.subr.mxu0 0.0
        %3236 = vmatpush1.msra.mxu0 0.0
        %3237 = vmatprep.subr.mxu0 0.0
        %3238 = vmatpush1.msra.mxu0 0.0
        %3239 = vmatprep.subr.mxu0 0.0
        %3240 = vmatpush1.msra.mxu0 0.0
        %3241 = vmatprep.subr.mxu0 0.0
        %3242 = vmatpush1.msra.mxu0 0.0
        %3243 = vmatprep.subr.mxu0 0.0
        %3244 = vmatpush1.msra.mxu0 0.0
        %3245 = vmatprep.subr.mxu0 0.0
        %3246 = vmatpush1.msra.mxu0 0.0
        %3247 = vmatprep.subr.mxu0 0.0
        %3248 = vmatpush1.msra.mxu0 0.0
        %3249 = vmatprep.subr.mxu0 0.0
        %3250 = vmatpush1.msra.mxu0 0.0
        %3251 = vmatprep.subr.mxu0 0.0
        %3252 = vmatpush1.msra.mxu0 0.0
        %3253 = vmatprep.subr.mxu0 0.0
        %3254 = vmatpush1.msra.mxu0 0.0
        %3255 = vmatprep.subr.mxu0 0.0
        %3256 = vmatpush1.msra.mxu0 0.0
        %3257 = vmatprep.subr.mxu0 0.0
        %3258 = vmatpush1.msra.mxu0 0.0
        %3259 = vmatprep.subr.mxu0 0.0
        %3260 = vmatpush1.msra.mxu0 0.0
        %3261 = vmatprep.subr.mxu0 0.0
        %3262 = vmatpush1.msra.mxu0 0.0
        %3263 = vmatprep.subr.mxu0 0.0
        %3264 = vmatpush1.msra.mxu0 0.0
        %3265 = vmatprep.subr.mxu0 0.0
        %3266 = vmatpush1.msra.mxu0 0.0
        %3267 = vmatprep.subr.mxu0 0.0
        %3268 = vmatpush1.msra.mxu0 0.0
        %3269 = vmatprep.subr.mxu0 0.0
        %3270 = vmatpush1.msra.mxu0 0.0
        %3271 = vmatprep.subr.mxu0 0.0
        %3272 = vmatpush1.msra.mxu0 0.0
        %3273 = vmatprep.subr.mxu0 0.0
        %3274 = vmatpush1.msra.mxu0 0.0
        %3275 = vmatprep.subr.mxu0 0.0
        %3276 = vmatpush1.msra.mxu0 0.0
        %3277 = vmatprep.subr.mxu0 0.0
        %3278 = vmatpush1.msra.mxu0 0.0
        %3279 = vmatprep.subr.mxu0 0.0
        %3280 = vmatpush1.msra.mxu0 0.0
        %3281 = vmatprep.subr.mxu0 0.0
        %3282 = vmatpush1.msra.mxu0 0.0
        %3283 = vmatprep.subr.mxu0 0.0
        %3284 = vmatpush1.msra.mxu0 0.0
        %3285 = vmatprep.subr.mxu0 0.0
        %3286 = vmatpush1.msra.mxu0 0.0
        %3287 = vmatprep.mubr.f32.mxu0 0.0
        %3288 = vmatmul.mubr.f32.gmra.mrb[0].mxu0 %v3218
        %v3289 = vpop.f32.mrb[0].mxu0
        %v3290 = vadd.f32 0.0, %v3289
        %v3291 = vpop.f32.mrb[0].mxu0
        %v3292 = vadd.f32 0.0, %v3291
        %3293 = vmatprep.mubr.f32.mxu0 0.0
        %3294 = vmatmul.mubr.f32.gmra.mrb[0].mxu0 %v3221
        %v3295 = vpop.f32.mrb[0].mxu0
        %v3296 = vadd.f32 0.0, %v3295
        %v3297 = vpop.f32.mrb[0].mxu0
        %v3298 = vadd.f32 0.0, %v3297
        %3299 = vdwg.mxu0
        %3300 = vmatprep.subr.mxu0 0.0
        %3301 = vmatpush1.msra.mxu0 %v3200
        %3302 = vmatprep.subr.mxu0 0.0
        %3303 = vmatpush1.msra.mxu0 %v3206
        %3304 = vmatprep.subr.mxu0 0.0
        %3305 = vmatpush1.msra.mxu0 0.0
        %3306 = vmatprep.subr.mxu0 0.0
        %3307 = vmatpush1.msra.mxu0 0.0
        %3308 = vmatprep.subr.mxu0 0.0
        %3309 = vmatpush1.msra.mxu0 0.0
        %3310 = vmatprep.subr.mxu0 0.0
        %3311 = vmatpush1.msra.mxu0 0.0
        %3312 = vmatprep.subr.mxu0 0.0
        %3313 = vmatpush1.msra.mxu0 0.0
        %3314 = vmatprep.subr.mxu0 0.0
        %3315 = vmatpush1.msra.mxu0 0.0
        %3316 = vmatprep.subr.mxu0 0.0
        %3317 = vmatpush1.msra.mxu0 0.0
        %3318 = vmatprep.subr.mxu0 0.0
        %3319 = vmatpush1.msra.mxu0 0.0
        %3320 = vmatprep.subr.mxu0 0.0
        %3321 = vmatpush1.msra.mxu0 0.0
        %3322 = vmatprep.subr.mxu0 0.0
        %3323 = vmatpush1.msra.mxu0 0.0
        %3324 = vmatprep.subr.mxu0 0.0
        %3325 = vmatpush1.msra.mxu0 0.0
        %3326 = vmatprep.subr.mxu0 0.0
        %3327 = vmatpush1.msra.mxu0 0.0
        %3328 = vmatprep.subr.mxu0 0.0
        %3329 = vmatpush1.msra.mxu0 0.0
        %3330 = vmatprep.subr.mxu0 0.0
        %3331 = vmatpush1.msra.mxu0 0.0
        %3332 = vmatprep.subr.mxu0 0.0
        %3333 = vmatpush1.msra.mxu0 0.0
        %3334 = vmatprep.subr.mxu0 0.0
        %3335 = vmatpush1.msra.mxu0 0.0
        %3336 = vmatprep.subr.mxu0 0.0
        %3337 = vmatpush1.msra.mxu0 0.0
        %3338 = vmatprep.subr.mxu0 0.0
        %3339 = vmatpush1.msra.mxu0 0.0
        %3340 = vmatprep.subr.mxu0 0.0
        %3341 = vmatpush1.msra.mxu0 0.0
        %3342 = vmatprep.subr.mxu0 0.0
        %3343 = vmatpush1.msra.mxu0 0.0
        %3344 = vmatprep.subr.mxu0 0.0
        %3345 = vmatpush1.msra.mxu0 0.0
        %3346 = vmatprep.subr.mxu0 0.0
        %3347 = vmatpush1.msra.mxu0 0.0
        %3348 = vmatprep.subr.mxu0 0.0
        %3349 = vmatpush1.msra.mxu0 0.0
        %3350 = vmatprep.subr.mxu0 0.0
        %3351 = vmatpush1.msra.mxu0 0.0
        %3352 = vmatprep.subr.mxu0 0.0
        %3353 = vmatpush1.msra.mxu0 0.0
        %3354 = vmatprep.subr.mxu0 0.0
        %3355 = vmatpush1.msra.mxu0 0.0
        %3356 = vmatprep.subr.mxu0 0.0
        %3357 = vmatpush1.msra.mxu0 0.0
        %3358 = vmatprep.subr.mxu0 0.0
        %3359 = vmatpush1.msra.mxu0 0.0
        %3360 = vmatprep.subr.mxu0 0.0
        %3361 = vmatpush1.msra.mxu0 0.0
        %3362 = vmatprep.subr.mxu0 0.0
        %3363 = vmatpush1.msra.mxu0 0.0
        %3364 = vmatprep.mubr.f32.mxu0 0.0
        %3365 = vmatmul.mubr.f32.gmra.mrb[0].mxu0 %v3218
        %v3366 = vpop.f32.mrb[0].mxu0
        %v3367 = vadd.f32 0.0, %v3366
        %v3368 = vpop.f32.mrb[0].mxu0
        %3369 = vmatprep.mubr.f32.mxu0 0.0
        %3370 = vmatmul.mubr.f32.gmra.mrb[0].mxu0 %v3221
        %v3371 = vpop.f32.mrb[0].mxu0
        %v3372 = vadd.f32 0.0, %v3371
        %v3373 = vpop.f32.mrb[0].mxu0
        %3374 = vdwg.mxu0
        %v3375 = vadd.f32 %v3186, %v3290
        %v3376 = vadd.f32 %v3187, %v3292
        %v3377 = vadd.f32 %v3188, %v3367
        %v3378 = vadd.f32 %v3189, %v3296
        %v3379 = vadd.f32 %v3190, %v3298
        %v3380 = vadd.f32 %v3191, %v3372
        %s3381 = scalar_lea.vmem %s4, 112
        %v3382 = vld [vmem:[%s3381] sm:$0xff]
        %v3383 = vld [vmem:[%s3381 + $0x8] sm:$0xff]
        %3384 = vrot.lane.b32.xlu0 %v2083, 91
        %v3385 = vpop.permute.xlu0 %3384
        %3386 = vrot.lane.b32.xlu0 %v2073, 91
        %v3387 = vpop.permute.xlu0 %3386
        %3388 = vrot.lane.b32.xlu0 %v2086, 91
        %v3389 = vpop.permute.xlu0 %3388
        %3390 = vrot.lane.b32.xlu0 %v2084, 91
        %v3391 = vpop.permute.xlu0 %3390
        %3392 = vrot.lane.b32.xlu0 %v2075, 91
        %v3393 = vpop.permute.xlu0 %3392
        %3394 = vrot.lane.b32.xlu0 %v2087, 91
        %v3395 = vpop.permute.xlu0 %3394
        %v3396 = vsel %vm1652, %v3385, %v3387
        %v3397 = vsel %vm1652, %v3387, %v3389
        %v3398 = vsel %vm1652, %v3391, %v3393
        %v3399 = vsel %vm1652, %v3393, %v3395
        %v3407 = vsel %vm2119, %v3382, 0
        %v3410 = vsel %vm2119, %v3383, 0
        %3412 = vmatprep.subr.mxu0 %v3397
        %3413 = vmatpush1.msra.mxu0 %v3396
        %3414 = vmatprep.subr.mxu0 %v3399
        %3415 = vmatpush1.msra.mxu0 %v3398
        %3416 = vmatprep.subr.mxu0 0.0
        %3417 = vmatpush1.msra.mxu0 0.0
        %3418 = vmatprep.subr.mxu0 0.0
        %3419 = vmatpush1.msra.mxu0 0.0
        %3420 = vmatprep.subr.mxu0 0.0
        %3421 = vmatpush1.msra.mxu0 0.0
        %3422 = vmatprep.subr.mxu0 0.0
        %3423 = vmatpush1.msra.mxu0 0.0
        %3424 = vmatprep.subr.mxu0 0.0
        %3425 = vmatpush1.msra.mxu0 0.0
        %3426 = vmatprep.subr.mxu0 0.0
        %3427 = vmatpush1.msra.mxu0 0.0
        %3428 = vmatprep.subr.mxu0 0.0
        %3429 = vmatpush1.msra.mxu0 0.0
        %3430 = vmatprep.subr.mxu0 0.0
        %3431 = vmatpush1.msra.mxu0 0.0
        %3432 = vmatprep.subr.mxu0 0.0
        %3433 = vmatpush1.msra.mxu0 0.0
        %3434 = vmatprep.subr.mxu0 0.0
        %3435 = vmatpush1.msra.mxu0 0.0
        %3436 = vmatprep.subr.mxu0 0.0
        %3437 = vmatpush1.msra.mxu0 0.0
        %3438 = vmatprep.subr.mxu0 0.0
        %3439 = vmatpush1.msra.mxu0 0.0
        %3440 = vmatprep.subr.mxu0 0.0
        %3441 = vmatpush1.msra.mxu0 0.0
        %3442 = vmatprep.subr.mxu0 0.0
        %3443 = vmatpush1.msra.mxu0 0.0
        %3444 = vmatprep.subr.mxu0 0.0
        %3445 = vmatpush1.msra.mxu0 0.0
        %3446 = vmatprep.subr.mxu0 0.0
        %3447 = vmatpush1.msra.mxu0 0.0
        %3448 = vmatprep.subr.mxu0 0.0
        %3449 = vmatpush1.msra.mxu0 0.0
        %3450 = vmatprep.subr.mxu0 0.0
        %3451 = vmatpush1.msra.mxu0 0.0
        %3452 = vmatprep.subr.mxu0 0.0
        %3453 = vmatpush1.msra.mxu0 0.0
        %3454 = vmatprep.subr.mxu0 0.0
        %3455 = vmatpush1.msra.mxu0 0.0
        %3456 = vmatprep.subr.mxu0 0.0
        %3457 = vmatpush1.msra.mxu0 0.0
        %3458 = vmatprep.subr.mxu0 0.0
        %3459 = vmatpush1.msra.mxu0 0.0
        %3460 = vmatprep.subr.mxu0 0.0
        %3461 = vmatpush1.msra.mxu0 0.0
        %3462 = vmatprep.subr.mxu0 0.0
        %3463 = vmatpush1.msra.mxu0 0.0
        %3464 = vmatprep.subr.mxu0 0.0
        %3465 = vmatpush1.msra.mxu0 0.0
        %3466 = vmatprep.subr.mxu0 0.0
        %3467 = vmatpush1.msra.mxu0 0.0
        %3468 = vmatprep.subr.mxu0 0.0
        %3469 = vmatpush1.msra.mxu0 0.0
        %3470 = vmatprep.subr.mxu0 0.0
        %3471 = vmatpush1.msra.mxu0 0.0
        %3472 = vmatprep.subr.mxu0 0.0
        %3473 = vmatpush1.msra.mxu0 0.0
        %3474 = vmatprep.subr.mxu0 0.0
        %3475 = vmatpush1.msra.mxu0 0.0
        %3476 = vmatprep.mubr.f32.mxu0 0.0
        %3477 = vmatmul.mubr.f32.gmra.mrb[0].mxu0 %v3407
        %v3478 = vpop.f32.mrb[0].mxu0
        %v3479 = vadd.f32 0.0, %v3478
        %v3480 = vpop.f32.mrb[0].mxu0
        %v3481 = vadd.f32 0.0, %v3480
        %3482 = vmatprep.mubr.f32.mxu0 0.0
        %3483 = vmatmul.mubr.f32.gmra.mrb[0].mxu0 %v3410
        %v3484 = vpop.f32.mrb[0].mxu0
        %v3485 = vadd.f32 0.0, %v3484
        %v3486 = vpop.f32.mrb[0].mxu0
        %v3487 = vadd.f32 0.0, %v3486
        %3488 = vdwg.mxu0
        %3489 = vmatprep.subr.mxu0 0.0
        %3490 = vmatpush1.msra.mxu0 %v3389
        %3491 = vmatprep.subr.mxu0 0.0
        %3492 = vmatpush1.msra.mxu0 %v3395
        %3493 = vmatprep.subr.mxu0 0.0
        %3494 = vmatpush1.msra.mxu0 0.0
        %3495 = vmatprep.subr.mxu0 0.0
        %3496 = vmatpush1.msra.mxu0 0.0
        %3497 = vmatprep.subr.mxu0 0.0
        %3498 = vmatpush1.msra.mxu0 0.0
        %3499 = vmatprep.subr.mxu0 0.0
        %3500 = vmatpush1.msra.mxu0 0.0
        %3501 = vmatprep.subr.mxu0 0.0
        %3502 = vmatpush1.msra.mxu0 0.0
        %3503 = vmatprep.subr.mxu0 0.0
        %3504 = vmatpush1.msra.mxu0 0.0
        %3505 = vmatprep.subr.mxu0 0.0
        %3506 = vmatpush1.msra.mxu0 0.0
        %3507 = vmatprep.subr.mxu0 0.0
        %3508 = vmatpush1.msra.mxu0 0.0
        %3509 = vmatprep.subr.mxu0 0.0
        %3510 = vmatpush1.msra.mxu0 0.0
        %3511 = vmatprep.subr.mxu0 0.0
        %3512 = vmatpush1.msra.mxu0 0.0
        %3513 = vmatprep.subr.mxu0 0.0
        %3514 = vmatpush1.msra.mxu0 0.0
        %3515 = vmatprep.subr.mxu0 0.0
        %3516 = vmatpush1.msra.mxu0 0.0
        %3517 = vmatprep.subr.mxu0 0.0
        %3518 = vmatpush1.msra.mxu0 0.0
        %3519 = vmatprep.subr.mxu0 0.0
        %3520 = vmatpush1.msra.mxu0 0.0
        %3521 = vmatprep.subr.mxu0 0.0
        %3522 = vmatpush1.msra.mxu0 0.0
        %3523 = vmatprep.subr.mxu0 0.0
        %3524 = vmatpush1.msra.mxu0 0.0
        %3525 = vmatprep.subr.mxu0 0.0
        %3526 = vmatpush1.msra.mxu0 0.0
        %3527 = vmatprep.subr.mxu0 0.0
        %3528 = vmatpush1.msra.mxu0 0.0
        %3529 = vmatprep.subr.mxu0 0.0
        %3530 = vmatpush1.msra.mxu0 0.0
        %3531 = vmatprep.subr.mxu0 0.0
        %3532 = vmatpush1.msra.mxu0 0.0
        %3533 = vmatprep.subr.mxu0 0.0
        %3534 = vmatpush1.msra.mxu0 0.0
        %3535 = vmatprep.subr.mxu0 0.0
        %3536 = vmatpush1.msra.mxu0 0.0
        %3537 = vmatprep.subr.mxu0 0.0
        %3538 = vmatpush1.msra.mxu0 0.0
        %3539 = vmatprep.subr.mxu0 0.0
        %3540 = vmatpush1.msra.mxu0 0.0
        %3541 = vmatprep.subr.mxu0 0.0
        %3542 = vmatpush1.msra.mxu0 0.0
        %3543 = vmatprep.subr.mxu0 0.0
        %3544 = vmatpush1.msra.mxu0 0.0
        %3545 = vmatprep.subr.mxu0 0.0
        %3546 = vmatpush1.msra.mxu0 0.0
        %3547 = vmatprep.subr.mxu0 0.0
        %3548 = vmatpush1.msra.mxu0 0.0
        %3549 = vmatprep.subr.mxu0 0.0
        %3550 = vmatpush1.msra.mxu0 0.0
        %3551 = vmatprep.subr.mxu0 0.0
        %3552 = vmatpush1.msra.mxu0 0.0
        %3553 = vmatprep.mubr.f32.mxu0 0.0
        %3554 = vmatmul.mubr.f32.gmra.mrb[0].mxu0 %v3407
        %v3555 = vpop.f32.mrb[0].mxu0
        %v3556 = vadd.f32 0.0, %v3555
        %v3557 = vpop.f32.mrb[0].mxu0
        %3558 = vmatprep.mubr.f32.mxu0 0.0
        %3559 = vmatmul.mubr.f32.gmra.mrb[0].mxu0 %v3410
        %v3560 = vpop.f32.mrb[0].mxu0
        %v3561 = vadd.f32 0.0, %v3560
        %v3562 = vpop.f32.mrb[0].mxu0
        %3563 = vdwg.mxu0
        %v3564 = vadd.f32 %v3375, %v3479
        %v3565 = vadd.f32 %v3376, %v3481
        %v3566 = vadd.f32 %v3377, %v3556
        %v3567 = vadd.f32 %v3378, %v3485
        %v3568 = vadd.f32 %v3379, %v3487
        %v3569 = vadd.f32 %v3380, %v3561
        %s3570 = scalar_lea.vmem %s4, 128
        %v3571 = vld [vmem:[%s3570] sm:$0xff]
        %v3572 = vld [vmem:[%s3570 + $0x8] sm:$0xff]
        %3573 = vrot.lane.b32.xlu0 %v2083, 90
        %v3574 = vpop.permute.xlu0 %3573
        %3575 = vrot.lane.b32.xlu0 %v2073, 90
        %v3576 = vpop.permute.xlu0 %3575
        %3577 = vrot.lane.b32.xlu0 %v2086, 90
        %v3578 = vpop.permute.xlu0 %3577
        %3579 = vrot.lane.b32.xlu0 %v2084, 90
        %v3580 = vpop.permute.xlu0 %3579
        %3581 = vrot.lane.b32.xlu0 %v2075, 90
        %v3582 = vpop.permute.xlu0 %3581
        %3583 = vrot.lane.b32.xlu0 %v2087, 90
        %v3584 = vpop.permute.xlu0 %3583
        %v3585 = vsel %vm1834, %v3574, %v3576
        %v3586 = vsel %vm1834, %v3576, %v3578
        %v3587 = vsel %vm1834, %v3580, %v3582
        %v3588 = vsel %vm1834, %v3582, %v3584
        %v3596 = vsel %vm2119, %v3571, 0
        %v3599 = vsel %vm2119, %v3572, 0
        %3601 = vmatprep.subr.mxu0 %v3586
        %3602 = vmatpush1.msra.mxu0 %v3585
        %3603 = vmatprep.subr.mxu0 %v3588
        %3604 = vmatpush1.msra.mxu0 %v3587
        %3605 = vmatprep.subr.mxu0 0.0
        %3606 = vmatpush1.msra.mxu0 0.0
        %3607 = vmatprep.subr.mxu0 0.0
        %3608 = vmatpush1.msra.mxu0 0.0
        %3609 = vmatprep.subr.mxu0 0.0
        %3610 = vmatpush1.msra.mxu0 0.0
        %3611 = vmatprep.subr.mxu0 0.0
        %3612 = vmatpush1.msra.mxu0 0.0
        %3613 = vmatprep.subr.mxu0 0.0
        %3614 = vmatpush1.msra.mxu0 0.0
        %3615 = vmatprep.subr.mxu0 0.0
        %3616 = vmatpush1.msra.mxu0 0.0
        %3617 = vmatprep.subr.mxu0 0.0
        %3618 = vmatpush1.msra.mxu0 0.0
        %3619 = vmatprep.subr.mxu0 0.0
        %3620 = vmatpush1.msra.mxu0 0.0
        %3621 = vmatprep.subr.mxu0 0.0
        %3622 = vmatpush1.msra.mxu0 0.0
        %3623 = vmatprep.subr.mxu0 0.0
        %3624 = vmatpush1.msra.mxu0 0.0
        %3625 = vmatprep.subr.mxu0 0.0
        %3626 = vmatpush1.msra.mxu0 0.0
        %3627 = vmatprep.subr.mxu0 0.0
        %3628 = vmatpush1.msra.mxu0 0.0
        %3629 = vmatprep.subr.mxu0 0.0
        %3630 = vmatpush1.msra.mxu0 0.0
        %3631 = vmatprep.subr.mxu0 0.0
        %3632 = vmatpush1.msra.mxu0 0.0
        %3633 = vmatprep.subr.mxu0 0.0
        %3634 = vmatpush1.msra.mxu0 0.0
        %3635 = vmatprep.subr.mxu0 0.0
        %3636 = vmatpush1.msra.mxu0 0.0
        %3637 = vmatprep.subr.mxu0 0.0
        %3638 = vmatpush1.msra.mxu0 0.0
        %3639 = vmatprep.subr.mxu0 0.0
        %3640 = vmatpush1.msra.mxu0 0.0
        %3641 = vmatprep.subr.mxu0 0.0
        %3642 = vmatpush1.msra.mxu0 0.0
        %3643 = vmatprep.subr.mxu0 0.0
        %3644 = vmatpush1.msra.mxu0 0.0
        %3645 = vmatprep.subr.mxu0 0.0
        %3646 = vmatpush1.msra.mxu0 0.0
        %3647 = vmatprep.subr.mxu0 0.0
        %3648 = vmatpush1.msra.mxu0 0.0
        %3649 = vmatprep.subr.mxu0 0.0
        %3650 = vmatpush1.msra.mxu0 0.0
        %3651 = vmatprep.subr.mxu0 0.0
        %3652 = vmatpush1.msra.mxu0 0.0
        %3653 = vmatprep.subr.mxu0 0.0
        %3654 = vmatpush1.msra.mxu0 0.0
        %3655 = vmatprep.subr.mxu0 0.0
        %3656 = vmatpush1.msra.mxu0 0.0
        %3657 = vmatprep.subr.mxu0 0.0
        %3658 = vmatpush1.msra.mxu0 0.0
        %3659 = vmatprep.subr.mxu0 0.0
        %3660 = vmatpush1.msra.mxu0 0.0
        %3661 = vmatprep.subr.mxu0 0.0
        %3662 = vmatpush1.msra.mxu0 0.0
        %3663 = vmatprep.subr.mxu0 0.0
        %3664 = vmatpush1.msra.mxu0 0.0
        %3665 = vmatprep.mubr.f32.mxu0 0.0
        %3666 = vmatmul.mubr.f32.gmra.mrb[0].mxu0 %v3596
        %v3667 = vpop.f32.mrb[0].mxu0
        %v3668 = vadd.f32 0.0, %v3667
        %v3669 = vpop.f32.mrb[0].mxu0
        %v3670 = vadd.f32 0.0, %v3669
        %3671 = vmatprep.mubr.f32.mxu0 0.0
        %3672 = vmatmul.mubr.f32.gmra.mrb[0].mxu0 %v3599
        %v3673 = vpop.f32.mrb[0].mxu0
        %v3674 = vadd.f32 0.0, %v3673
        %v3675 = vpop.f32.mrb[0].mxu0
        %v3676 = vadd.f32 0.0, %v3675
        %3677 = vdwg.mxu0
        %3678 = vmatprep.subr.mxu0 0.0
        %3679 = vmatpush1.msra.mxu0 %v3578
        %3680 = vmatprep.subr.mxu0 0.0
        %3681 = vmatpush1.msra.mxu0 %v3584
        %3682 = vmatprep.subr.mxu0 0.0
        %3683 = vmatpush1.msra.mxu0 0.0
        %3684 = vmatprep.subr.mxu0 0.0
        %3685 = vmatpush1.msra.mxu0 0.0
        %3686 = vmatprep.subr.mxu0 0.0
        %3687 = vmatpush1.msra.mxu0 0.0
        %3688 = vmatprep.subr.mxu0 0.0
        %3689 = vmatpush1.msra.mxu0 0.0
        %3690 = vmatprep.subr.mxu0 0.0
        %3691 = vmatpush1.msra.mxu0 0.0
        %3692 = vmatprep.subr.mxu0 0.0
        %3693 = vmatpush1.msra.mxu0 0.0
        %3694 = vmatprep.subr.mxu0 0.0
        %3695 = vmatpush1.msra.mxu0 0.0
        %3696 = vmatprep.subr.mxu0 0.0
        %3697 = vmatpush1.msra.mxu0 0.0
        %3698 = vmatprep.subr.mxu0 0.0
        %3699 = vmatpush1.msra.mxu0 0.0
        %3700 = vmatprep.subr.mxu0 0.0
        %3701 = vmatpush1.msra.mxu0 0.0
        %3702 = vmatprep.subr.mxu0 0.0
        %3703 = vmatpush1.msra.mxu0 0.0
        %3704 = vmatprep.subr.mxu0 0.0
        %3705 = vmatpush1.msra.mxu0 0.0
        %3706 = vmatprep.subr.mxu0 0.0
        %3707 = vmatpush1.msra.mxu0 0.0
        %3708 = vmatprep.subr.mxu0 0.0
        %3709 = vmatpush1.msra.mxu0 0.0
        %3710 = vmatprep.subr.mxu0 0.0
        %3711 = vmatpush1.msra.mxu0 0.0
        %3712 = vmatprep.subr.mxu0 0.0
        %3713 = vmatpush1.msra.mxu0 0.0
        %3714 = vmatprep.subr.mxu0 0.0
        %3715 = vmatpush1.msra.mxu0 0.0
        %3716 = vmatprep.subr.mxu0 0.0
        %3717 = vmatpush1.msra.mxu0 0.0
        %3718 = vmatprep.subr.mxu0 0.0
        %3719 = vmatpush1.msra.mxu0 0.0
        %3720 = vmatprep.subr.mxu0 0.0
        %3721 = vmatpush1.msra.mxu0 0.0
        %3722 = vmatprep.subr.mxu0 0.0
        %3723 = vmatpush1.msra.mxu0 0.0
        %3724 = vmatprep.subr.mxu0 0.0
        %3725 = vmatpush1.msra.mxu0 0.0
        %3726 = vmatprep.subr.mxu0 0.0
        %3727 = vmatpush1.msra.mxu0 0.0
        %3728 = vmatprep.subr.mxu0 0.0
        %3729 = vmatpush1.msra.mxu0 0.0
        %3730 = vmatprep.subr.mxu0 0.0
        %3731 = vmatpush1.msra.mxu0 0.0
        %3732 = vmatprep.subr.mxu0 0.0
        %3733 = vmatpush1.msra.mxu0 0.0
        %3734 = vmatprep.subr.mxu0 0.0
        %3735 = vmatpush1.msra.mxu0 0.0
        %3736 = vmatprep.subr.mxu0 0.0
        %3737 = vmatpush1.msra.mxu0 0.0
        %3738 = vmatprep.subr.mxu0 0.0
        %3739 = vmatpush1.msra.mxu0 0.0
        %3740 = vmatprep.subr.mxu0 0.0
        %3741 = vmatpush1.msra.mxu0 0.0
        %3742 = vmatprep.mubr.f32.mxu0 0.0
        %3743 = vmatmul.mubr.f32.gmra.mrb[0].mxu0 %v3596
        %v3744 = vpop.f32.mrb[0].mxu0
        %v3745 = vadd.f32 0.0, %v3744
        %v3746 = vpop.f32.mrb[0].mxu0
        %3747 = vmatprep.mubr.f32.mxu0 0.0
        %3748 = vmatmul.mubr.f32.gmra.mrb[0].mxu0 %v3599
        %v3749 = vpop.f32.mrb[0].mxu0
        %v3750 = vadd.f32 0.0, %v3749
        %v3751 = vpop.f32.mrb[0].mxu0
        %3752 = vdwg.mxu0
        %v3753 = vadd.f32 %v3564, %v3668
        %v3754 = vadd.f32 %v3565, %v3670
        %v3755 = vadd.f32 %v3566, %v3745
        %v3756 = vadd.f32 %v3567, %v3674
        %v3757 = vadd.f32 %v3568, %v3676
        %v3758 = vadd.f32 %v3569, %v3750
        %v3759 = vld [vmem:[%s5] sm:$0xff]
        %v3760 = vld [vmem:[%s5 + $0x8] sm:$0xff]
        %3762 = vset.pattern.permute.xlu0 0
        %3763 = vperm.xlu0 %3762, %v3759
        %v3764 = vpop.permute.xlu0 %3763
        %3767 = vset.pattern.permute.xlu0 0
        %3768 = vperm.xlu0 %3767, %v3760
        %v3769 = vpop.permute.xlu0 %3768
        %v3771 = vadd.f32 %v3753, %v3764
        %v3772 = vadd.f32 %v3754, %v3764
        %v3773 = vadd.f32 %v3755, %v3764
        %v3774 = vadd.f32 %v3756, %v3769
        %v3775 = vadd.f32 %v3757, %v3769
        %v3776 = vadd.f32 %v3758, %v3769
        %v3777 = vmax.f32 %v3771, 0.0
        %v3778 = vmax.f32 %v3772, 0.0
        %v3779 = vmax.f32 %v3773, 0.0
        %v3780 = vmax.f32 %v3774, 0.0
        %v3781 = vmax.f32 %v3775, 0.0
        %v3782 = vmax.f32 %v3776, 0.0
        %v3783 = vmul.f32 %v3777, %v2036
        %v3784 = vmul.f32 %v3778, %v2040
        %v3785 = vmul.f32 %v3779, %v2044
        %v3786 = vmul.f32 %v3780, %v2036
        %v3787 = vmul.f32 %v3781, %v2040
        %v3788 = vmul.f32 %v3782, %v2044
        %3795 = vrot.lane.b32.xlu0 %v3783, 19
        %v3796 = vpop.permute.xlu0 %3795
        %3797 = vrot.lane.b32.xlu0 %v3784, 19
        %v3798 = vpop.permute.xlu0 %3797
        %3799 = vrot.lane.b32.xlu0 %v3785, 19
        %v3800 = vpop.permute.xlu0 %3799
        %3801 = vrot.lane.b32.xlu0 %v3786, 19
        %v3802 = vpop.permute.xlu0 %3801
        %3803 = vrot.lane.b32.xlu0 %v3787, 19
        %v3804 = vpop.permute.xlu0 %3803
        %3805 = vrot.lane.b32.xlu0 %v3788, 19
        %v3806 = vpop.permute.xlu0 %3805
        %v3807 = vsel %vm2072, %v3796, %v3798
        %v3808 = vsel %vm2072, %v3798, %v3800
        %v3809 = vsel %vm2072, %v3802, %v3804
        %v3810 = vsel %vm2072, %v3804, %v3806
        %v3817 = vsel %vm2072, 0.0, %v3796
        %v3818 = vsel %vm2072, 0.0, %v3802
        %v3819 = vsel %vm2085, %v3808, 0.0
        %v3820 = vsel %vm2085, %v3810, 0.0
        %v3821 = vld [vmem:[%s6] sm:$0xff]
        %v3822 = vld [vmem:[%s6 + $0x8] sm:$0xff]
        %v3823 = vld [vmem:[%s6 + $0x10] sm:$0xff]
        %v3824 = vld [vmem:[%s6 + $0x18] sm:$0xff]
        %s3825 = scalar_lea.vmem %s6, 32
        %v3826 = vld [vmem:[%s3825] sm:$0xff]
        %v3827 = vld [vmem:[%s3825 + $0x8] sm:$0xff]
        %v3828 = vld [vmem:[%s3825 + $0x10] sm:$0xff]
        %v3829 = vld [vmem:[%s3825 + $0x18] sm:$0xff]
        %3834 = vrot.lane.b32.xlu0 %v3817, 127
        %v3835 = vpop.permute.xlu0 %3834
        %3836 = vrot.lane.b32.xlu0 %v3807, 127
        %v3837 = vpop.permute.xlu0 %3836
        %3838 = vrot.lane.b32.xlu0 %v3819, 127
        %v3839 = vpop.permute.xlu0 %3838
        %3840 = vrot.lane.b32.xlu0 %v3818, 127
        %v3841 = vpop.permute.xlu0 %3840
        %3842 = vrot.lane.b32.xlu0 %v3809, 127
        %v3843 = vpop.permute.xlu0 %3842
        %3844 = vrot.lane.b32.xlu0 %v3820, 127
        %v3845 = vpop.permute.xlu0 %3844
        %v3846 = vsel %vm400, %v3835, %v3837
        %v3847 = vsel %vm400, %v3837, %v3839
        %v3848 = vsel %vm400, %v3841, %v3843
        %v3849 = vsel %vm400, %v3843, %v3845
        %v3857 = vsel %vm2119, %v3826, 0
        %v3860 = vsel %vm2119, %v3827, 0
        %v3863 = vsel %vm2119, %v3828, 0
        %v3866 = vsel %vm2119, %v3829, 0
        %3868 = vmatprep.subr.mxu0 %v3847
        %3869 = vmatpush1.msra.mxu0 %v3846
        %3870 = vmatprep.subr.mxu0 %v3849
        %3871 = vmatpush1.msra.mxu0 %v3848
        %3872 = vmatprep.subr.mxu0 0.0
        %3873 = vmatpush1.msra.mxu0 0.0
        %3874 = vmatprep.subr.mxu0 0.0
        %3875 = vmatpush1.msra.mxu0 0.0
        %3876 = vmatprep.subr.mxu0 0.0
        %3877 = vmatpush1.msra.mxu0 0.0
        %3878 = vmatprep.subr.mxu0 0.0
        %3879 = vmatpush1.msra.mxu0 0.0
        %3880 = vmatprep.subr.mxu0 0.0
        %3881 = vmatpush1.msra.mxu0 0.0
        %3882 = vmatprep.subr.mxu0 0.0
        %3883 = vmatpush1.msra.mxu0 0.0
        %3884 = vmatprep.subr.mxu0 0.0
        %3885 = vmatpush1.msra.mxu0 0.0
        %3886 = vmatprep.subr.mxu0 0.0
        %3887 = vmatpush1.msra.mxu0 0.0
        %3888 = vmatprep.subr.mxu0 0.0
        %3889 = vmatpush1.msra.mxu0 0.0
        %3890 = vmatprep.subr.mxu0 0.0
        %3891 = vmatpush1.msra.mxu0 0.0
        %3892 = vmatprep.subr.mxu0 0.0
        %3893 = vmatpush1.msra.mxu0 0.0
        %3894 = vmatprep.subr.mxu0 0.0
        %3895 = vmatpush1.msra.mxu0 0.0
        %3896 = vmatprep.subr.mxu0 0.0
        %3897 = vmatpush1.msra.mxu0 0.0
        %3898 = vmatprep.subr.mxu0 0.0
        %3899 = vmatpush1.msra.mxu0 0.0
        %3900 = vmatprep.subr.mxu0 0.0
        %3901 = vmatpush1.msra.mxu0 0.0
        %3902 = vmatprep.subr.mxu0 0.0
        %3903 = vmatpush1.msra.mxu0 0.0
        %3904 = vmatprep.subr.mxu0 0.0
        %3905 = vmatpush1.msra.mxu0 0.0
        %3906 = vmatprep.subr.mxu0 0.0
        %3907 = vmatpush1.msra.mxu0 0.0
        %3908 = vmatprep.subr.mxu0 0.0
        %3909 = vmatpush1.msra.mxu0 0.0
        %3910 = vmatprep.subr.mxu0 0.0
        %3911 = vmatpush1.msra.mxu0 0.0
        %3912 = vmatprep.subr.mxu0 0.0
        %3913 = vmatpush1.msra.mxu0 0.0
        %3914 = vmatprep.subr.mxu0 0.0
        %3915 = vmatpush1.msra.mxu0 0.0
        %3916 = vmatprep.subr.mxu0 0.0
        %3917 = vmatpush1.msra.mxu0 0.0
        %3918 = vmatprep.subr.mxu0 0.0
        %3919 = vmatpush1.msra.mxu0 0.0
        %3920 = vmatprep.subr.mxu0 0.0
        %3921 = vmatpush1.msra.mxu0 0.0
        %3922 = vmatprep.subr.mxu0 0.0
        %3923 = vmatpush1.msra.mxu0 0.0
        %3924 = vmatprep.subr.mxu0 0.0
        %3925 = vmatpush1.msra.mxu0 0.0
        %3926 = vmatprep.subr.mxu0 0.0
        %3927 = vmatpush1.msra.mxu0 0.0
        %3928 = vmatprep.subr.mxu0 0.0
        %3929 = vmatpush1.msra.mxu0 0.0
        %3930 = vmatprep.subr.mxu0 0.0
        %3931 = vmatpush1.msra.mxu0 0.0
        %3932 = vmatprep.mubr.f32.mxu0 0.0
        %3933 = vmatmul.mubr.f32.gmra.mrb[0].mxu0 %v3857
        %v3934 = vpop.f32.mrb[0].mxu0
        %v3935 = vadd.f32 0.0, %v3934
        %v3936 = vpop.f32.mrb[0].mxu0
        %v3937 = vadd.f32 0.0, %v3936
        %3938 = vmatprep.mubr.f32.mxu0 0.0
        %3939 = vmatmul.mubr.f32.gmra.mrb[0].mxu0 %v3860
        %v3940 = vpop.f32.mrb[0].mxu0
        %v3941 = vadd.f32 0.0, %v3940
        %v3942 = vpop.f32.mrb[0].mxu0
        %v3943 = vadd.f32 0.0, %v3942
        %3944 = vmatprep.mubr.f32.mxu0 0.0
        %3945 = vmatmul.mubr.f32.gmra.mrb[0].mxu0 %v3863
        %v3946 = vpop.f32.mrb[0].mxu0
        %v3947 = vadd.f32 0.0, %v3946
        %v3948 = vpop.f32.mrb[0].mxu0
        %v3949 = vadd.f32 0.0, %v3948
        %3950 = vmatprep.mubr.f32.mxu0 0.0
        %3951 = vmatmul.mubr.f32.gmra.mrb[0].mxu0 %v3866
        %v3952 = vpop.f32.mrb[0].mxu0
        %v3953 = vadd.f32 0.0, %v3952
        %v3954 = vpop.f32.mrb[0].mxu0
        %v3955 = vadd.f32 0.0, %v3954
        %3956 = vdwg.mxu0
        %3957 = vmatprep.subr.mxu0 0.0
        %3958 = vmatpush1.msra.mxu0 %v3839
        %3959 = vmatprep.subr.mxu0 0.0
        %3960 = vmatpush1.msra.mxu0 %v3845
        %3961 = vmatprep.subr.mxu0 0.0
        %3962 = vmatpush1.msra.mxu0 0.0
        %3963 = vmatprep.subr.mxu0 0.0
        %3964 = vmatpush1.msra.mxu0 0.0
        %3965 = vmatprep.subr.mxu0 0.0
        %3966 = vmatpush1.msra.mxu0 0.0
        %3967 = vmatprep.subr.mxu0 0.0
        %3968 = vmatpush1.msra.mxu0 0.0
        %3969 = vmatprep.subr.mxu0 0.0
        %3970 = vmatpush1.msra.mxu0 0.0
        %3971 = vmatprep.subr.mxu0 0.0
        %3972 = vmatpush1.msra.mxu0 0.0
        %3973 = vmatprep.subr.mxu0 0.0
        %3974 = vmatpush1.msra.mxu0 0.0
        %3975 = vmatprep.subr.mxu0 0.0
        %3976 = vmatpush1.msra.mxu0 0.0
        %3977 = vmatprep.subr.mxu0 0.0
        %3978 = vmatpush1.msra.mxu0 0.0
        %3979 = vmatprep.subr.mxu0 0.0
        %3980 = vmatpush1.msra.mxu0 0.0
        %3981 = vmatprep.subr.mxu0 0.0
        %3982 = vmatpush1.msra.mxu0 0.0
        %3983 = vmatprep.subr.mxu0 0.0
        %3984 = vmatpush1.msra.mxu0 0.0
        %3985 = vmatprep.subr.mxu0 0.0
        %3986 = vmatpush1.msra.mxu0 0.0
        %3987 = vmatprep.subr.mxu0 0.0
        %3988 = vmatpush1.msra.mxu0 0.0
        %3989 = vmatprep.subr.mxu0 0.0
        %3990 = vmatpush1.msra.mxu0 0.0
        %3991 = vmatprep.subr.mxu0 0.0
        %3992 = vmatpush1.msra.mxu0 0.0
        %3993 = vmatprep.subr.mxu0 0.0
        %3994 = vmatpush1.msra.mxu0 0.0
        %3995 = vmatprep.subr.mxu0 0.0
        %3996 = vmatpush1.msra.mxu0 0.0
        %3997 = vmatprep.subr.mxu0 0.0
        %3998 = vmatpush1.msra.mxu0 0.0
        %3999 = vmatprep.subr.mxu0 0.0
        %4000 = vmatpush1.msra.mxu0 0.0
        %4001 = vmatprep.subr.mxu0 0.0
        %4002 = vmatpush1.msra.mxu0 0.0
        %4003 = vmatprep.subr.mxu0 0.0
        %4004 = vmatpush1.msra.mxu0 0.0
        %4005 = vmatprep.subr.mxu0 0.0
        %4006 = vmatpush1.msra.mxu0 0.0
        %4007 = vmatprep.subr.mxu0 0.0
        %4008 = vmatpush1.msra.mxu0 0.0
        %4009 = vmatprep.subr.mxu0 0.0
        %4010 = vmatpush1.msra.mxu0 0.0
        %4011 = vmatprep.subr.mxu0 0.0
        %4012 = vmatpush1.msra.mxu0 0.0
        %4013 = vmatprep.subr.mxu0 0.0
        %4014 = vmatpush1.msra.mxu0 0.0
        %4015 = vmatprep.subr.mxu0 0.0
        %4016 = vmatpush1.msra.mxu0 0.0
        %4017 = vmatprep.subr.mxu0 0.0
        %4018 = vmatpush1.msra.mxu0 0.0
        %4019 = vmatprep.subr.mxu0 0.0
        %4020 = vmatpush1.msra.mxu0 0.0
        %4021 = vmatprep.mubr.f32.mxu0 0.0
        %4022 = vmatmul.mubr.f32.gmra.mrb[0].mxu0 %v3857
        %v4023 = vpop.f32.mrb[0].mxu0
        %v4024 = vadd.f32 0.0, %v4023
        %v4025 = vpop.f32.mrb[0].mxu0
        %4026 = vmatprep.mubr.f32.mxu0 0.0
        %4027 = vmatmul.mubr.f32.gmra.mrb[0].mxu0 %v3860
        %v4028 = vpop.f32.mrb[0].mxu0
        %v4029 = vadd.f32 0.0, %v4028
        %v4030 = vpop.f32.mrb[0].mxu0
        %4031 = vmatprep.mubr.f32.mxu0 0.0
        %4032 = vmatmul.mubr.f32.gmra.mrb[0].mxu0 %v3863
        %v4033 = vpop.f32.mrb[0].mxu0
        %v4034 = vadd.f32 0.0, %v4033
        %v4035 = vpop.f32.mrb[0].mxu0
        %4036 = vmatprep.mubr.f32.mxu0 0.0
        %4037 = vmatmul.mubr.f32.gmra.mrb[0].mxu0 %v3866
        %v4038 = vpop.f32.mrb[0].mxu0
        %v4039 = vadd.f32 0.0, %v4038
        %v4040 = vpop.f32.mrb[0].mxu0
        %4041 = vdwg.mxu0
        %v4043 = vsel %vm2119, %v3821, 0
        %v4046 = vsel %vm2119, %v3822, 0
        %v4049 = vsel %vm2119, %v3823, 0
        %v4052 = vsel %vm2119, %v3824, 0
        %4054 = vmatprep.subr.mxu0 %v3807
        %4055 = vmatpush1.msra.mxu0 %v3817
        %4056 = vmatprep.subr.mxu0 %v3809
        %4057 = vmatpush1.msra.mxu0 %v3818
        %4058 = vmatprep.subr.mxu0 0.0
        %4059 = vmatpush1.msra.mxu0 0.0
        %4060 = vmatprep.subr.mxu0 0.0
        %4061 = vmatpush1.msra.mxu0 0.0
        %4062 = vmatprep.subr.mxu0 0.0
        %4063 = vmatpush1.msra.mxu0 0.0
        %4064 = vmatprep.subr.mxu0 0.0
        %4065 = vmatpush1.msra.mxu0 0.0
        %4066 = vmatprep.subr.mxu0 0.0
        %4067 = vmatpush1.msra.mxu0 0.0
        %4068 = vmatprep.subr.mxu0 0.0
        %4069 = vmatpush1.msra.mxu0 0.0
        %4070 = vmatprep.subr.mxu0 0.0
        %4071 = vmatpush1.msra.mxu0 0.0
        %4072 = vmatprep.subr.mxu0 0.0
        %4073 = vmatpush1.msra.mxu0 0.0
        %4074 = vmatprep.subr.mxu0 0.0
        %4075 = vmatpush1.msra.mxu0 0.0
        %4076 = vmatprep.subr.mxu0 0.0
        %4077 = vmatpush1.msra.mxu0 0.0
        %4078 = vmatprep.subr.mxu0 0.0
        %4079 = vmatpush1.msra.mxu0 0.0
        %4080 = vmatprep.subr.mxu0 0.0
        %4081 = vmatpush1.msra.mxu0 0.0
        %4082 = vmatprep.subr.mxu0 0.0
        %4083 = vmatpush1.msra.mxu0 0.0
        %4084 = vmatprep.subr.mxu0 0.0
        %4085 = vmatpush1.msra.mxu0 0.0
        %4086 = vmatprep.subr.mxu0 0.0
        %4087 = vmatpush1.msra.mxu0 0.0
        %4088 = vmatprep.subr.mxu0 0.0
        %4089 = vmatpush1.msra.mxu0 0.0
        %4090 = vmatprep.subr.mxu0 0.0
        %4091 = vmatpush1.msra.mxu0 0.0
        %4092 = vmatprep.subr.mxu0 0.0
        %4093 = vmatpush1.msra.mxu0 0.0
        %4094 = vmatprep.subr.mxu0 0.0
        %4095 = vmatpush1.msra.mxu0 0.0
        %4096 = vmatprep.subr.mxu0 0.0
        %4097 = vmatpush1.msra.mxu0 0.0
        %4098 = vmatprep.subr.mxu0 0.0
        %4099 = vmatpush1.msra.mxu0 0.0
        %4100 = vmatprep.subr.mxu0 0.0
        %4101 = vmatpush1.msra.mxu0 0.0
        %4102 = vmatprep.subr.mxu0 0.0
        %4103 = vmatpush1.msra.mxu0 0.0
        %4104 = vmatprep.subr.mxu0 0.0
        %4105 = vmatpush1.msra.mxu0 0.0
        %4106 = vmatprep.subr.mxu0 0.0
        %4107 = vmatpush1.msra.mxu0 0.0
        %4108 = vmatprep.subr.mxu0 0.0
        %4109 = vmatpush1.msra.mxu0 0.0
        %4110 = vmatprep.subr.mxu0 0.0
        %4111 = vmatpush1.msra.mxu0 0.0
        %4112 = vmatprep.subr.mxu0 0.0
        %4113 = vmatpush1.msra.mxu0 0.0
        %4114 = vmatprep.subr.mxu0 0.0
        %4115 = vmatpush1.msra.mxu0 0.0
        %4116 = vmatprep.subr.mxu0 0.0
        %4117 = vmatpush1.msra.mxu0 0.0
        %4118 = vmatprep.mubr.f32.mxu0 0.0
        %4119 = vmatmul.mubr.f32.gmra.mrb[0].mxu0 %v4043
        %v4120 = vpop.f32.mrb[0].mxu0
        %v4121 = vadd.f32 %v3935, %v4120
        %v4122 = vpop.f32.mrb[0].mxu0
        %v4123 = vadd.f32 %v3937, %v4122
        %4124 = vmatprep.mubr.f32.mxu0 0.0
        %4125 = vmatmul.mubr.f32.gmra.mrb[0].mxu0 %v4046
        %v4126 = vpop.f32.mrb[0].mxu0
        %v4127 = vadd.f32 %v3941, %v4126
        %v4128 = vpop.f32.mrb[0].mxu0
        %v4129 = vadd.f32 %v3943, %v4128
        %4130 = vmatprep.mubr.f32.mxu0 0.0
        %4131 = vmatmul.mubr.f32.gmra.mrb[0].mxu0 %v4049
        %v4132 = vpop.f32.mrb[0].mxu0
        %v4133 = vadd.f32 %v3947, %v4132
        %v4134 = vpop.f32.mrb[0].mxu0
        %v4135 = vadd.f32 %v3949, %v4134
        %4136 = vmatprep.mubr.f32.mxu0 0.0
        %4137 = vmatmul.mubr.f32.gmra.mrb[0].mxu0 %v4052
        %v4138 = vpop.f32.mrb[0].mxu0
        %v4139 = vadd.f32 %v3953, %v4138
        %v4140 = vpop.f32.mrb[0].mxu0
        %v4141 = vadd.f32 %v3955, %v4140
        %4142 = vdwg.mxu0
        %4143 = vmatprep.subr.mxu0 0.0
        %4144 = vmatpush1.msra.mxu0 %v3819
        %4145 = vmatprep.subr.mxu0 0.0
        %4146 = vmatpush1.msra.mxu0 %v3820
        %4147 = vmatprep.subr.mxu0 0.0
        %4148 = vmatpush1.msra.mxu0 0.0
        %4149 = vmatprep.subr.mxu0 0.0
        %4150 = vmatpush1.msra.mxu0 0.0
        %4151 = vmatprep.subr.mxu0 0.0
        %4152 = vmatpush1.msra.mxu0 0.0
        %4153 = vmatprep.subr.mxu0 0.0
        %4154 = vmatpush1.msra.mxu0 0.0
        %4155 = vmatprep.subr.mxu0 0.0
        %4156 = vmatpush1.msra.mxu0 0.0
        %4157 = vmatprep.subr.mxu0 0.0
        %4158 = vmatpush1.msra.mxu0 0.0
        %4159 = vmatprep.subr.mxu0 0.0
        %4160 = vmatpush1.msra.mxu0 0.0
        %4161 = vmatprep.subr.mxu0 0.0
        %4162 = vmatpush1.msra.mxu0 0.0
        %4163 = vmatprep.subr.mxu0 0.0
        %4164 = vmatpush1.msra.mxu0 0.0
        %4165 = vmatprep.subr.mxu0 0.0
        %4166 = vmatpush1.msra.mxu0 0.0
        %4167 = vmatprep.subr.mxu0 0.0
        %4168 = vmatpush1.msra.mxu0 0.0
        %4169 = vmatprep.subr.mxu0 0.0
        %4170 = vmatpush1.msra.mxu0 0.0
        %4171 = vmatprep.subr.mxu0 0.0
        %4172 = vmatpush1.msra.mxu0 0.0
        %4173 = vmatprep.subr.mxu0 0.0
        %4174 = vmatpush1.msra.mxu0 0.0
        %4175 = vmatprep.subr.mxu0 0.0
        %4176 = vmatpush1.msra.mxu0 0.0
        %4177 = vmatprep.subr.mxu0 0.0
        %4178 = vmatpush1.msra.mxu0 0.0
        %4179 = vmatprep.subr.mxu0 0.0
        %4180 = vmatpush1.msra.mxu0 0.0
        %4181 = vmatprep.subr.mxu0 0.0
        %4182 = vmatpush1.msra.mxu0 0.0
        %4183 = vmatprep.subr.mxu0 0.0
        %4184 = vmatpush1.msra.mxu0 0.0
        %4185 = vmatprep.subr.mxu0 0.0
        %4186 = vmatpush1.msra.mxu0 0.0
        %4187 = vmatprep.subr.mxu0 0.0
        %4188 = vmatpush1.msra.mxu0 0.0
        %4189 = vmatprep.subr.mxu0 0.0
        %4190 = vmatpush1.msra.mxu0 0.0
        %4191 = vmatprep.subr.mxu0 0.0
        %4192 = vmatpush1.msra.mxu0 0.0
        %4193 = vmatprep.subr.mxu0 0.0
        %4194 = vmatpush1.msra.mxu0 0.0
        %4195 = vmatprep.subr.mxu0 0.0
        %4196 = vmatpush1.msra.mxu0 0.0
        %4197 = vmatprep.subr.mxu0 0.0
        %4198 = vmatpush1.msra.mxu0 0.0
        %4199 = vmatprep.subr.mxu0 0.0
        %4200 = vmatpush1.msra.mxu0 0.0
        %4201 = vmatprep.subr.mxu0 0.0
        %4202 = vmatpush1.msra.mxu0 0.0
        %4203 = vmatprep.subr.mxu0 0.0
        %4204 = vmatpush1.msra.mxu0 0.0
        %4205 = vmatprep.subr.mxu0 0.0
        %4206 = vmatpush1.msra.mxu0 0.0
        %4207 = vmatprep.mubr.f32.mxu0 0.0
        %4208 = vmatmul.mubr.f32.gmra.mrb[0].mxu0 %v4043
        %v4209 = vpop.f32.mrb[0].mxu0
        %v4210 = vadd.f32 %v4024, %v4209
        %v4211 = vpop.f32.mrb[0].mxu0
        %4212 = vmatprep.mubr.f32.mxu0 0.0
        %4213 = vmatmul.mubr.f32.gmra.mrb[0].mxu0 %v4046
        %v4214 = vpop.f32.mrb[0].mxu0
        %v4215 = vadd.f32 %v4029, %v4214
        %v4216 = vpop.f32.mrb[0].mxu0
        %4217 = vmatprep.mubr.f32.mxu0 0.0
        %4218 = vmatmul.mubr.f32.gmra.mrb[0].mxu0 %v4049
        %v4219 = vpop.f32.mrb[0].mxu0
        %v4220 = vadd.f32 %v4034, %v4219
        %v4221 = vpop.f32.mrb[0].mxu0
        %4222 = vmatprep.mubr.f32.mxu0 0.0
        %4223 = vmatmul.mubr.f32.gmra.mrb[0].mxu0 %v4052
        %v4224 = vpop.f32.mrb[0].mxu0
        %v4225 = vadd.f32 %v4039, %v4224
        %v4226 = vpop.f32.mrb[0].mxu0
        %4227 = vdwg.mxu0
        %s4228 = scalar_lea.vmem %s6, 64
        %v4229 = vld [vmem:[%s4228] sm:$0xff]
        %v4230 = vld [vmem:[%s4228 + $0x8] sm:$0xff]
        %v4231 = vld [vmem:[%s4228 + $0x10] sm:$0xff]
        %v4232 = vld [vmem:[%s4228 + $0x18] sm:$0xff]
        %4233 = vrot.lane.b32.xlu0 %v3817, 126
        %v4234 = vpop.permute.xlu0 %4233
        %4235 = vrot.lane.b32.xlu0 %v3807, 126
        %v4236 = vpop.permute.xlu0 %4235
        %4237 = vrot.lane.b32.xlu0 %v3819, 126
        %v4238 = vpop.permute.xlu0 %4237
        %4239 = vrot.lane.b32.xlu0 %v3818, 126
        %v4240 = vpop.permute.xlu0 %4239
        %4241 = vrot.lane.b32.xlu0 %v3809, 126
        %v4242 = vpop.permute.xlu0 %4241
        %4243 = vrot.lane.b32.xlu0 %v3820, 126
        %v4244 = vpop.permute.xlu0 %4243
        %v4245 = vsel %vm742, %v4234, %v4236
        %v4246 = vsel %vm742, %v4236, %v4238
        %v4247 = vsel %vm742, %v4240, %v4242
        %v4248 = vsel %vm742, %v4242, %v4244
        %v4256 = vsel %vm2119, %v4229, 0
        %v4259 = vsel %vm2119, %v4230, 0
        %v4262 = vsel %vm2119, %v4231, 0
        %v4265 = vsel %vm2119, %v4232, 0
        %4267 = vmatprep.subr.mxu0 %v4246
        %4268 = vmatpush1.msra.mxu0 %v4245
        %4269 = vmatprep.subr.mxu0 %v4248
        %4270 = vmatpush1.msra.mxu0 %v4247
        %4271 = vmatprep.subr.mxu0 0.0
        %4272 = vmatpush1.msra.mxu0 0.0
        %4273 = vmatprep.subr.mxu0 0.0
        %4274 = vmatpush1.msra.mxu0 0.0
        %4275 = vmatprep.subr.mxu0 0.0
        %4276 = vmatpush1.msra.mxu0 0.0
        %4277 = vmatprep.subr.mxu0 0.0
        %4278 = vmatpush1.msra.mxu0 0.0
        %4279 = vmatprep.subr.mxu0 0.0
        %4280 = vmatpush1.msra.mxu0 0.0
        %4281 = vmatprep.subr.mxu0 0.0
        %4282 = vmatpush1.msra.mxu0 0.0
        %4283 = vmatprep.subr.mxu0 0.0
        %4284 = vmatpush1.msra.mxu0 0.0
        %4285 = vmatprep.subr.mxu0 0.0
        %4286 = vmatpush1.msra.mxu0 0.0
        %4287 = vmatprep.subr.mxu0 0.0
        %4288 = vmatpush1.msra.mxu0 0.0
        %4289 = vmatprep.subr.mxu0 0.0
        %4290 = vmatpush1.msra.mxu0 0.0
        %4291 = vmatprep.subr.mxu0 0.0
        %4292 = vmatpush1.msra.mxu0 0.0
        %4293 = vmatprep.subr.mxu0 0.0
        %4294 = vmatpush1.msra.mxu0 0.0
        %4295 = vmatprep.subr.mxu0 0.0
        %4296 = vmatpush1.msra.mxu0 0.0
        %4297 = vmatprep.subr.mxu0 0.0
        %4298 = vmatpush1.msra.mxu0 0.0
        %4299 = vmatprep.subr.mxu0 0.0
        %4300 = vmatpush1.msra.mxu0 0.0
        %4301 = vmatprep.subr.mxu0 0.0
        %4302 = vmatpush1.msra.mxu0 0.0
        %4303 = vmatprep.subr.mxu0 0.0
        %4304 = vmatpush1.msra.mxu0 0.0
        %4305 = vmatprep.subr.mxu0 0.0
        %4306 = vmatpush1.msra.mxu0 0.0
        %4307 = vmatprep.subr.mxu0 0.0
        %4308 = vmatpush1.msra.mxu0 0.0
        %4309 = vmatprep.subr.mxu0 0.0
        %4310 = vmatpush1.msra.mxu0 0.0
        %4311 = vmatprep.subr.mxu0 0.0
        %4312 = vmatpush1.msra.mxu0 0.0
        %4313 = vmatprep.subr.mxu0 0.0
        %4314 = vmatpush1.msra.mxu0 0.0
        %4315 = vmatprep.subr.mxu0 0.0
        %4316 = vmatpush1.msra.mxu0 0.0
        %4317 = vmatprep.subr.mxu0 0.0
        %4318 = vmatpush1.msra.mxu0 0.0
        %4319 = vmatprep.subr.mxu0 0.0
        %4320 = vmatpush1.msra.mxu0 0.0
        %4321 = vmatprep.subr.mxu0 0.0
        %4322 = vmatpush1.msra.mxu0 0.0
        %4323 = vmatprep.subr.mxu0 0.0
        %4324 = vmatpush1.msra.mxu0 0.0
        %4325 = vmatprep.subr.mxu0 0.0
        %4326 = vmatpush1.msra.mxu0 0.0
        %4327 = vmatprep.subr.mxu0 0.0
        %4328 = vmatpush1.msra.mxu0 0.0
        %4329 = vmatprep.subr.mxu0 0.0
        %4330 = vmatpush1.msra.mxu0 0.0
        %4331 = vmatprep.mubr.f32.mxu0 0.0
        %4332 = vmatmul.mubr.f32.gmra.mrb[0].mxu0 %v4256
        %v4333 = vpop.f32.mrb[0].mxu0
        %v4334 = vadd.f32 0.0, %v4333
        %v4335 = vpop.f32.mrb[0].mxu0
        %v4336 = vadd.f32 0.0, %v4335
        %4337 = vmatprep.mubr.f32.mxu0 0.0
        %4338 = vmatmul.mubr.f32.gmra.mrb[0].mxu0 %v4259
        %v4339 = vpop.f32.mrb[0].mxu0
        %v4340 = vadd.f32 0.0, %v4339
        %v4341 = vpop.f32.mrb[0].mxu0
        %v4342 = vadd.f32 0.0, %v4341
        %4343 = vmatprep.mubr.f32.mxu0 0.0
        %4344 = vmatmul.mubr.f32.gmra.mrb[0].mxu0 %v4262
        %v4345 = vpop.f32.mrb[0].mxu0
        %v4346 = vadd.f32 0.0, %v4345
        %v4347 = vpop.f32.mrb[0].mxu0
        %v4348 = vadd.f32 0.0, %v4347
        %4349 = vmatprep.mubr.f32.mxu0 0.0
        %4350 = vmatmul.mubr.f32.gmra.mrb[0].mxu0 %v4265
        %v4351 = vpop.f32.mrb[0].mxu0
        %v4352 = vadd.f32 0.0, %v4351
        %v4353 = vpop.f32.mrb[0].mxu0
        %v4354 = vadd.f32 0.0, %v4353
        %4355 = vdwg.mxu0
        %4356 = vmatprep.subr.mxu0 0.0
        %4357 = vmatpush1.msra.mxu0 %v4238
        %4358 = vmatprep.subr.mxu0 0.0
        %4359 = vmatpush1.msra.mxu0 %v4244
        %4360 = vmatprep.subr.mxu0 0.0
        %4361 = vmatpush1.msra.mxu0 0.0
        %4362 = vmatprep.subr.mxu0 0.0
        %4363 = vmatpush1.msra.mxu0 0.0
        %4364 = vmatprep.subr.mxu0 0.0
        %4365 = vmatpush1.msra.mxu0 0.0
        %4366 = vmatprep.subr.mxu0 0.0
        %4367 = vmatpush1.msra.mxu0 0.0
        %4368 = vmatprep.subr.mxu0 0.0
        %4369 = vmatpush1.msra.mxu0 0.0
        %4370 = vmatprep.subr.mxu0 0.0
        %4371 = vmatpush1.msra.mxu0 0.0
        %4372 = vmatprep.subr.mxu0 0.0
        %4373 = vmatpush1.msra.mxu0 0.0
        %4374 = vmatprep.subr.mxu0 0.0
        %4375 = vmatpush1.msra.mxu0 0.0
        %4376 = vmatprep.subr.mxu0 0.0
        %4377 = vmatpush1.msra.mxu0 0.0
        %4378 = vmatprep.subr.mxu0 0.0
        %4379 = vmatpush1.msra.mxu0 0.0
        %4380 = vmatprep.subr.mxu0 0.0
        %4381 = vmatpush1.msra.mxu0 0.0
        %4382 = vmatprep.subr.mxu0 0.0
        %4383 = vmatpush1.msra.mxu0 0.0
        %4384 = vmatprep.subr.mxu0 0.0
        %4385 = vmatpush1.msra.mxu0 0.0
        %4386 = vmatprep.subr.mxu0 0.0
        %4387 = vmatpush1.msra.mxu0 0.0
        %4388 = vmatprep.subr.mxu0 0.0
        %4389 = vmatpush1.msra.mxu0 0.0
        %4390 = vmatprep.subr.mxu0 0.0
        %4391 = vmatpush1.msra.mxu0 0.0
        %4392 = vmatprep.subr.mxu0 0.0
        %4393 = vmatpush1.msra.mxu0 0.0
        %4394 = vmatprep.subr.mxu0 0.0
        %4395 = vmatpush1.msra.mxu0 0.0
        %4396 = vmatprep.subr.mxu0 0.0
        %4397 = vmatpush1.msra.mxu0 0.0
        %4398 = vmatprep.subr.mxu0 0.0
        %4399 = vmatpush1.msra.mxu0 0.0
        %4400 = vmatprep.subr.mxu0 0.0
        %4401 = vmatpush1.msra.mxu0 0.0
        %4402 = vmatprep.subr.mxu0 0.0
        %4403 = vmatpush1.msra.mxu0 0.0
        %4404 = vmatprep.subr.mxu0 0.0
        %4405 = vmatpush1.msra.mxu0 0.0
        %4406 = vmatprep.subr.mxu0 0.0
        %4407 = vmatpush1.msra.mxu0 0.0
        %4408 = vmatprep.subr.mxu0 0.0
        %4409 = vmatpush1.msra.mxu0 0.0
        %4410 = vmatprep.subr.mxu0 0.0
        %4411 = vmatpush1.msra.mxu0 0.0
        %4412 = vmatprep.subr.mxu0 0.0
        %4413 = vmatpush1.msra.mxu0 0.0
        %4414 = vmatprep.subr.mxu0 0.0
        %4415 = vmatpush1.msra.mxu0 0.0
        %4416 = vmatprep.subr.mxu0 0.0
        %4417 = vmatpush1.msra.mxu0 0.0
        %4418 = vmatprep.subr.mxu0 0.0
        %4419 = vmatpush1.msra.mxu0 0.0
        %4420 = vmatprep.mubr.f32.mxu0 0.0
        %4421 = vmatmul.mubr.f32.gmra.mrb[0].mxu0 %v4256
        %v4422 = vpop.f32.mrb[0].mxu0
        %v4423 = vadd.f32 0.0, %v4422
        %v4424 = vpop.f32.mrb[0].mxu0
        %4425 = vmatprep.mubr.f32.mxu0 0.0
        %4426 = vmatmul.mubr.f32.gmra.mrb[0].mxu0 %v4259
        %v4427 = vpop.f32.mrb[0].mxu0
        %v4428 = vadd.f32 0.0, %v4427
        %v4429 = vpop.f32.mrb[0].mxu0
        %4430 = vmatprep.mubr.f32.mxu0 0.0
        %4431 = vmatmul.mubr.f32.gmra.mrb[0].mxu0 %v4262
        %v4432 = vpop.f32.mrb[0].mxu0
        %v4433 = vadd.f32 0.0, %v4432
        %v4434 = vpop.f32.mrb[0].mxu0
        %4435 = vmatprep.mubr.f32.mxu0 0.0
        %4436 = vmatmul.mubr.f32.gmra.mrb[0].mxu0 %v4265
        %v4437 = vpop.f32.mrb[0].mxu0
        %v4438 = vadd.f32 0.0, %v4437
        %v4439 = vpop.f32.mrb[0].mxu0
        %4440 = vdwg.mxu0
        %v4441 = vadd.f32 %v4121, %v4334
        %v4442 = vadd.f32 %v4123, %v4336
        %v4443 = vadd.f32 %v4210, %v4423
        %v4444 = vadd.f32 %v4127, %v4340
        %v4445 = vadd.f32 %v4129, %v4342
        %v4446 = vadd.f32 %v4215, %v4428
        %v4447 = vadd.f32 %v4133, %v4346
        %v4448 = vadd.f32 %v4135, %v4348
        %v4449 = vadd.f32 %v4220, %v4433
        %v4450 = vadd.f32 %v4139, %v4352
        %v4451 = vadd.f32 %v4141, %v4354
        %v4452 = vadd.f32 %v4225, %v4438
        %s4453 = scalar_lea.vmem %s6, 96
        %v4454 = vld [vmem:[%s4453] sm:$0xff]
        %v4455 = vld [vmem:[%s4453 + $0x8] sm:$0xff]
        %v4456 = vld [vmem:[%s4453 + $0x10] sm:$0xff]
        %v4457 = vld [vmem:[%s4453 + $0x18] sm:$0xff]
        %4458 = vrot.lane.b32.xlu0 %v3817, 110
        %v4459 = vpop.permute.xlu0 %4458
        %4460 = vrot.lane.b32.xlu0 %v3807, 110
        %v4461 = vpop.permute.xlu0 %4460
        %4462 = vrot.lane.b32.xlu0 %v3819, 110
        %v4463 = vpop.permute.xlu0 %4462
        %4464 = vrot.lane.b32.xlu0 %v3818, 110
        %v4465 = vpop.permute.xlu0 %4464
        %4466 = vrot.lane.b32.xlu0 %v3809, 110
        %v4467 = vpop.permute.xlu0 %4466
        %4468 = vrot.lane.b32.xlu0 %v3820, 110
        %v4469 = vpop.permute.xlu0 %4468
        %v4470 = vsel %vm924, %v4459, %v4461
        %v4471 = vsel %vm924, %v4461, %v4463
        %v4472 = vsel %vm924, %v4465, %v4467
        %v4473 = vsel %vm924, %v4467, %v4469
        %v4481 = vsel %vm2119, %v4454, 0
        %v4484 = vsel %vm2119, %v4455, 0
        %v4487 = vsel %vm2119, %v4456, 0
        %v4490 = vsel %vm2119, %v4457, 0
        %4492 = vmatprep.subr.mxu0 %v4471
        %4493 = vmatpush1.msra.mxu0 %v4470
        %4494 = vmatprep.subr.mxu0 %v4473
        %4495 = vmatpush1.msra.mxu0 %v4472
        %4496 = vmatprep.subr.mxu0 0.0
        %4497 = vmatpush1.msra.mxu0 0.0
        %4498 = vmatprep.subr.mxu0 0.0
        %4499 = vmatpush1.msra.mxu0 0.0
        %4500 = vmatprep.subr.mxu0 0.0
        %4501 = vmatpush1.msra.mxu0 0.0
        %4502 = vmatprep.subr.mxu0 0.0
        %4503 = vmatpush1.msra.mxu0 0.0
        %4504 = vmatprep.subr.mxu0 0.0
        %4505 = vmatpush1.msra.mxu0 0.0
        %4506 = vmatprep.subr.mxu0 0.0
        %4507 = vmatpush1.msra.mxu0 0.0
        %4508 = vmatprep.subr.mxu0 0.0
        %4509 = vmatpush1.msra.mxu0 0.0
        %4510 = vmatprep.subr.mxu0 0.0
        %4511 = vmatpush1.msra.mxu0 0.0
        %4512 = vmatprep.subr.mxu0 0.0
        %4513 = vmatpush1.msra.mxu0 0.0
        %4514 = vmatprep.subr.mxu0 0.0
        %4515 = vmatpush1.msra.mxu0 0.0
        %4516 = vmatprep.subr.mxu0 0.0
        %4517 = vmatpush1.msra.mxu0 0.0
        %4518 = vmatprep.subr.mxu0 0.0
        %4519 = vmatpush1.msra.mxu0 0.0
        %4520 = vmatprep.subr.mxu0 0.0
        %4521 = vmatpush1.msra.mxu0 0.0
        %4522 = vmatprep.subr.mxu0 0.0
        %4523 = vmatpush1.msra.mxu0 0.0
        %4524 = vmatprep.subr.mxu0 0.0
        %4525 = vmatpush1.msra.mxu0 0.0
        %4526 = vmatprep.subr.mxu0 0.0
        %4527 = vmatpush1.msra.mxu0 0.0
        %4528 = vmatprep.subr.mxu0 0.0
        %4529 = vmatpush1.msra.mxu0 0.0
        %4530 = vmatprep.subr.mxu0 0.0
        %4531 = vmatpush1.msra.mxu0 0.0
        %4532 = vmatprep.subr.mxu0 0.0
        %4533 = vmatpush1.msra.mxu0 0.0
        %4534 = vmatprep.subr.mxu0 0.0
        %4535 = vmatpush1.msra.mxu0 0.0
        %4536 = vmatprep.subr.mxu0 0.0
        %4537 = vmatpush1.msra.mxu0 0.0
        %4538 = vmatprep.subr.mxu0 0.0
        %4539 = vmatpush1.msra.mxu0 0.0
        %4540 = vmatprep.subr.mxu0 0.0
        %4541 = vmatpush1.msra.mxu0 0.0
        %4542 = vmatprep.subr.mxu0 0.0
        %4543 = vmatpush1.msra.mxu0 0.0
        %4544 = vmatprep.subr.mxu0 0.0
        %4545 = vmatpush1.msra.mxu0 0.0
        %4546 = vmatprep.subr.mxu0 0.0
        %4547 = vmatpush1.msra.mxu0 0.0
        %4548 = vmatprep.subr.mxu0 0.0
        %4549 = vmatpush1.msra.mxu0 0.0
        %4550 = vmatprep.subr.mxu0 0.0
        %4551 = vmatpush1.msra.mxu0 0.0
        %4552 = vmatprep.subr.mxu0 0.0
        %4553 = vmatpush1.msra.mxu0 0.0
        %4554 = vmatprep.subr.mxu0 0.0
        %4555 = vmatpush1.msra.mxu0 0.0
        %4556 = vmatprep.mubr.f32.mxu0 0.0
        %4557 = vmatmul.mubr.f32.gmra.mrb[0].mxu0 %v4481
        %v4558 = vpop.f32.mrb[0].mxu0
        %v4559 = vadd.f32 0.0, %v4558
        %v4560 = vpop.f32.mrb[0].mxu0
        %v4561 = vadd.f32 0.0, %v4560
        %4562 = vmatprep.mubr.f32.mxu0 0.0
        %4563 = vmatmul.mubr.f32.gmra.mrb[0].mxu0 %v4484
        %v4564 = vpop.f32.mrb[0].mxu0
        %v4565 = vadd.f32 0.0, %v4564
        %v4566 = vpop.f32.mrb[0].mxu0
        %v4567 = vadd.f32 0.0, %v4566
        %4568 = vmatprep.mubr.f32.mxu0 0.0
        %4569 = vmatmul.mubr.f32.gmra.mrb[0].mxu0 %v4487
        %v4570 = vpop.f32.mrb[0].mxu0
        %v4571 = vadd.f32 0.0, %v4570
        %v4572 = vpop.f32.mrb[0].mxu0
        %v4573 = vadd.f32 0.0, %v4572
        %4574 = vmatprep.mubr.f32.mxu0 0.0
        %4575 = vmatmul.mubr.f32.gmra.mrb[0].mxu0 %v4490
        %v4576 = vpop.f32.mrb[0].mxu0
        %v4577 = vadd.f32 0.0, %v4576
        %v4578 = vpop.f32.mrb[0].mxu0
        %v4579 = vadd.f32 0.0, %v4578
        %4580 = vdwg.mxu0
        %4581 = vmatprep.subr.mxu0 0.0
        %4582 = vmatpush1.msra.mxu0 %v4463
        %4583 = vmatprep.subr.mxu0 0.0
        %4584 = vmatpush1.msra.mxu0 %v4469
        %4585 = vmatprep.subr.mxu0 0.0
        %4586 = vmatpush1.msra.mxu0 0.0
        %4587 = vmatprep.subr.mxu0 0.0
        %4588 = vmatpush1.msra.mxu0 0.0
        %4589 = vmatprep.subr.mxu0 0.0
        %4590 = vmatpush1.msra.mxu0 0.0
        %4591 = vmatprep.subr.mxu0 0.0
        %4592 = vmatpush1.msra.mxu0 0.0
        %4593 = vmatprep.subr.mxu0 0.0
        %4594 = vmatpush1.msra.mxu0 0.0
        %4595 = vmatprep.subr.mxu0 0.0
        %4596 = vmatpush1.msra.mxu0 0.0
        %4597 = vmatprep.subr.mxu0 0.0
        %4598 = vmatpush1.msra.mxu0 0.0
        %4599 = vmatprep.subr.mxu0 0.0
        %4600 = vmatpush1.msra.mxu0 0.0
        %4601 = vmatprep.subr.mxu0 0.0
        %4602 = vmatpush1.msra.mxu0 0.0
        %4603 = vmatprep.subr.mxu0 0.0
        %4604 = vmatpush1.msra.mxu0 0.0
        %4605 = vmatprep.subr.mxu0 0.0
        %4606 = vmatpush1.msra.mxu0 0.0
        %4607 = vmatprep.subr.mxu0 0.0
        %4608 = vmatpush1.msra.mxu0 0.0
        %4609 = vmatprep.subr.mxu0 0.0
        %4610 = vmatpush1.msra.mxu0 0.0
        %4611 = vmatprep.subr.mxu0 0.0
        %4612 = vmatpush1.msra.mxu0 0.0
        %4613 = vmatprep.subr.mxu0 0.0
        %4614 = vmatpush1.msra.mxu0 0.0
        %4615 = vmatprep.subr.mxu0 0.0
        %4616 = vmatpush1.msra.mxu0 0.0
        %4617 = vmatprep.subr.mxu0 0.0
        %4618 = vmatpush1.msra.mxu0 0.0
        %4619 = vmatprep.subr.mxu0 0.0
        %4620 = vmatpush1.msra.mxu0 0.0
        %4621 = vmatprep.subr.mxu0 0.0
        %4622 = vmatpush1.msra.mxu0 0.0
        %4623 = vmatprep.subr.mxu0 0.0
        %4624 = vmatpush1.msra.mxu0 0.0
        %4625 = vmatprep.subr.mxu0 0.0
        %4626 = vmatpush1.msra.mxu0 0.0
        %4627 = vmatprep.subr.mxu0 0.0
        %4628 = vmatpush1.msra.mxu0 0.0
        %4629 = vmatprep.subr.mxu0 0.0
        %4630 = vmatpush1.msra.mxu0 0.0
        %4631 = vmatprep.subr.mxu0 0.0
        %4632 = vmatpush1.msra.mxu0 0.0
        %4633 = vmatprep.subr.mxu0 0.0
        %4634 = vmatpush1.msra.mxu0 0.0
        %4635 = vmatprep.subr.mxu0 0.0
        %4636 = vmatpush1.msra.mxu0 0.0
        %4637 = vmatprep.subr.mxu0 0.0
        %4638 = vmatpush1.msra.mxu0 0.0
        %4639 = vmatprep.subr.mxu0 0.0
        %4640 = vmatpush1.msra.mxu0 0.0
        %4641 = vmatprep.subr.mxu0 0.0
        %4642 = vmatpush1.msra.mxu0 0.0
        %4643 = vmatprep.subr.mxu0 0.0
        %4644 = vmatpush1.msra.mxu0 0.0
        %4645 = vmatprep.mubr.f32.mxu0 0.0
        %4646 = vmatmul.mubr.f32.gmra.mrb[0].mxu0 %v4481
        %v4647 = vpop.f32.mrb[0].mxu0
        %v4648 = vadd.f32 0.0, %v4647
        %v4649 = vpop.f32.mrb[0].mxu0
        %4650 = vmatprep.mubr.f32.mxu0 0.0
        %4651 = vmatmul.mubr.f32.gmra.mrb[0].mxu0 %v4484
        %v4652 = vpop.f32.mrb[0].mxu0
        %v4653 = vadd.f32 0.0, %v4652
        %v4654 = vpop.f32.mrb[0].mxu0
        %4655 = vmatprep.mubr.f32.mxu0 0.0
        %4656 = vmatmul.mubr.f32.gmra.mrb[0].mxu0 %v4487
        %v4657 = vpop.f32.mrb[0].mxu0
        %v4658 = vadd.f32 0.0, %v4657
        %v4659 = vpop.f32.mrb[0].mxu0
        %4660 = vmatprep.mubr.f32.mxu0 0.0
        %4661 = vmatmul.mubr.f32.gmra.mrb[0].mxu0 %v4490
        %v4662 = vpop.f32.mrb[0].mxu0
        %v4663 = vadd.f32 0.0, %v4662
        %v4664 = vpop.f32.mrb[0].mxu0
        %4665 = vdwg.mxu0
        %v4666 = vadd.f32 %v4441, %v4559
        %v4667 = vadd.f32 %v4442, %v4561
        %v4668 = vadd.f32 %v4443, %v4648
        %v4669 = vadd.f32 %v4444, %v4565
        %v4670 = vadd.f32 %v4445, %v4567
        %v4671 = vadd.f32 %v4446, %v4653
        %v4672 = vadd.f32 %v4447, %v4571
        %v4673 = vadd.f32 %v4448, %v4573
        %v4674 = vadd.f32 %v4449, %v4658
        %v4675 = vadd.f32 %v4450, %v4577
        %v4676 = vadd.f32 %v4451, %v4579
        %v4677 = vadd.f32 %v4452, %v4663
        %s4678 = scalar_lea.vmem %s6, 128
        %v4679 = vld [vmem:[%s4678] sm:$0xff]
        %v4680 = vld [vmem:[%s4678 + $0x8] sm:$0xff]
        %v4681 = vld [vmem:[%s4678 + $0x10] sm:$0xff]
        %v4682 = vld [vmem:[%s4678 + $0x18] sm:$0xff]
        %4683 = vrot.lane.b32.xlu0 %v3817, 109
        %v4684 = vpop.permute.xlu0 %4683
        %4685 = vrot.lane.b32.xlu0 %v3807, 109
        %v4686 = vpop.permute.xlu0 %4685
        %4687 = vrot.lane.b32.xlu0 %v3819, 109
        %v4688 = vpop.permute.xlu0 %4687
        %4689 = vrot.lane.b32.xlu0 %v3818, 109
        %v4690 = vpop.permute.xlu0 %4689
        %4691 = vrot.lane.b32.xlu0 %v3809, 109
        %v4692 = vpop.permute.xlu0 %4691
        %4693 = vrot.lane.b32.xlu0 %v3820, 109
        %v4694 = vpop.permute.xlu0 %4693
        %v4695 = vsel %vm1106, %v4684, %v4686
        %v4696 = vsel %vm1106, %v4686, %v4688
        %v4697 = vsel %vm1106, %v4690, %v4692
        %v4698 = vsel %vm1106, %v4692, %v4694
        %v4706 = vsel %vm2119, %v4679, 0
        %v4709 = vsel %vm2119, %v4680, 0
        %v4712 = vsel %vm2119, %v4681, 0
        %v4715 = vsel %vm2119, %v4682, 0
        %4717 = vmatprep.subr.mxu0 %v4696
        %4718 = vmatpush1.msra.mxu0 %v4695
        %4719 = vmatprep.subr.mxu0 %v4698
        %4720 = vmatpush1.msra.mxu0 %v4697
        %4721 = vmatprep.subr.mxu0 0.0
        %4722 = vmatpush1.msra.mxu0 0.0
        %4723 = vmatprep.subr.mxu0 0.0
        %4724 = vmatpush1.msra.mxu0 0.0
        %4725 = vmatprep.subr.mxu0 0.0
        %4726 = vmatpush1.msra.mxu0 0.0
        %4727 = vmatprep.subr.mxu0 0.0
        %4728 = vmatpush1.msra.mxu0 0.0
        %4729 = vmatprep.subr.mxu0 0.0
        %4730 = vmatpush1.msra.mxu0 0.0
        %4731 = vmatprep.subr.mxu0 0.0
        %4732 = vmatpush1.msra.mxu0 0.0
        %4733 = vmatprep.subr.mxu0 0.0
        %4734 = vmatpush1.msra.mxu0 0.0
        %4735 = vmatprep.subr.mxu0 0.0
        %4736 = vmatpush1.msra.mxu0 0.0
        %4737 = vmatprep.subr.mxu0 0.0
        %4738 = vmatpush1.msra.mxu0 0.0
        %4739 = vmatprep.subr.mxu0 0.0
        %4740 = vmatpush1.msra.mxu0 0.0
        %4741 = vmatprep.subr.mxu0 0.0
        %4742 = vmatpush1.msra.mxu0 0.0
        %4743 = vmatprep.subr.mxu0 0.0
        %4744 = vmatpush1.msra.mxu0 0.0
        %4745 = vmatprep.subr.mxu0 0.0
        %4746 = vmatpush1.msra.mxu0 0.0
        %4747 = vmatprep.subr.mxu0 0.0
        %4748 = vmatpush1.msra.mxu0 0.0
        %4749 = vmatprep.subr.mxu0 0.0
        %4750 = vmatpush1.msra.mxu0 0.0
        %4751 = vmatprep.subr.mxu0 0.0
        %4752 = vmatpush1.msra.mxu0 0.0
        %4753 = vmatprep.subr.mxu0 0.0
        %4754 = vmatpush1.msra.mxu0 0.0
        %4755 = vmatprep.subr.mxu0 0.0
        %4756 = vmatpush1.msra.mxu0 0.0
        %4757 = vmatprep.subr.mxu0 0.0
        %4758 = vmatpush1.msra.mxu0 0.0
        %4759 = vmatprep.subr.mxu0 0.0
        %4760 = vmatpush1.msra.mxu0 0.0
        %4761 = vmatprep.subr.mxu0 0.0
        %4762 = vmatpush1.msra.mxu0 0.0
        %4763 = vmatprep.subr.mxu0 0.0
        %4764 = vmatpush1.msra.mxu0 0.0
        %4765 = vmatprep.subr.mxu0 0.0
        %4766 = vmatpush1.msra.mxu0 0.0
        %4767 = vmatprep.subr.mxu0 0.0
        %4768 = vmatpush1.msra.mxu0 0.0
        %4769 = vmatprep.subr.mxu0 0.0
        %4770 = vmatpush1.msra.mxu0 0.0
        %4771 = vmatprep.subr.mxu0 0.0
        %4772 = vmatpush1.msra.mxu0 0.0
        %4773 = vmatprep.subr.mxu0 0.0
        %4774 = vmatpush1.msra.mxu0 0.0
        %4775 = vmatprep.subr.mxu0 0.0
        %4776 = vmatpush1.msra.mxu0 0.0
        %4777 = vmatprep.subr.mxu0 0.0
        %4778 = vmatpush1.msra.mxu0 0.0
        %4779 = vmatprep.subr.mxu0 0.0
        %4780 = vmatpush1.msra.mxu0 0.0
        %4781 = vmatprep.mubr.f32.mxu0 0.0
        %4782 = vmatmul.mubr.f32.gmra.mrb[0].mxu0 %v4706
        %v4783 = vpop.f32.mrb[0].mxu0
        %v4784 = vadd.f32 0.0, %v4783
        %v4785 = vpop.f32.mrb[0].mxu0
        %v4786 = vadd.f32 0.0, %v4785
        %4787 = vmatprep.mubr.f32.mxu0 0.0
        %4788 = vmatmul.mubr.f32.gmra.mrb[0].mxu0 %v4709
        %v4789 = vpop.f32.mrb[0].mxu0
        %v4790 = vadd.f32 0.0, %v4789
        %v4791 = vpop.f32.mrb[0].mxu0
        %v4792 = vadd.f32 0.0, %v4791
        %4793 = vmatprep.mubr.f32.mxu0 0.0
        %4794 = vmatmul.mubr.f32.gmra.mrb[0].mxu0 %v4712
        %v4795 = vpop.f32.mrb[0].mxu0
        %v4796 = vadd.f32 0.0, %v4795
        %v4797 = vpop.f32.mrb[0].mxu0
        %v4798 = vadd.f32 0.0, %v4797
        %4799 = vmatprep.mubr.f32.mxu0 0.0
        %4800 = vmatmul.mubr.f32.gmra.mrb[0].mxu0 %v4715
        %v4801 = vpop.f32.mrb[0].mxu0
        %v4802 = vadd.f32 0.0, %v4801
        %v4803 = vpop.f32.mrb[0].mxu0
        %v4804 = vadd.f32 0.0, %v4803
        %4805 = vdwg.mxu0
        %4806 = vmatprep.subr.mxu0 0.0
        %4807 = vmatpush1.msra.mxu0 %v4688
        %4808 = vmatprep.subr.mxu0 0.0
        %4809 = vmatpush1.msra.mxu0 %v4694
        %4810 = vmatprep.subr.mxu0 0.0
        %4811 = vmatpush1.msra.mxu0 0.0
        %4812 = vmatprep.subr.mxu0 0.0
        %4813 = vmatpush1.msra.mxu0 0.0
        %4814 = vmatprep.subr.mxu0 0.0
        %4815 = vmatpush1.msra.mxu0 0.0
        %4816 = vmatprep.subr.mxu0 0.0
        %4817 = vmatpush1.msra.mxu0 0.0
        %4818 = vmatprep.subr.mxu0 0.0
        %4819 = vmatpush1.msra.mxu0 0.0
        %4820 = vmatprep.subr.mxu0 0.0
        %4821 = vmatpush1.msra.mxu0 0.0
        %4822 = vmatprep.subr.mxu0 0.0
        %4823 = vmatpush1.msra.mxu0 0.0
        %4824 = vmatprep.subr.mxu0 0.0
        %4825 = vmatpush1.msra.mxu0 0.0
        %4826 = vmatprep.subr.mxu0 0.0
        %4827 = vmatpush1.msra.mxu0 0.0
        %4828 = vmatprep.subr.mxu0 0.0
        %4829 = vmatpush1.msra.mxu0 0.0
        %4830 = vmatprep.subr.mxu0 0.0
        %4831 = vmatpush1.msra.mxu0 0.0
        %4832 = vmatprep.subr.mxu0 0.0
        %4833 = vmatpush1.msra.mxu0 0.0
        %4834 = vmatprep.subr.mxu0 0.0
        %4835 = vmatpush1.msra.mxu0 0.0
        %4836 = vmatprep.subr.mxu0 0.0
        %4837 = vmatpush1.msra.mxu0 0.0
        %4838 = vmatprep.subr.mxu0 0.0
        %4839 = vmatpush1.msra.mxu0 0.0
        %4840 = vmatprep.subr.mxu0 0.0
        %4841 = vmatpush1.msra.mxu0 0.0
        %4842 = vmatprep.subr.mxu0 0.0
        %4843 = vmatpush1.msra.mxu0 0.0
        %4844 = vmatprep.subr.mxu0 0.0
        %4845 = vmatpush1.msra.mxu0 0.0
        %4846 = vmatprep.subr.mxu0 0.0
        %4847 = vmatpush1.msra.mxu0 0.0
        %4848 = vmatprep.subr.mxu0 0.0
        %4849 = vmatpush1.msra.mxu0 0.0
        %4850 = vmatprep.subr.mxu0 0.0
        %4851 = vmatpush1.msra.mxu0 0.0
        %4852 = vmatprep.subr.mxu0 0.0
        %4853 = vmatpush1.msra.mxu0 0.0
        %4854 = vmatprep.subr.mxu0 0.0
        %4855 = vmatpush1.msra.mxu0 0.0
        %4856 = vmatprep.subr.mxu0 0.0
        %4857 = vmatpush1.msra.mxu0 0.0
        %4858 = vmatprep.subr.mxu0 0.0
        %4859 = vmatpush1.msra.mxu0 0.0
        %4860 = vmatprep.subr.mxu0 0.0
        %4861 = vmatpush1.msra.mxu0 0.0
        %4862 = vmatprep.subr.mxu0 0.0
        %4863 = vmatpush1.msra.mxu0 0.0
        %4864 = vmatprep.subr.mxu0 0.0
        %4865 = vmatpush1.msra.mxu0 0.0
        %4866 = vmatprep.subr.mxu0 0.0
        %4867 = vmatpush1.msra.mxu0 0.0
        %4868 = vmatprep.subr.mxu0 0.0
        %4869 = vmatpush1.msra.mxu0 0.0
        %4870 = vmatprep.mubr.f32.mxu0 0.0
        %4871 = vmatmul.mubr.f32.gmra.mrb[0].mxu0 %v4706
        %v4872 = vpop.f32.mrb[0].mxu0
        %v4873 = vadd.f32 0.0, %v4872
        %v4874 = vpop.f32.mrb[0].mxu0
        %4875 = vmatprep.mubr.f32.mxu0 0.0
        %4876 = vmatmul.mubr.f32.gmra.mrb[0].mxu0 %v4709
        %v4877 = vpop.f32.mrb[0].mxu0
        %v4878 = vadd.f32 0.0, %v4877
        %v4879 = vpop.f32.mrb[0].mxu0
        %4880 = vmatprep.mubr.f32.mxu0 0.0
        %4881 = vmatmul.mubr.f32.gmra.mrb[0].mxu0 %v4712
        %v4882 = vpop.f32.mrb[0].mxu0
        %v4883 = vadd.f32 0.0, %v4882
        %v4884 = vpop.f32.mrb[0].mxu0
        %4885 = vmatprep.mubr.f32.mxu0 0.0
        %4886 = vmatmul.mubr.f32.gmra.mrb[0].mxu0 %v4715
        %v4887 = vpop.f32.mrb[0].mxu0
        %v4888 = vadd.f32 0.0, %v4887
        %v4889 = vpop.f32.mrb[0].mxu0
        %4890 = vdwg.mxu0
        %v4891 = vadd.f32 %v4666, %v4784
        %v4892 = vadd.f32 %v4667, %v4786
        %v4893 = vadd.f32 %v4668, %v4873
        %v4894 = vadd.f32 %v4669, %v4790
        %v4895 = vadd.f32 %v4670, %v4792
        %v4896 = vadd.f32 %v4671, %v4878
        %v4897 = vadd.f32 %v4672, %v4796
        %v4898 = vadd.f32 %v4673, %v4798
        %v4899 = vadd.f32 %v4674, %v4883
        %v4900 = vadd.f32 %v4675, %v4802
        %v4901 = vadd.f32 %v4676, %v4804
        %v4902 = vadd.f32 %v4677, %v4888
        %s4903 = scalar_lea.vmem %s6, 160
        %v4904 = vld [vmem:[%s4903] sm:$0xff]
        %v4905 = vld [vmem:[%s4903 + $0x8] sm:$0xff]
        %v4906 = vld [vmem:[%s4903 + $0x10] sm:$0xff]
        %v4907 = vld [vmem:[%s4903 + $0x18] sm:$0xff]
        %4908 = vrot.lane.b32.xlu0 %v3817, 108
        %v4909 = vpop.permute.xlu0 %4908
        %4910 = vrot.lane.b32.xlu0 %v3807, 108
        %v4911 = vpop.permute.xlu0 %4910
        %4912 = vrot.lane.b32.xlu0 %v3819, 108
        %v4913 = vpop.permute.xlu0 %4912
        %4914 = vrot.lane.b32.xlu0 %v3818, 108
        %v4915 = vpop.permute.xlu0 %4914
        %4916 = vrot.lane.b32.xlu0 %v3809, 108
        %v4917 = vpop.permute.xlu0 %4916
        %4918 = vrot.lane.b32.xlu0 %v3820, 108
        %v4919 = vpop.permute.xlu0 %4918
        %v4920 = vsel %vm1288, %v4909, %v4911
        %v4921 = vsel %vm1288, %v4911, %v4913
        %v4922 = vsel %vm1288, %v4915, %v4917
        %v4923 = vsel %vm1288, %v4917, %v4919
        %v4931 = vsel %vm2119, %v4904, 0
        %v4934 = vsel %vm2119, %v4905, 0
        %v4937 = vsel %vm2119, %v4906, 0
        %v4940 = vsel %vm2119, %v4907, 0
        %4942 = vmatprep.subr.mxu0 %v4921
        %4943 = vmatpush1.msra.mxu0 %v4920
        %4944 = vmatprep.subr.mxu0 %v4923
        %4945 = vmatpush1.msra.mxu0 %v4922
        %4946 = vmatprep.subr.mxu0 0.0
        %4947 = vmatpush1.msra.mxu0 0.0
        %4948 = vmatprep.subr.mxu0 0.0
        %4949 = vmatpush1.msra.mxu0 0.0
        %4950 = vmatprep.subr.mxu0 0.0
        %4951 = vmatpush1.msra.mxu0 0.0
        %4952 = vmatprep.subr.mxu0 0.0
        %4953 = vmatpush1.msra.mxu0 0.0
        %4954 = vmatprep.subr.mxu0 0.0
        %4955 = vmatpush1.msra.mxu0 0.0
        %4956 = vmatprep.subr.mxu0 0.0
        %4957 = vmatpush1.msra.mxu0 0.0
        %4958 = vmatprep.subr.mxu0 0.0
        %4959 = vmatpush1.msra.mxu0 0.0
        %4960 = vmatprep.subr.mxu0 0.0
        %4961 = vmatpush1.msra.mxu0 0.0
        %4962 = vmatprep.subr.mxu0 0.0
        %4963 = vmatpush1.msra.mxu0 0.0
        %4964 = vmatprep.subr.mxu0 0.0
        %4965 = vmatpush1.msra.mxu0 0.0
        %4966 = vmatprep.subr.mxu0 0.0
        %4967 = vmatpush1.msra.mxu0 0.0
        %4968 = vmatprep.subr.mxu0 0.0
        %4969 = vmatpush1.msra.mxu0 0.0
        %4970 = vmatprep.subr.mxu0 0.0
        %4971 = vmatpush1.msra.mxu0 0.0
        %4972 = vmatprep.subr.mxu0 0.0
        %4973 = vmatpush1.msra.mxu0 0.0
        %4974 = vmatprep.subr.mxu0 0.0
        %4975 = vmatpush1.msra.mxu0 0.0
        %4976 = vmatprep.subr.mxu0 0.0
        %4977 = vmatpush1.msra.mxu0 0.0
        %4978 = vmatprep.subr.mxu0 0.0
        %4979 = vmatpush1.msra.mxu0 0.0
        %4980 = vmatprep.subr.mxu0 0.0
        %4981 = vmatpush1.msra.mxu0 0.0
        %4982 = vmatprep.subr.mxu0 0.0
        %4983 = vmatpush1.msra.mxu0 0.0
        %4984 = vmatprep.subr.mxu0 0.0
        %4985 = vmatpush1.msra.mxu0 0.0
        %4986 = vmatprep.subr.mxu0 0.0
        %4987 = vmatpush1.msra.mxu0 0.0
        %4988 = vmatprep.subr.mxu0 0.0
        %4989 = vmatpush1.msra.mxu0 0.0
        %4990 = vmatprep.subr.mxu0 0.0
        %4991 = vmatpush1.msra.mxu0 0.0
        %4992 = vmatprep.subr.mxu0 0.0
        %4993 = vmatpush1.msra.mxu0 0.0
        %4994 = vmatprep.subr.mxu0 0.0
        %4995 = vmatpush1.msra.mxu0 0.0
        %4996 = vmatprep.subr.mxu0 0.0
        %4997 = vmatpush1.msra.mxu0 0.0
        %4998 = vmatprep.subr.mxu0 0.0
        %4999 = vmatpush1.msra.mxu0 0.0
        %5000 = vmatprep.subr.mxu0 0.0
        %5001 = vmatpush1.msra.mxu0 0.0
        %5002 = vmatprep.subr.mxu0 0.0
        %5003 = vmatpush1.msra.mxu0 0.0
        %5004 = vmatprep.subr.mxu0 0.0
        %5005 = vmatpush1.msra.mxu0 0.0
        %5006 = vmatprep.mubr.f32.mxu0 0.0
        %5007 = vmatmul.mubr.f32.gmra.mrb[0].mxu0 %v4931
        %v5008 = vpop.f32.mrb[0].mxu0
        %v5009 = vadd.f32 0.0, %v5008
        %v5010 = vpop.f32.mrb[0].mxu0
        %v5011 = vadd.f32 0.0, %v5010
        %5012 = vmatprep.mubr.f32.mxu0 0.0
        %5013 = vmatmul.mubr.f32.gmra.mrb[0].mxu0 %v4934
        %v5014 = vpop.f32.mrb[0].mxu0
        %v5015 = vadd.f32 0.0, %v5014
        %v5016 = vpop.f32.mrb[0].mxu0
        %v5017 = vadd.f32 0.0, %v5016
        %5018 = vmatprep.mubr.f32.mxu0 0.0
        %5019 = vmatmul.mubr.f32.gmra.mrb[0].mxu0 %v4937
        %v5020 = vpop.f32.mrb[0].mxu0
        %v5021 = vadd.f32 0.0, %v5020
        %v5022 = vpop.f32.mrb[0].mxu0
        %v5023 = vadd.f32 0.0, %v5022
        %5024 = vmatprep.mubr.f32.mxu0 0.0
        %5025 = vmatmul.mubr.f32.gmra.mrb[0].mxu0 %v4940
        %v5026 = vpop.f32.mrb[0].mxu0
        %v5027 = vadd.f32 0.0, %v5026
        %v5028 = vpop.f32.mrb[0].mxu0
        %v5029 = vadd.f32 0.0, %v5028
        %5030 = vdwg.mxu0
        %5031 = vmatprep.subr.mxu0 0.0
        %5032 = vmatpush1.msra.mxu0 %v4913
        %5033 = vmatprep.subr.mxu0 0.0
        %5034 = vmatpush1.msra.mxu0 %v4919
        %5035 = vmatprep.subr.mxu0 0.0
        %5036 = vmatpush1.msra.mxu0 0.0
        %5037 = vmatprep.subr.mxu0 0.0
        %5038 = vmatpush1.msra.mxu0 0.0
        %5039 = vmatprep.subr.mxu0 0.0
        %5040 = vmatpush1.msra.mxu0 0.0
        %5041 = vmatprep.subr.mxu0 0.0
        %5042 = vmatpush1.msra.mxu0 0.0
        %5043 = vmatprep.subr.mxu0 0.0
        %5044 = vmatpush1.msra.mxu0 0.0
        %5045 = vmatprep.subr.mxu0 0.0
        %5046 = vmatpush1.msra.mxu0 0.0
        %5047 = vmatprep.subr.mxu0 0.0
        %5048 = vmatpush1.msra.mxu0 0.0
        %5049 = vmatprep.subr.mxu0 0.0
        %5050 = vmatpush1.msra.mxu0 0.0
        %5051 = vmatprep.subr.mxu0 0.0
        %5052 = vmatpush1.msra.mxu0 0.0
        %5053 = vmatprep.subr.mxu0 0.0
        %5054 = vmatpush1.msra.mxu0 0.0
        %5055 = vmatprep.subr.mxu0 0.0
        %5056 = vmatpush1.msra.mxu0 0.0
        %5057 = vmatprep.subr.mxu0 0.0
        %5058 = vmatpush1.msra.mxu0 0.0
        %5059 = vmatprep.subr.mxu0 0.0
        %5060 = vmatpush1.msra.mxu0 0.0
        %5061 = vmatprep.subr.mxu0 0.0
        %5062 = vmatpush1.msra.mxu0 0.0
        %5063 = vmatprep.subr.mxu0 0.0
        %5064 = vmatpush1.msra.mxu0 0.0
        %5065 = vmatprep.subr.mxu0 0.0
        %5066 = vmatpush1.msra.mxu0 0.0
        %5067 = vmatprep.subr.mxu0 0.0
        %5068 = vmatpush1.msra.mxu0 0.0
        %5069 = vmatprep.subr.mxu0 0.0
        %5070 = vmatpush1.msra.mxu0 0.0
        %5071 = vmatprep.subr.mxu0 0.0
        %5072 = vmatpush1.msra.mxu0 0.0
        %5073 = vmatprep.subr.mxu0 0.0
        %5074 = vmatpush1.msra.mxu0 0.0
        %5075 = vmatprep.subr.mxu0 0.0
        %5076 = vmatpush1.msra.mxu0 0.0
        %5077 = vmatprep.subr.mxu0 0.0
        %5078 = vmatpush1.msra.mxu0 0.0
        %5079 = vmatprep.subr.mxu0 0.0
        %5080 = vmatpush1.msra.mxu0 0.0
        %5081 = vmatprep.subr.mxu0 0.0
        %5082 = vmatpush1.msra.mxu0 0.0
        %5083 = vmatprep.subr.mxu0 0.0
        %5084 = vmatpush1.msra.mxu0 0.0
        %5085 = vmatprep.subr.mxu0 0.0
        %5086 = vmatpush1.msra.mxu0 0.0
        %5087 = vmatprep.subr.mxu0 0.0
        %5088 = vmatpush1.msra.mxu0 0.0
        %5089 = vmatprep.subr.mxu0 0.0
        %5090 = vmatpush1.msra.mxu0 0.0
        %5091 = vmatprep.subr.mxu0 0.0
        %5092 = vmatpush1.msra.mxu0 0.0
        %5093 = vmatprep.subr.mxu0 0.0
        %5094 = vmatpush1.msra.mxu0 0.0
        %5095 = vmatprep.mubr.f32.mxu0 0.0
        %5096 = vmatmul.mubr.f32.gmra.mrb[0].mxu0 %v4931
        %v5097 = vpop.f32.mrb[0].mxu0
        %v5098 = vadd.f32 0.0, %v5097
        %v5099 = vpop.f32.mrb[0].mxu0
        %5100 = vmatprep.mubr.f32.mxu0 0.0
        %5101 = vmatmul.mubr.f32.gmra.mrb[0].mxu0 %v4934
        %v5102 = vpop.f32.mrb[0].mxu0
        %v5103 = vadd.f32 0.0, %v5102
        %v5104 = vpop.f32.mrb[0].mxu0
        %5105 = vmatprep.mubr.f32.mxu0 0.0
        %5106 = vmatmul.mubr.f32.gmra.mrb[0].mxu0 %v4937
        %v5107 = vpop.f32.mrb[0].mxu0
        %v5108 = vadd.f32 0.0, %v5107
        %v5109 = vpop.f32.mrb[0].mxu0
        %5110 = vmatprep.mubr.f32.mxu0 0.0
        %5111 = vmatmul.mubr.f32.gmra.mrb[0].mxu0 %v4940
        %v5112 = vpop.f32.mrb[0].mxu0
        %v5113 = vadd.f32 0.0, %v5112
        %v5114 = vpop.f32.mrb[0].mxu0
        %5115 = vdwg.mxu0
        %v5116 = vadd.f32 %v4891, %v5009
        %v5117 = vadd.f32 %v4892, %v5011
        %v5118 = vadd.f32 %v4893, %v5098
        %v5119 = vadd.f32 %v4894, %v5015
        %v5120 = vadd.f32 %v4895, %v5017
        %v5121 = vadd.f32 %v4896, %v5103
        %v5122 = vadd.f32 %v4897, %v5021
        %v5123 = vadd.f32 %v4898, %v5023
        %v5124 = vadd.f32 %v4899, %v5108
        %v5125 = vadd.f32 %v4900, %v5027
        %v5126 = vadd.f32 %v4901, %v5029
        %v5127 = vadd.f32 %v4902, %v5113
        %s5128 = scalar_lea.vmem %s6, 192
        %v5129 = vld [vmem:[%s5128] sm:$0xff]
        %v5130 = vld [vmem:[%s5128 + $0x8] sm:$0xff]
        %v5131 = vld [vmem:[%s5128 + $0x10] sm:$0xff]
        %v5132 = vld [vmem:[%s5128 + $0x18] sm:$0xff]
        %5133 = vrot.lane.b32.xlu0 %v3817, 92
        %v5134 = vpop.permute.xlu0 %5133
        %5135 = vrot.lane.b32.xlu0 %v3807, 92
        %v5136 = vpop.permute.xlu0 %5135
        %5137 = vrot.lane.b32.xlu0 %v3819, 92
        %v5138 = vpop.permute.xlu0 %5137
        %5139 = vrot.lane.b32.xlu0 %v3818, 92
        %v5140 = vpop.permute.xlu0 %5139
        %5141 = vrot.lane.b32.xlu0 %v3809, 92
        %v5142 = vpop.permute.xlu0 %5141
        %5143 = vrot.lane.b32.xlu0 %v3820, 92
        %v5144 = vpop.permute.xlu0 %5143
        %v5145 = vsel %vm1470, %v5134, %v5136
        %v5146 = vsel %vm1470, %v5136, %v5138
        %v5147 = vsel %vm1470, %v5140, %v5142
        %v5148 = vsel %vm1470, %v5142, %v5144
        %v5156 = vsel %vm2119, %v5129, 0
        %v5159 = vsel %vm2119, %v5130, 0
        %v5162 = vsel %vm2119, %v5131, 0
        %v5165 = vsel %vm2119, %v5132, 0
        %5167 = vmatprep.subr.mxu0 %v5146
        %5168 = vmatpush1.msra.mxu0 %v5145
        %5169 = vmatprep.subr.mxu0 %v5148
        %5170 = vmatpush1.msra.mxu0 %v5147
        %5171 = vmatprep.subr.mxu0 0.0
        %5172 = vmatpush1.msra.mxu0 0.0
        %5173 = vmatprep.subr.mxu0 0.0
        %5174 = vmatpush1.msra.mxu0 0.0
        %5175 = vmatprep.subr.mxu0 0.0
        %5176 = vmatpush1.msra.mxu0 0.0
        %5177 = vmatprep.subr.mxu0 0.0
        %5178 = vmatpush1.msra.mxu0 0.0
        %5179 = vmatprep.subr.mxu0 0.0
        %5180 = vmatpush1.msra.mxu0 0.0
        %5181 = vmatprep.subr.mxu0 0.0
        %5182 = vmatpush1.msra.mxu0 0.0
        %5183 = vmatprep.subr.mxu0 0.0
        %5184 = vmatpush1.msra.mxu0 0.0
        %5185 = vmatprep.subr.mxu0 0.0
        %5186 = vmatpush1.msra.mxu0 0.0
        %5187 = vmatprep.subr.mxu0 0.0
        %5188 = vmatpush1.msra.mxu0 0.0
        %5189 = vmatprep.subr.mxu0 0.0
        %5190 = vmatpush1.msra.mxu0 0.0
        %5191 = vmatprep.subr.mxu0 0.0
        %5192 = vmatpush1.msra.mxu0 0.0
        %5193 = vmatprep.subr.mxu0 0.0
        %5194 = vmatpush1.msra.mxu0 0.0
        %5195 = vmatprep.subr.mxu0 0.0
        %5196 = vmatpush1.msra.mxu0 0.0
        %5197 = vmatprep.subr.mxu0 0.0
        %5198 = vmatpush1.msra.mxu0 0.0
        %5199 = vmatprep.subr.mxu0 0.0
        %5200 = vmatpush1.msra.mxu0 0.0
        %5201 = vmatprep.subr.mxu0 0.0
        %5202 = vmatpush1.msra.mxu0 0.0
        %5203 = vmatprep.subr.mxu0 0.0
        %5204 = vmatpush1.msra.mxu0 0.0
        %5205 = vmatprep.subr.mxu0 0.0
        %5206 = vmatpush1.msra.mxu0 0.0
        %5207 = vmatprep.subr.mxu0 0.0
        %5208 = vmatpush1.msra.mxu0 0.0
        %5209 = vmatprep.subr.mxu0 0.0
        %5210 = vmatpush1.msra.mxu0 0.0
        %5211 = vmatprep.subr.mxu0 0.0
        %5212 = vmatpush1.msra.mxu0 0.0
        %5213 = vmatprep.subr.mxu0 0.0
        %5214 = vmatpush1.msra.mxu0 0.0
        %5215 = vmatprep.subr.mxu0 0.0
        %5216 = vmatpush1.msra.mxu0 0.0
        %5217 = vmatprep.subr.mxu0 0.0
        %5218 = vmatpush1.msra.mxu0 0.0
        %5219 = vmatprep.subr.mxu0 0.0
        %5220 = vmatpush1.msra.mxu0 0.0
        %5221 = vmatprep.subr.mxu0 0.0
        %5222 = vmatpush1.msra.mxu0 0.0
        %5223 = vmatprep.subr.mxu0 0.0
        %5224 = vmatpush1.msra.mxu0 0.0
        %5225 = vmatprep.subr.mxu0 0.0
        %5226 = vmatpush1.msra.mxu0 0.0
        %5227 = vmatprep.subr.mxu0 0.0
        %5228 = vmatpush1.msra.mxu0 0.0
        %5229 = vmatprep.subr.mxu0 0.0
        %5230 = vmatpush1.msra.mxu0 0.0
        %5231 = vmatprep.mubr.f32.mxu0 0.0
        %5232 = vmatmul.mubr.f32.gmra.mrb[0].mxu0 %v5156
        %v5233 = vpop.f32.mrb[0].mxu0
        %v5234 = vadd.f32 0.0, %v5233
        %v5235 = vpop.f32.mrb[0].mxu0
        %v5236 = vadd.f32 0.0, %v5235
        %5237 = vmatprep.mubr.f32.mxu0 0.0
        %5238 = vmatmul.mubr.f32.gmra.mrb[0].mxu0 %v5159
        %v5239 = vpop.f32.mrb[0].mxu0
        %v5240 = vadd.f32 0.0, %v5239
        %v5241 = vpop.f32.mrb[0].mxu0
        %v5242 = vadd.f32 0.0, %v5241
        %5243 = vmatprep.mubr.f32.mxu0 0.0
        %5244 = vmatmul.mubr.f32.gmra.mrb[0].mxu0 %v5162
        %v5245 = vpop.f32.mrb[0].mxu0
        %v5246 = vadd.f32 0.0, %v5245
        %v5247 = vpop.f32.mrb[0].mxu0
        %v5248 = vadd.f32 0.0, %v5247
        %5249 = vmatprep.mubr.f32.mxu0 0.0
        %5250 = vmatmul.mubr.f32.gmra.mrb[0].mxu0 %v5165
        %v5251 = vpop.f32.mrb[0].mxu0
        %v5252 = vadd.f32 0.0, %v5251
        %v5253 = vpop.f32.mrb[0].mxu0
        %v5254 = vadd.f32 0.0, %v5253
        %5255 = vdwg.mxu0
        %5256 = vmatprep.subr.mxu0 0.0
        %5257 = vmatpush1.msra.mxu0 %v5138
        %5258 = vmatprep.subr.mxu0 0.0
        %5259 = vmatpush1.msra.mxu0 %v5144
        %5260 = vmatprep.subr.mxu0 0.0
        %5261 = vmatpush1.msra.mxu0 0.0
        %5262 = vmatprep.subr.mxu0 0.0
        %5263 = vmatpush1.msra.mxu0 0.0
        %5264 = vmatprep.subr.mxu0 0.0
        %5265 = vmatpush1.msra.mxu0 0.0
        %5266 = vmatprep.subr.mxu0 0.0
        %5267 = vmatpush1.msra.mxu0 0.0
        %5268 = vmatprep.subr.mxu0 0.0
        %5269 = vmatpush1.msra.mxu0 0.0
        %5270 = vmatprep.subr.mxu0 0.0
        %5271 = vmatpush1.msra.mxu0 0.0
        %5272 = vmatprep.subr.mxu0 0.0
        %5273 = vmatpush1.msra.mxu0 0.0
        %5274 = vmatprep.subr.mxu0 0.0
        %5275 = vmatpush1.msra.mxu0 0.0
        %5276 = vmatprep.subr.mxu0 0.0
        %5277 = vmatpush1.msra.mxu0 0.0
        %5278 = vmatprep.subr.mxu0 0.0
        %5279 = vmatpush1.msra.mxu0 0.0
        %5280 = vmatprep.subr.mxu0 0.0
        %5281 = vmatpush1.msra.mxu0 0.0
        %5282 = vmatprep.subr.mxu0 0.0
        %5283 = vmatpush1.msra.mxu0 0.0
        %5284 = vmatprep.subr.mxu0 0.0
        %5285 = vmatpush1.msra.mxu0 0.0
        %5286 = vmatprep.subr.mxu0 0.0
        %5287 = vmatpush1.msra.mxu0 0.0
        %5288 = vmatprep.subr.mxu0 0.0
        %5289 = vmatpush1.msra.mxu0 0.0
        %5290 = vmatprep.subr.mxu0 0.0
        %5291 = vmatpush1.msra.mxu0 0.0
        %5292 = vmatprep.subr.mxu0 0.0
        %5293 = vmatpush1.msra.mxu0 0.0
        %5294 = vmatprep.subr.mxu0 0.0
        %5295 = vmatpush1.msra.mxu0 0.0
        %5296 = vmatprep.subr.mxu0 0.0
        %5297 = vmatpush1.msra.mxu0 0.0
        %5298 = vmatprep.subr.mxu0 0.0
        %5299 = vmatpush1.msra.mxu0 0.0
        %5300 = vmatprep.subr.mxu0 0.0
        %5301 = vmatpush1.msra.mxu0 0.0
        %5302 = vmatprep.subr.mxu0 0.0
        %5303 = vmatpush1.msra.mxu0 0.0
        %5304 = vmatprep.subr.mxu0 0.0
        %5305 = vmatpush1.msra.mxu0 0.0
        %5306 = vmatprep.subr.mxu0 0.0
        %5307 = vmatpush1.msra.mxu0 0.0
        %5308 = vmatprep.subr.mxu0 0.0
        %5309 = vmatpush1.msra.mxu0 0.0
        %5310 = vmatprep.subr.mxu0 0.0
        %5311 = vmatpush1.msra.mxu0 0.0
        %5312 = vmatprep.subr.mxu0 0.0
        %5313 = vmatpush1.msra.mxu0 0.0
        %5314 = vmatprep.subr.mxu0 0.0
        %5315 = vmatpush1.msra.mxu0 0.0
        %5316 = vmatprep.subr.mxu0 0.0
        %5317 = vmatpush1.msra.mxu0 0.0
        %5318 = vmatprep.subr.mxu0 0.0
        %5319 = vmatpush1.msra.mxu0 0.0
        %5320 = vmatprep.mubr.f32.mxu0 0.0
        %5321 = vmatmul.mubr.f32.gmra.mrb[0].mxu0 %v5156
        %v5322 = vpop.f32.mrb[0].mxu0
        %v5323 = vadd.f32 0.0, %v5322
        %v5324 = vpop.f32.mrb[0].mxu0
        %5325 = vmatprep.mubr.f32.mxu0 0.0
        %5326 = vmatmul.mubr.f32.gmra.mrb[0].mxu0 %v5159
        %v5327 = vpop.f32.mrb[0].mxu0
        %v5328 = vadd.f32 0.0, %v5327
        %v5329 = vpop.f32.mrb[0].mxu0
        %5330 = vmatprep.mubr.f32.mxu0 0.0
        %5331 = vmatmul.mubr.f32.gmra.mrb[0].mxu0 %v5162
        %v5332 = vpop.f32.mrb[0].mxu0
        %v5333 = vadd.f32 0.0, %v5332
        %v5334 = vpop.f32.mrb[0].mxu0
        %5335 = vmatprep.mubr.f32.mxu0 0.0
        %5336 = vmatmul.mubr.f32.gmra.mrb[0].mxu0 %v5165
        %v5337 = vpop.f32.mrb[0].mxu0
        %v5338 = vadd.f32 0.0, %v5337
        %v5339 = vpop.f32.mrb[0].mxu0
        %5340 = vdwg.mxu0
        %v5341 = vadd.f32 %v5116, %v5234
        %v5342 = vadd.f32 %v5117, %v5236
        %v5343 = vadd.f32 %v5118, %v5323
        %v5344 = vadd.f32 %v5119, %v5240
        %v5345 = vadd.f32 %v5120, %v5242
        %v5346 = vadd.f32 %v5121, %v5328
        %v5347 = vadd.f32 %v5122, %v5246
        %v5348 = vadd.f32 %v5123, %v5248
        %v5349 = vadd.f32 %v5124, %v5333
        %v5350 = vadd.f32 %v5125, %v5252
        %v5351 = vadd.f32 %v5126, %v5254
        %v5352 = vadd.f32 %v5127, %v5338
        %s5353 = scalar_lea.vmem %s6, 224
        %v5354 = vld [vmem:[%s5353] sm:$0xff]
        %v5355 = vld [vmem:[%s5353 + $0x8] sm:$0xff]
        %v5356 = vld [vmem:[%s5353 + $0x10] sm:$0xff]
        %v5357 = vld [vmem:[%s5353 + $0x18] sm:$0xff]
        %5358 = vrot.lane.b32.xlu0 %v3817, 91
        %v5359 = vpop.permute.xlu0 %5358
        %5360 = vrot.lane.b32.xlu0 %v3807, 91
        %v5361 = vpop.permute.xlu0 %5360
        %5362 = vrot.lane.b32.xlu0 %v3819, 91
        %v5363 = vpop.permute.xlu0 %5362
        %5364 = vrot.lane.b32.xlu0 %v3818, 91
        %v5365 = vpop.permute.xlu0 %5364
        %5366 = vrot.lane.b32.xlu0 %v3809, 91
        %v5367 = vpop.permute.xlu0 %5366
        %5368 = vrot.lane.b32.xlu0 %v3820, 91
        %v5369 = vpop.permute.xlu0 %5368
        %v5370 = vsel %vm1652, %v5359, %v5361
        %v5371 = vsel %vm1652, %v5361, %v5363
        %v5372 = vsel %vm1652, %v5365, %v5367
        %v5373 = vsel %vm1652, %v5367, %v5369
        %v5381 = vsel %vm2119, %v5354, 0
        %v5384 = vsel %vm2119, %v5355, 0
        %v5387 = vsel %vm2119, %v5356, 0
        %v5390 = vsel %vm2119, %v5357, 0
        %5392 = vmatprep.subr.mxu0 %v5371
        %5393 = vmatpush1.msra.mxu0 %v5370
        %5394 = vmatprep.subr.mxu0 %v5373
        %5395 = vmatpush1.msra.mxu0 %v5372
        %5396 = vmatprep.subr.mxu0 0.0
        %5397 = vmatpush1.msra.mxu0 0.0
        %5398 = vmatprep.subr.mxu0 0.0
        %5399 = vmatpush1.msra.mxu0 0.0
        %5400 = vmatprep.subr.mxu0 0.0
        %5401 = vmatpush1.msra.mxu0 0.0
        %5402 = vmatprep.subr.mxu0 0.0
        %5403 = vmatpush1.msra.mxu0 0.0
        %5404 = vmatprep.subr.mxu0 0.0
        %5405 = vmatpush1.msra.mxu0 0.0
        %5406 = vmatprep.subr.mxu0 0.0
        %5407 = vmatpush1.msra.mxu0 0.0
        %5408 = vmatprep.subr.mxu0 0.0
        %5409 = vmatpush1.msra.mxu0 0.0
        %5410 = vmatprep.subr.mxu0 0.0
        %5411 = vmatpush1.msra.mxu0 0.0
        %5412 = vmatprep.subr.mxu0 0.0
        %5413 = vmatpush1.msra.mxu0 0.0
        %5414 = vmatprep.subr.mxu0 0.0
        %5415 = vmatpush1.msra.mxu0 0.0
        %5416 = vmatprep.subr.mxu0 0.0
        %5417 = vmatpush1.msra.mxu0 0.0
        %5418 = vmatprep.subr.mxu0 0.0
        %5419 = vmatpush1.msra.mxu0 0.0
        %5420 = vmatprep.subr.mxu0 0.0
        %5421 = vmatpush1.msra.mxu0 0.0
        %5422 = vmatprep.subr.mxu0 0.0
        %5423 = vmatpush1.msra.mxu0 0.0
        %5424 = vmatprep.subr.mxu0 0.0
        %5425 = vmatpush1.msra.mxu0 0.0
        %5426 = vmatprep.subr.mxu0 0.0
        %5427 = vmatpush1.msra.mxu0 0.0
        %5428 = vmatprep.subr.mxu0 0.0
        %5429 = vmatpush1.msra.mxu0 0.0
        %5430 = vmatprep.subr.mxu0 0.0
        %5431 = vmatpush1.msra.mxu0 0.0
        %5432 = vmatprep.subr.mxu0 0.0
        %5433 = vmatpush1.msra.mxu0 0.0
        %5434 = vmatprep.subr.mxu0 0.0
        %5435 = vmatpush1.msra.mxu0 0.0
        %5436 = vmatprep.subr.mxu0 0.0
        %5437 = vmatpush1.msra.mxu0 0.0
        %5438 = vmatprep.subr.mxu0 0.0
        %5439 = vmatpush1.msra.mxu0 0.0
        %5440 = vmatprep.subr.mxu0 0.0
        %5441 = vmatpush1.msra.mxu0 0.0
        %5442 = vmatprep.subr.mxu0 0.0
        %5443 = vmatpush1.msra.mxu0 0.0
        %5444 = vmatprep.subr.mxu0 0.0
        %5445 = vmatpush1.msra.mxu0 0.0
        %5446 = vmatprep.subr.mxu0 0.0
        %5447 = vmatpush1.msra.mxu0 0.0
        %5448 = vmatprep.subr.mxu0 0.0
        %5449 = vmatpush1.msra.mxu0 0.0
        %5450 = vmatprep.subr.mxu0 0.0
        %5451 = vmatpush1.msra.mxu0 0.0
        %5452 = vmatprep.subr.mxu0 0.0
        %5453 = vmatpush1.msra.mxu0 0.0
        %5454 = vmatprep.subr.mxu0 0.0
        %5455 = vmatpush1.msra.mxu0 0.0
        %5456 = vmatprep.mubr.f32.mxu0 0.0
        %5457 = vmatmul.mubr.f32.gmra.mrb[0].mxu0 %v5381
        %v5458 = vpop.f32.mrb[0].mxu0
        %v5459 = vadd.f32 0.0, %v5458
        %v5460 = vpop.f32.mrb[0].mxu0
        %v5461 = vadd.f32 0.0, %v5460
        %5462 = vmatprep.mubr.f32.mxu0 0.0
        %5463 = vmatmul.mubr.f32.gmra.mrb[0].mxu0 %v5384
        %v5464 = vpop.f32.mrb[0].mxu0
        %v5465 = vadd.f32 0.0, %v5464
        %v5466 = vpop.f32.mrb[0].mxu0
        %v5467 = vadd.f32 0.0, %v5466
        %5468 = vmatprep.mubr.f32.mxu0 0.0
        %5469 = vmatmul.mubr.f32.gmra.mrb[0].mxu0 %v5387
        %v5470 = vpop.f32.mrb[0].mxu0
        %v5471 = vadd.f32 0.0, %v5470
        %v5472 = vpop.f32.mrb[0].mxu0
        %v5473 = vadd.f32 0.0, %v5472
        %5474 = vmatprep.mubr.f32.mxu0 0.0
        %5475 = vmatmul.mubr.f32.gmra.mrb[0].mxu0 %v5390
        %v5476 = vpop.f32.mrb[0].mxu0
        %v5477 = vadd.f32 0.0, %v5476
        %v5478 = vpop.f32.mrb[0].mxu0
        %v5479 = vadd.f32 0.0, %v5478
        %5480 = vdwg.mxu0
        %5481 = vmatprep.subr.mxu0 0.0
        %5482 = vmatpush1.msra.mxu0 %v5363
        %5483 = vmatprep.subr.mxu0 0.0
        %5484 = vmatpush1.msra.mxu0 %v5369
        %5485 = vmatprep.subr.mxu0 0.0
        %5486 = vmatpush1.msra.mxu0 0.0
        %5487 = vmatprep.subr.mxu0 0.0
        %5488 = vmatpush1.msra.mxu0 0.0
        %5489 = vmatprep.subr.mxu0 0.0
        %5490 = vmatpush1.msra.mxu0 0.0
        %5491 = vmatprep.subr.mxu0 0.0
        %5492 = vmatpush1.msra.mxu0 0.0
        %5493 = vmatprep.subr.mxu0 0.0
        %5494 = vmatpush1.msra.mxu0 0.0
        %5495 = vmatprep.subr.mxu0 0.0
        %5496 = vmatpush1.msra.mxu0 0.0
        %5497 = vmatprep.subr.mxu0 0.0
        %5498 = vmatpush1.msra.mxu0 0.0
        %5499 = vmatprep.subr.mxu0 0.0
        %5500 = vmatpush1.msra.mxu0 0.0
        %5501 = vmatprep.subr.mxu0 0.0
        %5502 = vmatpush1.msra.mxu0 0.0
        %5503 = vmatprep.subr.mxu0 0.0
        %5504 = vmatpush1.msra.mxu0 0.0
        %5505 = vmatprep.subr.mxu0 0.0
        %5506 = vmatpush1.msra.mxu0 0.0
        %5507 = vmatprep.subr.mxu0 0.0
        %5508 = vmatpush1.msra.mxu0 0.0
        %5509 = vmatprep.subr.mxu0 0.0
        %5510 = vmatpush1.msra.mxu0 0.0
        %5511 = vmatprep.subr.mxu0 0.0
        %5512 = vmatpush1.msra.mxu0 0.0
        %5513 = vmatprep.subr.mxu0 0.0
        %5514 = vmatpush1.msra.mxu0 0.0
        %5515 = vmatprep.subr.mxu0 0.0
        %5516 = vmatpush1.msra.mxu0 0.0
        %5517 = vmatprep.subr.mxu0 0.0
        %5518 = vmatpush1.msra.mxu0 0.0
        %5519 = vmatprep.subr.mxu0 0.0
        %5520 = vmatpush1.msra.mxu0 0.0
        %5521 = vmatprep.subr.mxu0 0.0
        %5522 = vmatpush1.msra.mxu0 0.0
        %5523 = vmatprep.subr.mxu0 0.0
        %5524 = vmatpush1.msra.mxu0 0.0
        %5525 = vmatprep.subr.mxu0 0.0
        %5526 = vmatpush1.msra.mxu0 0.0
        %5527 = vmatprep.subr.mxu0 0.0
        %5528 = vmatpush1.msra.mxu0 0.0
        %5529 = vmatprep.subr.mxu0 0.0
        %5530 = vmatpush1.msra.mxu0 0.0
        %5531 = vmatprep.subr.mxu0 0.0
        %5532 = vmatpush1.msra.mxu0 0.0
        %5533 = vmatprep.subr.mxu0 0.0
        %5534 = vmatpush1.msra.mxu0 0.0
        %5535 = vmatprep.subr.mxu0 0.0
        %5536 = vmatpush1.msra.mxu0 0.0
        %5537 = vmatprep.subr.mxu0 0.0
        %5538 = vmatpush1.msra.mxu0 0.0
        %5539 = vmatprep.subr.mxu0 0.0
        %5540 = vmatpush1.msra.mxu0 0.0
        %5541 = vmatprep.subr.mxu0 0.0
        %5542 = vmatpush1.msra.mxu0 0.0
        %5543 = vmatprep.subr.mxu0 0.0
        %5544 = vmatpush1.msra.mxu0 0.0
        %5545 = vmatprep.mubr.f32.mxu0 0.0
        %5546 = vmatmul.mubr.f32.gmra.mrb[0].mxu0 %v5381
        %v5547 = vpop.f32.mrb[0].mxu0
        %v5548 = vadd.f32 0.0, %v5547
        %v5549 = vpop.f32.mrb[0].mxu0
        %5550 = vmatprep.mubr.f32.mxu0 0.0
        %5551 = vmatmul.mubr.f32.gmra.mrb[0].mxu0 %v5384
        %v5552 = vpop.f32.mrb[0].mxu0
        %v5553 = vadd.f32 0.0, %v5552
        %v5554 = vpop.f32.mrb[0].mxu0
        %5555 = vmatprep.mubr.f32.mxu0 0.0
        %5556 = vmatmul.mubr.f32.gmra.mrb[0].mxu0 %v5387
        %v5557 = vpop.f32.mrb[0].mxu0
        %v5558 = vadd.f32 0.0, %v5557
        %v5559 = vpop.f32.mrb[0].mxu0
        %5560 = vmatprep.mubr.f32.mxu0 0.0
        %5561 = vmatmul.mubr.f32.gmra.mrb[0].mxu0 %v5390
        %v5562 = vpop.f32.mrb[0].mxu0
        %v5563 = vadd.f32 0.0, %v5562
        %v5564 = vpop.f32.mrb[0].mxu0
        %5565 = vdwg.mxu0
        %v5566 = vadd.f32 %v5341, %v5459
        %v5567 = vadd.f32 %v5342, %v5461
        %v5568 = vadd.f32 %v5343, %v5548
        %v5569 = vadd.f32 %v5344, %v5465
        %v5570 = vadd.f32 %v5345, %v5467
        %v5571 = vadd.f32 %v5346, %v5553
        %v5572 = vadd.f32 %v5347, %v5471
        %v5573 = vadd.f32 %v5348, %v5473
        %v5574 = vadd.f32 %v5349, %v5558
        %v5575 = vadd.f32 %v5350, %v5477
        %v5576 = vadd.f32 %v5351, %v5479
        %v5577 = vadd.f32 %v5352, %v5563
        %s5578 = scalar_lea.vmem %s6, 256
        %v5579 = vld [vmem:[%s5578] sm:$0xff]
        %v5580 = vld [vmem:[%s5578 + $0x8] sm:$0xff]
        %v5581 = vld [vmem:[%s5578 + $0x10] sm:$0xff]
        %v5582 = vld [vmem:[%s5578 + $0x18] sm:$0xff]
        %5583 = vrot.lane.b32.xlu0 %v3817, 90
        %v5584 = vpop.permute.xlu0 %5583
        %5585 = vrot.lane.b32.xlu0 %v3807, 90
        %v5586 = vpop.permute.xlu0 %5585
        %5587 = vrot.lane.b32.xlu0 %v3819, 90
        %v5588 = vpop.permute.xlu0 %5587
        %5589 = vrot.lane.b32.xlu0 %v3818, 90
        %v5590 = vpop.permute.xlu0 %5589
        %5591 = vrot.lane.b32.xlu0 %v3809, 90
        %v5592 = vpop.permute.xlu0 %5591
        %5593 = vrot.lane.b32.xlu0 %v3820, 90
        %v5594 = vpop.permute.xlu0 %5593
        %v5595 = vsel %vm1834, %v5584, %v5586
        %v5596 = vsel %vm1834, %v5586, %v5588
        %v5597 = vsel %vm1834, %v5590, %v5592
        %v5598 = vsel %vm1834, %v5592, %v5594
        %v5606 = vsel %vm2119, %v5579, 0
        %v5609 = vsel %vm2119, %v5580, 0
        %v5612 = vsel %vm2119, %v5581, 0
        %v5615 = vsel %vm2119, %v5582, 0
        %5617 = vmatprep.subr.mxu0 %v5596
        %5618 = vmatpush1.msra.mxu0 %v5595
        %5619 = vmatprep.subr.mxu0 %v5598
        %5620 = vmatpush1.msra.mxu0 %v5597
        %5621 = vmatprep.subr.mxu0 0.0
        %5622 = vmatpush1.msra.mxu0 0.0
        %5623 = vmatprep.subr.mxu0 0.0
        %5624 = vmatpush1.msra.mxu0 0.0
        %5625 = vmatprep.subr.mxu0 0.0
        %5626 = vmatpush1.msra.mxu0 0.0
        %5627 = vmatprep.subr.mxu0 0.0
        %5628 = vmatpush1.msra.mxu0 0.0
        %5629 = vmatprep.subr.mxu0 0.0
        %5630 = vmatpush1.msra.mxu0 0.0
        %5631 = vmatprep.subr.mxu0 0.0
        %5632 = vmatpush1.msra.mxu0 0.0
        %5633 = vmatprep.subr.mxu0 0.0
        %5634 = vmatpush1.msra.mxu0 0.0
        %5635 = vmatprep.subr.mxu0 0.0
        %5636 = vmatpush1.msra.mxu0 0.0
        %5637 = vmatprep.subr.mxu0 0.0
        %5638 = vmatpush1.msra.mxu0 0.0
        %5639 = vmatprep.subr.mxu0 0.0
        %5640 = vmatpush1.msra.mxu0 0.0
        %5641 = vmatprep.subr.mxu0 0.0
        %5642 = vmatpush1.msra.mxu0 0.0
        %5643 = vmatprep.subr.mxu0 0.0
        %5644 = vmatpush1.msra.mxu0 0.0
        %5645 = vmatprep.subr.mxu0 0.0
        %5646 = vmatpush1.msra.mxu0 0.0
        %5647 = vmatprep.subr.mxu0 0.0
        %5648 = vmatpush1.msra.mxu0 0.0
        %5649 = vmatprep.subr.mxu0 0.0
        %5650 = vmatpush1.msra.mxu0 0.0
        %5651 = vmatprep.subr.mxu0 0.0
        %5652 = vmatpush1.msra.mxu0 0.0
        %5653 = vmatprep.subr.mxu0 0.0
        %5654 = vmatpush1.msra.mxu0 0.0
        %5655 = vmatprep.subr.mxu0 0.0
        %5656 = vmatpush1.msra.mxu0 0.0
        %5657 = vmatprep.subr.mxu0 0.0
        %5658 = vmatpush1.msra.mxu0 0.0
        %5659 = vmatprep.subr.mxu0 0.0
        %5660 = vmatpush1.msra.mxu0 0.0
        %5661 = vmatprep.subr.mxu0 0.0
        %5662 = vmatpush1.msra.mxu0 0.0
        %5663 = vmatprep.subr.mxu0 0.0
        %5664 = vmatpush1.msra.mxu0 0.0
        %5665 = vmatprep.subr.mxu0 0.0
        %5666 = vmatpush1.msra.mxu0 0.0
        %5667 = vmatprep.subr.mxu0 0.0
        %5668 = vmatpush1.msra.mxu0 0.0
        %5669 = vmatprep.subr.mxu0 0.0
        %5670 = vmatpush1.msra.mxu0 0.0
        %5671 = vmatprep.subr.mxu0 0.0
        %5672 = vmatpush1.msra.mxu0 0.0
        %5673 = vmatprep.subr.mxu0 0.0
        %5674 = vmatpush1.msra.mxu0 0.0
        %5675 = vmatprep.subr.mxu0 0.0
        %5676 = vmatpush1.msra.mxu0 0.0
        %5677 = vmatprep.subr.mxu0 0.0
        %5678 = vmatpush1.msra.mxu0 0.0
        %5679 = vmatprep.subr.mxu0 0.0
        %5680 = vmatpush1.msra.mxu0 0.0
        %5681 = vmatprep.mubr.f32.mxu0 0.0
        %5682 = vmatmul.mubr.f32.gmra.mrb[0].mxu0 %v5606
        %v5683 = vpop.f32.mrb[0].mxu0
        %v5684 = vadd.f32 0.0, %v5683
        %v5685 = vpop.f32.mrb[0].mxu0
        %v5686 = vadd.f32 0.0, %v5685
        %5687 = vmatprep.mubr.f32.mxu0 0.0
        %5688 = vmatmul.mubr.f32.gmra.mrb[0].mxu0 %v5609
        %v5689 = vpop.f32.mrb[0].mxu0
        %v5690 = vadd.f32 0.0, %v5689
        %v5691 = vpop.f32.mrb[0].mxu0
        %v5692 = vadd.f32 0.0, %v5691
        %5693 = vmatprep.mubr.f32.mxu0 0.0
        %5694 = vmatmul.mubr.f32.gmra.mrb[0].mxu0 %v5612
        %v5695 = vpop.f32.mrb[0].mxu0
        %v5696 = vadd.f32 0.0, %v5695
        %v5697 = vpop.f32.mrb[0].mxu0
        %v5698 = vadd.f32 0.0, %v5697
        %5699 = vmatprep.mubr.f32.mxu0 0.0
        %5700 = vmatmul.mubr.f32.gmra.mrb[0].mxu0 %v5615
        %v5701 = vpop.f32.mrb[0].mxu0
        %v5702 = vadd.f32 0.0, %v5701
        %v5703 = vpop.f32.mrb[0].mxu0
        %v5704 = vadd.f32 0.0, %v5703
        %5705 = vdwg.mxu0
        %5706 = vmatprep.subr.mxu0 0.0
        %5707 = vmatpush1.msra.mxu0 %v5588
        %5708 = vmatprep.subr.mxu0 0.0
        %5709 = vmatpush1.msra.mxu0 %v5594
        %5710 = vmatprep.subr.mxu0 0.0
        %5711 = vmatpush1.msra.mxu0 0.0
        %5712 = vmatprep.subr.mxu0 0.0
        %5713 = vmatpush1.msra.mxu0 0.0
        %5714 = vmatprep.subr.mxu0 0.0
        %5715 = vmatpush1.msra.mxu0 0.0
        %5716 = vmatprep.subr.mxu0 0.0
        %5717 = vmatpush1.msra.mxu0 0.0
        %5718 = vmatprep.subr.mxu0 0.0
        %5719 = vmatpush1.msra.mxu0 0.0
        %5720 = vmatprep.subr.mxu0 0.0
        %5721 = vmatpush1.msra.mxu0 0.0
        %5722 = vmatprep.subr.mxu0 0.0
        %5723 = vmatpush1.msra.mxu0 0.0
        %5724 = vmatprep.subr.mxu0 0.0
        %5725 = vmatpush1.msra.mxu0 0.0
        %5726 = vmatprep.subr.mxu0 0.0
        %5727 = vmatpush1.msra.mxu0 0.0
        %5728 = vmatprep.subr.mxu0 0.0
        %5729 = vmatpush1.msra.mxu0 0.0
        %5730 = vmatprep.subr.mxu0 0.0
        %5731 = vmatpush1.msra.mxu0 0.0
        %5732 = vmatprep.subr.mxu0 0.0
        %5733 = vmatpush1.msra.mxu0 0.0
        %5734 = vmatprep.subr.mxu0 0.0
        %5735 = vmatpush1.msra.mxu0 0.0
        %5736 = vmatprep.subr.mxu0 0.0
        %5737 = vmatpush1.msra.mxu0 0.0
        %5738 = vmatprep.subr.mxu0 0.0
        %5739 = vmatpush1.msra.mxu0 0.0
        %5740 = vmatprep.subr.mxu0 0.0
        %5741 = vmatpush1.msra.mxu0 0.0
        %5742 = vmatprep.subr.mxu0 0.0
        %5743 = vmatpush1.msra.mxu0 0.0
        %5744 = vmatprep.subr.mxu0 0.0
        %5745 = vmatpush1.msra.mxu0 0.0
        %5746 = vmatprep.subr.mxu0 0.0
        %5747 = vmatpush1.msra.mxu0 0.0
        %5748 = vmatprep.subr.mxu0 0.0
        %5749 = vmatpush1.msra.mxu0 0.0
        %5750 = vmatprep.subr.mxu0 0.0
        %5751 = vmatpush1.msra.mxu0 0.0
        %5752 = vmatprep.subr.mxu0 0.0
        %5753 = vmatpush1.msra.mxu0 0.0
        %5754 = vmatprep.subr.mxu0 0.0
        %5755 = vmatpush1.msra.mxu0 0.0
        %5756 = vmatprep.subr.mxu0 0.0
        %5757 = vmatpush1.msra.mxu0 0.0
        %5758 = vmatprep.subr.mxu0 0.0
        %5759 = vmatpush1.msra.mxu0 0.0
        %5760 = vmatprep.subr.mxu0 0.0
        %5761 = vmatpush1.msra.mxu0 0.0
        %5762 = vmatprep.subr.mxu0 0.0
        %5763 = vmatpush1.msra.mxu0 0.0
        %5764 = vmatprep.subr.mxu0 0.0
        %5765 = vmatpush1.msra.mxu0 0.0
        %5766 = vmatprep.subr.mxu0 0.0
        %5767 = vmatpush1.msra.mxu0 0.0
        %5768 = vmatprep.subr.mxu0 0.0
        %5769 = vmatpush1.msra.mxu0 0.0
        %5770 = vmatprep.mubr.f32.mxu0 0.0
        %5771 = vmatmul.mubr.f32.gmra.mrb[0].mxu0 %v5606
        %v5772 = vpop.f32.mrb[0].mxu0
        %v5773 = vadd.f32 0.0, %v5772
        %v5774 = vpop.f32.mrb[0].mxu0
        %5775 = vmatprep.mubr.f32.mxu0 0.0
        %5776 = vmatmul.mubr.f32.gmra.mrb[0].mxu0 %v5609
        %v5777 = vpop.f32.mrb[0].mxu0
        %v5778 = vadd.f32 0.0, %v5777
        %v5779 = vpop.f32.mrb[0].mxu0
        %5780 = vmatprep.mubr.f32.mxu0 0.0
        %5781 = vmatmul.mubr.f32.gmra.mrb[0].mxu0 %v5612
        %v5782 = vpop.f32.mrb[0].mxu0
        %v5783 = vadd.f32 0.0, %v5782
        %v5784 = vpop.f32.mrb[0].mxu0
        %5785 = vmatprep.mubr.f32.mxu0 0.0
        %5786 = vmatmul.mubr.f32.gmra.mrb[0].mxu0 %v5615
        %v5787 = vpop.f32.mrb[0].mxu0
        %v5788 = vadd.f32 0.0, %v5787
        %v5789 = vpop.f32.mrb[0].mxu0
        %5790 = vdwg.mxu0
        %v5791 = vadd.f32 %v5566, %v5684
        %v5792 = vadd.f32 %v5567, %v5686
        %v5793 = vadd.f32 %v5568, %v5773
        %v5794 = vadd.f32 %v5569, %v5690
        %v5795 = vadd.f32 %v5570, %v5692
        %v5796 = vadd.f32 %v5571, %v5778
        %v5797 = vadd.f32 %v5572, %v5696
        %v5798 = vadd.f32 %v5573, %v5698
        %v5799 = vadd.f32 %v5574, %v5783
        %v5800 = vadd.f32 %v5575, %v5702
        %v5801 = vadd.f32 %v5576, %v5704
        %v5802 = vadd.f32 %v5577, %v5788
        %v5803 = vld [vmem:[%s7] sm:$0xff]
        %v5804 = vld [vmem:[%s7 + $0x8] sm:$0xff]
        %v5805 = vld [vmem:[%s7 + $0x10] sm:$0xff]
        %v5806 = vld [vmem:[%s7 + $0x18] sm:$0xff]
        %5808 = vset.pattern.permute.xlu0 0
        %5809 = vperm.xlu0 %5808, %v5803
        %v5810 = vpop.permute.xlu0 %5809
        %5813 = vset.pattern.permute.xlu0 0
        %5814 = vperm.xlu0 %5813, %v5804
        %v5815 = vpop.permute.xlu0 %5814
        %5818 = vset.pattern.permute.xlu0 0
        %5819 = vperm.xlu0 %5818, %v5805
        %v5820 = vpop.permute.xlu0 %5819
        %5823 = vset.pattern.permute.xlu0 0
        %5824 = vperm.xlu0 %5823, %v5806
        %v5825 = vpop.permute.xlu0 %5824
        %v5827 = vadd.f32 %v5791, %v5810
        %v5828 = vadd.f32 %v5792, %v5810
        %v5829 = vadd.f32 %v5793, %v5810
        %v5830 = vadd.f32 %v5794, %v5815
        %v5831 = vadd.f32 %v5795, %v5815
        %v5832 = vadd.f32 %v5796, %v5815
        %v5833 = vadd.f32 %v5797, %v5820
        %v5834 = vadd.f32 %v5798, %v5820
        %v5835 = vadd.f32 %v5799, %v5820
        %v5836 = vadd.f32 %v5800, %v5825
        %v5837 = vadd.f32 %v5801, %v5825
        %v5838 = vadd.f32 %v5802, %v5825
        %v5839 = vmax.f32 %v5827, 0.0
        %v5840 = vmax.f32 %v5828, 0.0
        %v5841 = vmax.f32 %v5829, 0.0
        %v5842 = vmax.f32 %v5830, 0.0
        %v5843 = vmax.f32 %v5831, 0.0
        %v5844 = vmax.f32 %v5832, 0.0
        %v5845 = vmax.f32 %v5833, 0.0
        %v5846 = vmax.f32 %v5834, 0.0
        %v5847 = vmax.f32 %v5835, 0.0
        %v5848 = vmax.f32 %v5836, 0.0
        %v5849 = vmax.f32 %v5837, 0.0
        %v5850 = vmax.f32 %v5838, 0.0
        %v5851 = vld [vmem:[%s8] sm:$0xff]
        %v5852 = vld [vmem:[%s8 + $0x8] sm:$0xff]
        %v5853 = vld [vmem:[%s8 + $0x10] sm:$0xff]
        %v5854 = vld [vmem:[%s8 + $0x18] sm:$0xff]
        %v5855 = vld [vmem:[%s8 + $0x20] sm:$0xff]
        %v5856 = vld [vmem:[%s8 + $0x28] sm:$0xff]
        %v5857 = vld [vmem:[%s8 + $0x30] sm:$0xff]
        %v5858 = vld [vmem:[%s8 + $0x38] sm:$0xff]
        %v5859 = vld [vmem:[%s8 + $0x40] sm:$0xff]
        %v5860 = vld [vmem:[%s8 + $0x48] sm:$0xff]
        %v5861 = vld [vmem:[%s8 + $0x50] sm:$0xff]
        %v5862 = vld [vmem:[%s8 + $0x58] sm:$0xff]
        %v5863 = vld [vmem:[%s8 + $0x60] sm:$0xff]
        %v5864 = vld [vmem:[%s8 + $0x68] sm:$0xff]
        %v5865 = vld [vmem:[%s8 + $0x70] sm:$0xff]
        %v5866 = vld [vmem:[%s8 + $0x78] sm:$0xff]
        %v5867 = vld [vmem:[%s8 + $0x80] sm:$0xff]
        %v5868 = vld [vmem:[%s8 + $0x88] sm:$0xff]
        %v5869 = vld [vmem:[%s8 + $0x90] sm:$0xff]
        %v5870 = vld [vmem:[%s8 + $0x98] sm:$0xff]
        %v5871 = vld [vmem:[%s8 + $0xa0] sm:$0xff]
        %v5872 = vld [vmem:[%s8 + $0xa8] sm:$0xff]
        %v5873 = vld [vmem:[%s8 + $0xb0] sm:$0xff]
        %v5874 = vld [vmem:[%s8 + $0xb8] sm:$0xff]
        %v5875 = vld [vmem:[%s8 + $0xc0] sm:$0xff]
        %v5876 = vld [vmem:[%s8 + $0xc8] sm:$0xff]
        %v5877 = vld [vmem:[%s8 + $0xd0] sm:$0xff]
        %v5878 = vld [vmem:[%s8 + $0xd8] sm:$0xff]
        %v5879 = vld [vmem:[%s8 + $0xe0] sm:$0xff]
        %v5880 = vld [vmem:[%s8 + $0xe8] sm:$0xff]
        %v5881 = vld [vmem:[%s8 + $0xf0] sm:$0xff]
        %v5882 = vld [vmem:[%s8 + $0xf8] sm:$0xff]
        %v5883 = vld [vmem:[%s8 + $0x100] sm:$0xff]
        %v5884 = vld [vmem:[%s8 + $0x108] sm:$0xff]
        %v5885 = vld [vmem:[%s8 + $0x110] sm:$0xff]
        %v5886 = vld [vmem:[%s8 + $0x118] sm:$0xff]
        %vm5887 = vcmask 261120
        %v5889 = vsel %vm5887, %v5841, 0
        %v5892 = vsel %vm5887, %v5844, 0
        %v5895 = vsel %vm5887, %v5847, 0
        %v5898 = vsel %vm5887, %v5850, 0
        %5900 = vmatprep.subr.mxu0 0.0
        %5901 = vmatpush1.msra.mxu0 %v5851
        %5902 = vmatprep.subr.mxu0 0.0
        %5903 = vmatpush1.msra.mxu0 %v5852
        %5904 = vmatprep.subr.mxu0 0.0
        %5905 = vmatpush1.msra.mxu0 %v5853
        %5906 = vmatprep.subr.mxu0 0.0
        %5907 = vmatpush1.msra.mxu0 %v5854
        %5908 = vmatprep.subr.mxu0 0.0
        %5909 = vmatpush1.msra.mxu0 %v5855
        %5910 = vmatprep.subr.mxu0 0.0
        %5911 = vmatpush1.msra.mxu0 %v5856
        %5912 = vmatprep.subr.mxu0 0.0
        %5913 = vmatpush1.msra.mxu0 %v5857
        %5914 = vmatprep.subr.mxu0 0.0
        %5915 = vmatpush1.msra.mxu0 %v5858
        %5916 = vmatprep.subr.mxu0 0.0
        %5917 = vmatpush1.msra.mxu0 %v5859
        %5918 = vmatprep.subr.mxu0 0.0
        %5919 = vmatpush1.msra.mxu0 %v5860
        %5920 = vmatprep.subr.mxu0 0.0
        %5921 = vmatpush1.msra.mxu0 %v5861
        %5922 = vmatprep.subr.mxu0 0.0
        %5923 = vmatpush1.msra.mxu0 %v5862
        %5924 = vmatprep.subr.mxu0 0.0
        %5925 = vmatpush1.msra.mxu0 %v5863
        %5926 = vmatprep.subr.mxu0 0.0
        %5927 = vmatpush1.msra.mxu0 %v5864
        %5928 = vmatprep.subr.mxu0 0.0
        %5929 = vmatpush1.msra.mxu0 %v5865
        %5930 = vmatprep.subr.mxu0 0.0
        %5931 = vmatpush1.msra.mxu0 %v5866
        %5932 = vmatprep.subr.mxu0 0.0
        %5933 = vmatpush1.msra.mxu0 %v5867
        %5934 = vmatprep.subr.mxu0 0.0
        %5935 = vmatpush1.msra.mxu0 %v5868
        %5936 = vmatprep.subr.mxu0 0.0
        %5937 = vmatpush1.msra.mxu0 %v5869
        %5938 = vmatprep.subr.mxu0 0.0
        %5939 = vmatpush1.msra.mxu0 %v5870
        %5940 = vmatprep.subr.mxu0 0.0
        %5941 = vmatpush1.msra.mxu0 %v5871
        %5942 = vmatprep.subr.mxu0 0.0
        %5943 = vmatpush1.msra.mxu0 %v5872
        %5944 = vmatprep.subr.mxu0 0.0
        %5945 = vmatpush1.msra.mxu0 %v5873
        %5946 = vmatprep.subr.mxu0 0.0
        %5947 = vmatpush1.msra.mxu0 %v5874
        %5948 = vmatprep.subr.mxu0 0.0
        %5949 = vmatpush1.msra.mxu0 %v5875
        %5950 = vmatprep.subr.mxu0 0.0
        %5951 = vmatpush1.msra.mxu0 %v5876
        %5952 = vmatprep.subr.mxu0 0.0
        %5953 = vmatpush1.msra.mxu0 %v5877
        %5954 = vmatprep.subr.mxu0 0.0
        %5955 = vmatpush1.msra.mxu0 %v5878
        %5956 = vmatprep.subr.mxu0 0.0
        %5957 = vmatpush1.msra.mxu0 %v5879
        %5958 = vmatprep.subr.mxu0 0.0
        %5959 = vmatpush1.msra.mxu0 %v5880
        %5960 = vmatprep.subr.mxu0 0.0
        %5961 = vmatpush1.msra.mxu0 %v5881
        %5962 = vmatprep.subr.mxu0 0.0
        %5963 = vmatpush1.msra.mxu0 %v5882
        %5964 = vmatprep.mubr.f32.mxu0 %v5840
        %5965 = vmatmul.mubr.f32.gmra.mrb[0].mxu0 %v5839
        %v5966 = vpop.f32.mrb[0].mxu0
        %v5967 = vadd.f32 0.0, %v5966
        %v5968 = vpop.f32.mrb[0].mxu0
        %5969 = vmatprep.mubr.f32.mxu0 %v5843
        %5970 = vmatmul.mubr.f32.gmra.mrb[0].mxu0 %v5842
        %v5971 = vpop.f32.mrb[0].mxu0
        %v5972 = vadd.f32 0.0, %v5971
        %v5973 = vpop.f32.mrb[0].mxu0
        %5974 = vmatprep.mubr.f32.mxu0 %v5846
        %5975 = vmatmul.mubr.f32.gmra.mrb[0].mxu0 %v5845
        %v5976 = vpop.f32.mrb[0].mxu0
        %v5977 = vadd.f32 0.0, %v5976
        %v5978 = vpop.f32.mrb[0].mxu0
        %5979 = vmatprep.mubr.f32.mxu0 %v5849
        %5980 = vmatmul.mubr.f32.gmra.mrb[0].mxu0 %v5848
        %v5981 = vpop.f32.mrb[0].mxu0
        %v5982 = vadd.f32 0.0, %v5981
        %v5983 = vpop.f32.mrb[0].mxu0
        %5984 = vdwg.mxu0
        %5985 = vmatprep.subr.mxu0 0.0
        %5986 = vmatpush1.msra.mxu0 %v5883
        %5987 = vmatprep.subr.mxu0 0.0
        %5988 = vmatpush1.msra.mxu0 %v5884
        %5989 = vmatprep.subr.mxu0 0.0
        %5990 = vmatpush1.msra.mxu0 %v5885
        %5991 = vmatprep.subr.mxu0 0.0
        %5992 = vmatpush1.msra.mxu0 %v5886
        %5993 = vmatprep.subr.mxu0 0.0
        %5994 = vmatpush1.msra.mxu0 0.0
        %5995 = vmatprep.subr.mxu0 0.0
        %5996 = vmatpush1.msra.mxu0 0.0
        %5997 = vmatprep.subr.mxu0 0.0
        %5998 = vmatpush1.msra.mxu0 0.0
        %5999 = vmatprep.subr.mxu0 0.0
        %6000 = vmatpush1.msra.mxu0 0.0
        %6001 = vmatprep.subr.mxu0 0.0
        %6002 = vmatpush1.msra.mxu0 0.0
        %6003 = vmatprep.subr.mxu0 0.0
        %6004 = vmatpush1.msra.mxu0 0.0
        %6005 = vmatprep.subr.mxu0 0.0
        %6006 = vmatpush1.msra.mxu0 0.0
        %6007 = vmatprep.subr.mxu0 0.0
        %6008 = vmatpush1.msra.mxu0 0.0
        %6009 = vmatprep.subr.mxu0 0.0
        %6010 = vmatpush1.msra.mxu0 0.0
        %6011 = vmatprep.subr.mxu0 0.0
        %6012 = vmatpush1.msra.mxu0 0.0
        %6013 = vmatprep.subr.mxu0 0.0
        %6014 = vmatpush1.msra.mxu0 0.0
        %6015 = vmatprep.subr.mxu0 0.0
        %6016 = vmatpush1.msra.mxu0 0.0
        %6017 = vmatprep.subr.mxu0 0.0
        %6018 = vmatpush1.msra.mxu0 0.0
        %6019 = vmatprep.subr.mxu0 0.0
        %6020 = vmatpush1.msra.mxu0 0.0
        %6021 = vmatprep.subr.mxu0 0.0
        %6022 = vmatpush1.msra.mxu0 0.0
        %6023 = vmatprep.subr.mxu0 0.0
        %6024 = vmatpush1.msra.mxu0 0.0
        %6025 = vmatprep.subr.mxu0 0.0
        %6026 = vmatpush1.msra.mxu0 0.0
        %6027 = vmatprep.subr.mxu0 0.0
        %6028 = vmatpush1.msra.mxu0 0.0
        %6029 = vmatprep.subr.mxu0 0.0
        %6030 = vmatpush1.msra.mxu0 0.0
        %6031 = vmatprep.subr.mxu0 0.0
        %6032 = vmatpush1.msra.mxu0 0.0
        %6033 = vmatprep.subr.mxu0 0.0
        %6034 = vmatpush1.msra.mxu0 0.0
        %6035 = vmatprep.subr.mxu0 0.0
        %6036 = vmatpush1.msra.mxu0 0.0
        %6037 = vmatprep.subr.mxu0 0.0
        %6038 = vmatpush1.msra.mxu0 0.0
        %6039 = vmatprep.subr.mxu0 0.0
        %6040 = vmatpush1.msra.mxu0 0.0
        %6041 = vmatprep.subr.mxu0 0.0
        %6042 = vmatpush1.msra.mxu0 0.0
        %6043 = vmatprep.subr.mxu0 0.0
        %6044 = vmatpush1.msra.mxu0 0.0
        %6045 = vmatprep.subr.mxu0 0.0
        %6046 = vmatpush1.msra.mxu0 0.0
        %6047 = vmatprep.subr.mxu0 0.0
        %6048 = vmatpush1.msra.mxu0 0.0
        %6049 = vmatprep.mubr.f32.mxu0 0.0
        %6050 = vmatmul.mubr.f32.gmra.mrb[0].mxu0 %v5889
        %v6051 = vpop.f32.mrb[0].mxu0
        %v6052 = vadd.f32 %v5967, %v6051
        %v6053 = vpop.f32.mrb[0].mxu0
        %6054 = vmatprep.mubr.f32.mxu0 0.0
        %6055 = vmatmul.mubr.f32.gmra.mrb[0].mxu0 %v5892
        %v6056 = vpop.f32.mrb[0].mxu0
        %v6057 = vadd.f32 %v5972, %v6056
        %v6058 = vpop.f32.mrb[0].mxu0
        %6059 = vmatprep.mubr.f32.mxu0 0.0
        %6060 = vmatmul.mubr.f32.gmra.mrb[0].mxu0 %v5895
        %v6061 = vpop.f32.mrb[0].mxu0
        %v6062 = vadd.f32 %v5977, %v6061
        %v6063 = vpop.f32.mrb[0].mxu0
        %6064 = vmatprep.mubr.f32.mxu0 0.0
        %6065 = vmatmul.mubr.f32.gmra.mrb[0].mxu0 %v5898
        %v6066 = vpop.f32.mrb[0].mxu0
        %v6067 = vadd.f32 %v5982, %v6066
        %v6068 = vpop.f32.mrb[0].mxu0
        %6069 = vdwg.mxu0
        %v6070 = vld [vmem:[%s9] sm:$0xff]
        %v6071 = vld [vmem:[%s9 + $0x8] sm:$0xff]
        %v6072 = vld [vmem:[%s9 + $0x10] sm:$0xff]
        %v6073 = vld [vmem:[%s9 + $0x18] sm:$0xff]
        %v6074 = vmul.f32 %v6070, %v6052
        %v6075 = vmul.f32 %v6071, %v6057
        %v6076 = vmul.f32 %v6072, %v6062
        %v6077 = vmul.f32 %v6073, %v6067
        %vm6078 = vcmask 523264
        %v6079 = vsel %vm6078, %v6074, 0.0
        %6080 = vadd.xlane.f32.xlu0 %v6079
        %v6081 = vpop.xlane.xlu0 %6080
        %v6082 = vsel %vm6078, %v6075, 0.0
        %6083 = vadd.xlane.f32.xlu0 %v6082
        %v6084 = vpop.xlane.xlu0 %6083
        %v6085 = vsel %vm6078, %v6076, 0.0
        %6086 = vadd.xlane.f32.xlu0 %v6085
        %v6087 = vpop.xlane.xlu0 %6086
        %v6088 = vsel %vm6078, %v6077, 0.0
        %6089 = vadd.xlane.f32.xlu0 %v6088
        %v6090 = vpop.xlane.xlu0 %6089
        %s6091 = scalar_lea.vmem %s9, 32
        %v6092 = vld [vmem:[%s6091] sm:$0xff]
        %v6093 = vld [vmem:[%s6091 + $0x8] sm:$0xff]
        %v6094 = vld [vmem:[%s6091 + $0x10] sm:$0xff]
        %v6095 = vld [vmem:[%s6091 + $0x18] sm:$0xff]
        %v6096 = vmul.f32 %v6092, %v6052
        %v6097 = vmul.f32 %v6093, %v6057
        %v6098 = vmul.f32 %v6094, %v6062
        %v6099 = vmul.f32 %v6095, %v6067
        %v6100 = vsel %vm6078, %v6096, 0.0
        %6101 = vadd.xlane.f32.xlu0 %v6100
        %v6102 = vpop.xlane.xlu0 %6101
        %v6103 = vsel %vm6078, %v6097, 0.0
        %6104 = vadd.xlane.f32.xlu0 %v6103
        %v6105 = vpop.xlane.xlu0 %6104
        %v6106 = vsel %vm6078, %v6098, 0.0
        %6107 = vadd.xlane.f32.xlu0 %v6106
        %v6108 = vpop.xlane.xlu0 %6107
        %v6109 = vsel %vm6078, %v6099, 0.0
        %6110 = vadd.xlane.f32.xlu0 %v6109
        %v6111 = vpop.xlane.xlu0 %6110
        %s6112 = scalar_lea.vmem %s9, 64
        %v6113 = vld [vmem:[%s6112] sm:$0xff]
        %v6114 = vld [vmem:[%s6112 + $0x8] sm:$0xff]
        %v6115 = vld [vmem:[%s6112 + $0x10] sm:$0xff]
        %v6116 = vld [vmem:[%s6112 + $0x18] sm:$0xff]
        %v6117 = vmul.f32 %v6113, %v6052
        %v6118 = vmul.f32 %v6114, %v6057
        %v6119 = vmul.f32 %v6115, %v6062
        %v6120 = vmul.f32 %v6116, %v6067
        %v6121 = vsel %vm6078, %v6117, 0.0
        %6122 = vadd.xlane.f32.xlu0 %v6121
        %v6123 = vpop.xlane.xlu0 %6122
        %v6124 = vsel %vm6078, %v6118, 0.0
        %6125 = vadd.xlane.f32.xlu0 %v6124
        %v6126 = vpop.xlane.xlu0 %6125
        %v6127 = vsel %vm6078, %v6119, 0.0
        %6128 = vadd.xlane.f32.xlu0 %v6127
        %v6129 = vpop.xlane.xlu0 %6128
        %v6130 = vsel %vm6078, %v6120, 0.0
        %6131 = vadd.xlane.f32.xlu0 %v6130
        %v6132 = vpop.xlane.xlu0 %6131
        %s6133 = scalar_lea.vmem %s9, 96
        %v6134 = vld [vmem:[%s6133] sm:$0xff]
        %v6135 = vld [vmem:[%s6133 + $0x8] sm:$0xff]
        %v6136 = vld [vmem:[%s6133 + $0x10] sm:$0xff]
        %v6137 = vld [vmem:[%s6133 + $0x18] sm:$0xff]
        %v6138 = vmul.f32 %v6134, %v6052
        %v6139 = vmul.f32 %v6135, %v6057
        %v6140 = vmul.f32 %v6136, %v6062
        %v6141 = vmul.f32 %v6137, %v6067
        %v6142 = vsel %vm6078, %v6138, 0.0
        %6143 = vadd.xlane.f32.xlu0 %v6142
        %v6144 = vpop.xlane.xlu0 %6143
        %v6145 = vsel %vm6078, %v6139, 0.0
        %6146 = vadd.xlane.f32.xlu0 %v6145
        %v6147 = vpop.xlane.xlu0 %6146
        %v6148 = vsel %vm6078, %v6140, 0.0
        %6149 = vadd.xlane.f32.xlu0 %v6148
        %v6150 = vpop.xlane.xlu0 %6149
        %v6151 = vsel %vm6078, %v6141, 0.0
        %6152 = vadd.xlane.f32.xlu0 %v6151
        %v6153 = vpop.xlane.xlu0 %6152
        %s6154 = scalar_lea.vmem %s9, 128
        %v6155 = vld [vmem:[%s6154] sm:$0xff]
        %v6156 = vld [vmem:[%s6154 + $0x8] sm:$0xff]
        %v6157 = vld [vmem:[%s6154 + $0x10] sm:$0xff]
        %v6158 = vld [vmem:[%s6154 + $0x18] sm:$0xff]
        %v6159 = vmul.f32 %v6155, %v6052
        %v6160 = vmul.f32 %v6156, %v6057
        %v6161 = vmul.f32 %v6157, %v6062
        %v6162 = vmul.f32 %v6158, %v6067
        %v6163 = vsel %vm6078, %v6159, 0.0
        %6164 = vadd.xlane.f32.xlu0 %v6163
        %v6165 = vpop.xlane.xlu0 %6164
        %v6166 = vsel %vm6078, %v6160, 0.0
        %6167 = vadd.xlane.f32.xlu0 %v6166
        %v6168 = vpop.xlane.xlu0 %6167
        %v6169 = vsel %vm6078, %v6161, 0.0
        %6170 = vadd.xlane.f32.xlu0 %v6169
        %v6171 = vpop.xlane.xlu0 %6170
        %v6172 = vsel %vm6078, %v6162, 0.0
        %6173 = vadd.xlane.f32.xlu0 %v6172
        %v6174 = vpop.xlane.xlu0 %6173
        %s6175 = scalar_lea.vmem %s9, 160
        %v6176 = vld [vmem:[%s6175] sm:$0xff]
        %v6177 = vld [vmem:[%s6175 + $0x8] sm:$0xff]
        %v6178 = vld [vmem:[%s6175 + $0x10] sm:$0xff]
        %v6179 = vld [vmem:[%s6175 + $0x18] sm:$0xff]
        %v6180 = vmul.f32 %v6176, %v6052
        %v6181 = vmul.f32 %v6177, %v6057
        %v6182 = vmul.f32 %v6178, %v6062
        %v6183 = vmul.f32 %v6179, %v6067
        %v6184 = vsel %vm6078, %v6180, 0.0
        %6185 = vadd.xlane.f32.xlu0 %v6184
        %v6186 = vpop.xlane.xlu0 %6185
        %v6187 = vsel %vm6078, %v6181, 0.0
        %6188 = vadd.xlane.f32.xlu0 %v6187
        %v6189 = vpop.xlane.xlu0 %6188
        %v6190 = vsel %vm6078, %v6182, 0.0
        %6191 = vadd.xlane.f32.xlu0 %v6190
        %v6192 = vpop.xlane.xlu0 %6191
        %v6193 = vsel %vm6078, %v6183, 0.0
        %6194 = vadd.xlane.f32.xlu0 %v6193
        %v6195 = vpop.xlane.xlu0 %6194
        %s6196 = scalar_lea.vmem %s9, 192
        %v6197 = vld [vmem:[%s6196] sm:$0xff]
        %v6198 = vld [vmem:[%s6196 + $0x8] sm:$0xff]
        %v6199 = vld [vmem:[%s6196 + $0x10] sm:$0xff]
        %v6200 = vld [vmem:[%s6196 + $0x18] sm:$0xff]
        %v6201 = vmul.f32 %v6197, %v6052
        %v6202 = vmul.f32 %v6198, %v6057
        %v6203 = vmul.f32 %v6199, %v6062
        %v6204 = vmul.f32 %v6200, %v6067
        %v6205 = vsel %vm6078, %v6201, 0.0
        %6206 = vadd.xlane.f32.xlu0 %v6205
        %v6207 = vpop.xlane.xlu0 %6206
        %v6208 = vsel %vm6078, %v6202, 0.0
        %6209 = vadd.xlane.f32.xlu0 %v6208
        %v6210 = vpop.xlane.xlu0 %6209
        %v6211 = vsel %vm6078, %v6203, 0.0
        %6212 = vadd.xlane.f32.xlu0 %v6211
        %v6213 = vpop.xlane.xlu0 %6212
        %v6214 = vsel %vm6078, %v6204, 0.0
        %6215 = vadd.xlane.f32.xlu0 %v6214
        %v6216 = vpop.xlane.xlu0 %6215
        %s6217 = scalar_lea.vmem %s9, 224
        %v6218 = vld [vmem:[%s6217] sm:$0xff]
        %v6219 = vld [vmem:[%s6217 + $0x8] sm:$0xff]
        %v6220 = vld [vmem:[%s6217 + $0x10] sm:$0xff]
        %v6221 = vld [vmem:[%s6217 + $0x18] sm:$0xff]
        %v6222 = vmul.f32 %v6218, %v6052
        %v6223 = vmul.f32 %v6219, %v6057
        %v6224 = vmul.f32 %v6220, %v6062
        %v6225 = vmul.f32 %v6221, %v6067
        %v6226 = vsel %vm6078, %v6222, 0.0
        %6227 = vadd.xlane.f32.xlu0 %v6226
        %v6228 = vpop.xlane.xlu0 %6227
        %v6229 = vsel %vm6078, %v6223, 0.0
        %6230 = vadd.xlane.f32.xlu0 %v6229
        %v6231 = vpop.xlane.xlu0 %6230
        %v6232 = vsel %vm6078, %v6224, 0.0
        %6233 = vadd.xlane.f32.xlu0 %v6232
        %v6234 = vpop.xlane.xlu0 %6233
        %v6235 = vsel %vm6078, %v6225, 0.0
        %6236 = vadd.xlane.f32.xlu0 %v6235
        %v6237 = vpop.xlane.xlu0 %6236
        %s6238 = scalar_lea.vmem %s9, 256
        %v6239 = vld [vmem:[%s6238] sm:$0xff]
        %v6240 = vld [vmem:[%s6238 + $0x8] sm:$0xff]
        %v6241 = vld [vmem:[%s6238 + $0x10] sm:$0xff]
        %v6242 = vld [vmem:[%s6238 + $0x18] sm:$0xff]
        %v6243 = vmul.f32 %v6239, %v6052
        %v6244 = vmul.f32 %v6240, %v6057
        %v6245 = vmul.f32 %v6241, %v6062
        %v6246 = vmul.f32 %v6242, %v6067
        %v6247 = vsel %vm6078, %v6243, 0.0
        %6248 = vadd.xlane.f32.xlu0 %v6247
        %v6249 = vpop.xlane.xlu0 %6248
        %v6250 = vsel %vm6078, %v6244, 0.0
        %6251 = vadd.xlane.f32.xlu0 %v6250
        %v6252 = vpop.xlane.xlu0 %6251
        %v6253 = vsel %vm6078, %v6245, 0.0
        %6254 = vadd.xlane.f32.xlu0 %v6253
        %v6255 = vpop.xlane.xlu0 %6254
        %v6256 = vsel %vm6078, %v6246, 0.0
        %6257 = vadd.xlane.f32.xlu0 %v6256
        %v6258 = vpop.xlane.xlu0 %6257
        %s6259 = scalar_lea.vmem %s9, 288
        %v6260 = vld [vmem:[%s6259] sm:$0xff]
        %v6261 = vld [vmem:[%s6259 + $0x8] sm:$0xff]
        %v6262 = vld [vmem:[%s6259 + $0x10] sm:$0xff]
        %v6263 = vld [vmem:[%s6259 + $0x18] sm:$0xff]
        %v6264 = vmul.f32 %v6260, %v6052
        %v6265 = vmul.f32 %v6261, %v6057
        %v6266 = vmul.f32 %v6262, %v6062
        %v6267 = vmul.f32 %v6263, %v6067
        %v6268 = vsel %vm6078, %v6264, 0.0
        %6269 = vadd.xlane.f32.xlu0 %v6268
        %v6270 = vpop.xlane.xlu0 %6269
        %v6271 = vsel %vm6078, %v6265, 0.0
        %6272 = vadd.xlane.f32.xlu0 %v6271
        %v6273 = vpop.xlane.xlu0 %6272
        %v6274 = vsel %vm6078, %v6266, 0.0
        %6275 = vadd.xlane.f32.xlu0 %v6274
        %v6276 = vpop.xlane.xlu0 %6275
        %v6277 = vsel %vm6078, %v6267, 0.0
        %6278 = vadd.xlane.f32.xlu0 %v6277
        %v6279 = vpop.xlane.xlu0 %6278
        %vm6280 = vcmask 7168
        %v6281 = vsel %vm6280, %v6081, %v6102
        %v6282 = vsel %vm6280, %v6084, %v6105
        %v6283 = vsel %vm6280, %v6087, %v6108
        %v6284 = vsel %vm6280, %v6090, %v6111
        %vm6285 = vcmask 15360
        %v6286 = vsel %vm6285, %v6281, %v6123
        %v6287 = vsel %vm6285, %v6282, %v6126
        %v6288 = vsel %vm6285, %v6283, %v6129
        %v6289 = vsel %vm6285, %v6284, %v6132
        %v6290 = vsel %vm403, %v6286, %v6144
        %v6291 = vsel %vm403, %v6287, %v6147
        %v6292 = vsel %vm403, %v6288, %v6150
        %v6293 = vsel %vm403, %v6289, %v6153
        %vm6294 = vcmask 31744
        %v6295 = vsel %vm6294, %v6290, %v6165
        %v6296 = vsel %vm6294, %v6291, %v6168
        %v6297 = vsel %vm6294, %v6292, %v6171
        %v6298 = vsel %vm6294, %v6293, %v6174
        %vm6299 = vcmask 39936
        %v6300 = vsel %vm6299, %v6295, %v6186
        %v6301 = vsel %vm6299, %v6296, %v6189
        %v6302 = vsel %vm6299, %v6297, %v6192
        %v6303 = vsel %vm6299, %v6298, %v6195
        %vm6304 = vcmask 48128
        %v6305 = vsel %vm6304, %v6300, %v6207
        %v6306 = vsel %vm6304, %v6301, %v6210
        %v6307 = vsel %vm6304, %v6302, %v6213
        %v6308 = vsel %vm6304, %v6303, %v6216
        %vm6309 = vcmask 56320
        %v6310 = vsel %vm6309, %v6305, %v6228
        %v6311 = vsel %vm6309, %v6306, %v6231
        %v6312 = vsel %vm6309, %v6307, %v6234
        %v6313 = vsel %vm6309, %v6308, %v6237
        %vm6314 = vcmask 64512
        %v6315 = vsel %vm6314, %v6310, %v6249
        %v6316 = vsel %vm6314, %v6311, %v6252
        %v6317 = vsel %vm6314, %v6312, %v6255
        %v6318 = vsel %vm6314, %v6313, %v6258
        %vm6319 = vcmask 72704
        %v6320 = vsel %vm6319, %v6315, %v6270
        %v6321 = vsel %vm6319, %v6316, %v6273
        %v6322 = vsel %vm6319, %v6317, %v6276
        %v6323 = vsel %vm6319, %v6318, %v6279
        %vm6324 = vcmask 80896
        %v6325 = vsel %vm6324, %v6320, 0.0
        %v6326 = vsel %vm6324, %v6321, 0.0
        %v6327 = vadd.f32 %v6325, %v6326
        %v6328 = vsel %vm6324, %v6322, 0.0
        %v6329 = vadd.f32 %v6327, %v6328
        %v6330 = vsel %vm6324, %v6323, 0.0
        %v6331 = vadd.f32 %v6329, %v6330
        %v6332 = vrot.slane %v6331, 4
        %v6333 = vadd.f32 %v6331, %v6332
        %v6334 = vrot.slane %v6333, 2
        %v6335 = vadd.f32 %v6333, %v6334
        %v6336 = vrot.slane %v6335, 1
        %v6337 = vadd.f32 %v6335, %v6336
        %v6338 = vld [vmem:[%s10] sm:$0x1]
        %v6339 = vadd.f32 %v6337, %v6338
        %vm6340 = vcmask 73728
        %6341 = vst.msk [vmem:[%s378] sm:$0x1] %vm6340, %v6339
        %s6342 = sand.u32 %s269, 1
        %s6343 = scalar_lea.sflag [#allocation3], %s6342
        %s6344 = sand.u32 %s269, 1
        %s6345 = scalar_lea.vmem [#allocation2], %s6344
        // Predicated region
        $region65: #{simple_vision_model.1} parent=63 // pred_check
          %p6346 = pneg %p279
        $region66: #{simple_vision_model.1} parent=63 // pred_check_branch
          %6348 = sbr.rel (%p6346) target = $region68
        $region67: #{simple_vision_model.1} parent=63 // pred_region
          %s6350 = ssub.s32 16, 16
          %6351 = vsyncadd %s6343, %s6350
          %s6352 = smul.addr %s25, 16
          %s6353 = scalar_lea.hbm %s11, %s6352
          %s6355 = sshll.u32 %s6345, 4
          %s6356 = int_to_ptr.vmem [resolvable:$true] %s6355
          %6358 = dma.vmem_to_hbm [thread:$0]  %s6356, 16, %s6353, %s6343
        $region68: #{simple_vision_model.1} parent=63 // pred_fallthru
          _
      $region64: #{simple_vision_model.1} parent=5 // pred_fallthru
        _
      %p6359 = scmp.le.s32.totalorder 2, %s20
      // Predicated region
      $region69: #{simple_vision_model.1} parent=5 // pred_check
        %p6360 = pneg %p6359
      $region70: #{simple_vision_model.1} parent=5 // pred_check_branch
        %6362 = sbr.rel (%p6360) target = $region72
      $region71: #{simple_vision_model.1} parent=5 // pred_region
        %s6363 = ssub.s32 %s20, 2
        // Predicated region
        $region73: #{simple_vision_model.1} parent=71 // pred_check
          %p6364 = pneg %p285
        $region74: #{simple_vision_model.1} parent=71 // pred_check_branch
          %6366 = sbr.rel (%p6364) target = $region76
        $region75: #{simple_vision_model.1} parent=71 // pred_region
          %s6367 = sand.u32 %s270, 1
          %s6368 = scalar_lea.sflag [#allocation3], %s6367
          %s6369 = sand.u32 %s270, 1
          %s6370 = scalar_lea.vmem [#allocation2], %s6369
          %6371 = dma.done %s6368, 16
        $region76: #{simple_vision_model.1} parent=71 // pred_fallthru
          _
      $region72: #{simple_vision_model.1} parent=5 // pred_fallthru
        _
    $region6: #{simple_vision_model.1} parent=1 // loop_footer
      %s24 = sadd.s32 1, %s20
    $region7: #{simple_vision_model.1} parent=1 // loop_footer_branch
      %19 = sbr.rel target = $region3
    $region8: #{simple_vision_model.1} parent=1 // loop_exit
      _
    %6372 = vsyncpa [#allocation3], 1
    %s6373 = scalar_lea.sflag [#allocation3], 1
    %6374 = vsyncpa %s6373, 1

</llo_original>
